<compile_context>
chip_gen: v6e
topology: v6e:2x2x1
jax: 0.10.0
libtpu: 0.0.40
codegen_flags: <defaults>
</compile_context>

<pallas_src>
import numpy as np
import jax
import jax.numpy as jnp
from jax.experimental import pallas as pl
from jax.experimental.pallas import tpu as pltpu

# ---------------- configuration (ViT defaults) ----------------
IMAGE = 25          # image_size
PATCH = 5           # patch_size
CHANNELS = 3
DIM = 64
HEADS = 8
DIM_HEAD = 64
MLP_DIM = 64
GH = HEADS          # global MultiheadAttention heads
GDH = DIM // HEADS  # global head dim = 8 (zero-padded to DIM_HEAD in prep)
HP = IMAGE // PATCH
WP = IMAGE // PATCH
N = HP * WP                           # 25 patches per image
N_PAD = 32                            # tokens padded to a sublane multiple
PATCH_DIM = CHANNELS * PATCH * PATCH  # 75
INNER = HEADS * DIM_HEAD              # 512
EPS = 1e-5
OUT_HW = IMAGE * IMAGE                # 625

# packed small-parameter table: 16 rows x 128 lanes (f32)
SP_W = 128
ROW_LN_P1 = 0    # rows 0,1  : LN(patch_dim) gamma/beta
ROW_LN_P2 = 2    # rows 2,3  : LN(dim) gamma/beta (patch embed)
ROW_B_PE = 4     # patch-embedding bias
ROW_LN_A = 5     # rows 5,6  : attention LN
ROW_B_AO = 7     # attention out-proj bias
ROW_LN_F = 8     # rows 8,9  : feed-forward LN
ROW_B_F1 = 10
ROW_B_F2 = 11
ROW_B_GOUT = 12  # global MHA out-proj bias
ROW_LN_FIN = 13  # rows 13,14: final transformer LN
SP_ROWS = 16


# ---------------- in-kernel helpers ----------------
def _layernorm(x, gamma, beta):
    mu = jnp.mean(x, axis=-1, keepdims=True)
    var = jnp.mean((x - mu) ** 2, axis=-1, keepdims=True)
    return (x - mu) * jax.lax.rsqrt(var + EPS) * gamma + beta


def _ln_params(sp, row, width):
    return sp[row:row + 1, :width], sp[row + 1:row + 2, :width]


def _softmax(x):
    m = jnp.max(x, axis=-1, keepdims=True)
    e = jnp.exp(x - m)
    return e * pl.reciprocal(jnp.sum(e, axis=-1, keepdims=True), approx=True)


def _mha_block(qkv_ref, key_mask, w_out_ref, wo_off, bt):
    """Per-batch-element multi-head attention with fused out-projection.

    qkv_ref: VMEM ref (bt*N_PAD, 3*INNER) bf16, layout [q | k | v], 64-wide
    head slots (global MHA heads are zero-padded 8->64); Q is pre-scaled.
    key_mask: (1, 1, N_PAD) additive bias masking padded key positions.
    w_out_ref: (2*INNER, DIM) bf16; wo_off selects local (0) or global (INNER)
    out-projection rows.  Returns the (bt*N_PAD, DIM) f32 projected output.
    """
    out = None
    for hh in range(HEADS):
        s = hh * DIM_HEAD
        qh = qkv_ref[:, s:s + DIM_HEAD].reshape(bt, N_PAD, DIM_HEAD)
        kh = qkv_ref[:, INNER + s:INNER + s + DIM_HEAD].reshape(bt, N_PAD, DIM_HEAD)
        vh = qkv_ref[:, 2 * INNER + s:2 * INNER + s + DIM_HEAD].reshape(bt, N_PAD, DIM_HEAD)
        dots = jax.lax.dot_general(qh, kh, (((2,), (2,)), ((0,), (0,))),
                                   preferred_element_type=jnp.float32)   # (bt,32,32)
        attn = _softmax(dots + key_mask)
        oh = jax.lax.dot_general(attn.astype(jnp.bfloat16), vh,
                                 (((2,), (1,)), ((0,), (0,))),
                                 preferred_element_type=jnp.float32)     # (bt,32,hd)
        oh = oh.reshape(bt * N_PAD, DIM_HEAD).astype(jnp.bfloat16)
        c = jnp.dot(oh, w_out_ref[wo_off + s:wo_off + s + DIM_HEAD, :],
                    preferred_element_type=jnp.float32)                  # (R, DIM)
        out = c if out is None else out + c
    return out


# ---------------- main transformer kernel (BT batch elements per step) ------
def vit_kernel(x_ref, pos_ref, sp_ref, bgin_ref,
               w_pe_ref, w_in_ref, w_out_ref, w_ff_ref,
               out_ref, qkv_scr):
    bf16 = jnp.bfloat16
    f32 = jnp.float32
    sp = sp_ref[...]                                   # (16, 128) f32
    bt = x_ref.shape[0] // N_PAD

    # key-padding mask (compile-time constant; real tokens are keys 0..N-1)
    key_ids = jax.lax.broadcasted_iota(jnp.int32, (1, 1, N_PAD), 2)
    key_mask = jnp.where(key_ids < N, jnp.float32(0.0), jnp.float32(-1e30))

    # ---- patch embedding: LN -> Linear -> LN, + positional embedding ----
    g, b = _ln_params(sp, ROW_LN_P1, PATCH_DIM)
    h = _layernorm(x_ref[...], g, b)                   # (R, PATCH_DIM) f32
    h = jnp.dot(h.astype(bf16), w_pe_ref[...], preferred_element_type=f32)
    h = h + sp[ROW_B_PE:ROW_B_PE + 1, :DIM]
    g, b = _ln_params(sp, ROW_LN_P2, DIM)
    h = _layernorm(h, g, b)
    h = h + pos_ref[...]                               # emb_dropout: identity

    # ---- local multi-head attention + residual ----
    g, b = _ln_params(sp, ROW_LN_A, DIM)
    a = _layernorm(h, g, b)
    qkv_scr[...] = jnp.dot(a.astype(bf16), w_in_ref[0:DIM, :],
                           preferred_element_type=f32).astype(bf16)
    att = _mha_block(qkv_scr, key_mask, w_out_ref, 0, bt)
    h = att + sp[ROW_B_AO:ROW_B_AO + 1, :DIM] + h

    # ---- feed-forward + residual ----
    g, b = _ln_params(sp, ROW_LN_F, DIM)
    f = _layernorm(h, g, b)
    f = jnp.dot(f.astype(bf16), w_ff_ref[0:DIM, :], preferred_element_type=f32)
    f = jnp.maximum(f + sp[ROW_B_F1:ROW_B_F1 + 1, :MLP_DIM], 0.0)
    f = jnp.dot(f.astype(bf16), w_ff_ref[DIM:DIM + MLP_DIM, :],
                preferred_element_type=f32)
    h = f + sp[ROW_B_F2:ROW_B_F2 + 1, :DIM] + h

    # ---- global nn.MultiheadAttention (replaces h, no residual) ----
    qg = jnp.dot(h.astype(bf16), w_in_ref[DIM:2 * DIM, :],
                 preferred_element_type=f32)
    qkv_scr[...] = (qg + bgin_ref[...]).astype(bf16)
    h = _mha_block(qkv_scr, key_mask, w_out_ref, INNER, bt)
    h = h + sp[ROW_B_GOUT:ROW_B_GOUT + 1, :DIM]

    # ---- final transformer LayerNorm ----
    g, b = _ln_params(sp, ROW_LN_FIN, DIM)
    out_ref[...] = _layernorm(h, g, b)


# ---------------- bilinear upsample kernel (batch folded into rows) ---------
def upsample_kernel(x_ref, m_ref, o_ref):
    # x_ref: (BT*DIM, HP*WP) bf16; m_ref: (HP*WP, OUT_HW) bf16 interp matrix
    o_ref[...] = jnp.dot(x_ref[...], m_ref[...],
                         preferred_element_type=jnp.float32)


# ---------------- parameter preparation (wrapper-side, one time) ------------
def _pack_small_params(p):
    """Pack all tiny (<=128-wide) parameters into one (16, 128) f32 array."""
    def pad_row(v):
        v = jnp.asarray(v).reshape(-1).astype(jnp.float32)
        return jnp.pad(v, (0, SP_W - v.shape[0]))

    rows = [
        p['ln_p1'][0], p['ln_p1'][1],
        p['ln_p2'][0], p['ln_p2'][1],
        p['b_pe'],
        p['ln_a'][0], p['ln_a'][1],
        p['b_ao'],
        p['ln_f'][0], p['ln_f'][1],
        p['b_f1'], p['b_f2'],
        p['b_gout'],
        p['ln_fin'][0], p['ln_fin'][1],
        jnp.zeros((SP_W,), jnp.float32),
    ]
    return jnp.stack([pad_row(v) for v in rows])          # (16, 128) f32


def _prep_weights(p):
    """Fold attention scales into the Q columns, zero-pad the global MHA head
    dim 8 -> 64 (lane-aligned slices), stack weights, cast to bf16."""
    bf16 = jnp.bfloat16
    lscale = DIM_HEAD ** (-0.5)
    w_qkv = jnp.concatenate([p['w_qkv'][:, :INNER] * lscale,
                             p['w_qkv'][:, INNER:]], axis=1)       # (64, 1536)

    gscale = GDH ** (-0.5)

    def pad_head_cols(w_sec):   # (DIM, GH*GDH) -> (DIM, GH*DIM_HEAD)
        w3 = w_sec.reshape(DIM, GH, GDH)
        w3 = jnp.pad(w3, ((0, 0), (0, 0), (0, DIM_HEAD - GDH)))
        return w3.reshape(DIM, GH * DIM_HEAD)

    wq = pad_head_cols(p['w_gin'][:, :DIM] * gscale)
    wk = pad_head_cols(p['w_gin'][:, DIM:2 * DIM])
    wv = pad_head_cols(p['w_gin'][:, 2 * DIM:])
    w_gin = jnp.concatenate([wq, wk, wv], axis=1)                  # (64, 1536)
    w_in = jnp.concatenate([w_qkv, w_gin], axis=0)                 # (128, 1536)

    w_go3 = p['w_gout'].reshape(GH, GDH, DIM)
    w_go3 = jnp.pad(w_go3, ((0, 0), (0, DIM_HEAD - GDH), (0, 0)))
    w_gout = w_go3.reshape(GH * DIM_HEAD, DIM)                     # (512, 64)
    w_out = jnp.concatenate([p['w_ao'], w_gout], axis=0)           # (1024, 64)

    w_ff = jnp.concatenate([p['w_f1'], p['w_f2']], axis=0)         # (128, 64)

    def pad_head_bias(b_sec):   # (GH*GDH,) -> (GH*DIM_HEAD,)
        b3 = b_sec.reshape(GH, GDH)
        return jnp.pad(b3, ((0, 0), (0, DIM_HEAD - GDH))).reshape(-1)

    bg = p['b_gin'].reshape(-1)
    b_gin = jnp.concatenate([pad_head_bias(bg[:DIM] * gscale),
                             pad_head_bias(bg[DIM:2 * DIM]),
                             pad_head_bias(bg[2 * DIM:])])
    b_gin = b_gin.reshape(1, 3 * INNER).astype(jnp.float32)        # (1, 1536)

    return (p['w_pe'].astype(bf16), w_in.astype(bf16), w_out.astype(bf16),
            w_ff.astype(bf16), b_gin)


def _bilinear_matrix(out_size, in_size):
    """PyTorch F.interpolate(mode='bilinear', align_corners=False) 1-D weights."""
    w = np.zeros((out_size, in_size), dtype=np.float32)
    scale = in_size / out_size
    for i in range(out_size):
        src = max(scale * (i + 0.5) - 0.5, 0.0)
        i0 = min(int(np.floor(src)), in_size - 1)
        i1 = min(i0 + 1, in_size - 1)
        lam = src - i0
        w[i, i0] += 1.0 - lam
        w[i, i1] += lam
    return w


def init_params(key):
    ks = jax.random.split(key, 8)

    def nrm(k, shape, s=0.02):
        return jax.random.normal(k, shape, jnp.float32) * s

    def ln(d):
        return jnp.stack([jnp.ones((d,), jnp.float32), jnp.zeros((d,), jnp.float32)])

    return dict(
        ln_p1=ln(PATCH_DIM),
        w_pe=nrm(ks[0], (PATCH_DIM, DIM)),
        b_pe=jnp.zeros((1, DIM), jnp.float32),
        ln_p2=ln(DIM),
        pos=jax.random.normal(ks[1], (N, DIM), jnp.float32),      # torch.randn pos emb
        ln_a=ln(DIM),
        w_qkv=nrm(ks[2], (DIM, 3 * INNER)),                       # to_qkv (no bias)
        w_ao=nrm(ks[3], (INNER, DIM)),
        b_ao=jnp.zeros((1, DIM), jnp.float32),
        ln_f=ln(DIM),
        w_f1=nrm(ks[4], (DIM, MLP_DIM)),
        b_f1=jnp.zeros((1, MLP_DIM), jnp.float32),
        w_f2=nrm(ks[5], (MLP_DIM, DIM)),
        b_f2=jnp.zeros((1, DIM), jnp.float32),
        w_gin=nrm(ks[6], (DIM, 3 * DIM)),                         # MHA in_proj (q|k|v)
        b_gin=jnp.zeros((1, 3 * DIM), jnp.float32),
        w_gout=nrm(ks[7], (DIM, DIM)),                            # MHA out_proj
        b_gout=jnp.zeros((1, DIM), jnp.float32),
        ln_fin=ln(DIM),
    )


# ---------------- forward pass ----------------
def vit_forward(img, params):
    B = img.shape[0]
    assert img.shape[1:] == (CHANNELS, IMAGE, IMAGE)

    # Rearrange 'b c (h p1) (w p2) -> b (h w) (p1 p2 c)'   (pure layout glue)
    x = img.reshape(B, CHANNELS, HP, PATCH, WP, PATCH)
    x = jnp.transpose(x, (0, 2, 4, 3, 5, 1))
    patches = x.reshape(B, N, PATCH_DIM).astype(jnp.float32)

    # batch blocking: BT batch elements per step; cap at B//2 so the grid has
    # >= 2 steps when B >= 2 (keeps both v7x TensorCores busy). BT=8 -> RB=256
    # rows fills the MXU M dimension on v6e/v7x.
    BT = max(1, min(8, B // 2))
    G = -(-B // BT)
    B_pad = G * BT
    RB = BT * N_PAD                                    # rows per grid step

    patches = jnp.pad(patches, ((0, B_pad - B), (0, N_PAD - N), (0, 0)))
    patches = patches.reshape(B_pad * N_PAD, PATCH_DIM)

    sp = _pack_small_params(params)
    w_pe, w_in, w_out, w_ff, b_gin = _prep_weights(params)
    pos = jnp.pad(params['pos'].astype(jnp.float32), ((0, N_PAD - N), (0, 0)))
    pos = jnp.tile(pos, (BT, 1))                       # (RB, DIM)

    c2 = lambda b: (0, 0)   # constant index maps -> fetched once by the pipeline
    x_out = pl.pallas_call(
        vit_kernel,
        out_shape=jax.ShapeDtypeStruct((B_pad * N_PAD, DIM), jnp.float32),
        grid_spec=pltpu.PrefetchScalarGridSpec(
            num_scalar_prefetch=0,
            grid=(G,),
            in_specs=[
                pl.BlockSpec((RB, PATCH_DIM), lambda b: (b, 0)),  # patches
                pl.BlockSpec((RB, DIM), c2),                      # pos (tiled)
                pl.BlockSpec((SP_ROWS, SP_W), c2),                # packed smalls
                pl.BlockSpec((1, 3 * INNER), c2),                 # global in-proj bias
                pl.BlockSpec((PATCH_DIM, DIM), c2),               # w_pe
                pl.BlockSpec((2 * DIM, 3 * INNER), c2),           # w_qkv | w_gin(padded)
                pl.BlockSpec((2 * INNER, DIM), c2),               # w_ao  | w_gout(padded)
                pl.BlockSpec((DIM + MLP_DIM, DIM), c2),           # w_f1  | w_f2
            ],
            out_specs=pl.BlockSpec((RB, DIM), lambda b: (b, 0)),
            scratch_shapes=[pltpu.VMEM((RB, 3 * INNER), jnp.bfloat16)]),
        compiler_params=pltpu.CompilerParams(
            dimension_semantics=("parallel",)),
    )(patches, pos, sp, b_gin, w_pe, w_in, w_out, w_ff)

    x_real = x_out.reshape(B_pad, N_PAD, DIM)[:, :N, :]   # drop token padding
    x_tok = x_real[:B]                                     # (B, N, DIM)

    # x_seg = x.view(b, d, H, W): row-major reinterpretation (intentionally
    # bug-compatible with the PyTorch reference), then bilinear upsample
    # (align_corners=False) expressed as one matmul with kron(Wh, Ww)^T.
    xt = x_real.reshape(B_pad * DIM, HP * WP).astype(jnp.bfloat16)
    wh = _bilinear_matrix(IMAGE, HP)
    ww = _bilinear_matrix(IMAGE, WP)
    mt = jnp.asarray(np.kron(wh, ww).T.astype(np.float32)).astype(jnp.bfloat16)

    RU = BT * DIM
    seg_flat = pl.pallas_call(
        upsample_kernel,
        out_shape=jax.ShapeDtypeStruct((B_pad * DIM, OUT_HW), jnp.float32),
        grid_spec=pltpu.PrefetchScalarGridSpec(
            num_scalar_prefetch=0,
            grid=(G,),
            in_specs=[pl.BlockSpec((RU, HP * WP), lambda b: (b, 0)),
                      pl.BlockSpec((HP * WP, OUT_HW), c2)],
            out_specs=pl.BlockSpec((RU, OUT_HW), lambda b: (b, 0))),
        compiler_params=pltpu.CompilerParams(
            dimension_semantics=("parallel",)),
    )(xt, mt)

    if B_pad == B:
        x_seg = seg_flat.reshape(B, DIM, IMAGE, IMAGE)      # pure metadata reshape
    else:
        x_seg = seg_flat[:B * DIM].reshape(B, DIM, IMAGE, IMAGE)
    return x_seg, x_tok


if __name__ == "__main__":
    key = jax.random.PRNGKey(0)
    k_img, k_par = jax.random.split(key)
    img = jax.random.normal(k_img, (2, CHANNELS, IMAGE, IMAGE), jnp.float32)  # NCHW
    params = init_params(k_par)

    fwd = jax.jit(vit_forward)
    x_seg, x = fwd(img, params)
    jax.block_until_ready((x_seg, x))

    assert x.shape == (2, N, DIM)
    assert x_seg.shape == (2, DIM, IMAGE, IMAGE)
    assert bool(jnp.all(jnp.isfinite(x))) and bool(jnp.all(jnp.isfinite(x_seg)))
    print("KERNEL_OK")
</pallas_src>

<mosaic_0001>
module attributes {stable_mosaic.version = 11 : i64} {
  func.func @upsample_kernel(%arg0: i32, %arg1: memref<64x25xbf16, #tpu.memory_space<vmem>>, %arg2: memref<25x625xbf16, #tpu.memory_space<vmem>>, %arg3: memref<64x625xf32, #tpu.memory_space<vmem>>) attributes {dimension_semantics = [#tpu.dimension_semantics<parallel>], iteration_bounds = array<i64: 2>, scalar_prefetch = 0 : i64, scratch_operands = 0 : i64, tpu.core_type = #tpu.core_type<tc>, window_params = [{transform_indices = @transform_0, window_bounds = array<i64: 64, 25>}, {pipeline_mode = #tpu.pipeline_mode<synchronous>, transform_indices = @transform_1, window_bounds = array<i64: 25, 625>}, {transform_indices = @transform_2, window_bounds = array<i64: 64, 625>}]} {
    %c0 = arith.constant 0 : index
    %c0_0 = arith.constant 0 : index
    %0 = vector.load %arg1[%c0, %c0_0] : memref<64x25xbf16, #tpu.memory_space<vmem>>, vector<64x25xbf16>
    %c0_1 = arith.constant 0 : index
    %c0_2 = arith.constant 0 : index
    %1 = vector.load %arg2[%c0_1, %c0_2] : memref<25x625xbf16, #tpu.memory_space<vmem>>, vector<25x625xbf16>
    %cst = arith.constant dense<0.000000e+00> : vector<64x625xf32>
    %2 = tpu.matmul %0, %1, %cst {dimension_numbers = #tpu.dot_dimension_numbers<[1], [0], [0], [1], [0, 0, 1, 1], [], []>} : vector<64x25xbf16>, vector<25x625xbf16>, vector<64x625xf32> -> vector<64x625xf32>
    %c0_3 = arith.constant 0 : index
    %c0_4 = arith.constant 0 : index
    %3 = vector.load %arg3[%c0_3, %c0_4] : memref<64x625xf32, #tpu.memory_space<vmem>>, vector<64x625xf32>
    tpu.vector_store %arg3[%c0_3, %c0_4], %2 {strides = array<i32>} : memref<64x625xf32, #tpu.memory_space<vmem>>, vector<64x625xf32>,
    return
  }
  func.func @transform_0(%arg0: i32) -> (i32, i32) {
    %c0_i32 = arith.constant 0 : i32
    %c0_i32_0 = arith.constant 0 : i32
    return %arg0, %c0_i32 : i32, i32
  }
  func.func @transform_1(%arg0: i32) -> (i32, i32) {
    %c0_i32 = arith.constant 0 : i32
    %c0_i32_0 = arith.constant 0 : i32
    %c0_i32_1 = arith.constant 0 : i32
    return %c0_i32, %c0_i32_0 : i32, i32
  }
  func.func @transform_2(%arg0: i32) -> (i32, i32) {
    %c0_i32 = arith.constant 0 : i32
    %c0_i32_0 = arith.constant 0 : i32
    return %arg0, %c0_i32 : i32, i32
  }
}

module attributes {stable_mosaic.version = 11 : i64} {
  func.func @vit_kernel(%arg0: i32, %arg1: memref<32x75xf32, #tpu.memory_space<vmem>>, %arg2: memref<32x64xf32, #tpu.memory_space<vmem>>, %arg3: memref<16x128xf32, #tpu.memory_space<vmem>>, %arg4: memref<1x1536xf32, #tpu.memory_space<vmem>>, %arg5: memref<75x64xbf16, #tpu.memory_space<vmem>>, %arg6: memref<128x1536xbf16, #tpu.memory_space<vmem>>, %arg7: memref<1024x64xbf16, #tpu.memory_space<vmem>>, %arg8: memref<128x64xbf16, #tpu.memory_space<vmem>>, %arg9: memref<32x64xf32, #tpu.memory_space<vmem>>, %arg10: memref<32x1536xbf16, #tpu.memory_space<vmem>>) attributes {dimension_semantics = [#tpu.dimension_semantics<parallel>], iteration_bounds = array<i64: 2>, scalar_prefetch = 0 : i64, scratch_operands = 1 : i64, tpu.core_type = #tpu.core_type<tc>, window_params = [{transform_indices = @transform_0, window_bounds = array<i64: 32, 75>}, {pipeline_mode = #tpu.pipeline_mode<synchronous>, transform_indices = @transform_1, window_bounds = array<i64: 32, 64>}, {pipeline_mode = #tpu.pipeline_mode<synchronous>, transform_indices = @transform_2, window_bounds = array<i64: 16, 128>}, {pipeline_mode = #tpu.pipeline_mode<synchronous>, transform_indices = @transform_3, window_bounds = array<i64: 1, 1536>}, {pipeline_mode = #tpu.pipeline_mode<synchronous>, transform_indices = @transform_4, window_bounds = array<i64: 75, 64>}, {pipeline_mode = #tpu.pipeline_mode<synchronous>, transform_indices = @transform_5, window_bounds = array<i64: 128, 1536>}, {pipeline_mode = #tpu.pipeline_mode<synchronous>, transform_indices = @transform_6, window_bounds = array<i64: 1024, 64>}, {pipeline_mode = #tpu.pipeline_mode<synchronous>, transform_indices = @transform_7, window_bounds = array<i64: 128, 64>}, {transform_indices = @transform_8, window_bounds = array<i64: 32, 64>}]} {
    %c0 = arith.constant 0 : index
    %c0_0 = arith.constant 0 : index
    %0 = vector.load %arg3[%c0, %c0_0] : memref<16x128xf32, #tpu.memory_space<vmem>>, vector<16x128xf32>
    %1 = tpu.iota {dimensions = array<i32: 2>} : vector<1x1x32xi32>
    %c25_i32 = arith.constant 25 : i32
    %2 = vector.broadcast %c25_i32 : i32 to vector<1x1x32xi32>
    %3 = arith.cmpi slt, %1, %2 : vector<1x1x32xi32>
    %cst = arith.constant 0.000000e+00 : f32
    %cst_1 = arith.constant -1.000000e+30 : f32
    %4 = vector.broadcast %cst : f32 to vector<1x1x32xf32>
    %5 = vector.broadcast %cst_1 : f32 to vector<1x1x32xf32>
    %6 = arith.select %3, %4, %5 : vector<1x1x32xi1>, vector<1x1x32xf32>
    %7 = vector.extract_strided_slice %0 {offsets = [0, 0], sizes = [1, 75], strides = [1, 1]} : vector<16x128xf32> to vector<1x75xf32>
    %8 = vector.extract_strided_slice %0 {offsets = [1, 0], sizes = [1, 75], strides = [1, 1]} : vector<16x128xf32> to vector<1x75xf32>
    %c0_2 = arith.constant 0 : index
    %c0_3 = arith.constant 0 : index
    %9 = vector.load %arg1[%c0_2, %c0_3] : memref<32x75xf32, #tpu.memory_space<vmem>>, vector<32x75xf32>
    %cst_4 = arith.constant dense<0.000000e+00> : vector<32xf32>
    %10 = vector.multi_reduction <add>, %9, %cst_4 [1] : vector<32x75xf32> to vector<32xf32>
    %11 = vector.shape_cast %10 : vector<32xf32> to vector<32x1xf32>
    %cst_5 = arith.constant 7.500000e+01 : f32
    %12 = vector.broadcast %cst_5 : f32 to vector<32x1xf32>
    %13 = arith.divf %11, %12 : vector<32x1xf32>
    %14 = vector.broadcast %13 : vector<32x1xf32> to vector<32x75xf32>
    %15 = arith.subf %9, %14 : vector<32x75xf32>
    %16 = arith.mulf %15, %15 : vector<32x75xf32>
    %cst_6 = arith.constant dense<0.000000e+00> : vector<32xf32>
    %17 = vector.multi_reduction <add>, %16, %cst_6 [1] : vector<32x75xf32> to vector<32xf32>
    %18 = vector.shape_cast %17 : vector<32xf32> to vector<32x1xf32>
    %cst_7 = arith.constant 7.500000e+01 : f32
    %19 = vector.broadcast %cst_7 : f32 to vector<32x1xf32>
    %20 = arith.divf %18, %19 : vector<32x1xf32>
    %21 = vector.broadcast %13 : vector<32x1xf32> to vector<32x75xf32>
    %22 = arith.subf %9, %21 : vector<32x75xf32>
    %cst_8 = arith.constant 9.99999974E-6 : f32
    %23 = vector.broadcast %cst_8 : f32 to vector<32x1xf32>
    %24 = arith.addf %20, %23 : vector<32x1xf32>
    %25 = math.rsqrt %24 : vector<32x1xf32>
    %26 = vector.broadcast %25 : vector<32x1xf32> to vector<32x75xf32>
    %27 = arith.mulf %22, %26 : vector<32x75xf32>
    %28 = vector.broadcast %7 : vector<1x75xf32> to vector<32x75xf32>
    %29 = arith.mulf %27, %28 : vector<32x75xf32>
    %30 = vector.broadcast %8 : vector<1x75xf32> to vector<32x75xf32>
    %31 = arith.addf %29, %30 : vector<32x75xf32>
    %32 = arith.truncf %31 : vector<32x75xf32> to vector<32x75xbf16>
    %c0_9 = arith.constant 0 : index
    %c0_10 = arith.constant 0 : index
    %33 = vector.load %arg5[%c0_9, %c0_10] : memref<75x64xbf16, #tpu.memory_space<vmem>>, vector<75x64xbf16>
    %cst_11 = arith.constant dense<0.000000e+00> : vector<32x64xf32>
    %34 = tpu.matmul %32, %33, %cst_11 {dimension_numbers = #tpu.dot_dimension_numbers<[1], [0], [0], [1], [0, 0, 1, 1], [], []>} : vector<32x75xbf16>, vector<75x64xbf16>, vector<32x64xf32> -> vector<32x64xf32>
    %35 = vector.extract_strided_slice %0 {offsets = [4, 0], sizes = [1, 64], strides = [1, 1]} : vector<16x128xf32> to vector<1x64xf32>
    %36 = vector.broadcast %35 : vector<1x64xf32> to vector<32x64xf32>
    %37 = arith.addf %34, %36 : vector<32x64xf32>
    %38 = vector.extract_strided_slice %0 {offsets = [2, 0], sizes = [1, 64], strides = [1, 1]} : vector<16x128xf32> to vector<1x64xf32>
    %39 = vector.extract_strided_slice %0 {offsets = [3, 0], sizes = [1, 64], strides = [1, 1]} : vector<16x128xf32> to vector<1x64xf32>
    %cst_12 = arith.constant dense<0.000000e+00> : vector<32xf32>
    %40 = vector.multi_reduction <add>, %37, %cst_12 [1] : vector<32x64xf32> to vector<32xf32>
    %41 = vector.shape_cast %40 : vector<32xf32> to vector<32x1xf32>
    %cst_13 = arith.constant 6.400000e+01 : f32
    %42 = vector.broadcast %cst_13 : f32 to vector<32x1xf32>
    %43 = arith.divf %41, %42 : vector<32x1xf32>
    %44 = vector.broadcast %43 : vector<32x1xf32> to vector<32x64xf32>
    %45 = arith.subf %37, %44 : vector<32x64xf32>
    %46 = arith.mulf %45, %45 : vector<32x64xf32>
    %cst_14 = arith.constant dense<0.000000e+00> : vector<32xf32>
    %47 = vector.multi_reduction <add>, %46, %cst_14 [1] : vector<32x64xf32> to vector<32xf32>
    %48 = vector.shape_cast %47 : vector<32xf32> to vector<32x1xf32>
    %cst_15 = arith.constant 6.400000e+01 : f32
    %49 = vector.broadcast %cst_15 : f32 to vector<32x1xf32>
    %50 = arith.divf %48, %49 : vector<32x1xf32>
    %51 = vector.broadcast %43 : vector<32x1xf32> to vector<32x64xf32>
    %52 = arith.subf %37, %51 : vector<32x64xf32>
    %cst_16 = arith.constant 9.99999974E-6 : f32
    %53 = vector.broadcast %cst_16 : f32 to vector<32x1xf32>
    %54 = arith.addf %50, %53 : vector<32x1xf32>
    %55 = math.rsqrt %54 : vector<32x1xf32>
    %56 = vector.broadcast %55 : vector<32x1xf32> to vector<32x64xf32>
    %57 = arith.mulf %52, %56 : vector<32x64xf32>
    %58 = vector.broadcast %38 : vector<1x64xf32> to vector<32x64xf32>
    %59 = arith.mulf %57, %58 : vector<32x64xf32>
    %60 = vector.broadcast %39 : vector<1x64xf32> to vector<32x64xf32>
    %61 = arith.addf %59, %60 : vector<32x64xf32>
    %c0_17 = arith.constant 0 : index
    %c0_18 = arith.constant 0 : index
    %62 = vector.load %arg2[%c0_17, %c0_18] : memref<32x64xf32, #tpu.memory_space<vmem>>, vector<32x64xf32>
    %63 = arith.addf %61, %62 : vector<32x64xf32>
    %64 = vector.extract_strided_slice %0 {offsets = [5, 0], sizes = [1, 64], strides = [1, 1]} : vector<16x128xf32> to vector<1x64xf32>
    %65 = vector.extract_strided_slice %0 {offsets = [6, 0], sizes = [1, 64], strides = [1, 1]} : vector<16x128xf32> to vector<1x64xf32>
    %cst_19 = arith.constant dense<0.000000e+00> : vector<32xf32>
    %66 = vector.multi_reduction <add>, %63, %cst_19 [1] : vector<32x64xf32> to vector<32xf32>
    %67 = vector.shape_cast %66 : vector<32xf32> to vector<32x1xf32>
    %cst_20 = arith.constant 6.400000e+01 : f32
    %68 = vector.broadcast %cst_20 : f32 to vector<32x1xf32>
    %69 = arith.divf %67, %68 : vector<32x1xf32>
    %70 = vector.broadcast %69 : vector<32x1xf32> to vector<32x64xf32>
    %71 = arith.subf %63, %70 : vector<32x64xf32>
    %72 = arith.mulf %71, %71 : vector<32x64xf32>
    %cst_21 = arith.constant dense<0.000000e+00> : vector<32xf32>
    %73 = vector.multi_reduction <add>, %72, %cst_21 [1] : vector<32x64xf32> to vector<32xf32>
    %74 = vector.shape_cast %73 : vector<32xf32> to vector<32x1xf32>
    %cst_22 = arith.constant 6.400000e+01 : f32
    %75 = vector.broadcast %cst_22 : f32 to vector<32x1xf32>
    %76 = arith.divf %74, %75 : vector<32x1xf32>
    %77 = vector.broadcast %69 : vector<32x1xf32> to vector<32x64xf32>
    %78 = arith.subf %63, %77 : vector<32x64xf32>
    %cst_23 = arith.constant 9.99999974E-6 : f32
    %79 = vector.broadcast %cst_23 : f32 to vector<32x1xf32>
    %80 = arith.addf %76, %79 : vector<32x1xf32>
    %81 = math.rsqrt %80 : vector<32x1xf32>
    %82 = vector.broadcast %81 : vector<32x1xf32> to vector<32x64xf32>
    %83 = arith.mulf %78, %82 : vector<32x64xf32>
    %84 = vector.broadcast %64 : vector<1x64xf32> to vector<32x64xf32>
    %85 = arith.mulf %83, %84 : vector<32x64xf32>
    %86 = vector.broadcast %65 : vector<1x64xf32> to vector<32x64xf32>
    %87 = arith.addf %85, %86 : vector<32x64xf32>
    %88 = arith.truncf %87 : vector<32x64xf32> to vector<32x64xbf16>
    %c0_24 = arith.constant 0 : index
    %c0_25 = arith.constant 0 : index
    %89 = vector.load %arg6[%c0_24, %c0_25] : memref<128x1536xbf16, #tpu.memory_space<vmem>>, vector<64x1536xbf16>
    %cst_26 = arith.constant dense<0.000000e+00> : vector<32x1536xf32>
    %90 = tpu.matmul %88, %89, %cst_26 {dimension_numbers = #tpu.dot_dimension_numbers<[1], [0], [0], [1], [0, 0, 1, 1], [], []>} : vector<32x64xbf16>, vector<64x1536xbf16>, vector<32x1536xf32> -> vector<32x1536xf32>
    %91 = arith.truncf %90 : vector<32x1536xf32> to vector<32x1536xbf16>
    %c0_27 = arith.constant 0 : index
    %c0_28 = arith.constant 0 : index
    %92 = vector.load %arg10[%c0_27, %c0_28] : memref<32x1536xbf16, #tpu.memory_space<vmem>>, vector<32x1536xbf16>
    tpu.vector_store %arg10[%c0_27, %c0_28], %91 {strides = array<i32>} : memref<32x1536xbf16, #tpu.memory_space<vmem>>, vector<32x1536xbf16>,
    %c0_29 = arith.constant 0 : index
    %c0_30 = arith.constant 0 : index
    %93 = vector.load %arg10[%c0_29, %c0_30] : memref<32x1536xbf16, #tpu.memory_space<vmem>>, vector<32x64xbf16>
    %94 = vector.shape_cast %93 : vector<32x64xbf16> to vector<1x32x64xbf16>
    %c0_31 = arith.constant 0 : index
    %c512 = arith.constant 512 : index
    %95 = vector.load %arg10[%c0_31, %c512] : memref<32x1536xbf16, #tpu.memory_space<vmem>>, vector<32x64xbf16>
    %96 = vector.shape_cast %95 : vector<32x64xbf16> to vector<1x32x64xbf16>
    %c0_32 = arith.constant 0 : index
    %c1024 = arith.constant 1024 : index
    %97 = vector.load %arg10[%c0_32, %c1024] : memref<32x1536xbf16, #tpu.memory_space<vmem>>, vector<32x64xbf16>
    %98 = vector.shape_cast %97 : vector<32x64xbf16> to vector<1x32x64xbf16>
    %cst_33 = arith.constant dense<0.000000e+00> : vector<1x32x32xf32>
    %99 = tpu.matmul %94, %96, %cst_33 {dimension_numbers = #tpu.dot_dimension_numbers<[2], [2], [1], [1], [0, 0, 0, 1, 1, 1], [0], [0]>} : vector<1x32x64xbf16>, vector<1x32x64xbf16>, vector<1x32x32xf32> -> vector<1x32x32xf32>
    %100 = vector.broadcast %6 : vector<1x1x32xf32> to vector<1x32x32xf32>
    %101 = arith.addf %99, %100 : vector<1x32x32xf32>
    %cst_34 = arith.constant dense<0xFF800000> : vector<1x32xf32>
    %102 = vector.multi_reduction <maximumf>, %101, %cst_34 [2] : vector<1x32x32xf32> to vector<1x32xf32>
    %103 = vector.shape_cast %102 : vector<1x32xf32> to vector<1x32x1xf32>
    %104 = vector.broadcast %103 : vector<1x32x1xf32> to vector<1x32x32xf32>
    %105 = arith.subf %101, %104 : vector<1x32x32xf32>
    %106 = math.exp %105 : vector<1x32x32xf32>
    %cst_35 = arith.constant dense<0.000000e+00> : vector<1x32xf32>
    %107 = vector.multi_reduction <add>, %106, %cst_35 [2] : vector<1x32x32xf32> to vector<1x32xf32>
    %108 = vector.shape_cast %107 : vector<1x32xf32> to vector<1x32x1xf32>
    %109 = tpu.reciprocal %108 {approx = true} : vector<1x32x1xf32> -> vector<1x32x1xf32>
    %110 = vector.broadcast %109 : vector<1x32x1xf32> to vector<1x32x32xf32>
    %111 = arith.mulf %106, %110 : vector<1x32x32xf32>
    %112 = arith.truncf %111 : vector<1x32x32xf32> to vector<1x32x32xbf16>
    %cst_36 = arith.constant dense<0.000000e+00> : vector<1x32x64xf32>
    %113 = tpu.matmul %112, %98, %cst_36 {dimension_numbers = #tpu.dot_dimension_numbers<[2], [1], [1], [2], [0, 0, 0, 1, 1, 2], [0], [0]>} : vector<1x32x32xbf16>, vector<1x32x64xbf16>, vector<1x32x64xf32> -> vector<1x32x64xf32>
    %114 = vector.shape_cast %113 : vector<1x32x64xf32> to vector<32x64xf32>
    %115 = arith.truncf %114 : vector<32x64xf32> to vector<32x64xbf16>
    %c0_37 = arith.constant 0 : index
    %c0_38 = arith.constant 0 : index
    %116 = vector.load %arg7[%c0_37, %c0_38] : memref<1024x64xbf16, #tpu.memory_space<vmem>>, vector<64x64xbf16>
    %cst_39 = arith.constant dense<0.000000e+00> : vector<32x64xf32>
    %117 = tpu.matmul %115, %116, %cst_39 {dimension_numbers = #tpu.dot_dimension_numbers<[1], [0], [0], [1], [0, 0, 1, 1], [], []>} : vector<32x64xbf16>, vector<64x64xbf16>, vector<32x64xf32> -> vector<32x64xf32>
    %c0_40 = arith.constant 0 : index
    %c64 = arith.constant 64 : index
    %118 = vector.load %arg10[%c0_40, %c64] : memref<32x1536xbf16, #tpu.memory_space<vmem>>, vector<32x64xbf16>
    %119 = vector.shape_cast %118 : vector<32x64xbf16> to vector<1x32x64xbf16>
    %c0_41 = arith.constant 0 : index
    %c576 = arith.constant 576 : index
    %120 = vector.load %arg10[%c0_41, %c576] : memref<32x1536xbf16, #tpu.memory_space<vmem>>, vector<32x64xbf16>
    %121 = vector.shape_cast %120 : vector<32x64xbf16> to vector<1x32x64xbf16>
    %c0_42 = arith.constant 0 : index
    %c1088 = arith.constant 1088 : index
    %122 = vector.load %arg10[%c0_42, %c1088] : memref<32x1536xbf16, #tpu.memory_space<vmem>>, vector<32x64xbf16>
    %123 = vector.shape_cast %122 : vector<32x64xbf16> to vector<1x32x64xbf16>
    %cst_43 = arith.constant dense<0.000000e+00> : vector<1x32x32xf32>
    %124 = tpu.matmul %119, %121, %cst_43 {dimension_numbers = #tpu.dot_dimension_numbers<[2], [2], [1], [1], [0, 0, 0, 1, 1, 1], [0], [0]>} : vector<1x32x64xbf16>, vector<1x32x64xbf16>, vector<1x32x32xf32> -> vector<1x32x32xf32>
    %125 = vector.broadcast %6 : vector<1x1x32xf32> to vector<1x32x32xf32>
    %126 = arith.addf %124, %125 : vector<1x32x32xf32>
    %cst_44 = arith.constant dense<0xFF800000> : vector<1x32xf32>
    %127 = vector.multi_reduction <maximumf>, %126, %cst_44 [2] : vector<1x32x32xf32> to vector<1x32xf32>
    %128 = vector.shape_cast %127 : vector<1x32xf32> to vector<1x32x1xf32>
    %129 = vector.broadcast %128 : vector<1x32x1xf32> to vector<1x32x32xf32>
    %130 = arith.subf %126, %129 : vector<1x32x32xf32>
    %131 = math.exp %130 : vector<1x32x32xf32>
    %cst_45 = arith.constant dense<0.000000e+00> : vector<1x32xf32>
    %132 = vector.multi_reduction <add>, %131, %cst_45 [2] : vector<1x32x32xf32> to vector<1x32xf32>
    %133 = vector.shape_cast %132 : vector<1x32xf32> to vector<1x32x1xf32>
    %134 = tpu.reciprocal %133 {approx = true} : vector<1x32x1xf32> -> vector<1x32x1xf32>
    %135 = vector.broadcast %134 : vector<1x32x1xf32> to vector<1x32x32xf32>
    %136 = arith.mulf %131, %135 : vector<1x32x32xf32>
    %137 = arith.truncf %136 : vector<1x32x32xf32> to vector<1x32x32xbf16>
    %cst_46 = arith.constant dense<0.000000e+00> : vector<1x32x64xf32>
    %138 = tpu.matmul %137, %123, %cst_46 {dimension_numbers = #tpu.dot_dimension_numbers<[2], [1], [1], [2], [0, 0, 0, 1, 1, 2], [0], [0]>} : vector<1x32x32xbf16>, vector<1x32x64xbf16>, vector<1x32x64xf32> -> vector<1x32x64xf32>
    %139 = vector.shape_cast %138 : vector<1x32x64xf32> to vector<32x64xf32>
    %140 = arith.truncf %139 : vector<32x64xf32> to vector<32x64xbf16>
    %c64_47 = arith.constant 64 : index
    %c0_48 = arith.constant 0 : index
    %141 = vector.load %arg7[%c64_47, %c0_48] : memref<1024x64xbf16, #tpu.memory_space<vmem>>, vector<64x64xbf16>
    %cst_49 = arith.constant dense<0.000000e+00> : vector<32x64xf32>
    %142 = tpu.matmul %140, %141, %cst_49 {dimension_numbers = #tpu.dot_dimension_numbers<[1], [0], [0], [1], [0, 0, 1, 1], [], []>} : vector<32x64xbf16>, vector<64x64xbf16>, vector<32x64xf32> -> vector<32x64xf32>
    %143 = arith.addf %117, %142 : vector<32x64xf32>
    %c0_50 = arith.constant 0 : index
    %c128 = arith.constant 128 : index
    %144 = vector.load %arg10[%c0_50, %c128] : memref<32x1536xbf16, #tpu.memory_space<vmem>>, vector<32x64xbf16>
    %145 = vector.shape_cast %144 : vector<32x64xbf16> to vector<1x32x64xbf16>
    %c0_51 = arith.constant 0 : index
    %c640 = arith.constant 640 : index
    %146 = vector.load %arg10[%c0_51, %c640] : memref<32x1536xbf16, #tpu.memory_space<vmem>>, vector<32x64xbf16>
    %147 = vector.shape_cast %146 : vector<32x64xbf16> to vector<1x32x64xbf16>
    %c0_52 = arith.constant 0 : index
    %c1152 = arith.constant 1152 : index
    %148 = vector.load %arg10[%c0_52, %c1152] : memref<32x1536xbf16, #tpu.memory_space<vmem>>, vector<32x64xbf16>
    %149 = vector.shape_cast %148 : vector<32x64xbf16> to vector<1x32x64xbf16>
    %cst_53 = arith.constant dense<0.000000e+00> : vector<1x32x32xf32>
    %150 = tpu.matmul %145, %147, %cst_53 {dimension_numbers = #tpu.dot_dimension_numbers<[2], [2], [1], [1], [0, 0, 0, 1, 1, 1], [0], [0]>} : vector<1x32x64xbf16>, vector<1x32x64xbf16>, vector<1x32x32xf32> -> vector<1x32x32xf32>
    %151 = vector.broadcast %6 : vector<1x1x32xf32> to vector<1x32x32xf32>
    %152 = arith.addf %150, %151 : vector<1x32x32xf32>
    %cst_54 = arith.constant dense<0xFF800000> : vector<1x32xf32>
    %153 = vector.multi_reduction <maximumf>, %152, %cst_54 [2] : vector<1x32x32xf32> to vector<1x32xf32>
    %154 = vector.shape_cast %153 : vector<1x32xf32> to vector<1x32x1xf32>
    %155 = vector.broadcast %154 : vector<1x32x1xf32> to vector<1x32x32xf32>
    %156 = arith.subf %152, %155 : vector<1x32x32xf32>
    %157 = math.exp %156 : vector<1x32x32xf32>
    %cst_55 = arith.constant dense<0.000000e+00> : vector<1x32xf32>
    %158 = vector.multi_reduction <add>, %157, %cst_55 [2] : vector<1x32x32xf32> to vector<1x32xf32>
    %159 = vector.shape_cast %158 : vector<1x32xf32> to vector<1x32x1xf32>
    %160 = tpu.reciprocal %159 {approx = true} : vector<1x32x1xf32> -> vector<1x32x1xf32>
    %161 = vector.broadcast %160 : vector<1x32x1xf32> to vector<1x32x32xf32>
    %162 = arith.mulf %157, %161 : vector<1x32x32xf32>
    %163 = arith.truncf %162 : vector<1x32x32xf32> to vector<1x32x32xbf16>
    %cst_56 = arith.constant dense<0.000000e+00> : vector<1x32x64xf32>
    %164 = tpu.matmul %163, %149, %cst_56 {dimension_numbers = #tpu.dot_dimension_numbers<[2], [1], [1], [2], [0, 0, 0, 1, 1, 2], [0], [0]>} : vector<1x32x32xbf16>, vector<1x32x64xbf16>, vector<1x32x64xf32> -> vector<1x32x64xf32>
    %165 = vector.shape_cast %164 : vector<1x32x64xf32> to vector<32x64xf32>
    %166 = arith.truncf %165 : vector<32x64xf32> to vector<32x64xbf16>
    %c128_57 = arith.constant 128 : index
    %c0_58 = arith.constant 0 : index
    %167 = vector.load %arg7[%c128_57, %c0_58] : memref<1024x64xbf16, #tpu.memory_space<vmem>>, vector<64x64xbf16>
    %cst_59 = arith.constant dense<0.000000e+00> : vector<32x64xf32>
    %168 = tpu.matmul %166, %167, %cst_59 {dimension_numbers = #tpu.dot_dimension_numbers<[1], [0], [0], [1], [0, 0, 1, 1], [], []>} : vector<32x64xbf16>, vector<64x64xbf16>, vector<32x64xf32> -> vector<32x64xf32>
    %169 = arith.addf %143, %168 : vector<32x64xf32>
    %c0_60 = arith.constant 0 : index
    %c192 = arith.constant 192 : index
    %170 = vector.load %arg10[%c0_60, %c192] : memref<32x1536xbf16, #tpu.memory_space<vmem>>, vector<32x64xbf16>
    %171 = vector.shape_cast %170 : vector<32x64xbf16> to vector<1x32x64xbf16>
    %c0_61 = arith.constant 0 : index
    %c704 = arith.constant 704 : index
    %172 = vector.load %arg10[%c0_61, %c704] : memref<32x1536xbf16, #tpu.memory_space<vmem>>, vector<32x64xbf16>
    %173 = vector.shape_cast %172 : vector<32x64xbf16> to vector<1x32x64xbf16>
    %c0_62 = arith.constant 0 : index
    %c1216 = arith.constant 1216 : index
    %174 = vector.load %arg10[%c0_62, %c1216] : memref<32x1536xbf16, #tpu.memory_space<vmem>>, vector<32x64xbf16>
    %175 = vector.shape_cast %174 : vector<32x64xbf16> to vector<1x32x64xbf16>
    %cst_63 = arith.constant dense<0.000000e+00> : vector<1x32x32xf32>
    %176 = tpu.matmul %171, %173, %cst_63 {dimension_numbers = #tpu.dot_dimension_numbers<[2], [2], [1], [1], [0, 0, 0, 1, 1, 1], [0], [0]>} : vector<1x32x64xbf16>, vector<1x32x64xbf16>, vector<1x32x32xf32> -> vector<1x32x32xf32>
    %177 = vector.broadcast %6 : vector<1x1x32xf32> to vector<1x32x32xf32>
    %178 = arith.addf %176, %177 : vector<1x32x32xf32>
    %cst_64 = arith.constant dense<0xFF800000> : vector<1x32xf32>
    %179 = vector.multi_reduction <maximumf>, %178, %cst_64 [2] : vector<1x32x32xf32> to vector<1x32xf32>
    %180 = vector.shape_cast %179 : vector<1x32xf32> to vector<1x32x1xf32>
    %181 = vector.broadcast %180 : vector<1x32x1xf32> to vector<1x32x32xf32>
    %182 = arith.subf %178, %181 : vector<1x32x32xf32>
    %183 = math.exp %182 : vector<1x32x32xf32>
    %cst_65 = arith.constant dense<0.000000e+00> : vector<1x32xf32>
    %184 = vector.multi_reduction <add>, %183, %cst_65 [2] : vector<1x32x32xf32> to vector<1x32xf32>
    %185 = vector.shape_cast %184 : vector<1x32xf32> to vector<1x32x1xf32>
    %186 = tpu.reciprocal %185 {approx = true} : vector<1x32x1xf32> -> vector<1x32x1xf32>
    %187 = vector.broadcast %186 : vector<1x32x1xf32> to vector<1x32x32xf32>
    %188 = arith.mulf %183, %187 : vector<1x32x32xf32>
    %189 = arith.truncf %188 : vector<1x32x32xf32> to vector<1x32x32xbf16>
    %cst_66 = arith.constant dense<0.000000e+00> : vector<1x32x64xf32>
    %190 = tpu.matmul %189, %175, %cst_66 {dimension_numbers = #tpu.dot_dimension_numbers<[2], [1], [1], [2], [0, 0, 0, 1, 1, 2], [0], [0]>} : vector<1x32x32xbf16>, vector<1x32x64xbf16>, vector<1x32x64xf32> -> vector<1x32x64xf32>
    %191 = vector.shape_cast %190 : vector<1x32x64xf32> to vector<32x64xf32>
    %192 = arith.truncf %191 : vector<32x64xf32> to vector<32x64xbf16>
    %c192_67 = arith.constant 192 : index
    %c0_68 = arith.constant 0 : index
    %193 = vector.load %arg7[%c192_67, %c0_68] : memref<1024x64xbf16, #tpu.memory_space<vmem>>, vector<64x64xbf16>
    %cst_69 = arith.constant dense<0.000000e+00> : vector<32x64xf32>
    %194 = tpu.matmul %192, %193, %cst_69 {dimension_numbers = #tpu.dot_dimension_numbers<[1], [0], [0], [1], [0, 0, 1, 1], [], []>} : vector<32x64xbf16>, vector<64x64xbf16>, vector<32x64xf32> -> vector<32x64xf32>
    %195 = arith.addf %169, %194 : vector<32x64xf32>
    %c0_70 = arith.constant 0 : index
    %c256 = arith.constant 256 : index
    %196 = vector.load %arg10[%c0_70, %c256] : memref<32x1536xbf16, #tpu.memory_space<vmem>>, vector<32x64xbf16>
    %197 = vector.shape_cast %196 : vector<32x64xbf16> to vector<1x32x64xbf16>
    %c0_71 = arith.constant 0 : index
    %c768 = arith.constant 768 : index
    %198 = vector.load %arg10[%c0_71, %c768] : memref<32x1536xbf16, #tpu.memory_space<vmem>>, vector<32x64xbf16>
    %199 = vector.shape_cast %198 : vector<32x64xbf16> to vector<1x32x64xbf16>
    %c0_72 = arith.constant 0 : index
    %c1280 = arith.constant 1280 : index
    %200 = vector.load %arg10[%c0_72, %c1280] : memref<32x1536xbf16, #tpu.memory_space<vmem>>, vector<32x64xbf16>
    %201 = vector.shape_cast %200 : vector<32x64xbf16> to vector<1x32x64xbf16>
    %cst_73 = arith.constant dense<0.000000e+00> : vector<1x32x32xf32>
    %202 = tpu.matmul %197, %199, %cst_73 {dimension_numbers = #tpu.dot_dimension_numbers<[2], [2], [1], [1], [0, 0, 0, 1, 1, 1], [0], [0]>} : vector<1x32x64xbf16>, vector<1x32x64xbf16>, vector<1x32x32xf32> -> vector<1x32x32xf32>
    %203 = vector.broadcast %6 : vector<1x1x32xf32> to vector<1x32x32xf32>
    %204 = arith.addf %202, %203 : vector<1x32x32xf32>
    %cst_74 = arith.constant dense<0xFF800000> : vector<1x32xf32>
    %205 = vector.multi_reduction <maximumf>, %204, %cst_74 [2] : vector<1x32x32xf32> to vector<1x32xf32>
    %206 = vector.shape_cast %205 : vector<1x32xf32> to vector<1x32x1xf32>
    %207 = vector.broadcast %206 : vector<1x32x1xf32> to vector<1x32x32xf32>
    %208 = arith.subf %204, %207 : vector<1x32x32xf32>
    %209 = math.exp %208 : vector<1x32x32xf32>
    %cst_75 = arith.constant dense<0.000000e+00> : vector<1x32xf32>
    %210 = vector.multi_reduction <add>, %209, %cst_75 [2] : vector<1x32x32xf32> to vector<1x32xf32>
    %211 = vector.shape_cast %210 : vector<1x32xf32> to vector<1x32x1xf32>
    %212 = tpu.reciprocal %211 {approx = true} : vector<1x32x1xf32> -> vector<1x32x1xf32>
    %213 = vector.broadcast %212 : vector<1x32x1xf32> to vector<1x32x32xf32>
    %214 = arith.mulf %209, %213 : vector<1x32x32xf32>
    %215 = arith.truncf %214 : vector<1x32x32xf32> to vector<1x32x32xbf16>
    %cst_76 = arith.constant dense<0.000000e+00> : vector<1x32x64xf32>
    %216 = tpu.matmul %215, %201, %cst_76 {dimension_numbers = #tpu.dot_dimension_numbers<[2], [1], [1], [2], [0, 0, 0, 1, 1, 2], [0], [0]>} : vector<1x32x32xbf16>, vector<1x32x64xbf16>, vector<1x32x64xf32> -> vector<1x32x64xf32>
    %217 = vector.shape_cast %216 : vector<1x32x64xf32> to vector<32x64xf32>
    %218 = arith.truncf %217 : vector<32x64xf32> to vector<32x64xbf16>
    %c256_77 = arith.constant 256 : index
    %c0_78 = arith.constant 0 : index
    %219 = vector.load %arg7[%c256_77, %c0_78] : memref<1024x64xbf16, #tpu.memory_space<vmem>>, vector<64x64xbf16>
    %cst_79 = arith.constant dense<0.000000e+00> : vector<32x64xf32>
    %220 = tpu.matmul %218, %219, %cst_79 {dimension_numbers = #tpu.dot_dimension_numbers<[1], [0], [0], [1], [0, 0, 1, 1], [], []>} : vector<32x64xbf16>, vector<64x64xbf16>, vector<32x64xf32> -> vector<32x64xf32>
    %221 = arith.addf %195, %220 : vector<32x64xf32>
    %c0_80 = arith.constant 0 : index
    %c320 = arith.constant 320 : index
    %222 = vector.load %arg10[%c0_80, %c320] : memref<32x1536xbf16, #tpu.memory_space<vmem>>, vector<32x64xbf16>
    %223 = vector.shape_cast %222 : vector<32x64xbf16> to vector<1x32x64xbf16>
    %c0_81 = arith.constant 0 : index
    %c832 = arith.constant 832 : index
    %224 = vector.load %arg10[%c0_81, %c832] : memref<32x1536xbf16, #tpu.memory_space<vmem>>, vector<32x64xbf16>
    %225 = vector.shape_cast %224 : vector<32x64xbf16> to vector<1x32x64xbf16>
    %c0_82 = arith.constant 0 : index
    %c1344 = arith.constant 1344 : index
    %226 = vector.load %arg10[%c0_82, %c1344] : memref<32x1536xbf16, #tpu.memory_space<vmem>>, vector<32x64xbf16>
    %227 = vector.shape_cast %226 : vector<32x64xbf16> to vector<1x32x64xbf16>
    %cst_83 = arith.constant dense<0.000000e+00> : vector<1x32x32xf32>
    %228 = tpu.matmul %223, %225, %cst_83 {dimension_numbers = #tpu.dot_dimension_numbers<[2], [2], [1], [1], [0, 0, 0, 1, 1, 1], [0], [0]>} : vector<1x32x64xbf16>, vector<1x32x64xbf16>, vector<1x32x32xf32> -> vector<1x32x32xf32>
    %229 = vector.broadcast %6 : vector<1x1x32xf32> to vector<1x32x32xf32>
    %230 = arith.addf %228, %229 : vector<1x32x32xf32>
    %cst_84 = arith.constant dense<0xFF800000> : vector<1x32xf32>
    %231 = vector.multi_reduction <maximumf>, %230, %cst_84 [2] : vector<1x32x32xf32> to vector<1x32xf32>
    %232 = vector.shape_cast %231 : vector<1x32xf32> to vector<1x32x1xf32>
    %233 = vector.broadcast %232 : vector<1x32x1xf32> to vector<1x32x32xf32>
    %234 = arith.subf %230, %233 : vector<1x32x32xf32>
    %235 = math.exp %234 : vector<1x32x32xf32>
    %cst_85 = arith.constant dense<0.000000e+00> : vector<1x32xf32>
    %236 = vector.multi_reduction <add>, %235, %cst_85 [2] : vector<1x32x32xf32> to vector<1x32xf32>
    %237 = vector.shape_cast %236 : vector<1x32xf32> to vector<1x32x1xf32>
    %238 = tpu.reciprocal %237 {approx = true} : vector<1x32x1xf32> -> vector<1x32x1xf32>
    %239 = vector.broadcast %238 : vector<1x32x1xf32> to vector<1x32x32xf32>
    %240 = arith.mulf %235, %239 : vector<1x32x32xf32>
    %241 = arith.truncf %240 : vector<1x32x32xf32> to vector<1x32x32xbf16>
    %cst_86 = arith.constant dense<0.000000e+00> : vector<1x32x64xf32>
    %242 = tpu.matmul %241, %227, %cst_86 {dimension_numbers = #tpu.dot_dimension_numbers<[2], [1], [1], [2], [0, 0, 0, 1, 1, 2], [0], [0]>} : vector<1x32x32xbf16>, vector<1x32x64xbf16>, vector<1x32x64xf32> -> vector<1x32x64xf32>
    %243 = vector.shape_cast %242 : vector<1x32x64xf32> to vector<32x64xf32>
    %244 = arith.truncf %243 : vector<32x64xf32> to vector<32x64xbf16>
    %c320_87 = arith.constant 320 : index
    %c0_88 = arith.constant 0 : index
    %245 = vector.load %arg7[%c320_87, %c0_88] : memref<1024x64xbf16, #tpu.memory_space<vmem>>, vector<64x64xbf16>
    %cst_89 = arith.constant dense<0.000000e+00> : vector<32x64xf32>
    %246 = tpu.matmul %244, %245, %cst_89 {dimension_numbers = #tpu.dot_dimension_numbers<[1], [0], [0], [1], [0, 0, 1, 1], [], []>} : vector<32x64xbf16>, vector<64x64xbf16>, vector<32x64xf32> -> vector<32x64xf32>
    %247 = arith.addf %221, %246 : vector<32x64xf32>
    %c0_90 = arith.constant 0 : index
    %c384 = arith.constant 384 : index
    %248 = vector.load %arg10[%c0_90, %c384] : memref<32x1536xbf16, #tpu.memory_space<vmem>>, vector<32x64xbf16>
    %249 = vector.shape_cast %248 : vector<32x64xbf16> to vector<1x32x64xbf16>
    %c0_91 = arith.constant 0 : index
    %c896 = arith.constant 896 : index
    %250 = vector.load %arg10[%c0_91, %c896] : memref<32x1536xbf16, #tpu.memory_space<vmem>>, vector<32x64xbf16>
    %251 = vector.shape_cast %250 : vector<32x64xbf16> to vector<1x32x64xbf16>
    %c0_92 = arith.constant 0 : index
    %c1408 = arith.constant 1408 : index
    %252 = vector.load %arg10[%c0_92, %c1408] : memref<32x1536xbf16, #tpu.memory_space<vmem>>, vector<32x64xbf16>
    %253 = vector.shape_cast %252 : vector<32x64xbf16> to vector<1x32x64xbf16>
    %cst_93 = arith.constant dense<0.000000e+00> : vector<1x32x32xf32>
    %254 = tpu.matmul %249, %251, %cst_93 {dimension_numbers = #tpu.dot_dimension_numbers<[2], [2], [1], [1], [0, 0, 0, 1, 1, 1], [0], [0]>} : vector<1x32x64xbf16>, vector<1x32x64xbf16>, vector<1x32x32xf32> -> vector<1x32x32xf32>
    %255 = vector.broadcast %6 : vector<1x1x32xf32> to vector<1x32x32xf32>
    %256 = arith.addf %254, %255 : vector<1x32x32xf32>
    %cst_94 = arith.constant dense<0xFF800000> : vector<1x32xf32>
    %257 = vector.multi_reduction <maximumf>, %256, %cst_94 [2] : vector<1x32x32xf32> to vector<1x32xf32>
    %258 = vector.shape_cast %257 : vector<1x32xf32> to vector<1x32x1xf32>
    %259 = vector.broadcast %258 : vector<1x32x1xf32> to vector<1x32x32xf32>
    %260 = arith.subf %256, %259 : vector<1x32x32xf32>
    %261 = math.exp %260 : vector<1x32x32xf32>
    %cst_95 = arith.constant dense<0.000000e+00> : vector<1x32xf32>
    %262 = vector.multi_reduction <add>, %261, %cst_95 [2] : vector<1x32x32xf32> to vector<1x32xf32>
    %263 = vector.shape_cast %262 : vector<1x32xf32> to vector<1x32x1xf32>
    %264 = tpu.reciprocal %263 {approx = true} : vector<1x32x1xf32> -> vector<1x32x1xf32>
    %265 = vector.broadcast %264 : vector<1x32x1xf32> to vector<1x32x32xf32>
    %266 = arith.mulf %261, %265 : vector<1x32x32xf32>
    %267 = arith.truncf %266 : vector<1x32x32xf32> to vector<1x32x32xbf16>
    %cst_96 = arith.constant dense<0.000000e+00> : vector<1x32x64xf32>
    %268 = tpu.matmul %267, %253, %cst_96 {dimension_numbers = #tpu.dot_dimension_numbers<[2], [1], [1], [2], [0, 0, 0, 1, 1, 2], [0], [0]>} : vector<1x32x32xbf16>, vector<1x32x64xbf16>, vector<1x32x64xf32> -> vector<1x32x64xf32>
    %269 = vector.shape_cast %268 : vector<1x32x64xf32> to vector<32x64xf32>
    %270 = arith.truncf %269 : vector<32x64xf32> to vector<32x64xbf16>
    %c384_97 = arith.constant 384 : index
    %c0_98 = arith.constant 0 : index
    %271 = vector.load %arg7[%c384_97, %c0_98] : memref<1024x64xbf16, #tpu.memory_space<vmem>>, vector<64x64xbf16>
    %cst_99 = arith.constant dense<0.000000e+00> : vector<32x64xf32>
    %272 = tpu.matmul %270, %271, %cst_99 {dimension_numbers = #tpu.dot_dimension_numbers<[1], [0], [0], [1], [0, 0, 1, 1], [], []>} : vector<32x64xbf16>, vector<64x64xbf16>, vector<32x64xf32> -> vector<32x64xf32>
    %273 = arith.addf %247, %272 : vector<32x64xf32>
    %c0_100 = arith.constant 0 : index
    %c448 = arith.constant 448 : index
    %274 = vector.load %arg10[%c0_100, %c448] : memref<32x1536xbf16, #tpu.memory_space<vmem>>, vector<32x64xbf16>
    %275 = vector.shape_cast %274 : vector<32x64xbf16> to vector<1x32x64xbf16>
    %c0_101 = arith.constant 0 : index
    %c960 = arith.constant 960 : index
    %276 = vector.load %arg10[%c0_101, %c960] : memref<32x1536xbf16, #tpu.memory_space<vmem>>, vector<32x64xbf16>
    %277 = vector.shape_cast %276 : vector<32x64xbf16> to vector<1x32x64xbf16>
    %c0_102 = arith.constant 0 : index
    %c1472 = arith.constant 1472 : index
    %278 = vector.load %arg10[%c0_102, %c1472] : memref<32x1536xbf16, #tpu.memory_space<vmem>>, vector<32x64xbf16>
    %279 = vector.shape_cast %278 : vector<32x64xbf16> to vector<1x32x64xbf16>
    %cst_103 = arith.constant dense<0.000000e+00> : vector<1x32x32xf32>
    %280 = tpu.matmul %275, %277, %cst_103 {dimension_numbers = #tpu.dot_dimension_numbers<[2], [2], [1], [1], [0, 0, 0, 1, 1, 1], [0], [0]>} : vector<1x32x64xbf16>, vector<1x32x64xbf16>, vector<1x32x32xf32> -> vector<1x32x32xf32>
    %281 = vector.broadcast %6 : vector<1x1x32xf32> to vector<1x32x32xf32>
    %282 = arith.addf %280, %281 : vector<1x32x32xf32>
    %cst_104 = arith.constant dense<0xFF800000> : vector<1x32xf32>
    %283 = vector.multi_reduction <maximumf>, %282, %cst_104 [2] : vector<1x32x32xf32> to vector<1x32xf32>
    %284 = vector.shape_cast %283 : vector<1x32xf32> to vector<1x32x1xf32>
    %285 = vector.broadcast %284 : vector<1x32x1xf32> to vector<1x32x32xf32>
    %286 = arith.subf %282, %285 : vector<1x32x32xf32>
    %287 = math.exp %286 : vector<1x32x32xf32>
    %cst_105 = arith.constant dense<0.000000e+00> : vector<1x32xf32>
    %288 = vector.multi_reduction <add>, %287, %cst_105 [2] : vector<1x32x32xf32> to vector<1x32xf32>
    %289 = vector.shape_cast %288 : vector<1x32xf32> to vector<1x32x1xf32>
    %290 = tpu.reciprocal %289 {approx = true} : vector<1x32x1xf32> -> vector<1x32x1xf32>
    %291 = vector.broadcast %290 : vector<1x32x1xf32> to vector<1x32x32xf32>
    %292 = arith.mulf %287, %291 : vector<1x32x32xf32>
    %293 = arith.truncf %292 : vector<1x32x32xf32> to vector<1x32x32xbf16>
    %cst_106 = arith.constant dense<0.000000e+00> : vector<1x32x64xf32>
    %294 = tpu.matmul %293, %279, %cst_106 {dimension_numbers = #tpu.dot_dimension_numbers<[2], [1], [1], [2], [0, 0, 0, 1, 1, 2], [0], [0]>} : vector<1x32x32xbf16>, vector<1x32x64xbf16>, vector<1x32x64xf32> -> vector<1x32x64xf32>
    %295 = vector.shape_cast %294 : vector<1x32x64xf32> to vector<32x64xf32>
    %296 = arith.truncf %295 : vector<32x64xf32> to vector<32x64xbf16>
    %c448_107 = arith.constant 448 : index
    %c0_108 = arith.constant 0 : index
    %297 = vector.load %arg7[%c448_107, %c0_108] : memref<1024x64xbf16, #tpu.memory_space<vmem>>, vector<64x64xbf16>
    %cst_109 = arith.constant dense<0.000000e+00> : vector<32x64xf32>
    %298 = tpu.matmul %296, %297, %cst_109 {dimension_numbers = #tpu.dot_dimension_numbers<[1], [0], [0], [1], [0, 0, 1, 1], [], []>} : vector<32x64xbf16>, vector<64x64xbf16>, vector<32x64xf32> -> vector<32x64xf32>
    %299 = arith.addf %273, %298 : vector<32x64xf32>
    %300 = vector.extract_strided_slice %0 {offsets = [7, 0], sizes = [1, 64], strides = [1, 1]} : vector<16x128xf32> to vector<1x64xf32>
    %301 = vector.broadcast %300 : vector<1x64xf32> to vector<32x64xf32>
    %302 = arith.addf %299, %301 : vector<32x64xf32>
    %303 = arith.addf %302, %63 : vector<32x64xf32>
    %304 = vector.extract_strided_slice %0 {offsets = [8, 0], sizes = [1, 64], strides = [1, 1]} : vector<16x128xf32> to vector<1x64xf32>
    %305 = vector.extract_strided_slice %0 {offsets = [9, 0], sizes = [1, 64], strides = [1, 1]} : vector<16x128xf32> to vector<1x64xf32>
    %cst_110 = arith.constant dense<0.000000e+00> : vector<32xf32>
    %306 = vector.multi_reduction <add>, %303, %cst_110 [1] : vector<32x64xf32> to vector<32xf32>
    %307 = vector.shape_cast %306 : vector<32xf32> to vector<32x1xf32>
    %cst_111 = arith.constant 6.400000e+01 : f32
    %308 = vector.broadcast %cst_111 : f32 to vector<32x1xf32>
    %309 = arith.divf %307, %308 : vector<32x1xf32>
    %310 = vector.broadcast %309 : vector<32x1xf32> to vector<32x64xf32>
    %311 = arith.subf %303, %310 : vector<32x64xf32>
    %312 = arith.mulf %311, %311 : vector<32x64xf32>
    %cst_112 = arith.constant dense<0.000000e+00> : vector<32xf32>
    %313 = vector.multi_reduction <add>, %312, %cst_112 [1] : vector<32x64xf32> to vector<32xf32>
    %314 = vector.shape_cast %313 : vector<32xf32> to vector<32x1xf32>
    %cst_113 = arith.constant 6.400000e+01 : f32
    %315 = vector.broadcast %cst_113 : f32 to vector<32x1xf32>
    %316 = arith.divf %314, %315 : vector<32x1xf32>
    %317 = vector.broadcast %309 : vector<32x1xf32> to vector<32x64xf32>
    %318 = arith.subf %303, %317 : vector<32x64xf32>
    %cst_114 = arith.constant 9.99999974E-6 : f32
    %319 = vector.broadcast %cst_114 : f32 to vector<32x1xf32>
    %320 = arith.addf %316, %319 : vector<32x1xf32>
    %321 = math.rsqrt %320 : vector<32x1xf32>
    %322 = vector.broadcast %321 : vector<32x1xf32> to vector<32x64xf32>
    %323 = arith.mulf %318, %322 : vector<32x64xf32>
    %324 = vector.broadcast %304 : vector<1x64xf32> to vector<32x64xf32>
    %325 = arith.mulf %323, %324 : vector<32x64xf32>
    %326 = vector.broadcast %305 : vector<1x64xf32> to vector<32x64xf32>
    %327 = arith.addf %325, %326 : vector<32x64xf32>
    %328 = arith.truncf %327 : vector<32x64xf32> to vector<32x64xbf16>
    %c0_115 = arith.constant 0 : index
    %c0_116 = arith.constant 0 : index
    %329 = vector.load %arg8[%c0_115, %c0_116] : memref<128x64xbf16, #tpu.memory_space<vmem>>, vector<64x64xbf16>
    %cst_117 = arith.constant dense<0.000000e+00> : vector<32x64xf32>
    %330 = tpu.matmul %328, %329, %cst_117 {dimension_numbers = #tpu.dot_dimension_numbers<[1], [0], [0], [1], [0, 0, 1, 1], [], []>} : vector<32x64xbf16>, vector<64x64xbf16>, vector<32x64xf32> -> vector<32x64xf32>
    %331 = vector.extract_strided_slice %0 {offsets = [10, 0], sizes = [1, 64], strides = [1, 1]} : vector<16x128xf32> to vector<1x64xf32>
    %332 = vector.broadcast %331 : vector<1x64xf32> to vector<32x64xf32>
    %333 = arith.addf %330, %332 : vector<32x64xf32>
    %cst_118 = arith.constant 0.000000e+00 : f32
    %334 = vector.broadcast %cst_118 : f32 to vector<32x64xf32>
    %335 = arith.maximumf %333, %334 : vector<32x64xf32>
    %336 = arith.truncf %335 : vector<32x64xf32> to vector<32x64xbf16>
    %c64_119 = arith.constant 64 : index
    %c0_120 = arith.constant 0 : index
    %337 = vector.load %arg8[%c64_119, %c0_120] : memref<128x64xbf16, #tpu.memory_space<vmem>>, vector<64x64xbf16>
    %cst_121 = arith.constant dense<0.000000e+00> : vector<32x64xf32>
    %338 = tpu.matmul %336, %337, %cst_121 {dimension_numbers = #tpu.dot_dimension_numbers<[1], [0], [0], [1], [0, 0, 1, 1], [], []>} : vector<32x64xbf16>, vector<64x64xbf16>, vector<32x64xf32> -> vector<32x64xf32>
    %339 = vector.extract_strided_slice %0 {offsets = [11, 0], sizes = [1, 64], strides = [1, 1]} : vector<16x128xf32> to vector<1x64xf32>
    %340 = vector.broadcast %339 : vector<1x64xf32> to vector<32x64xf32>
    %341 = arith.addf %338, %340 : vector<32x64xf32>
    %342 = arith.addf %341, %303 : vector<32x64xf32>
    %343 = arith.truncf %342 : vector<32x64xf32> to vector<32x64xbf16>
    %c64_122 = arith.constant 64 : index
    %c0_123 = arith.constant 0 : index
    %344 = vector.load %arg6[%c64_122, %c0_123] : memref<128x1536xbf16, #tpu.memory_space<vmem>>, vector<64x1536xbf16>
    %cst_124 = arith.constant dense<0.000000e+00> : vector<32x1536xf32>
    %345 = tpu.matmul %343, %344, %cst_124 {dimension_numbers = #tpu.dot_dimension_numbers<[1], [0], [0], [1], [0, 0, 1, 1], [], []>} : vector<32x64xbf16>, vector<64x1536xbf16>, vector<32x1536xf32> -> vector<32x1536xf32>
    %c0_125 = arith.constant 0 : index
    %c0_126 = arith.constant 0 : index
    %346 = vector.load %arg4[%c0_125, %c0_126] : memref<1x1536xf32, #tpu.memory_space<vmem>>, vector<1x1536xf32>
    %347 = vector.broadcast %346 : vector<1x1536xf32> to vector<32x1536xf32>
    %348 = arith.addf %345, %347 : vector<32x1536xf32>
    %349 = arith.truncf %348 : vector<32x1536xf32> to vector<32x1536xbf16>
    %c0_127 = arith.constant 0 : index
    %c0_128 = arith.constant 0 : index
    %350 = vector.load %arg10[%c0_127, %c0_128] : memref<32x1536xbf16, #tpu.memory_space<vmem>>, vector<32x1536xbf16>
    tpu.vector_store %arg10[%c0_127, %c0_128], %349 {strides = array<i32>} : memref<32x1536xbf16, #tpu.memory_space<vmem>>, vector<32x1536xbf16>,
    %c0_129 = arith.constant 0 : index
    %c0_130 = arith.constant 0 : index
    %351 = vector.load %arg10[%c0_129, %c0_130] : memref<32x1536xbf16, #tpu.memory_space<vmem>>, vector<32x64xbf16>
    %352 = vector.shape_cast %351 : vector<32x64xbf16> to vector<1x32x64xbf16>
    %c0_131 = arith.constant 0 : index
    %c512_132 = arith.constant 512 : index
    %353 = vector.load %arg10[%c0_131, %c512_132] : memref<32x1536xbf16, #tpu.memory_space<vmem>>, vector<32x64xbf16>
    %354 = vector.shape_cast %353 : vector<32x64xbf16> to vector<1x32x64xbf16>
    %c0_133 = arith.constant 0 : index
    %c1024_134 = arith.constant 1024 : index
    %355 = vector.load %arg10[%c0_133, %c1024_134] : memref<32x1536xbf16, #tpu.memory_space<vmem>>, vector<32x64xbf16>
    %356 = vector.shape_cast %355 : vector<32x64xbf16> to vector<1x32x64xbf16>
    %cst_135 = arith.constant dense<0.000000e+00> : vector<1x32x32xf32>
    %357 = tpu.matmul %352, %354, %cst_135 {dimension_numbers = #tpu.dot_dimension_numbers<[2], [2], [1], [1], [0, 0, 0, 1, 1, 1], [0], [0]>} : vector<1x32x64xbf16>, vector<1x32x64xbf16>, vector<1x32x32xf32> -> vector<1x32x32xf32>
    %358 = vector.broadcast %6 : vector<1x1x32xf32> to vector<1x32x32xf32>
    %359 = arith.addf %357, %358 : vector<1x32x32xf32>
    %cst_136 = arith.constant dense<0xFF800000> : vector<1x32xf32>
    %360 = vector.multi_reduction <maximumf>, %359, %cst_136 [2] : vector<1x32x32xf32> to vector<1x32xf32>
    %361 = vector.shape_cast %360 : vector<1x32xf32> to vector<1x32x1xf32>
    %362 = vector.broadcast %361 : vector<1x32x1xf32> to vector<1x32x32xf32>
    %363 = arith.subf %359, %362 : vector<1x32x32xf32>
    %364 = math.exp %363 : vector<1x32x32xf32>
    %cst_137 = arith.constant dense<0.000000e+00> : vector<1x32xf32>
    %365 = vector.multi_reduction <add>, %364, %cst_137 [2] : vector<1x32x32xf32> to vector<1x32xf32>
    %366 = vector.shape_cast %365 : vector<1x32xf32> to vector<1x32x1xf32>
    %367 = tpu.reciprocal %366 {approx = true} : vector<1x32x1xf32> -> vector<1x32x1xf32>
    %368 = vector.broadcast %367 : vector<1x32x1xf32> to vector<1x32x32xf32>
    %369 = arith.mulf %364, %368 : vector<1x32x32xf32>
    %370 = arith.truncf %369 : vector<1x32x32xf32> to vector<1x32x32xbf16>
    %cst_138 = arith.constant dense<0.000000e+00> : vector<1x32x64xf32>
    %371 = tpu.matmul %370, %356, %cst_138 {dimension_numbers = #tpu.dot_dimension_numbers<[2], [1], [1], [2], [0, 0, 0, 1, 1, 2], [0], [0]>} : vector<1x32x32xbf16>, vector<1x32x64xbf16>, vector<1x32x64xf32> -> vector<1x32x64xf32>
    %372 = vector.shape_cast %371 : vector<1x32x64xf32> to vector<32x64xf32>
    %373 = arith.truncf %372 : vector<32x64xf32> to vector<32x64xbf16>
    %c512_139 = arith.constant 512 : index
    %c0_140 = arith.constant 0 : index
    %374 = vector.load %arg7[%c512_139, %c0_140] : memref<1024x64xbf16, #tpu.memory_space<vmem>>, vector<64x64xbf16>
    %cst_141 = arith.constant dense<0.000000e+00> : vector<32x64xf32>
    %375 = tpu.matmul %373, %374, %cst_141 {dimension_numbers = #tpu.dot_dimension_numbers<[1], [0], [0], [1], [0, 0, 1, 1], [], []>} : vector<32x64xbf16>, vector<64x64xbf16>, vector<32x64xf32> -> vector<32x64xf32>
    %c0_142 = arith.constant 0 : index
    %c64_143 = arith.constant 64 : index
    %376 = vector.load %arg10[%c0_142, %c64_143] : memref<32x1536xbf16, #tpu.memory_space<vmem>>, vector<32x64xbf16>
    %377 = vector.shape_cast %376 : vector<32x64xbf16> to vector<1x32x64xbf16>
    %c0_144 = arith.constant 0 : index
    %c576_145 = arith.constant 576 : index
    %378 = vector.load %arg10[%c0_144, %c576_145] : memref<32x1536xbf16, #tpu.memory_space<vmem>>, vector<32x64xbf16>
    %379 = vector.shape_cast %378 : vector<32x64xbf16> to vector<1x32x64xbf16>
    %c0_146 = arith.constant 0 : index
    %c1088_147 = arith.constant 1088 : index
    %380 = vector.load %arg10[%c0_146, %c1088_147] : memref<32x1536xbf16, #tpu.memory_space<vmem>>, vector<32x64xbf16>
    %381 = vector.shape_cast %380 : vector<32x64xbf16> to vector<1x32x64xbf16>
    %cst_148 = arith.constant dense<0.000000e+00> : vector<1x32x32xf32>
    %382 = tpu.matmul %377, %379, %cst_148 {dimension_numbers = #tpu.dot_dimension_numbers<[2], [2], [1], [1], [0, 0, 0, 1, 1, 1], [0], [0]>} : vector<1x32x64xbf16>, vector<1x32x64xbf16>, vector<1x32x32xf32> -> vector<1x32x32xf32>
    %383 = vector.broadcast %6 : vector<1x1x32xf32> to vector<1x32x32xf32>
    %384 = arith.addf %382, %383 : vector<1x32x32xf32>
    %cst_149 = arith.constant dense<0xFF800000> : vector<1x32xf32>
    %385 = vector.multi_reduction <maximumf>, %384, %cst_149 [2] : vector<1x32x32xf32> to vector<1x32xf32>
    %386 = vector.shape_cast %385 : vector<1x32xf32> to vector<1x32x1xf32>
    %387 = vector.broadcast %386 : vector<1x32x1xf32> to vector<1x32x32xf32>
    %388 = arith.subf %384, %387 : vector<1x32x32xf32>
    %389 = math.exp %388 : vector<1x32x32xf32>
    %cst_150 = arith.constant dense<0.000000e+00> : vector<1x32xf32>
    %390 = vector.multi_reduction <add>, %389, %cst_150 [2] : vector<1x32x32xf32> to vector<1x32xf32>
    %391 = vector.shape_cast %390 : vector<1x32xf32> to vector<1x32x1xf32>
    %392 = tpu.reciprocal %391 {approx = true} : vector<1x32x1xf32> -> vector<1x32x1xf32>
    %393 = vector.broadcast %392 : vector<1x32x1xf32> to vector<1x32x32xf32>
    %394 = arith.mulf %389, %393 : vector<1x32x32xf32>
    %395 = arith.truncf %394 : vector<1x32x32xf32> to vector<1x32x32xbf16>
    %cst_151 = arith.constant dense<0.000000e+00> : vector<1x32x64xf32>
    %396 = tpu.matmul %395, %381, %cst_151 {dimension_numbers = #tpu.dot_dimension_numbers<[2], [1], [1], [2], [0, 0, 0, 1, 1, 2], [0], [0]>} : vector<1x32x32xbf16>, vector<1x32x64xbf16>, vector<1x32x64xf32> -> vector<1x32x64xf32>
    %397 = vector.shape_cast %396 : vector<1x32x64xf32> to vector<32x64xf32>
    %398 = arith.truncf %397 : vector<32x64xf32> to vector<32x64xbf16>
    %c576_152 = arith.constant 576 : index
    %c0_153 = arith.constant 0 : index
    %399 = vector.load %arg7[%c576_152, %c0_153] : memref<1024x64xbf16, #tpu.memory_space<vmem>>, vector<64x64xbf16>
    %cst_154 = arith.constant dense<0.000000e+00> : vector<32x64xf32>
    %400 = tpu.matmul %398, %399, %cst_154 {dimension_numbers = #tpu.dot_dimension_numbers<[1], [0], [0], [1], [0, 0, 1, 1], [], []>} : vector<32x64xbf16>, vector<64x64xbf16>, vector<32x64xf32> -> vector<32x64xf32>
    %401 = arith.addf %375, %400 : vector<32x64xf32>
    %c0_155 = arith.constant 0 : index
    %c128_156 = arith.constant 128 : index
    %402 = vector.load %arg10[%c0_155, %c128_156] : memref<32x1536xbf16, #tpu.memory_space<vmem>>, vector<32x64xbf16>
    %403 = vector.shape_cast %402 : vector<32x64xbf16> to vector<1x32x64xbf16>
    %c0_157 = arith.constant 0 : index
    %c640_158 = arith.constant 640 : index
    %404 = vector.load %arg10[%c0_157, %c640_158] : memref<32x1536xbf16, #tpu.memory_space<vmem>>, vector<32x64xbf16>
    %405 = vector.shape_cast %404 : vector<32x64xbf16> to vector<1x32x64xbf16>
    %c0_159 = arith.constant 0 : index
    %c1152_160 = arith.constant 1152 : index
    %406 = vector.load %arg10[%c0_159, %c1152_160] : memref<32x1536xbf16, #tpu.memory_space<vmem>>, vector<32x64xbf16>
    %407 = vector.shape_cast %406 : vector<32x64xbf16> to vector<1x32x64xbf16>
    %cst_161 = arith.constant dense<0.000000e+00> : vector<1x32x32xf32>
    %408 = tpu.matmul %403, %405, %cst_161 {dimension_numbers = #tpu.dot_dimension_numbers<[2], [2], [1], [1], [0, 0, 0, 1, 1, 1], [0], [0]>} : vector<1x32x64xbf16>, vector<1x32x64xbf16>, vector<1x32x32xf32> -> vector<1x32x32xf32>
    %409 = vector.broadcast %6 : vector<1x1x32xf32> to vector<1x32x32xf32>
    %410 = arith.addf %408, %409 : vector<1x32x32xf32>
    %cst_162 = arith.constant dense<0xFF800000> : vector<1x32xf32>
    %411 = vector.multi_reduction <maximumf>, %410, %cst_162 [2] : vector<1x32x32xf32> to vector<1x32xf32>
    %412 = vector.shape_cast %411 : vector<1x32xf32> to vector<1x32x1xf32>
    %413 = vector.broadcast %412 : vector<1x32x1xf32> to vector<1x32x32xf32>
    %414 = arith.subf %410, %413 : vector<1x32x32xf32>
    %415 = math.exp %414 : vector<1x32x32xf32>
    %cst_163 = arith.constant dense<0.000000e+00> : vector<1x32xf32>
    %416 = vector.multi_reduction <add>, %415, %cst_163 [2] : vector<1x32x32xf32> to vector<1x32xf32>
    %417 = vector.shape_cast %416 : vector<1x32xf32> to vector<1x32x1xf32>
    %418 = tpu.reciprocal %417 {approx = true} : vector<1x32x1xf32> -> vector<1x32x1xf32>
    %419 = vector.broadcast %418 : vector<1x32x1xf32> to vector<1x32x32xf32>
    %420 = arith.mulf %415, %419 : vector<1x32x32xf32>
    %421 = arith.truncf %420 : vector<1x32x32xf32> to vector<1x32x32xbf16>
    %cst_164 = arith.constant dense<0.000000e+00> : vector<1x32x64xf32>
    %422 = tpu.matmul %421, %407, %cst_164 {dimension_numbers = #tpu.dot_dimension_numbers<[2], [1], [1], [2], [0, 0, 0, 1, 1, 2], [0], [0]>} : vector<1x32x32xbf16>, vector<1x32x64xbf16>, vector<1x32x64xf32> -> vector<1x32x64xf32>
    %423 = vector.shape_cast %422 : vector<1x32x64xf32> to vector<32x64xf32>
    %424 = arith.truncf %423 : vector<32x64xf32> to vector<32x64xbf16>
    %c640_165 = arith.constant 640 : index
    %c0_166 = arith.constant 0 : index
    %425 = vector.load %arg7[%c640_165, %c0_166] : memref<1024x64xbf16, #tpu.memory_space<vmem>>, vector<64x64xbf16>
    %cst_167 = arith.constant dense<0.000000e+00> : vector<32x64xf32>
    %426 = tpu.matmul %424, %425, %cst_167 {dimension_numbers = #tpu.dot_dimension_numbers<[1], [0], [0], [1], [0, 0, 1, 1], [], []>} : vector<32x64xbf16>, vector<64x64xbf16>, vector<32x64xf32> -> vector<32x64xf32>
    %427 = arith.addf %401, %426 : vector<32x64xf32>
    %c0_168 = arith.constant 0 : index
    %c192_169 = arith.constant 192 : index
    %428 = vector.load %arg10[%c0_168, %c192_169] : memref<32x1536xbf16, #tpu.memory_space<vmem>>, vector<32x64xbf16>
    %429 = vector.shape_cast %428 : vector<32x64xbf16> to vector<1x32x64xbf16>
    %c0_170 = arith.constant 0 : index
    %c704_171 = arith.constant 704 : index
    %430 = vector.load %arg10[%c0_170, %c704_171] : memref<32x1536xbf16, #tpu.memory_space<vmem>>, vector<32x64xbf16>
    %431 = vector.shape_cast %430 : vector<32x64xbf16> to vector<1x32x64xbf16>
    %c0_172 = arith.constant 0 : index
    %c1216_173 = arith.constant 1216 : index
    %432 = vector.load %arg10[%c0_172, %c1216_173] : memref<32x1536xbf16, #tpu.memory_space<vmem>>, vector<32x64xbf16>
    %433 = vector.shape_cast %432 : vector<32x64xbf16> to vector<1x32x64xbf16>
    %cst_174 = arith.constant dense<0.000000e+00> : vector<1x32x32xf32>
    %434 = tpu.matmul %429, %431, %cst_174 {dimension_numbers = #tpu.dot_dimension_numbers<[2], [2], [1], [1], [0, 0, 0, 1, 1, 1], [0], [0]>} : vector<1x32x64xbf16>, vector<1x32x64xbf16>, vector<1x32x32xf32> -> vector<1x32x32xf32>
    %435 = vector.broadcast %6 : vector<1x1x32xf32> to vector<1x32x32xf32>
    %436 = arith.addf %434, %435 : vector<1x32x32xf32>
    %cst_175 = arith.constant dense<0xFF800000> : vector<1x32xf32>
    %437 = vector.multi_reduction <maximumf>, %436, %cst_175 [2] : vector<1x32x32xf32> to vector<1x32xf32>
    %438 = vector.shape_cast %437 : vector<1x32xf32> to vector<1x32x1xf32>
    %439 = vector.broadcast %438 : vector<1x32x1xf32> to vector<1x32x32xf32>
    %440 = arith.subf %436, %439 : vector<1x32x32xf32>
    %441 = math.exp %440 : vector<1x32x32xf32>
    %cst_176 = arith.constant dense<0.000000e+00> : vector<1x32xf32>
    %442 = vector.multi_reduction <add>, %441, %cst_176 [2] : vector<1x32x32xf32> to vector<1x32xf32>
    %443 = vector.shape_cast %442 : vector<1x32xf32> to vector<1x32x1xf32>
    %444 = tpu.reciprocal %443 {approx = true} : vector<1x32x1xf32> -> vector<1x32x1xf32>
    %445 = vector.broadcast %444 : vector<1x32x1xf32> to vector<1x32x32xf32>
    %446 = arith.mulf %441, %445 : vector<1x32x32xf32>
    %447 = arith.truncf %446 : vector<1x32x32xf32> to vector<1x32x32xbf16>
    %cst_177 = arith.constant dense<0.000000e+00> : vector<1x32x64xf32>
    %448 = tpu.matmul %447, %433, %cst_177 {dimension_numbers = #tpu.dot_dimension_numbers<[2], [1], [1], [2], [0, 0, 0, 1, 1, 2], [0], [0]>} : vector<1x32x32xbf16>, vector<1x32x64xbf16>, vector<1x32x64xf32> -> vector<1x32x64xf32>
    %449 = vector.shape_cast %448 : vector<1x32x64xf32> to vector<32x64xf32>
    %450 = arith.truncf %449 : vector<32x64xf32> to vector<32x64xbf16>
    %c704_178 = arith.constant 704 : index
    %c0_179 = arith.constant 0 : index
    %451 = vector.load %arg7[%c704_178, %c0_179] : memref<1024x64xbf16, #tpu.memory_space<vmem>>, vector<64x64xbf16>
    %cst_180 = arith.constant dense<0.000000e+00> : vector<32x64xf32>
    %452 = tpu.matmul %450, %451, %cst_180 {dimension_numbers = #tpu.dot_dimension_numbers<[1], [0], [0], [1], [0, 0, 1, 1], [], []>} : vector<32x64xbf16>, vector<64x64xbf16>, vector<32x64xf32> -> vector<32x64xf32>
    %453 = arith.addf %427, %452 : vector<32x64xf32>
    %c0_181 = arith.constant 0 : index
    %c256_182 = arith.constant 256 : index
    %454 = vector.load %arg10[%c0_181, %c256_182] : memref<32x1536xbf16, #tpu.memory_space<vmem>>, vector<32x64xbf16>
    %455 = vector.shape_cast %454 : vector<32x64xbf16> to vector<1x32x64xbf16>
    %c0_183 = arith.constant 0 : index
    %c768_184 = arith.constant 768 : index
    %456 = vector.load %arg10[%c0_183, %c768_184] : memref<32x1536xbf16, #tpu.memory_space<vmem>>, vector<32x64xbf16>
    %457 = vector.shape_cast %456 : vector<32x64xbf16> to vector<1x32x64xbf16>
    %c0_185 = arith.constant 0 : index
    %c1280_186 = arith.constant 1280 : index
    %458 = vector.load %arg10[%c0_185, %c1280_186] : memref<32x1536xbf16, #tpu.memory_space<vmem>>, vector<32x64xbf16>
    %459 = vector.shape_cast %458 : vector<32x64xbf16> to vector<1x32x64xbf16>
    %cst_187 = arith.constant dense<0.000000e+00> : vector<1x32x32xf32>
    %460 = tpu.matmul %455, %457, %cst_187 {dimension_numbers = #tpu.dot_dimension_numbers<[2], [2], [1], [1], [0, 0, 0, 1, 1, 1], [0], [0]>} : vector<1x32x64xbf16>, vector<1x32x64xbf16>, vector<1x32x32xf32> -> vector<1x32x32xf32>
    %461 = vector.broadcast %6 : vector<1x1x32xf32> to vector<1x32x32xf32>
    %462 = arith.addf %460, %461 : vector<1x32x32xf32>
    %cst_188 = arith.constant dense<0xFF800000> : vector<1x32xf32>
    %463 = vector.multi_reduction <maximumf>, %462, %cst_188 [2] : vector<1x32x32xf32> to vector<1x32xf32>
    %464 = vector.shape_cast %463 : vector<1x32xf32> to vector<1x32x1xf32>
    %465 = vector.broadcast %464 : vector<1x32x1xf32> to vector<1x32x32xf32>
    %466 = arith.subf %462, %465 : vector<1x32x32xf32>
    %467 = math.exp %466 : vector<1x32x32xf32>
    %cst_189 = arith.constant dense<0.000000e+00> : vector<1x32xf32>
    %468 = vector.multi_reduction <add>, %467, %cst_189 [2] : vector<1x32x32xf32> to vector<1x32xf32>
    %469 = vector.shape_cast %468 : vector<1x32xf32> to vector<1x32x1xf32>
    %470 = tpu.reciprocal %469 {approx = true} : vector<1x32x1xf32> -> vector<1x32x1xf32>
    %471 = vector.broadcast %470 : vector<1x32x1xf32> to vector<1x32x32xf32>
    %472 = arith.mulf %467, %471 : vector<1x32x32xf32>
    %473 = arith.truncf %472 : vector<1x32x32xf32> to vector<1x32x32xbf16>
    %cst_190 = arith.constant dense<0.000000e+00> : vector<1x32x64xf32>
    %474 = tpu.matmul %473, %459, %cst_190 {dimension_numbers = #tpu.dot_dimension_numbers<[2], [1], [1], [2], [0, 0, 0, 1, 1, 2], [0], [0]>} : vector<1x32x32xbf16>, vector<1x32x64xbf16>, vector<1x32x64xf32> -> vector<1x32x64xf32>
    %475 = vector.shape_cast %474 : vector<1x32x64xf32> to vector<32x64xf32>
    %476 = arith.truncf %475 : vector<32x64xf32> to vector<32x64xbf16>
    %c768_191 = arith.constant 768 : index
    %c0_192 = arith.constant 0 : index
    %477 = vector.load %arg7[%c768_191, %c0_192] : memref<1024x64xbf16, #tpu.memory_space<vmem>>, vector<64x64xbf16>
    %cst_193 = arith.constant dense<0.000000e+00> : vector<32x64xf32>
    %478 = tpu.matmul %476, %477, %cst_193 {dimension_numbers = #tpu.dot_dimension_numbers<[1], [0], [0], [1], [0, 0, 1, 1], [], []>} : vector<32x64xbf16>, vector<64x64xbf16>, vector<32x64xf32> -> vector<32x64xf32>
    %479 = arith.addf %453, %478 : vector<32x64xf32>
    %c0_194 = arith.constant 0 : index
    %c320_195 = arith.constant 320 : index
    %480 = vector.load %arg10[%c0_194, %c320_195] : memref<32x1536xbf16, #tpu.memory_space<vmem>>, vector<32x64xbf16>
    %481 = vector.shape_cast %480 : vector<32x64xbf16> to vector<1x32x64xbf16>
    %c0_196 = arith.constant 0 : index
    %c832_197 = arith.constant 832 : index
    %482 = vector.load %arg10[%c0_196, %c832_197] : memref<32x1536xbf16, #tpu.memory_space<vmem>>, vector<32x64xbf16>
    %483 = vector.shape_cast %482 : vector<32x64xbf16> to vector<1x32x64xbf16>
    %c0_198 = arith.constant 0 : index
    %c1344_199 = arith.constant 1344 : index
    %484 = vector.load %arg10[%c0_198, %c1344_199] : memref<32x1536xbf16, #tpu.memory_space<vmem>>, vector<32x64xbf16>
    %485 = vector.shape_cast %484 : vector<32x64xbf16> to vector<1x32x64xbf16>
    %cst_200 = arith.constant dense<0.000000e+00> : vector<1x32x32xf32>
    %486 = tpu.matmul %481, %483, %cst_200 {dimension_numbers = #tpu.dot_dimension_numbers<[2], [2], [1], [1], [0, 0, 0, 1, 1, 1], [0], [0]>} : vector<1x32x64xbf16>, vector<1x32x64xbf16>, vector<1x32x32xf32> -> vector<1x32x32xf32>
    %487 = vector.broadcast %6 : vector<1x1x32xf32> to vector<1x32x32xf32>
    %488 = arith.addf %486, %487 : vector<1x32x32xf32>
    %cst_201 = arith.constant dense<0xFF800000> : vector<1x32xf32>
    %489 = vector.multi_reduction <maximumf>, %488, %cst_201 [2] : vector<1x32x32xf32> to vector<1x32xf32>
    %490 = vector.shape_cast %489 : vector<1x32xf32> to vector<1x32x1xf32>
    %491 = vector.broadcast %490 : vector<1x32x1xf32> to vector<1x32x32xf32>
    %492 = arith.subf %488, %491 : vector<1x32x32xf32>
    %493 = math.exp %492 : vector<1x32x32xf32>
    %cst_202 = arith.constant dense<0.000000e+00> : vector<1x32xf32>
    %494 = vector.multi_reduction <add>, %493, %cst_202 [2] : vector<1x32x32xf32> to vector<1x32xf32>
    %495 = vector.shape_cast %494 : vector<1x32xf32> to vector<1x32x1xf32>
    %496 = tpu.reciprocal %495 {approx = true} : vector<1x32x1xf32> -> vector<1x32x1xf32>
    %497 = vector.broadcast %496 : vector<1x32x1xf32> to vector<1x32x32xf32>
    %498 = arith.mulf %493, %497 : vector<1x32x32xf32>
    %499 = arith.truncf %498 : vector<1x32x32xf32> to vector<1x32x32xbf16>
    %cst_203 = arith.constant dense<0.000000e+00> : vector<1x32x64xf32>
    %500 = tpu.matmul %499, %485, %cst_203 {dimension_numbers = #tpu.dot_dimension_numbers<[2], [1], [1], [2], [0, 0, 0, 1, 1, 2], [0], [0]>} : vector<1x32x32xbf16>, vector<1x32x64xbf16>, vector<1x32x64xf32> -> vector<1x32x64xf32>
    %501 = vector.shape_cast %500 : vector<1x32x64xf32> to vector<32x64xf32>
    %502 = arith.truncf %501 : vector<32x64xf32> to vector<32x64xbf16>
    %c832_204 = arith.constant 832 : index
    %c0_205 = arith.constant 0 : index
    %503 = vector.load %arg7[%c832_204, %c0_205] : memref<1024x64xbf16, #tpu.memory_space<vmem>>, vector<64x64xbf16>
    %cst_206 = arith.constant dense<0.000000e+00> : vector<32x64xf32>
    %504 = tpu.matmul %502, %503, %cst_206 {dimension_numbers = #tpu.dot_dimension_numbers<[1], [0], [0], [1], [0, 0, 1, 1], [], []>} : vector<32x64xbf16>, vector<64x64xbf16>, vector<32x64xf32> -> vector<32x64xf32>
    %505 = arith.addf %479, %504 : vector<32x64xf32>
    %c0_207 = arith.constant 0 : index
    %c384_208 = arith.constant 384 : index
    %506 = vector.load %arg10[%c0_207, %c384_208] : memref<32x1536xbf16, #tpu.memory_space<vmem>>, vector<32x64xbf16>
    %507 = vector.shape_cast %506 : vector<32x64xbf16> to vector<1x32x64xbf16>
    %c0_209 = arith.constant 0 : index
    %c896_210 = arith.constant 896 : index
    %508 = vector.load %arg10[%c0_209, %c896_210] : memref<32x1536xbf16, #tpu.memory_space<vmem>>, vector<32x64xbf16>
    %509 = vector.shape_cast %508 : vector<32x64xbf16> to vector<1x32x64xbf16>
    %c0_211 = arith.constant 0 : index
    %c1408_212 = arith.constant 1408 : index
    %510 = vector.load %arg10[%c0_211, %c1408_212] : memref<32x1536xbf16, #tpu.memory_space<vmem>>, vector<32x64xbf16>
    %511 = vector.shape_cast %510 : vector<32x64xbf16> to vector<1x32x64xbf16>
    %cst_213 = arith.constant dense<0.000000e+00> : vector<1x32x32xf32>
    %512 = tpu.matmul %507, %509, %cst_213 {dimension_numbers = #tpu.dot_dimension_numbers<[2], [2], [1], [1], [0, 0, 0, 1, 1, 1], [0], [0]>} : vector<1x32x64xbf16>, vector<1x32x64xbf16>, vector<1x32x32xf32> -> vector<1x32x32xf32>
    %513 = vector.broadcast %6 : vector<1x1x32xf32> to vector<1x32x32xf32>
    %514 = arith.addf %512, %513 : vector<1x32x32xf32>
    %cst_214 = arith.constant dense<0xFF800000> : vector<1x32xf32>
    %515 = vector.multi_reduction <maximumf>, %514, %cst_214 [2] : vector<1x32x32xf32> to vector<1x32xf32>
    %516 = vector.shape_cast %515 : vector<1x32xf32> to vector<1x32x1xf32>
    %517 = vector.broadcast %516 : vector<1x32x1xf32> to vector<1x32x32xf32>
    %518 = arith.subf %514, %517 : vector<1x32x32xf32>
    %519 = math.exp %518 : vector<1x32x32xf32>
    %cst_215 = arith.constant dense<0.000000e+00> : vector<1x32xf32>
    %520 = vector.multi_reduction <add>, %519, %cst_215 [2] : vector<1x32x32xf32> to vector<1x32xf32>
    %521 = vector.shape_cast %520 : vector<1x32xf32> to vector<1x32x1xf32>
    %522 = tpu.reciprocal %521 {approx = true} : vector<1x32x1xf32> -> vector<1x32x1xf32>
    %523 = vector.broadcast %522 : vector<1x32x1xf32> to vector<1x32x32xf32>
    %524 = arith.mulf %519, %523 : vector<1x32x32xf32>
    %525 = arith.truncf %524 : vector<1x32x32xf32> to vector<1x32x32xbf16>
    %cst_216 = arith.constant dense<0.000000e+00> : vector<1x32x64xf32>
    %526 = tpu.matmul %525, %511, %cst_216 {dimension_numbers = #tpu.dot_dimension_numbers<[2], [1], [1], [2], [0, 0, 0, 1, 1, 2], [0], [0]>} : vector<1x32x32xbf16>, vector<1x32x64xbf16>, vector<1x32x64xf32> -> vector<1x32x64xf32>
    %527 = vector.shape_cast %526 : vector<1x32x64xf32> to vector<32x64xf32>
    %528 = arith.truncf %527 : vector<32x64xf32> to vector<32x64xbf16>
    %c896_217 = arith.constant 896 : index
    %c0_218 = arith.constant 0 : index
    %529 = vector.load %arg7[%c896_217, %c0_218] : memref<1024x64xbf16, #tpu.memory_space<vmem>>, vector<64x64xbf16>
    %cst_219 = arith.constant dense<0.000000e+00> : vector<32x64xf32>
    %530 = tpu.matmul %528, %529, %cst_219 {dimension_numbers = #tpu.dot_dimension_numbers<[1], [0], [0], [1], [0, 0, 1, 1], [], []>} : vector<32x64xbf16>, vector<64x64xbf16>, vector<32x64xf32> -> vector<32x64xf32>
    %531 = arith.addf %505, %530 : vector<32x64xf32>
    %c0_220 = arith.constant 0 : index
    %c448_221 = arith.constant 448 : index
    %532 = vector.load %arg10[%c0_220, %c448_221] : memref<32x1536xbf16, #tpu.memory_space<vmem>>, vector<32x64xbf16>
    %533 = vector.shape_cast %532 : vector<32x64xbf16> to vector<1x32x64xbf16>
    %c0_222 = arith.constant 0 : index
    %c960_223 = arith.constant 960 : index
    %534 = vector.load %arg10[%c0_222, %c960_223] : memref<32x1536xbf16, #tpu.memory_space<vmem>>, vector<32x64xbf16>
    %535 = vector.shape_cast %534 : vector<32x64xbf16> to vector<1x32x64xbf16>
    %c0_224 = arith.constant 0 : index
    %c1472_225 = arith.constant 1472 : index
    %536 = vector.load %arg10[%c0_224, %c1472_225] : memref<32x1536xbf16, #tpu.memory_space<vmem>>, vector<32x64xbf16>
    %537 = vector.shape_cast %536 : vector<32x64xbf16> to vector<1x32x64xbf16>
    %cst_226 = arith.constant dense<0.000000e+00> : vector<1x32x32xf32>
    %538 = tpu.matmul %533, %535, %cst_226 {dimension_numbers = #tpu.dot_dimension_numbers<[2], [2], [1], [1], [0, 0, 0, 1, 1, 1], [0], [0]>} : vector<1x32x64xbf16>, vector<1x32x64xbf16>, vector<1x32x32xf32> -> vector<1x32x32xf32>
    %539 = vector.broadcast %6 : vector<1x1x32xf32> to vector<1x32x32xf32>
    %540 = arith.addf %538, %539 : vector<1x32x32xf32>
    %cst_227 = arith.constant dense<0xFF800000> : vector<1x32xf32>
    %541 = vector.multi_reduction <maximumf>, %540, %cst_227 [2] : vector<1x32x32xf32> to vector<1x32xf32>
    %542 = vector.shape_cast %541 : vector<1x32xf32> to vector<1x32x1xf32>
    %543 = vector.broadcast %542 : vector<1x32x1xf32> to vector<1x32x32xf32>
    %544 = arith.subf %540, %543 : vector<1x32x32xf32>
    %545 = math.exp %544 : vector<1x32x32xf32>
    %cst_228 = arith.constant dense<0.000000e+00> : vector<1x32xf32>
    %546 = vector.multi_reduction <add>, %545, %cst_228 [2] : vector<1x32x32xf32> to vector<1x32xf32>
    %547 = vector.shape_cast %546 : vector<1x32xf32> to vector<1x32x1xf32>
    %548 = tpu.reciprocal %547 {approx = true} : vector<1x32x1xf32> -> vector<1x32x1xf32>
    %549 = vector.broadcast %548 : vector<1x32x1xf32> to vector<1x32x32xf32>
    %550 = arith.mulf %545, %549 : vector<1x32x32xf32>
    %551 = arith.truncf %550 : vector<1x32x32xf32> to vector<1x32x32xbf16>
    %cst_229 = arith.constant dense<0.000000e+00> : vector<1x32x64xf32>
    %552 = tpu.matmul %551, %537, %cst_229 {dimension_numbers = #tpu.dot_dimension_numbers<[2], [1], [1], [2], [0, 0, 0, 1, 1, 2], [0], [0]>} : vector<1x32x32xbf16>, vector<1x32x64xbf16>, vector<1x32x64xf32> -> vector<1x32x64xf32>
    %553 = vector.shape_cast %552 : vector<1x32x64xf32> to vector<32x64xf32>
    %554 = arith.truncf %553 : vector<32x64xf32> to vector<32x64xbf16>
    %c960_230 = arith.constant 960 : index
    %c0_231 = arith.constant 0 : index
    %555 = vector.load %arg7[%c960_230, %c0_231] : memref<1024x64xbf16, #tpu.memory_space<vmem>>, vector<64x64xbf16>
    %cst_232 = arith.constant dense<0.000000e+00> : vector<32x64xf32>
    %556 = tpu.matmul %554, %555, %cst_232 {dimension_numbers = #tpu.dot_dimension_numbers<[1], [0], [0], [1], [0, 0, 1, 1], [], []>} : vector<32x64xbf16>, vector<64x64xbf16>, vector<32x64xf32> -> vector<32x64xf32>
    %557 = arith.addf %531, %556 : vector<32x64xf32>
    %558 = vector.extract_strided_slice %0 {offsets = [12, 0], sizes = [1, 64], strides = [1, 1]} : vector<16x128xf32> to vector<1x64xf32>
    %559 = vector.broadcast %558 : vector<1x64xf32> to vector<32x64xf32>
    %560 = arith.addf %557, %559 : vector<32x64xf32>
    %561 = vector.extract_strided_slice %0 {offsets = [13, 0], sizes = [1, 64], strides = [1, 1]} : vector<16x128xf32> to vector<1x64xf32>
    %562 = vector.extract_strided_slice %0 {offsets = [14, 0], sizes = [1, 64], strides = [1, 1]} : vector<16x128xf32> to vector<1x64xf32>
    %cst_233 = arith.constant dense<0.000000e+00> : vector<32xf32>
    %563 = vector.multi_reduction <add>, %560, %cst_233 [1] : vector<32x64xf32> to vector<32xf32>
    %564 = vector.shape_cast %563 : vector<32xf32> to vector<32x1xf32>
    %cst_234 = arith.constant 6.400000e+01 : f32
    %565 = vector.broadcast %cst_234 : f32 to vector<32x1xf32>
    %566 = arith.divf %564, %565 : vector<32x1xf32>
    %567 = vector.broadcast %566 : vector<32x1xf32> to vector<32x64xf32>
    %568 = arith.subf %560, %567 : vector<32x64xf32>
    %569 = arith.mulf %568, %568 : vector<32x64xf32>
    %cst_235 = arith.constant dense<0.000000e+00> : vector<32xf32>
    %570 = vector.multi_reduction <add>, %569, %cst_235 [1] : vector<32x64xf32> to vector<32xf32>
    %571 = vector.shape_cast %570 : vector<32xf32> to vector<32x1xf32>
    %cst_236 = arith.constant 6.400000e+01 : f32
    %572 = vector.broadcast %cst_236 : f32 to vector<32x1xf32>
    %573 = arith.divf %571, %572 : vector<32x1xf32>
    %574 = vector.broadcast %566 : vector<32x1xf32> to vector<32x64xf32>
    %575 = arith.subf %560, %574 : vector<32x64xf32>
    %cst_237 = arith.constant 9.99999974E-6 : f32
    %576 = vector.broadcast %cst_237 : f32 to vector<32x1xf32>
    %577 = arith.addf %573, %576 : vector<32x1xf32>
    %578 = math.rsqrt %577 : vector<32x1xf32>
    %579 = vector.broadcast %578 : vector<32x1xf32> to vector<32x64xf32>
    %580 = arith.mulf %575, %579 : vector<32x64xf32>
    %581 = vector.broadcast %561 : vector<1x64xf32> to vector<32x64xf32>
    %582 = arith.mulf %580, %581 : vector<32x64xf32>
    %583 = vector.broadcast %562 : vector<1x64xf32> to vector<32x64xf32>
    %584 = arith.addf %582, %583 : vector<32x64xf32>
    %c0_238 = arith.constant 0 : index
    %c0_239 = arith.constant 0 : index
    %585 = vector.load %arg9[%c0_238, %c0_239] : memref<32x64xf32, #tpu.memory_space<vmem>>, vector<32x64xf32>
    tpu.vector_store %arg9[%c0_238, %c0_239], %584 {strides = array<i32>} : memref<32x64xf32, #tpu.memory_space<vmem>>, vector<32x64xf32>,
    return
  }
  func.func @transform_0(%arg0: i32) -> (i32, i32) {
    %c0_i32 = arith.constant 0 : i32
    %c0_i32_0 = arith.constant 0 : i32
    return %arg0, %c0_i32 : i32, i32
  }
  func.func @transform_1(%arg0: i32) -> (i32, i32) {
    %c0_i32 = arith.constant 0 : i32
    %c0_i32_0 = arith.constant 0 : i32
    %c0_i32_1 = arith.constant 0 : i32
    return %c0_i32, %c0_i32_0 : i32, i32
  }
  func.func @transform_2(%arg0: i32) -> (i32, i32) {
    %c0_i32 = arith.constant 0 : i32
    %c0_i32_0 = arith.constant 0 : i32
    %c0_i32_1 = arith.constant 0 : i32
    return %c0_i32, %c0_i32_0 : i32, i32
  }
  func.func @transform_3(%arg0: i32) -> (i32, i32) {
    %c0_i32 = arith.constant 0 : i32
    %c0_i32_0 = arith.constant 0 : i32
    %c0_i32_1 = arith.constant 0 : i32
    return %c0_i32, %c0_i32_0 : i32, i32
  }
  func.func @transform_4(%arg0: i32) -> (i32, i32) {
    %c0_i32 = arith.constant 0 : i32
    %c0_i32_0 = arith.constant 0 : i32
    %c0_i32_1 = arith.constant 0 : i32
    return %c0_i32, %c0_i32_0 : i32, i32
  }
  func.func @transform_5(%arg0: i32) -> (i32, i32) {
    %c0_i32 = arith.constant 0 : i32
    %c0_i32_0 = arith.constant 0 : i32
    %c0_i32_1 = arith.constant 0 : i32
    return %c0_i32, %c0_i32_0 : i32, i32
  }
  func.func @transform_6(%arg0: i32) -> (i32, i32) {
    %c0_i32 = arith.constant 0 : i32
    %c0_i32_0 = arith.constant 0 : i32
    %c0_i32_1 = arith.constant 0 : i32
    return %c0_i32, %c0_i32_0 : i32, i32
  }
  func.func @transform_7(%arg0: i32) -> (i32, i32) {
    %c0_i32 = arith.constant 0 : i32
    %c0_i32_0 = arith.constant 0 : i32
    %c0_i32_1 = arith.constant 0 : i32
    return %c0_i32, %c0_i32_0 : i32, i32
  }
  func.func @transform_8(%arg0: i32) -> (i32, i32) {
    %c0_i32 = arith.constant 0 : i32
    %c0_i32_0 = arith.constant 0 : i32
    return %arg0, %c0_i32 : i32, i32
  }
}

</mosaic_0001>

<llo_original>
// kernel: vit_forward.3
$region0: #{vit_forward.3}
  #allocation0 [shape = 'u32[]', space=smem, size = 0x4, offset = 0x4, fixed_abs, tag = 'smem constant byte address 0x4 - core index']
  #allocation1 [shape = 'u32[144,128]{1,0:T(1,128)}', space=vmem, size = 0x12000, scoped, tag = 'internal scratch']
  %s0 = inlined_call_operand.vmem [shape: bf16[128,25], index: 0, kind: input, shape index: {}]
  %s1 = inlined_call_operand.vmem [shape: bf16[25,625], index: 1, kind: input, shape index: {}]
  %s2 = inlined_call_operand.vmem [shape: f32[128,625], index: 2, kind: output, shape index: {}]
  %s3 = sld [smem:[#allocation0]]
  $region41: #{vit_forward.3} parent=0
    _
  %s5 = ssub.s32 1, %s3
  %s6 = scalar_select 0, %s5, %s3
  loop: start=0, step=1, limit=4
  $region2: #{vit_forward.3} parent=0 // loop_pre_header
    _
  $region3: #{vit_forward.3} parent=0 // loop_header
    %s8 = sphi 0, %s12
    %p9 = scmp.ge.s32.totalorder %s8, 4
    %s18 = sphi 0, %s20
    %s21 = sphi 0, %s18
    %s22 = sphi 0, %s21
    %s38 = sphi 0, %s22
    %s42 = sphi 0, %s42
    %s44 = sphi 0, %s42
    %s45 = sphi 0, %s44
    %s59 = sphi 0, %s45
    %s65 = sphi 0, %s67
    %s68 = sphi 0, %s65
    %s69 = sphi 0, %s68
    %s85 = sphi 0, %s69
  $region4: #{vit_forward.3} parent=0 // loop_header_branch
    %11 = sbr.rel (%p9) target = $region8
  $region5: #{vit_forward.3} parent=0 // loop_body
    %s13 = ssub.s32 %s8, 1
    %s14 = ssub.s32 %s8, 2
    %s15 = sadd.s32 %s8, 1
    %s16 = ssub.s32 %s8, %s15
    %p17 = scmp.eq.s32.totalorder %s16, 0
    %s19 = sadd.s32 %s18, 1
    %s20 = scalar_select %p17, %s18, %s19
    %p23 = pneg %p17
    %p24 = scmp.eq.s32.totalorder %s8, 1
    %p25 = por %p23, %p24
    %p26 = scmp.ne.s32.totalorder %s18, %s21
    %p27 = scmp.eq.s32.totalorder %s8, 0
    %p28 = por %p26, %p27
    %p29 = scmp.ne.s32.totalorder %s18, %s21
    %p30 = scmp.eq.s32.totalorder %s13, 1
    %p31 = por %p29, %p30
    %p32 = scmp.ne.s32.totalorder %s21, %s22
    %p33 = scmp.eq.s32.totalorder %s13, 0
    %p34 = por %p32, %p33
    %p35 = scmp.ne.s32.totalorder %s21, %s22
    %p36 = scmp.eq.s32.totalorder %s14, 1
    %p37 = por %p35, %p36
    %p39 = scmp.ne.s32.totalorder %s22, %s38
    %p40 = scmp.eq.s32.totalorder %s14, 0
    %p41 = por %p39, %p40
    %s43 = sadd.s32 %s42, 1
    %p46 = scmp.eq.s32.totalorder %s8, 1
    %p47 = scmp.ne.s32.totalorder %s42, %s44
    %p48 = scmp.eq.s32.totalorder %s8, 0
    %p49 = por %p47, %p48
    %p50 = scmp.ne.s32.totalorder %s42, %s44
    %p51 = scmp.eq.s32.totalorder %s13, 1
    %p52 = por %p50, %p51
    %p53 = scmp.ne.s32.totalorder %s44, %s45
    %p54 = scmp.eq.s32.totalorder %s13, 0
    %p55 = por %p53, %p54
    %p56 = scmp.ne.s32.totalorder %s44, %s45
    %p57 = scmp.eq.s32.totalorder %s14, 1
    %p58 = por %p56, %p57
    %p60 = scmp.ne.s32.totalorder %s45, %s59
    %p61 = scmp.eq.s32.totalorder %s14, 0
    %p62 = por %p60, %p61
    %s63 = ssub.s32 %s8, %s15
    %p64 = scmp.eq.s32.totalorder %s63, 0
    %s66 = sadd.s32 %s65, 1
    %s67 = scalar_select %p64, %s65, %s66
    %p70 = pneg %p64
    %p71 = scmp.eq.s32.totalorder %s8, 1
    %p72 = por %p70, %p71
    %p73 = scmp.ne.s32.totalorder %s65, %s68
    %p74 = scmp.eq.s32.totalorder %s8, 0
    %p75 = por %p73, %p74
    %p76 = scmp.ne.s32.totalorder %s65, %s68
    %p77 = scmp.eq.s32.totalorder %s13, 1
    %p78 = por %p76, %p77
    %p79 = scmp.ne.s32.totalorder %s68, %s69
    %p80 = scmp.eq.s32.totalorder %s13, 0
    %p81 = por %p79, %p80
    %p82 = scmp.ne.s32.totalorder %s68, %s69
    %p83 = scmp.eq.s32.totalorder %s14, 1
    %p84 = por %p82, %p83
    %p86 = scmp.ne.s32.totalorder %s69, %s85
    %p87 = scmp.eq.s32.totalorder %s14, 0
    %p88 = por %p86, %p87
    %p89 = scmp.le.s32.totalorder 1, %s8
    %p90 = scmp.lt.s32.totalorder %s8, 3
    %p91 = pnand %p89, %p90
    %p92 = pneg %p91
    // Predicated region
    $region9: #{vit_forward.3} parent=5 // pred_check
      _
    $region10: #{vit_forward.3} parent=5 // pred_check_branch
      %94 = sbr.rel (%p91) target = $region12
    $region11: #{vit_forward.3} parent=5 // pred_region
      %s95 = ssub.s32 %s8, 1
      // Predicated region
      $region13: #{vit_forward.3} parent=11 // pred_check
        %p96 = pneg %p55
      $region14: #{vit_forward.3} parent=11 // pred_check_branch
        %98 = sbr.rel (%p96) target = $region16
      $region15: #{vit_forward.3} parent=11 // pred_region
        _
      $region16: #{vit_forward.3} parent=11 // pred_fallthru
        _
    $region12: #{vit_forward.3} parent=5 // pred_fallthru
      _
    %p99 = scmp.lt.s32.totalorder %s8, 2
    // Predicated region
    $region17: #{vit_forward.3} parent=5 // pred_check
      %p100 = pneg %p99
    $region18: #{vit_forward.3} parent=5 // pred_check_branch
      %102 = sbr.rel (%p100) target = $region20
    $region19: #{vit_forward.3} parent=5 // pred_region
      // Predicated region
      $region21: #{vit_forward.3} parent=19 // pred_check
        %p103 = pneg %p28
      $region22: #{vit_forward.3} parent=19 // pred_check_branch
        %105 = sbr.rel (%p103) target = $region24
      $region23: #{vit_forward.3} parent=19 // pred_region
        %s106 = smul.u32 8, %s8
        %p107 = scmp.lt.s32.totalorder %s106, 15
        %s108 = scalar_select %p107, %s106, 15
        %s109 = smul.addr %s108, 4
        %s110 = scalar_lea.vmem %s0, %s109
        %s111 = smul.u32 8, %s8
      $region24: #{vit_forward.3} parent=19 // pred_fallthru
        _
    $region20: #{vit_forward.3} parent=5 // pred_fallthru
      _
    %p112 = scmp.le.s32.totalorder 1, %s8
    %p113 = scmp.lt.s32.totalorder %s8, 3
    %p114 = pnand %p112, %p113
    %p115 = pneg %p114
    // Predicated region
    $region25: #{vit_forward.3} parent=5 // pred_check
      _
    $region26: #{vit_forward.3} parent=5 // pred_check_branch
      %117 = sbr.rel (%p114) target = $region28
    $region27: #{vit_forward.3} parent=5 // pred_region
      %s118 = ssub.s32 %s8, 1
      %s119 = smul.u32 8, %s13
      %p120 = scmp.lt.s32.totalorder %s119, 15
      %s121 = scalar_select %p120, %s119, 15
      %s122 = smul.addr %s121, 4
      %s123 = scalar_lea.vmem %s0, %s122
      %p124 = pneg %p34
      %p125 = pneg %p31
      %p126 = pneg %p55
      %p127 = pneg %p52
      %p128 = pneg %p81
      %p129 = pneg %p78
      %s130 = smul.u32 8, %s13
      %p131 = scmp.lt.s32.totalorder %s130, 15
      %s132 = scalar_select %p131, %s130, 15
      %s133 = smul.addr %s132, 5
      %s134 = smul.addr %s133, 8
      %s135 = scalar_lea.vmem %s2, %s134
      %s136 = smul.u32 8, %s13
      %p137 = scmp.lt.s32.totalorder %s136, 15
      %s138 = scalar_select %p137, %s136, 15
      %s139 = smul.addr %s138, 4
      %s140 = scalar_lea.vmem %s0, %s139
      %s141 = smul.u32 8, %s13
      %s142 = smul.u32 8, %s13
      %p143 = scmp.lt.s32.totalorder %s142, 15
      %s144 = scalar_select %p143, %s142, 15
      %s145 = smul.addr %s144, 5
      %s146 = smul.addr %s145, 8
      %s147 = scalar_lea.vmem %s2, %s146
      %s148 = smul.u32 8, %s13
      %v150 = vld [vmem:[%s140] sm:$0xf]
      %v151 = vld [vmem:[%s140 + $0x4] sm:$0xf]
      %v152 = vld [vmem:[%s140 + $0x8] sm:$0xf]
      %v153 = vld [vmem:[%s140 + $0xc] sm:$0xf]
      %v154 = vld [vmem:[%s140 + $0x10] sm:$0xf]
      %v155 = vld [vmem:[%s140 + $0x14] sm:$0xf]
      %v156 = vld [vmem:[%s140 + $0x18] sm:$0xf]
      %v157 = vld [vmem:[%s140 + $0x1c] sm:$0xf]
      %v158 = vld [vmem:[%s1] sm:$0xff]
      %v159 = vld [vmem:[%s1 + $0x8] sm:$0xff]
      %v160 = vld [vmem:[%s1 + $0x10] sm:$0xf]
      %v161 = vld [vmem:[%s1 + $0x14] sm:$0xff]
      %v162 = vld [vmem:[%s1 + $0x1c] sm:$0xff]
      %v163 = vld [vmem:[%s1 + $0x24] sm:$0xf]
      %v164 = vld [vmem:[%s1 + $0x28] sm:$0xff]
      %v165 = vld [vmem:[%s1 + $0x30] sm:$0xff]
      %v166 = vld [vmem:[%s1 + $0x38] sm:$0xf]
      %v167 = vld [vmem:[%s1 + $0x3c] sm:$0x11]
      %v168 = vld [vmem:[%s1 + $0x44] sm:$0x11]
      %v169 = vld [vmem:[%s1 + $0x4c] sm:$0x1]
      %v178 = vunpack.c.l.b16 %v150
      %v179 = vunpack.c.l.b16 %v151
      %v180 = vunpack.c.l.b16 %v152
      %v181 = vunpack.c.l.b16 %v153
      %v182 = vunpack.c.l.b16 %v154
      %v183 = vunpack.c.l.b16 %v155
      %v184 = vunpack.c.l.b16 %v156
      %v185 = vunpack.c.l.b16 %v157
      %v186 = vpack.c.b16 %v179, %v178
      %v187 = vpack.c.b16 %v181, %v180
      %v188 = vpack.c.b16 %v183, %v182
      %v189 = vpack.c.b16 %v185, %v184
      %v202 = vunpack.c.l.b16 %v158
      %v203 = vunpack.c.h.b16 %v158
      %v204 = vunpack.c.l.b16 %v159
      %v205 = vunpack.c.h.b16 %v159
      %v206 = vunpack.c.l.b16 %v160
      %v207 = vunpack.c.l.b16 %v161
      %v208 = vunpack.c.h.b16 %v161
      %v209 = vunpack.c.l.b16 %v162
      %v210 = vunpack.c.h.b16 %v162
      %v211 = vunpack.c.l.b16 %v163
      %v212 = vunpack.c.l.b16 %v164
      %v213 = vunpack.c.h.b16 %v164
      %v214 = vunpack.c.l.b16 %v165
      %v215 = vunpack.c.h.b16 %v165
      %v216 = vunpack.c.l.b16 %v166
      %v217 = vunpack.c.l.b16 %v167
      %v218 = vunpack.c.h.b16 %v167
      %v219 = vunpack.c.l.b16 %v168
      %v220 = vunpack.c.h.b16 %v168
      %v221 = vunpack.c.l.b16 %v169
      %v222 = vpack.c.b16 %v207, %v202
      %v223 = vpack.c.b16 %v208, %v203
      %v224 = vpack.c.b16 %v209, %v204
      %v225 = vpack.c.b16 %v210, %v205
      %v226 = vpack.c.b16 %v211, %v206
      %v227 = vpack.c.b16 %v217, %v212
      %v228 = vpack.c.b16 %v218, %v213
      %v229 = vpack.c.b16 %v219, %v214
      %v230 = vpack.c.b16 %v220, %v215
      %v231 = vpack.c.b16 %v221, %v216
      %vm237 = vcmask 203776
      %v239 = vsel %vm237, %v186, 0
      %v242 = vsel %vm237, %v187, 0
      %v245 = vsel %vm237, %v188, 0
      %v248 = vsel %vm237, %v189, 0
      %vm250 = vcmask 1043456
      %vm251 = vcmask 1044480
      %v252 = vsel %vm250, 4294967295, 65535
      %v253 = vsel %vm251, %v252, 0
      %v255 = vand.u32 %v227, %v253
      %v258 = vand.u32 %v228, %v253
      %v261 = vand.u32 %v229, %v253
      %v264 = vand.u32 %v230, %v253
      %v267 = vand.u32 %v231, %v253
      %269 = vmatprep.subr.bf16.mxu0 0
      %270 = vmatpush1.bf16.msra.mxu0 0
      %271 = vmatprep.subr.bf16.mxu0 0
      %272 = vmatpush1.bf16.msra.mxu0 0
      %273 = vmatprep.subr.bf16.mxu0 0
      %274 = vmatpush1.bf16.msra.mxu0 0
      %275 = vmatprep.subr.bf16.mxu0 0
      %276 = vmatpush1.bf16.msra.mxu0 0
      %277 = vmatprep.subr.bf16.mxu0 0
      %278 = vmatpush1.bf16.msra.mxu0 0
      %279 = vmatprep.subr.bf16.mxu0 0
      %280 = vmatpush1.bf16.msra.mxu0 0
      %281 = vmatprep.subr.bf16.mxu0 %v258
      %282 = vmatpush1.bf16.msra.mxu0 %v255
      %283 = vmatprep.subr.bf16.mxu0 %v223
      %284 = vmatpush1.bf16.msra.mxu0 %v222
      %285 = vmatprep.subr.bf16.mxu0 0
      %286 = vmatpush2.bf16.msra.mxu0 0
      %287 = vmatprep.subr.bf16.mxu0 0
      %288 = vmatpush2.bf16.msra.mxu0 0
      %289 = vmatprep.subr.bf16.mxu0 0
      %290 = vmatpush2.bf16.msra.mxu0 0
      %291 = vmatprep.subr.bf16.mxu0 0
      %292 = vmatpush2.bf16.msra.mxu0 0
      %293 = vmatprep.subr.bf16.mxu0 0
      %294 = vmatpush2.bf16.msra.mxu0 0
      %295 = vmatprep.subr.bf16.mxu0 0
      %296 = vmatpush2.bf16.msra.mxu0 0
      %297 = vmatprep.subr.bf16.mxu0 0
      %298 = vmatpush2.bf16.msra.mxu0 0
      %299 = vmatprep.subr.bf16.mxu0 0
      %300 = vmatpush2.bf16.msra.mxu0 0
      %301 = vmatprep.mubr.bf16.mxu0 0
      %302 = vmatmul.mubr.bf16.gmra.mxu0 %v239
      %v303 = vpop.f32.mrf.mxu0
      %v304 = vadd.f32 0.0, %v303
      %v305 = vpop.f32.mrf.mxu0
      %v306 = vadd.f32 0.0, %v305
      %v307 = vpop.f32.mrf.mxu0
      %v308 = vadd.f32 0.0, %v307
      %v309 = vpop.f32.mrf.mxu0
      %v310 = vadd.f32 0.0, %v309
      %311 = vmatprep.mubr.bf16.mxu0 0
      %312 = vmatmul.mubr.bf16.gmra.mxu0 %v242
      %v313 = vpop.f32.mrf.mxu0
      %v314 = vadd.f32 0.0, %v313
      %v315 = vpop.f32.mrf.mxu0
      %v316 = vadd.f32 0.0, %v315
      %v317 = vpop.f32.mrf.mxu0
      %v318 = vadd.f32 0.0, %v317
      %v319 = vpop.f32.mrf.mxu0
      %v320 = vadd.f32 0.0, %v319
      %321 = vmatprep.mubr.bf16.mxu0 0
      %322 = vmatmul.mubr.bf16.gmra.mxu0 %v245
      %v323 = vpop.f32.mrf.mxu0
      %v324 = vadd.f32 0.0, %v323
      %v325 = vpop.f32.mrf.mxu0
      %v326 = vadd.f32 0.0, %v325
      %v327 = vpop.f32.mrf.mxu0
      %v328 = vadd.f32 0.0, %v327
      %v329 = vpop.f32.mrf.mxu0
      %v330 = vadd.f32 0.0, %v329
      %331 = vmatprep.mubr.bf16.mxu0 0
      %332 = vmatmul.mubr.bf16.gmra.mxu0 %v248
      %v333 = vpop.f32.mrf.mxu0
      %v334 = vadd.f32 0.0, %v333
      %v335 = vpop.f32.mrf.mxu0
      %v336 = vadd.f32 0.0, %v335
      %v337 = vpop.f32.mrf.mxu0
      %v338 = vadd.f32 0.0, %v337
      %v339 = vpop.f32.mrf.mxu0
      %v340 = vadd.f32 0.0, %v339
      %341 = vdwg.mxu0
      %342 = vmatprep.subr.bf16.mxu0 0
      %343 = vmatpush1.bf16.msra.mxu0 0
      %344 = vmatprep.subr.bf16.mxu0 0
      %345 = vmatpush1.bf16.msra.mxu0 0
      %346 = vmatprep.subr.bf16.mxu0 0
      %347 = vmatpush1.bf16.msra.mxu0 0
      %348 = vmatprep.subr.bf16.mxu0 0
      %349 = vmatpush1.bf16.msra.mxu0 0
      %350 = vmatprep.subr.bf16.mxu0 0
      %351 = vmatpush1.bf16.msra.mxu0 0
      %352 = vmatprep.subr.bf16.mxu0 0
      %353 = vmatpush1.bf16.msra.mxu0 0
      %354 = vmatprep.subr.bf16.mxu0 %v264
      %355 = vmatpush1.bf16.msra.mxu0 %v261
      %356 = vmatprep.subr.bf16.mxu0 %v225
      %357 = vmatpush1.bf16.msra.mxu0 %v224
      %358 = vmatprep.subr.bf16.mxu0 0
      %359 = vmatpush2.bf16.msra.mxu0 0
      %360 = vmatprep.subr.bf16.mxu0 0
      %361 = vmatpush2.bf16.msra.mxu0 0
      %362 = vmatprep.subr.bf16.mxu0 0
      %363 = vmatpush2.bf16.msra.mxu0 0
      %364 = vmatprep.subr.bf16.mxu0 0
      %365 = vmatpush2.bf16.msra.mxu0 0
      %366 = vmatprep.subr.bf16.mxu0 0
      %367 = vmatpush2.bf16.msra.mxu0 0
      %368 = vmatprep.subr.bf16.mxu0 0
      %369 = vmatpush2.bf16.msra.mxu0 0
      %370 = vmatprep.subr.bf16.mxu0 0
      %371 = vmatpush2.bf16.msra.mxu0 0
      %372 = vmatprep.subr.bf16.mxu0 0
      %373 = vmatpush2.bf16.msra.mxu0 0
      %374 = vmatprep.mubr.bf16.mxu0 0
      %375 = vmatmul.mubr.bf16.gmra.mxu0 %v239
      %v376 = vpop.f32.mrf.mxu0
      %v377 = vadd.f32 0.0, %v376
      %v378 = vpop.f32.mrf.mxu0
      %v379 = vadd.f32 0.0, %v378
      %v380 = vpop.f32.mrf.mxu0
      %v381 = vadd.f32 0.0, %v380
      %v382 = vpop.f32.mrf.mxu0
      %v383 = vadd.f32 0.0, %v382
      %384 = vmatprep.mubr.bf16.mxu0 0
      %385 = vmatmul.mubr.bf16.gmra.mxu0 %v242
      %v386 = vpop.f32.mrf.mxu0
      %v387 = vadd.f32 0.0, %v386
      %v388 = vpop.f32.mrf.mxu0
      %v389 = vadd.f32 0.0, %v388
      %v390 = vpop.f32.mrf.mxu0
      %v391 = vadd.f32 0.0, %v390
      %v392 = vpop.f32.mrf.mxu0
      %v393 = vadd.f32 0.0, %v392
      %394 = vmatprep.mubr.bf16.mxu0 0
      %395 = vmatmul.mubr.bf16.gmra.mxu0 %v245
      %v396 = vpop.f32.mrf.mxu0
      %v397 = vadd.f32 0.0, %v396
      %v398 = vpop.f32.mrf.mxu0
      %v399 = vadd.f32 0.0, %v398
      %v400 = vpop.f32.mrf.mxu0
      %v401 = vadd.f32 0.0, %v400
      %v402 = vpop.f32.mrf.mxu0
      %v403 = vadd.f32 0.0, %v402
      %404 = vmatprep.mubr.bf16.mxu0 0
      %405 = vmatmul.mubr.bf16.gmra.mxu0 %v248
      %v406 = vpop.f32.mrf.mxu0
      %v407 = vadd.f32 0.0, %v406
      %v408 = vpop.f32.mrf.mxu0
      %v409 = vadd.f32 0.0, %v408
      %v410 = vpop.f32.mrf.mxu0
      %v411 = vadd.f32 0.0, %v410
      %v412 = vpop.f32.mrf.mxu0
      %v413 = vadd.f32 0.0, %v412
      %414 = vdwg.mxu0
      %415 = vmatprep.subr.bf16.mxu0 0
      %416 = vmatpush1.bf16.msra.mxu0 0
      %417 = vmatprep.subr.bf16.mxu0 0
      %418 = vmatpush1.bf16.msra.mxu0 0
      %419 = vmatprep.subr.bf16.mxu0 0
      %420 = vmatpush1.bf16.msra.mxu0 0
      %421 = vmatprep.subr.bf16.mxu0 0
      %422 = vmatpush1.bf16.msra.mxu0 0
      %423 = vmatprep.subr.bf16.mxu0 0
      %424 = vmatpush1.bf16.msra.mxu0 0
      %425 = vmatprep.subr.bf16.mxu0 0
      %426 = vmatpush1.bf16.msra.mxu0 0
      %427 = vmatprep.subr.bf16.mxu0 0
      %428 = vmatpush1.bf16.msra.mxu0 %v267
      %429 = vmatprep.subr.bf16.mxu0 0
      %430 = vmatpush1.bf16.msra.mxu0 %v226
      %431 = vmatprep.subr.bf16.mxu0 0
      %432 = vmatpush2.bf16.msra.mxu0 0
      %433 = vmatprep.subr.bf16.mxu0 0
      %434 = vmatpush2.bf16.msra.mxu0 0
      %435 = vmatprep.subr.bf16.mxu0 0
      %436 = vmatpush2.bf16.msra.mxu0 0
      %437 = vmatprep.subr.bf16.mxu0 0
      %438 = vmatpush2.bf16.msra.mxu0 0
      %439 = vmatprep.subr.bf16.mxu0 0
      %440 = vmatpush2.bf16.msra.mxu0 0
      %441 = vmatprep.subr.bf16.mxu0 0
      %442 = vmatpush2.bf16.msra.mxu0 0
      %443 = vmatprep.subr.bf16.mxu0 0
      %444 = vmatpush2.bf16.msra.mxu0 0
      %445 = vmatprep.subr.bf16.mxu0 0
      %446 = vmatpush2.bf16.msra.mxu0 0
      %447 = vmatprep.mubr.bf16.mxu0 0
      %448 = vmatmul.mubr.bf16.gmra.mxu0 %v239
      %v449 = vpop.f32.mrf.mxu0
      %v450 = vadd.f32 0.0, %v449
      %v451 = vpop.f32.mrf.mxu0
      %v452 = vpop.f32.mrf.mxu0
      %v453 = vadd.f32 0.0, %v452
      %v454 = vpop.f32.mrf.mxu0
      %455 = vmatprep.mubr.bf16.mxu0 0
      %456 = vmatmul.mubr.bf16.gmra.mxu0 %v242
      %v457 = vpop.f32.mrf.mxu0
      %v458 = vadd.f32 0.0, %v457
      %v459 = vpop.f32.mrf.mxu0
      %v460 = vpop.f32.mrf.mxu0
      %v461 = vadd.f32 0.0, %v460
      %v462 = vpop.f32.mrf.mxu0
      %463 = vmatprep.mubr.bf16.mxu0 0
      %464 = vmatmul.mubr.bf16.gmra.mxu0 %v245
      %v465 = vpop.f32.mrf.mxu0
      %v466 = vadd.f32 0.0, %v465
      %v467 = vpop.f32.mrf.mxu0
      %v468 = vpop.f32.mrf.mxu0
      %v469 = vadd.f32 0.0, %v468
      %v470 = vpop.f32.mrf.mxu0
      %471 = vmatprep.mubr.bf16.mxu0 0
      %472 = vmatmul.mubr.bf16.gmra.mxu0 %v248
      %v473 = vpop.f32.mrf.mxu0
      %v474 = vadd.f32 0.0, %v473
      %v475 = vpop.f32.mrf.mxu0
      %v476 = vpop.f32.mrf.mxu0
      %v477 = vadd.f32 0.0, %v476
      %v478 = vpop.f32.mrf.mxu0
      %479 = vdwg.mxu0
      %480 = vst [vmem:[%s147] sm:$0xff] %v304
      %481 = vst [vmem:[%s147 + $0x8] sm:$0xff] %v306
      %482 = vst [vmem:[%s147 + $0x10] sm:$0xff] %v377
      %483 = vst [vmem:[%s147 + $0x18] sm:$0xff] %v379
      %vm484 = vcmask 924672
      %485 = vst.msk [vmem:[%s147 + $0x20] sm:$0xff] %vm484, %v450
      %486 = vst [vmem:[%s147 + $0x28] sm:$0xff] %v308
      %487 = vst [vmem:[%s147 + $0x30] sm:$0xff] %v310
      %488 = vst [vmem:[%s147 + $0x38] sm:$0xff] %v381
      %489 = vst [vmem:[%s147 + $0x40] sm:$0xff] %v383
      %490 = vst.msk [vmem:[%s147 + $0x48] sm:$0xff] %vm484, %v453
      %491 = vst [vmem:[%s147 + $0x50] sm:$0xff] %v314
      %492 = vst [vmem:[%s147 + $0x58] sm:$0xff] %v316
      %493 = vst [vmem:[%s147 + $0x60] sm:$0xff] %v387
      %494 = vst [vmem:[%s147 + $0x68] sm:$0xff] %v389
      %495 = vst.msk [vmem:[%s147 + $0x70] sm:$0xff] %vm484, %v458
      %496 = vst [vmem:[%s147 + $0x78] sm:$0xff] %v318
      %497 = vst [vmem:[%s147 + $0x80] sm:$0xff] %v320
      %498 = vst [vmem:[%s147 + $0x88] sm:$0xff] %v391
      %499 = vst [vmem:[%s147 + $0x90] sm:$0xff] %v393
      %500 = vst.msk [vmem:[%s147 + $0x98] sm:$0xff] %vm484, %v461
      %501 = vst [vmem:[%s147 + $0xa0] sm:$0xff] %v324
      %502 = vst [vmem:[%s147 + $0xa8] sm:$0xff] %v326
      %503 = vst [vmem:[%s147 + $0xb0] sm:$0xff] %v397
      %504 = vst [vmem:[%s147 + $0xb8] sm:$0xff] %v399
      %505 = vst.msk [vmem:[%s147 + $0xc0] sm:$0xff] %vm484, %v466
      %506 = vst [vmem:[%s147 + $0xc8] sm:$0xff] %v328
      %507 = vst [vmem:[%s147 + $0xd0] sm:$0xff] %v330
      %508 = vst [vmem:[%s147 + $0xd8] sm:$0xff] %v401
      %509 = vst [vmem:[%s147 + $0xe0] sm:$0xff] %v403
      %510 = vst.msk [vmem:[%s147 + $0xe8] sm:$0xff] %vm484, %v469
      %511 = vst [vmem:[%s147 + $0xf0] sm:$0xff] %v334
      %512 = vst [vmem:[%s147 + $0xf8] sm:$0xff] %v336
      %513 = vst [vmem:[%s147 + $0x100] sm:$0xff] %v407
      %514 = vst [vmem:[%s147 + $0x108] sm:$0xff] %v409
      %515 = vst.msk [vmem:[%s147 + $0x110] sm:$0xff] %vm484, %v474
      %516 = vst [vmem:[%s147 + $0x118] sm:$0xff] %v338
      %517 = vst [vmem:[%s147 + $0x120] sm:$0xff] %v340
      %518 = vst [vmem:[%s147 + $0x128] sm:$0xff] %v411
      %519 = vst [vmem:[%s147 + $0x130] sm:$0xff] %v413
      %520 = vst.msk [vmem:[%s147 + $0x138] sm:$0xff] %vm484, %v477
      %s521 = smul.u32 8, %s13
      %p522 = scmp.lt.s32.totalorder %s521, 15
      %s523 = scalar_select %p522, %s521, 15
      %s524 = smul.addr %s523, 5
      %s525 = smul.addr %s524, 8
      %s526 = scalar_lea.vmem %s2, %s525
      // Predicated region
      $region29: #{vit_forward.3} parent=27 // pred_check
        %p527 = pneg %p78
      $region30: #{vit_forward.3} parent=27 // pred_check_branch
        %529 = sbr.rel (%p527) target = $region32
      $region31: #{vit_forward.3} parent=27 // pred_region
        %s530 = smul.u32 8, %s13
      $region32: #{vit_forward.3} parent=27 // pred_fallthru
        _
    $region28: #{vit_forward.3} parent=5 // pred_fallthru
      _
    %p531 = scmp.le.s32.totalorder 2, %s8
    // Predicated region
    $region33: #{vit_forward.3} parent=5 // pred_check
      %p532 = pneg %p531
    $region34: #{vit_forward.3} parent=5 // pred_check_branch
      %534 = sbr.rel (%p532) target = $region36
    $region35: #{vit_forward.3} parent=5 // pred_region
      %s535 = ssub.s32 %s8, 2
      // Predicated region
      $region37: #{vit_forward.3} parent=35 // pred_check
        %p536 = pneg %p84
      $region38: #{vit_forward.3} parent=35 // pred_check_branch
        %538 = sbr.rel (%p536) target = $region40
      $region39: #{vit_forward.3} parent=35 // pred_region
        %s539 = smul.u32 8, %s14
        %p540 = scmp.lt.s32.totalorder %s539, 15
        %s541 = scalar_select %p540, %s539, 15
        %s542 = smul.addr %s541, 5
        %s543 = smul.addr %s542, 8
        %s544 = scalar_lea.vmem %s2, %s543
      $region40: #{vit_forward.3} parent=35 // pred_fallthru
        _
    $region36: #{vit_forward.3} parent=5 // pred_fallthru
      _
  $region6: #{vit_forward.3} parent=0 // loop_footer
    %s12 = sadd.s32 1, %s8
  $region7: #{vit_forward.3} parent=0 // loop_footer_branch
    %7 = sbr.rel target = $region3
  $region8: #{vit_forward.3} parent=0 // loop_exit
    _

// kernel: vit_forward.2
$region0: #{vit_forward.2}
  #allocation0 [shape = 'u32[]', space=smem, size = 0x4, offset = 0x4, fixed_abs, tag = 'smem constant byte address 0x4 - core index']
  #allocation1 [shape = 'u32[144,128]{1,0:T(1,128)}', space=vmem, size = 0x12000, scoped, tag = 'internal scratch']
  #allocation2 [shape = 'bf16[32,1536]{1,0:T(8,128)(2,1)}', space=vmem, size = 0x18000, scoped, tag = 'scratch operand']
  %s0 = inlined_call_operand.vmem [shape: f32[64,75], index: 0, kind: input, shape index: {}]
  %s1 = inlined_call_operand.vmem [shape: f32[32,64], index: 1, kind: input, shape index: {}]
  %s2 = inlined_call_operand.vmem [shape: f32[16,128], index: 2, kind: input, shape index: {}]
  %s3 = inlined_call_operand.vmem [shape: f32[1,1536], index: 3, kind: input, shape index: {}]
  %s4 = inlined_call_operand.vmem [shape: bf16[75,64], index: 4, kind: input, shape index: {}]
  %s5 = inlined_call_operand.vmem [shape: bf16[128,1536], index: 5, kind: input, shape index: {}]
  %s6 = inlined_call_operand.vmem [shape: bf16[1024,64], index: 6, kind: input, shape index: {}]
  %s7 = inlined_call_operand.vmem [shape: bf16[128,64], index: 7, kind: input, shape index: {}]
  %s8 = inlined_call_operand.vmem [shape: f32[64,64], index: 8, kind: output, shape index: {}]
  %s9 = sld [smem:[#allocation0]]
  $region65: #{vit_forward.2} parent=0
    _
  %s11 = ssub.s32 1, %s9
  %s12 = scalar_select 0, %s11, %s9
  loop: start=0, step=1, limit=4
  $region2: #{vit_forward.2} parent=0 // loop_pre_header
    _
  $region3: #{vit_forward.2} parent=0 // loop_header
    %s14 = sphi 0, %s18
    %p15 = scmp.ge.s32.totalorder %s14, 4
    %s24 = sphi 0, %s26
    %s27 = sphi 0, %s24
    %s28 = sphi 0, %s27
    %s44 = sphi 0, %s28
    %s48 = sphi 0, %s48
    %s50 = sphi 0, %s48
    %s51 = sphi 0, %s50
    %s65 = sphi 0, %s51
    %s69 = sphi 0, %s69
    %s71 = sphi 0, %s69
    %s72 = sphi 0, %s71
    %s86 = sphi 0, %s72
    %s90 = sphi 0, %s90
    %s92 = sphi 0, %s90
    %s93 = sphi 0, %s92
    %s107 = sphi 0, %s93
    %s111 = sphi 0, %s111
    %s113 = sphi 0, %s111
    %s114 = sphi 0, %s113
    %s128 = sphi 0, %s114
    %s132 = sphi 0, %s132
    %s134 = sphi 0, %s132
    %s135 = sphi 0, %s134
    %s149 = sphi 0, %s135
    %s153 = sphi 0, %s153
    %s155 = sphi 0, %s153
    %s156 = sphi 0, %s155
    %s170 = sphi 0, %s156
    %s174 = sphi 0, %s174
    %s176 = sphi 0, %s174
    %s177 = sphi 0, %s176
    %s191 = sphi 0, %s177
    %s197 = sphi 0, %s199
    %s200 = sphi 0, %s197
    %s201 = sphi 0, %s200
    %s217 = sphi 0, %s201
  $region4: #{vit_forward.2} parent=0 // loop_header_branch
    %17 = sbr.rel (%p15) target = $region8
  $region5: #{vit_forward.2} parent=0 // loop_body
    %s19 = ssub.s32 %s14, 1
    %s20 = ssub.s32 %s14, 2
    %s21 = sadd.s32 %s14, 1
    %s22 = ssub.s32 %s14, %s21
    %p23 = scmp.eq.s32.totalorder %s22, 0
    %s25 = sadd.s32 %s24, 1
    %s26 = scalar_select %p23, %s24, %s25
    %p29 = pneg %p23
    %p30 = scmp.eq.s32.totalorder %s14, 1
    %p31 = por %p29, %p30
    %p32 = scmp.ne.s32.totalorder %s24, %s27
    %p33 = scmp.eq.s32.totalorder %s14, 0
    %p34 = por %p32, %p33
    %p35 = scmp.ne.s32.totalorder %s24, %s27
    %p36 = scmp.eq.s32.totalorder %s19, 1
    %p37 = por %p35, %p36
    %p38 = scmp.ne.s32.totalorder %s27, %s28
    %p39 = scmp.eq.s32.totalorder %s19, 0
    %p40 = por %p38, %p39
    %p41 = scmp.ne.s32.totalorder %s27, %s28
    %p42 = scmp.eq.s32.totalorder %s20, 1
    %p43 = por %p41, %p42
    %p45 = scmp.ne.s32.totalorder %s28, %s44
    %p46 = scmp.eq.s32.totalorder %s20, 0
    %p47 = por %p45, %p46
    %s49 = sadd.s32 %s48, 1
    %p52 = scmp.eq.s32.totalorder %s14, 1
    %p53 = scmp.ne.s32.totalorder %s48, %s50
    %p54 = scmp.eq.s32.totalorder %s14, 0
    %p55 = por %p53, %p54
    %p56 = scmp.ne.s32.totalorder %s48, %s50
    %p57 = scmp.eq.s32.totalorder %s19, 1
    %p58 = por %p56, %p57
    %p59 = scmp.ne.s32.totalorder %s50, %s51
    %p60 = scmp.eq.s32.totalorder %s19, 0
    %p61 = por %p59, %p60
    %p62 = scmp.ne.s32.totalorder %s50, %s51
    %p63 = scmp.eq.s32.totalorder %s20, 1
    %p64 = por %p62, %p63
    %p66 = scmp.ne.s32.totalorder %s51, %s65
    %p67 = scmp.eq.s32.totalorder %s20, 0
    %p68 = por %p66, %p67
    %s70 = sadd.s32 %s69, 1
    %p73 = scmp.eq.s32.totalorder %s14, 1
    %p74 = scmp.ne.s32.totalorder %s69, %s71
    %p75 = scmp.eq.s32.totalorder %s14, 0
    %p76 = por %p74, %p75
    %p77 = scmp.ne.s32.totalorder %s69, %s71
    %p78 = scmp.eq.s32.totalorder %s19, 1
    %p79 = por %p77, %p78
    %p80 = scmp.ne.s32.totalorder %s71, %s72
    %p81 = scmp.eq.s32.totalorder %s19, 0
    %p82 = por %p80, %p81
    %p83 = scmp.ne.s32.totalorder %s71, %s72
    %p84 = scmp.eq.s32.totalorder %s20, 1
    %p85 = por %p83, %p84
    %p87 = scmp.ne.s32.totalorder %s72, %s86
    %p88 = scmp.eq.s32.totalorder %s20, 0
    %p89 = por %p87, %p88
    %s91 = sadd.s32 %s90, 1
    %p94 = scmp.eq.s32.totalorder %s14, 1
    %p95 = scmp.ne.s32.totalorder %s90, %s92
    %p96 = scmp.eq.s32.totalorder %s14, 0
    %p97 = por %p95, %p96
    %p98 = scmp.ne.s32.totalorder %s90, %s92
    %p99 = scmp.eq.s32.totalorder %s19, 1
    %p100 = por %p98, %p99
    %p101 = scmp.ne.s32.totalorder %s92, %s93
    %p102 = scmp.eq.s32.totalorder %s19, 0
    %p103 = por %p101, %p102
    %p104 = scmp.ne.s32.totalorder %s92, %s93
    %p105 = scmp.eq.s32.totalorder %s20, 1
    %p106 = por %p104, %p105
    %p108 = scmp.ne.s32.totalorder %s93, %s107
    %p109 = scmp.eq.s32.totalorder %s20, 0
    %p110 = por %p108, %p109
    %s112 = sadd.s32 %s111, 1
    %p115 = scmp.eq.s32.totalorder %s14, 1
    %p116 = scmp.ne.s32.totalorder %s111, %s113
    %p117 = scmp.eq.s32.totalorder %s14, 0
    %p118 = por %p116, %p117
    %p119 = scmp.ne.s32.totalorder %s111, %s113
    %p120 = scmp.eq.s32.totalorder %s19, 1
    %p121 = por %p119, %p120
    %p122 = scmp.ne.s32.totalorder %s113, %s114
    %p123 = scmp.eq.s32.totalorder %s19, 0
    %p124 = por %p122, %p123
    %p125 = scmp.ne.s32.totalorder %s113, %s114
    %p126 = scmp.eq.s32.totalorder %s20, 1
    %p127 = por %p125, %p126
    %p129 = scmp.ne.s32.totalorder %s114, %s128
    %p130 = scmp.eq.s32.totalorder %s20, 0
    %p131 = por %p129, %p130
    %s133 = sadd.s32 %s132, 1
    %p136 = scmp.eq.s32.totalorder %s14, 1
    %p137 = scmp.ne.s32.totalorder %s132, %s134
    %p138 = scmp.eq.s32.totalorder %s14, 0
    %p139 = por %p137, %p138
    %p140 = scmp.ne.s32.totalorder %s132, %s134
    %p141 = scmp.eq.s32.totalorder %s19, 1
    %p142 = por %p140, %p141
    %p143 = scmp.ne.s32.totalorder %s134, %s135
    %p144 = scmp.eq.s32.totalorder %s19, 0
    %p145 = por %p143, %p144
    %p146 = scmp.ne.s32.totalorder %s134, %s135
    %p147 = scmp.eq.s32.totalorder %s20, 1
    %p148 = por %p146, %p147
    %p150 = scmp.ne.s32.totalorder %s135, %s149
    %p151 = scmp.eq.s32.totalorder %s20, 0
    %p152 = por %p150, %p151
    %s154 = sadd.s32 %s153, 1
    %p157 = scmp.eq.s32.totalorder %s14, 1
    %p158 = scmp.ne.s32.totalorder %s153, %s155
    %p159 = scmp.eq.s32.totalorder %s14, 0
    %p160 = por %p158, %p159
    %p161 = scmp.ne.s32.totalorder %s153, %s155
    %p162 = scmp.eq.s32.totalorder %s19, 1
    %p163 = por %p161, %p162
    %p164 = scmp.ne.s32.totalorder %s155, %s156
    %p165 = scmp.eq.s32.totalorder %s19, 0
    %p166 = por %p164, %p165
    %p167 = scmp.ne.s32.totalorder %s155, %s156
    %p168 = scmp.eq.s32.totalorder %s20, 1
    %p169 = por %p167, %p168
    %p171 = scmp.ne.s32.totalorder %s156, %s170
    %p172 = scmp.eq.s32.totalorder %s20, 0
    %p173 = por %p171, %p172
    %s175 = sadd.s32 %s174, 1
    %p178 = scmp.eq.s32.totalorder %s14, 1
    %p179 = scmp.ne.s32.totalorder %s174, %s176
    %p180 = scmp.eq.s32.totalorder %s14, 0
    %p181 = por %p179, %p180
    %p182 = scmp.ne.s32.totalorder %s174, %s176
    %p183 = scmp.eq.s32.totalorder %s19, 1
    %p184 = por %p182, %p183
    %p185 = scmp.ne.s32.totalorder %s176, %s177
    %p186 = scmp.eq.s32.totalorder %s19, 0
    %p187 = por %p185, %p186
    %p188 = scmp.ne.s32.totalorder %s176, %s177
    %p189 = scmp.eq.s32.totalorder %s20, 1
    %p190 = por %p188, %p189
    %p192 = scmp.ne.s32.totalorder %s177, %s191
    %p193 = scmp.eq.s32.totalorder %s20, 0
    %p194 = por %p192, %p193
    %s195 = ssub.s32 %s14, %s21
    %p196 = scmp.eq.s32.totalorder %s195, 0
    %s198 = sadd.s32 %s197, 1
    %s199 = scalar_select %p196, %s197, %s198
    %p202 = pneg %p196
    %p203 = scmp.eq.s32.totalorder %s14, 1
    %p204 = por %p202, %p203
    %p205 = scmp.ne.s32.totalorder %s197, %s200
    %p206 = scmp.eq.s32.totalorder %s14, 0
    %p207 = por %p205, %p206
    %p208 = scmp.ne.s32.totalorder %s197, %s200
    %p209 = scmp.eq.s32.totalorder %s19, 1
    %p210 = por %p208, %p209
    %p211 = scmp.ne.s32.totalorder %s200, %s201
    %p212 = scmp.eq.s32.totalorder %s19, 0
    %p213 = por %p211, %p212
    %p214 = scmp.ne.s32.totalorder %s200, %s201
    %p215 = scmp.eq.s32.totalorder %s20, 1
    %p216 = por %p214, %p215
    %p218 = scmp.ne.s32.totalorder %s201, %s217
    %p219 = scmp.eq.s32.totalorder %s20, 0
    %p220 = por %p218, %p219
    %p221 = scmp.le.s32.totalorder 1, %s14
    %p222 = scmp.lt.s32.totalorder %s14, 3
    %p223 = pnand %p221, %p222
    %p224 = pneg %p223
    // Predicated region
    $region9: #{vit_forward.2} parent=5 // pred_check
      _
    $region10: #{vit_forward.2} parent=5 // pred_check_branch
      %226 = sbr.rel (%p223) target = $region12
    $region11: #{vit_forward.2} parent=5 // pred_region
      %s227 = ssub.s32 %s14, 1
      // Predicated region
      $region13: #{vit_forward.2} parent=11 // pred_check
        %p228 = pneg %p61
      $region14: #{vit_forward.2} parent=11 // pred_check_branch
        %230 = sbr.rel (%p228) target = $region16
      $region15: #{vit_forward.2} parent=11 // pred_region
        _
      $region16: #{vit_forward.2} parent=11 // pred_fallthru
        _
      // Predicated region
      $region17: #{vit_forward.2} parent=11 // pred_check
        %p231 = pneg %p82
      $region18: #{vit_forward.2} parent=11 // pred_check_branch
        %233 = sbr.rel (%p231) target = $region20
      $region19: #{vit_forward.2} parent=11 // pred_region
        _
      $region20: #{vit_forward.2} parent=11 // pred_fallthru
        _
      // Predicated region
      $region21: #{vit_forward.2} parent=11 // pred_check
        %p234 = pneg %p103
      $region22: #{vit_forward.2} parent=11 // pred_check_branch
        %236 = sbr.rel (%p234) target = $region24
      $region23: #{vit_forward.2} parent=11 // pred_region
        _
      $region24: #{vit_forward.2} parent=11 // pred_fallthru
        _
      // Predicated region
      $region25: #{vit_forward.2} parent=11 // pred_check
        %p237 = pneg %p124
      $region26: #{vit_forward.2} parent=11 // pred_check_branch
        %239 = sbr.rel (%p237) target = $region28
      $region27: #{vit_forward.2} parent=11 // pred_region
        _
      $region28: #{vit_forward.2} parent=11 // pred_fallthru
        _
      // Predicated region
      $region29: #{vit_forward.2} parent=11 // pred_check
        %p240 = pneg %p145
      $region30: #{vit_forward.2} parent=11 // pred_check_branch
        %242 = sbr.rel (%p240) target = $region32
      $region31: #{vit_forward.2} parent=11 // pred_region
        _
      $region32: #{vit_forward.2} parent=11 // pred_fallthru
        _
      // Predicated region
      $region33: #{vit_forward.2} parent=11 // pred_check
        %p243 = pneg %p166
      $region34: #{vit_forward.2} parent=11 // pred_check_branch
        %245 = sbr.rel (%p243) target = $region36
      $region35: #{vit_forward.2} parent=11 // pred_region
        _
      $region36: #{vit_forward.2} parent=11 // pred_fallthru
        _
      // Predicated region
      $region37: #{vit_forward.2} parent=11 // pred_check
        %p246 = pneg %p187
      $region38: #{vit_forward.2} parent=11 // pred_check_branch
        %248 = sbr.rel (%p246) target = $region40
      $region39: #{vit_forward.2} parent=11 // pred_region
        _
      $region40: #{vit_forward.2} parent=11 // pred_fallthru
        _
    $region12: #{vit_forward.2} parent=5 // pred_fallthru
      _
    %p249 = scmp.lt.s32.totalorder %s14, 2
    // Predicated region
    $region41: #{vit_forward.2} parent=5 // pred_check
      %p250 = pneg %p249
    $region42: #{vit_forward.2} parent=5 // pred_check_branch
      %252 = sbr.rel (%p250) target = $region44
    $region43: #{vit_forward.2} parent=5 // pred_region
      // Predicated region
      $region45: #{vit_forward.2} parent=43 // pred_check
        %p253 = pneg %p34
      $region46: #{vit_forward.2} parent=43 // pred_check_branch
        %255 = sbr.rel (%p253) target = $region48
      $region47: #{vit_forward.2} parent=43 // pred_region
        %s256 = smul.u32 4, %s14
        %p257 = scmp.lt.s32.totalorder %s256, 7
        %s258 = scalar_select %p257, %s256, 7
        %s259 = smul.addr %s258, 8
        %s260 = scalar_lea.vmem %s0, %s259
        %s261 = smul.u32 4, %s14
      $region48: #{vit_forward.2} parent=43 // pred_fallthru
        _
    $region44: #{vit_forward.2} parent=5 // pred_fallthru
      _
    %p262 = scmp.le.s32.totalorder 1, %s14
    %p263 = scmp.lt.s32.totalorder %s14, 3
    %p264 = pnand %p262, %p263
    %p265 = pneg %p264
    // Predicated region
    $region49: #{vit_forward.2} parent=5 // pred_check
      _
    $region50: #{vit_forward.2} parent=5 // pred_check_branch
      %267 = sbr.rel (%p264) target = $region52
    $region51: #{vit_forward.2} parent=5 // pred_region
      %s268 = ssub.s32 %s14, 1
      %s269 = smul.u32 4, %s19
      %p270 = scmp.lt.s32.totalorder %s269, 7
      %s271 = scalar_select %p270, %s269, 7
      %s272 = smul.addr %s271, 8
      %s273 = scalar_lea.vmem %s0, %s272
      %p274 = pneg %p40
      %p275 = pneg %p37
      %p276 = pneg %p61
      %p277 = pneg %p58
      %p278 = pneg %p82
      %p279 = pneg %p79
      %p280 = pneg %p103
      %p281 = pneg %p100
      %p282 = pneg %p124
      %p283 = pneg %p121
      %p284 = pneg %p145
      %p285 = pneg %p142
      %p286 = pneg %p166
      %p287 = pneg %p163
      %p288 = pneg %p187
      %p289 = pneg %p184
      %p290 = pneg %p213
      %p291 = pneg %p210
      %s292 = smul.u32 4, %s19
      %p293 = scmp.lt.s32.totalorder %s292, 7
      %s294 = scalar_select %p293, %s292, 7
      %s295 = smul.addr %s294, 8
      %s296 = scalar_lea.vmem %s8, %s295
      %s297 = smul.u32 4, %s19
      %p298 = scmp.lt.s32.totalorder %s297, 7
      %s299 = scalar_select %p298, %s297, 7
      %s300 = smul.addr %s299, 8
      %s301 = scalar_lea.vmem %s0, %s300
      %s302 = smul.u32 4, %s19
      %s303 = smul.u32 4, %s19
      %p304 = scmp.lt.s32.totalorder %s303, 7
      %s305 = scalar_select %p304, %s303, 7
      %s306 = smul.addr %s305, 8
      %s307 = scalar_lea.vmem %s8, %s306
      %s308 = smul.u32 4, %s19
      %v310 = vld [vmem:[%s2] sm:$0xff]
      %v311 = vld [vmem:[%s2 + $0x8] sm:$0xff]
      %v312 = vlaneseq
      %v313 = vand.u32 %v312, 127
      %vm314 = vcmp.lt.s32.totalorder %v313, 25
      %v315 = vsel %vm314, 0.0, -1e+30
      %v316 = vld [vmem:[%s301] sm:$0xff]
      %v317 = vld [vmem:[%s301 + $0x8] sm:$0xff]
      %v318 = vld [vmem:[%s301 + $0x10] sm:$0xff]
      %v319 = vld [vmem:[%s301 + $0x18] sm:$0xff]
      %vm320 = vcmask 613376
      %v321 = vsel %vm320, %v316, 0.0
      %322 = vadd.xlane.f32.xlu0 %v321
      %v323 = vpop.xlane.xlu0 %322
      %v324 = vsel %vm320, %v317, 0.0
      %325 = vadd.xlane.f32.xlu0 %v324
      %v326 = vpop.xlane.xlu0 %325
      %v327 = vsel %vm320, %v318, 0.0
      %328 = vadd.xlane.f32.xlu0 %v327
      %v329 = vpop.xlane.xlu0 %328
      %v330 = vsel %vm320, %v319, 0.0
      %331 = vadd.xlane.f32.xlu0 %v330
      %v332 = vpop.xlane.xlu0 %331
      %v333 = vrcp.pop 75.0
      %v334 = vmul.f32 %v323, %v333
      %v335 = vmul.f32 %v326, %v333
      %v336 = vmul.f32 %v329, %v333
      %v337 = vmul.f32 %v332, %v333
      %v338 = vsub.f32 %v316, %v334
      %v339 = vsub.f32 %v317, %v335
      %v340 = vsub.f32 %v318, %v336
      %v341 = vsub.f32 %v319, %v337
      %v342 = vmul.f32 %v338, %v338
      %v343 = vmul.f32 %v339, %v339
      %v344 = vmul.f32 %v340, %v340
      %v345 = vmul.f32 %v341, %v341
      %v346 = vsel %vm320, %v342, 0.0
      %347 = vadd.xlane.f32.xlu0 %v346
      %v348 = vpop.xlane.xlu0 %347
      %v349 = vsel %vm320, %v343, 0.0
      %350 = vadd.xlane.f32.xlu0 %v349
      %v351 = vpop.xlane.xlu0 %350
      %v352 = vsel %vm320, %v344, 0.0
      %353 = vadd.xlane.f32.xlu0 %v352
      %v354 = vpop.xlane.xlu0 %353
      %v355 = vsel %vm320, %v345, 0.0
      %356 = vadd.xlane.f32.xlu0 %v355
      %v357 = vpop.xlane.xlu0 %356
      %v358 = vmul.f32 %v348, %v333
      %v359 = vmul.f32 %v351, %v333
      %v360 = vmul.f32 %v354, %v333
      %v361 = vmul.f32 %v357, %v333
      %v362 = vadd.f32 %v358, 1e-05
      %v363 = vadd.f32 %v359, 1e-05
      %v364 = vadd.f32 %v360, 1e-05
      %v365 = vadd.f32 %v361, 1e-05
      %v366 = vrsqrt.pop %v362
      %v367 = vrsqrt.pop %v363
      %v368 = vrsqrt.pop %v364
      %v369 = vrsqrt.pop %v365
      %v370 = vmul.f32 %v338, %v366
      %v371 = vmul.f32 %v339, %v367
      %v372 = vmul.f32 %v340, %v368
      %v373 = vmul.f32 %v341, %v369
      %v374 = vlaneseq
      %v375 = vshrl.u32 %v374, 7
      %v376 = vsub.s32 0, %v375
      %v377 = vrot.slane %v310, %v376
      %v378 = vmul.f32 %v370, %v377
      %v379 = vmul.f32 %v371, %v377
      %v380 = vmul.f32 %v372, %v377
      %v381 = vmul.f32 %v373, %v377
      %v382 = vlaneseq
      %v383 = vshrl.u32 %v382, 7
      %v384 = vsub.s32 1, %v383
      %v385 = vrot.slane %v310, %v384
      %v386 = vadd.f32 %v378, %v385
      %v387 = vadd.f32 %v379, %v385
      %v388 = vadd.f32 %v380, %v385
      %v389 = vadd.f32 %v381, %v385
      %v390 = vpack.c.bf16 %v387, %v386
      %v391 = vpack.c.bf16 %v389, %v388
      %v392 = vld [vmem:[%s4] sm:$0xf]
      %v393 = vld [vmem:[%s4 + $0x4] sm:$0xf]
      %v394 = vld [vmem:[%s4 + $0x8] sm:$0xf]
      %v395 = vld [vmem:[%s4 + $0xc] sm:$0xf]
      %v396 = vld [vmem:[%s4 + $0x10] sm:$0xf]
      %v397 = vld [vmem:[%s4 + $0x14] sm:$0xf]
      %v398 = vld [vmem:[%s4 + $0x18] sm:$0xf]
      %v399 = vld [vmem:[%s4 + $0x1c] sm:$0xf]
      %v400 = vld [vmem:[%s4 + $0x20] sm:$0xf]
      %v401 = vld [vmem:[%s4 + $0x24] sm:$0x3]
      %v402 = vlaneseq
      %v403 = vshrl.u32 %v402, 7
      %v404 = vsub.s32 4, %v403
      %v405 = vrot.slane %v310, %v404
      %v416 = vunpack.c.l.b16 %v392
      %v417 = vunpack.c.l.b16 %v393
      %v418 = vunpack.c.l.b16 %v394
      %v419 = vunpack.c.l.b16 %v395
      %v420 = vunpack.c.l.b16 %v396
      %v421 = vunpack.c.l.b16 %v397
      %v422 = vunpack.c.l.b16 %v398
      %v423 = vunpack.c.l.b16 %v399
      %v424 = vunpack.c.l.b16 %v400
      %v425 = vunpack.c.l.b16 %v401
      %v426 = vpack.c.b16 %v417, %v416
      %v427 = vpack.c.b16 %v419, %v418
      %v428 = vpack.c.b16 %v421, %v420
      %v429 = vpack.c.b16 %v423, %v422
      %v430 = vpack.c.b16 %v425, %v424
      %v436 = vsel %vm320, %v390, 0
      %v439 = vsel %vm320, %v391, 0
      %vm441 = vcmask 1044480
      %vm442 = vcmask 1045504
      %v443 = vsel %vm441, 4294967295, 65535
      %v444 = vsel %vm442, %v443, 0
      %v446 = vand.u32 %v430, %v444
      %448 = vmatprep.subr.bf16.mxu0 0
      %449 = vmatpush1.bf16.msra.mxu0 0
      %450 = vmatprep.subr.bf16.mxu0 0
      %451 = vmatpush1.bf16.msra.mxu0 0
      %452 = vmatprep.subr.bf16.mxu0 0
      %453 = vmatpush1.bf16.msra.mxu0 0
      %454 = vmatprep.subr.bf16.mxu0 0
      %455 = vmatpush1.bf16.msra.mxu0 %v446
      %456 = vmatprep.subr.bf16.mxu0 0
      %457 = vmatpush1.bf16.msra.mxu0 %v429
      %458 = vmatprep.subr.bf16.mxu0 0
      %459 = vmatpush1.bf16.msra.mxu0 %v428
      %460 = vmatprep.subr.bf16.mxu0 0
      %461 = vmatpush1.bf16.msra.mxu0 %v427
      %462 = vmatprep.subr.bf16.mxu0 0
      %463 = vmatpush1.bf16.msra.mxu0 %v426
      %464 = vmatprep.subr.bf16.mxu0 0
      %465 = vmatpush2.bf16.msra.mxu0 0
      %466 = vmatprep.subr.bf16.mxu0 0
      %467 = vmatpush2.bf16.msra.mxu0 0
      %468 = vmatprep.subr.bf16.mxu0 0
      %469 = vmatpush2.bf16.msra.mxu0 0
      %470 = vmatprep.subr.bf16.mxu0 0
      %471 = vmatpush2.bf16.msra.mxu0 0
      %472 = vmatprep.subr.bf16.mxu0 0
      %473 = vmatpush2.bf16.msra.mxu0 0
      %474 = vmatprep.subr.bf16.mxu0 0
      %475 = vmatpush2.bf16.msra.mxu0 0
      %476 = vmatprep.subr.bf16.mxu0 0
      %477 = vmatpush2.bf16.msra.mxu0 0
      %478 = vmatprep.subr.bf16.mxu0 0
      %479 = vmatpush2.bf16.msra.mxu0 0
      %480 = vmatprep.mubr.bf16.mxu0 0
      %481 = vmatmul.mubr.bf16.gmra.mxu0 %v436
      %v482 = vpop.f32.mrf.mxu0
      %v483 = vadd.f32 %v405, %v482
      %v484 = vpop.f32.mrf.mxu0
      %v485 = vpop.f32.mrf.mxu0
      %v486 = vadd.f32 %v405, %v485
      %v487 = vpop.f32.mrf.mxu0
      %488 = vmatprep.mubr.bf16.mxu0 0
      %489 = vmatmul.mubr.bf16.gmra.mxu0 %v439
      %v490 = vpop.f32.mrf.mxu0
      %v491 = vadd.f32 %v405, %v490
      %v492 = vpop.f32.mrf.mxu0
      %v493 = vpop.f32.mrf.mxu0
      %v494 = vadd.f32 %v405, %v493
      %v495 = vpop.f32.mrf.mxu0
      %496 = vdwg.mxu0
      %vm497 = vcmask 523264
      %v498 = vsel %vm497, %v483, 0.0
      %499 = vadd.xlane.f32.xlu0 %v498
      %v500 = vpop.xlane.xlu0 %499
      %v501 = vsel %vm497, %v486, 0.0
      %502 = vadd.xlane.f32.xlu0 %v501
      %v503 = vpop.xlane.xlu0 %502
      %v504 = vsel %vm497, %v491, 0.0
      %505 = vadd.xlane.f32.xlu0 %v504
      %v506 = vpop.xlane.xlu0 %505
      %v507 = vsel %vm497, %v494, 0.0
      %508 = vadd.xlane.f32.xlu0 %v507
      %v509 = vpop.xlane.xlu0 %508
      %v510 = vrcp.pop 64.0
      %v511 = vmul.f32 %v500, %v510
      %v512 = vmul.f32 %v503, %v510
      %v513 = vmul.f32 %v506, %v510
      %v514 = vmul.f32 %v509, %v510
      %v515 = vsub.f32 %v483, %v511
      %v516 = vsub.f32 %v486, %v512
      %v517 = vsub.f32 %v491, %v513
      %v518 = vsub.f32 %v494, %v514
      %v519 = vmul.f32 %v515, %v515
      %v520 = vmul.f32 %v516, %v516
      %v521 = vmul.f32 %v517, %v517
      %v522 = vmul.f32 %v518, %v518
      %v523 = vsel %vm497, %v519, 0.0
      %524 = vadd.xlane.f32.xlu0 %v523
      %v525 = vpop.xlane.xlu0 %524
      %v526 = vsel %vm497, %v520, 0.0
      %527 = vadd.xlane.f32.xlu0 %v526
      %v528 = vpop.xlane.xlu0 %527
      %v529 = vsel %vm497, %v521, 0.0
      %530 = vadd.xlane.f32.xlu0 %v529
      %v531 = vpop.xlane.xlu0 %530
      %v532 = vsel %vm497, %v522, 0.0
      %533 = vadd.xlane.f32.xlu0 %v532
      %v534 = vpop.xlane.xlu0 %533
      %v535 = vmul.f32 %v525, %v510
      %v536 = vmul.f32 %v528, %v510
      %v537 = vmul.f32 %v531, %v510
      %v538 = vmul.f32 %v534, %v510
      %v539 = vadd.f32 %v535, 1e-05
      %v540 = vadd.f32 %v536, 1e-05
      %v541 = vadd.f32 %v537, 1e-05
      %v542 = vadd.f32 %v538, 1e-05
      %v543 = vrsqrt.pop %v539
      %v544 = vrsqrt.pop %v540
      %v545 = vrsqrt.pop %v541
      %v546 = vrsqrt.pop %v542
      %v547 = vmul.f32 %v515, %v543
      %v548 = vmul.f32 %v516, %v544
      %v549 = vmul.f32 %v517, %v545
      %v550 = vmul.f32 %v518, %v546
      %v551 = vlaneseq
      %v552 = vshrl.u32 %v551, 7
      %v553 = vsub.s32 2, %v552
      %v554 = vrot.slane %v310, %v553
      %v555 = vmul.f32 %v547, %v554
      %v556 = vmul.f32 %v548, %v554
      %v557 = vmul.f32 %v549, %v554
      %v558 = vmul.f32 %v550, %v554
      %v559 = vlaneseq
      %v560 = vshrl.u32 %v559, 7
      %v561 = vsub.s32 3, %v560
      %v562 = vrot.slane %v310, %v561
      %v563 = vadd.f32 %v555, %v562
      %v564 = vadd.f32 %v556, %v562
      %v565 = vadd.f32 %v557, %v562
      %v566 = vadd.f32 %v558, %v562
      %v567 = vld [vmem:[%s1] sm:$0xff]
      %v568 = vld [vmem:[%s1 + $0x8] sm:$0xff]
      %v569 = vld [vmem:[%s1 + $0x10] sm:$0xff]
      %v570 = vld [vmem:[%s1 + $0x18] sm:$0xff]
      %v571 = vadd.f32 %v563, %v567
      %v572 = vadd.f32 %v564, %v568
      %v573 = vadd.f32 %v565, %v569
      %v574 = vadd.f32 %v566, %v570
      %v575 = vsel %vm497, %v571, 0.0
      %576 = vadd.xlane.f32.xlu0 %v575
      %v577 = vpop.xlane.xlu0 %576
      %v578 = vsel %vm497, %v572, 0.0
      %579 = vadd.xlane.f32.xlu0 %v578
      %v580 = vpop.xlane.xlu0 %579
      %v581 = vsel %vm497, %v573, 0.0
      %582 = vadd.xlane.f32.xlu0 %v581
      %v583 = vpop.xlane.xlu0 %582
      %v584 = vsel %vm497, %v574, 0.0
      %585 = vadd.xlane.f32.xlu0 %v584
      %v586 = vpop.xlane.xlu0 %585
      %v587 = vmul.f32 %v577, %v510
      %v588 = vmul.f32 %v580, %v510
      %v589 = vmul.f32 %v583, %v510
      %v590 = vmul.f32 %v586, %v510
      %v591 = vsub.f32 %v571, %v587
      %v592 = vsub.f32 %v572, %v588
      %v593 = vsub.f32 %v573, %v589
      %v594 = vsub.f32 %v574, %v590
      %v595 = vmul.f32 %v591, %v591
      %v596 = vmul.f32 %v592, %v592
      %v597 = vmul.f32 %v593, %v593
      %v598 = vmul.f32 %v594, %v594
      %v599 = vsel %vm497, %v595, 0.0
      %600 = vadd.xlane.f32.xlu0 %v599
      %v601 = vpop.xlane.xlu0 %600
      %v602 = vsel %vm497, %v596, 0.0
      %603 = vadd.xlane.f32.xlu0 %v602
      %v604 = vpop.xlane.xlu0 %603
      %v605 = vsel %vm497, %v597, 0.0
      %606 = vadd.xlane.f32.xlu0 %v605
      %v607 = vpop.xlane.xlu0 %606
      %v608 = vsel %vm497, %v598, 0.0
      %609 = vadd.xlane.f32.xlu0 %v608
      %v610 = vpop.xlane.xlu0 %609
      %v611 = vmul.f32 %v601, %v510
      %v612 = vmul.f32 %v604, %v510
      %v613 = vmul.f32 %v607, %v510
      %v614 = vmul.f32 %v610, %v510
      %v615 = vadd.f32 %v611, 1e-05
      %v616 = vadd.f32 %v612, 1e-05
      %v617 = vadd.f32 %v613, 1e-05
      %v618 = vadd.f32 %v614, 1e-05
      %v619 = vrsqrt.pop %v615
      %v620 = vrsqrt.pop %v616
      %v621 = vrsqrt.pop %v617
      %v622 = vrsqrt.pop %v618
      %v623 = vmul.f32 %v591, %v619
      %v624 = vmul.f32 %v592, %v620
      %v625 = vmul.f32 %v593, %v621
      %v626 = vmul.f32 %v594, %v622
      %v627 = vlaneseq
      %v628 = vshrl.u32 %v627, 7
      %v629 = vsub.s32 5, %v628
      %v630 = vrot.slane %v310, %v629
      %v631 = vmul.f32 %v623, %v630
      %v632 = vmul.f32 %v624, %v630
      %v633 = vmul.f32 %v625, %v630
      %v634 = vmul.f32 %v626, %v630
      %v635 = vlaneseq
      %v636 = vshrl.u32 %v635, 7
      %v637 = vsub.s32 6, %v636
      %v638 = vrot.slane %v310, %v637
      %v639 = vadd.f32 %v631, %v638
      %v640 = vadd.f32 %v632, %v638
      %v641 = vadd.f32 %v633, %v638
      %v642 = vadd.f32 %v634, %v638
      %v643 = vpack.c.bf16 %v640, %v639
      %v644 = vpack.c.bf16 %v642, %v641
      %v645 = vld [vmem:[%s5] sm:$0xff]
      %v646 = vld [vmem:[%s5 + $0x8] sm:$0xff]
      %v647 = vld [vmem:[%s5 + $0x10] sm:$0xff]
      %v648 = vld [vmem:[%s5 + $0x18] sm:$0xff]
      %v649 = vld [vmem:[%s5 + $0x20] sm:$0xff]
      %v650 = vld [vmem:[%s5 + $0x28] sm:$0xff]
      %v651 = vld [vmem:[%s5 + $0x30] sm:$0xff]
      %v652 = vld [vmem:[%s5 + $0x38] sm:$0xff]
      %v653 = vld [vmem:[%s5 + $0x40] sm:$0xff]
      %v654 = vld [vmem:[%s5 + $0x48] sm:$0xff]
      %v655 = vld [vmem:[%s5 + $0x50] sm:$0xff]
      %v656 = vld [vmem:[%s5 + $0x58] sm:$0xff]
      %v657 = vld [vmem:[%s5 + $0x60] sm:$0xff]
      %v658 = vld [vmem:[%s5 + $0x68] sm:$0xff]
      %v659 = vld [vmem:[%s5 + $0x70] sm:$0xff]
      %v660 = vld [vmem:[%s5 + $0x78] sm:$0xff]
      %v661 = vld [vmem:[%s5 + $0x80] sm:$0xff]
      %v662 = vld [vmem:[%s5 + $0x88] sm:$0xff]
      %v663 = vld [vmem:[%s5 + $0x90] sm:$0xff]
      %v664 = vld [vmem:[%s5 + $0x98] sm:$0xff]
      %v665 = vld [vmem:[%s5 + $0xa0] sm:$0xff]
      %v666 = vld [vmem:[%s5 + $0xa8] sm:$0xff]
      %v667 = vld [vmem:[%s5 + $0xb0] sm:$0xff]
      %v668 = vld [vmem:[%s5 + $0xb8] sm:$0xff]
      %v669 = vld [vmem:[%s5 + $0xc0] sm:$0xff]
      %v670 = vld [vmem:[%s5 + $0xc8] sm:$0xff]
      %v671 = vld [vmem:[%s5 + $0xd0] sm:$0xff]
      %v672 = vld [vmem:[%s5 + $0xd8] sm:$0xff]
      %v673 = vld [vmem:[%s5 + $0xe0] sm:$0xff]
      %v674 = vld [vmem:[%s5 + $0xe8] sm:$0xff]
      %v675 = vld [vmem:[%s5 + $0xf0] sm:$0xff]
      %v676 = vld [vmem:[%s5 + $0xf8] sm:$0xff]
      %v677 = vld [vmem:[%s5 + $0x100] sm:$0xff]
      %v678 = vld [vmem:[%s5 + $0x108] sm:$0xff]
      %v679 = vld [vmem:[%s5 + $0x110] sm:$0xff]
      %v680 = vld [vmem:[%s5 + $0x118] sm:$0xff]
      %v681 = vld [vmem:[%s5 + $0x120] sm:$0xff]
      %v682 = vld [vmem:[%s5 + $0x128] sm:$0xff]
      %v683 = vld [vmem:[%s5 + $0x130] sm:$0xff]
      %v684 = vld [vmem:[%s5 + $0x138] sm:$0xff]
      %v685 = vld [vmem:[%s5 + $0x140] sm:$0xff]
      %v686 = vld [vmem:[%s5 + $0x148] sm:$0xff]
      %v687 = vld [vmem:[%s5 + $0x150] sm:$0xff]
      %v688 = vld [vmem:[%s5 + $0x158] sm:$0xff]
      %v689 = vld [vmem:[%s5 + $0x160] sm:$0xff]
      %v690 = vld [vmem:[%s5 + $0x168] sm:$0xff]
      %v691 = vld [vmem:[%s5 + $0x170] sm:$0xff]
      %v692 = vld [vmem:[%s5 + $0x178] sm:$0xff]
      %v741 = vunpack.c.l.b16 %v645
      %v742 = vunpack.c.h.b16 %v645
      %v743 = vunpack.c.l.b16 %v646
      %v744 = vunpack.c.h.b16 %v646
      %v745 = vunpack.c.l.b16 %v647
      %v746 = vunpack.c.h.b16 %v647
      %v747 = vunpack.c.l.b16 %v648
      %v748 = vunpack.c.h.b16 %v648
      %v749 = vunpack.c.l.b16 %v649
      %v750 = vunpack.c.h.b16 %v649
      %v751 = vunpack.c.l.b16 %v650
      %v752 = vunpack.c.h.b16 %v650
      %v753 = vunpack.c.l.b16 %v651
      %v754 = vunpack.c.h.b16 %v651
      %v755 = vunpack.c.l.b16 %v652
      %v756 = vunpack.c.h.b16 %v652
      %v757 = vunpack.c.l.b16 %v653
      %v758 = vunpack.c.h.b16 %v653
      %v759 = vunpack.c.l.b16 %v654
      %v760 = vunpack.c.h.b16 %v654
      %v761 = vunpack.c.l.b16 %v655
      %v762 = vunpack.c.h.b16 %v655
      %v763 = vunpack.c.l.b16 %v656
      %v764 = vunpack.c.h.b16 %v656
      %v765 = vunpack.c.l.b16 %v657
      %v766 = vunpack.c.h.b16 %v657
      %v767 = vunpack.c.l.b16 %v658
      %v768 = vunpack.c.h.b16 %v658
      %v769 = vunpack.c.l.b16 %v659
      %v770 = vunpack.c.h.b16 %v659
      %v771 = vunpack.c.l.b16 %v660
      %v772 = vunpack.c.h.b16 %v660
      %v773 = vunpack.c.l.b16 %v661
      %v774 = vunpack.c.h.b16 %v661
      %v775 = vunpack.c.l.b16 %v662
      %v776 = vunpack.c.h.b16 %v662
      %v777 = vunpack.c.l.b16 %v663
      %v778 = vunpack.c.h.b16 %v663
      %v779 = vunpack.c.l.b16 %v664
      %v780 = vunpack.c.h.b16 %v664
      %v781 = vunpack.c.l.b16 %v665
      %v782 = vunpack.c.h.b16 %v665
      %v783 = vunpack.c.l.b16 %v666
      %v784 = vunpack.c.h.b16 %v666
      %v785 = vunpack.c.l.b16 %v667
      %v786 = vunpack.c.h.b16 %v667
      %v787 = vunpack.c.l.b16 %v668
      %v788 = vunpack.c.h.b16 %v668
      %v789 = vunpack.c.l.b16 %v669
      %v790 = vunpack.c.h.b16 %v669
      %v791 = vunpack.c.l.b16 %v670
      %v792 = vunpack.c.h.b16 %v670
      %v793 = vunpack.c.l.b16 %v671
      %v794 = vunpack.c.h.b16 %v671
      %v795 = vunpack.c.l.b16 %v672
      %v796 = vunpack.c.h.b16 %v672
      %v797 = vunpack.c.l.b16 %v673
      %v798 = vunpack.c.h.b16 %v673
      %v799 = vunpack.c.l.b16 %v674
      %v800 = vunpack.c.h.b16 %v674
      %v801 = vunpack.c.l.b16 %v675
      %v802 = vunpack.c.h.b16 %v675
      %v803 = vunpack.c.l.b16 %v676
      %v804 = vunpack.c.h.b16 %v676
      %v805 = vunpack.c.l.b16 %v677
      %v806 = vunpack.c.h.b16 %v677
      %v807 = vunpack.c.l.b16 %v678
      %v808 = vunpack.c.h.b16 %v678
      %v809 = vunpack.c.l.b16 %v679
      %v810 = vunpack.c.h.b16 %v679
      %v811 = vunpack.c.l.b16 %v680
      %v812 = vunpack.c.h.b16 %v680
      %v813 = vunpack.c.l.b16 %v681
      %v814 = vunpack.c.h.b16 %v681
      %v815 = vunpack.c.l.b16 %v682
      %v816 = vunpack.c.h.b16 %v682
      %v817 = vunpack.c.l.b16 %v683
      %v818 = vunpack.c.h.b16 %v683
      %v819 = vunpack.c.l.b16 %v684
      %v820 = vunpack.c.h.b16 %v684
      %v821 = vunpack.c.l.b16 %v685
      %v822 = vunpack.c.h.b16 %v685
      %v823 = vunpack.c.l.b16 %v686
      %v824 = vunpack.c.h.b16 %v686
      %v825 = vunpack.c.l.b16 %v687
      %v826 = vunpack.c.h.b16 %v687
      %v827 = vunpack.c.l.b16 %v688
      %v828 = vunpack.c.h.b16 %v688
      %v829 = vunpack.c.l.b16 %v689
      %v830 = vunpack.c.h.b16 %v689
      %v831 = vunpack.c.l.b16 %v690
      %v832 = vunpack.c.h.b16 %v690
      %v833 = vunpack.c.l.b16 %v691
      %v834 = vunpack.c.h.b16 %v691
      %v835 = vunpack.c.l.b16 %v692
      %v836 = vunpack.c.h.b16 %v692
      %v837 = vpack.c.b16 %v753, %v741
      %v838 = vpack.c.b16 %v754, %v742
      %v839 = vpack.c.b16 %v755, %v743
      %v840 = vpack.c.b16 %v756, %v744
      %v841 = vpack.c.b16 %v757, %v745
      %v842 = vpack.c.b16 %v758, %v746
      %v843 = vpack.c.b16 %v759, %v747
      %v844 = vpack.c.b16 %v760, %v748
      %v845 = vpack.c.b16 %v761, %v749
      %v846 = vpack.c.b16 %v762, %v750
      %v847 = vpack.c.b16 %v763, %v751
      %v848 = vpack.c.b16 %v764, %v752
      %v849 = vpack.c.b16 %v777, %v765
      %v850 = vpack.c.b16 %v778, %v766
      %v851 = vpack.c.b16 %v779, %v767
      %v852 = vpack.c.b16 %v780, %v768
      %v853 = vpack.c.b16 %v781, %v769
      %v854 = vpack.c.b16 %v782, %v770
      %v855 = vpack.c.b16 %v783, %v771
      %v856 = vpack.c.b16 %v784, %v772
      %v857 = vpack.c.b16 %v785, %v773
      %v858 = vpack.c.b16 %v786, %v774
      %v859 = vpack.c.b16 %v787, %v775
      %v860 = vpack.c.b16 %v788, %v776
      %v861 = vpack.c.b16 %v801, %v789
      %v862 = vpack.c.b16 %v802, %v790
      %v863 = vpack.c.b16 %v803, %v791
      %v864 = vpack.c.b16 %v804, %v792
      %v865 = vpack.c.b16 %v805, %v793
      %v866 = vpack.c.b16 %v806, %v794
      %v867 = vpack.c.b16 %v807, %v795
      %v868 = vpack.c.b16 %v808, %v796
      %v869 = vpack.c.b16 %v809, %v797
      %v870 = vpack.c.b16 %v810, %v798
      %v871 = vpack.c.b16 %v811, %v799
      %v872 = vpack.c.b16 %v812, %v800
      %v873 = vpack.c.b16 %v825, %v813
      %v874 = vpack.c.b16 %v826, %v814
      %v875 = vpack.c.b16 %v827, %v815
      %v876 = vpack.c.b16 %v828, %v816
      %v877 = vpack.c.b16 %v829, %v817
      %v878 = vpack.c.b16 %v830, %v818
      %v879 = vpack.c.b16 %v831, %v819
      %v880 = vpack.c.b16 %v832, %v820
      %v881 = vpack.c.b16 %v833, %v821
      %v882 = vpack.c.b16 %v834, %v822
      %v883 = vpack.c.b16 %v835, %v823
      %v884 = vpack.c.b16 %v836, %v824
      %v934 = vsel %vm497, %v643, 0
      %v937 = vsel %vm497, %v644, 0
      %939 = vmatprep.subr.bf16.mxu0 0
      %940 = vmatpush1.bf16.msra.mxu0 0
      %941 = vmatprep.subr.bf16.mxu0 0
      %942 = vmatpush1.bf16.msra.mxu0 0
      %943 = vmatprep.subr.bf16.mxu0 0
      %944 = vmatpush1.bf16.msra.mxu0 0
      %945 = vmatprep.subr.bf16.mxu0 0
      %946 = vmatpush1.bf16.msra.mxu0 0
      %947 = vmatprep.subr.bf16.mxu0 %v874
      %948 = vmatpush1.bf16.msra.mxu0 %v873
      %949 = vmatprep.subr.bf16.mxu0 %v862
      %950 = vmatpush1.bf16.msra.mxu0 %v861
      %951 = vmatprep.subr.bf16.mxu0 %v850
      %952 = vmatpush1.bf16.msra.mxu0 %v849
      %953 = vmatprep.subr.bf16.mxu0 %v838
      %954 = vmatpush1.bf16.msra.mxu0 %v837
      %955 = vmatprep.subr.bf16.mxu0 0
      %956 = vmatpush2.bf16.msra.mxu0 0
      %957 = vmatprep.subr.bf16.mxu0 0
      %958 = vmatpush2.bf16.msra.mxu0 0
      %959 = vmatprep.subr.bf16.mxu0 0
      %960 = vmatpush2.bf16.msra.mxu0 0
      %961 = vmatprep.subr.bf16.mxu0 0
      %962 = vmatpush2.bf16.msra.mxu0 0
      %963 = vmatprep.subr.bf16.mxu0 0
      %964 = vmatpush2.bf16.msra.mxu0 0
      %965 = vmatprep.subr.bf16.mxu0 0
      %966 = vmatpush2.bf16.msra.mxu0 0
      %967 = vmatprep.subr.bf16.mxu0 0
      %968 = vmatpush2.bf16.msra.mxu0 0
      %969 = vmatprep.subr.bf16.mxu0 0
      %970 = vmatpush2.bf16.msra.mxu0 0
      %971 = vmatprep.mubr.bf16.mxu0 0
      %972 = vmatmul.mubr.bf16.gmra.mxu0 %v934
      %v973 = vpop.f32.mrf.mxu0
      %v974 = vadd.f32 0.0, %v973
      %v975 = vpop.f32.mrf.mxu0
      %v976 = vadd.f32 0.0, %v975
      %v977 = vpop.f32.mrf.mxu0
      %v978 = vadd.f32 0.0, %v977
      %v979 = vpop.f32.mrf.mxu0
      %v980 = vadd.f32 0.0, %v979
      %981 = vmatprep.mubr.bf16.mxu0 0
      %982 = vmatmul.mubr.bf16.gmra.mxu0 %v937
      %v983 = vpop.f32.mrf.mxu0
      %v984 = vadd.f32 0.0, %v983
      %v985 = vpop.f32.mrf.mxu0
      %v986 = vadd.f32 0.0, %v985
      %v987 = vpop.f32.mrf.mxu0
      %v988 = vadd.f32 0.0, %v987
      %v989 = vpop.f32.mrf.mxu0
      %v990 = vadd.f32 0.0, %v989
      %991 = vdwg.mxu0
      %992 = vmatprep.subr.bf16.mxu0 0
      %993 = vmatpush1.bf16.msra.mxu0 0
      %994 = vmatprep.subr.bf16.mxu0 0
      %995 = vmatpush1.bf16.msra.mxu0 0
      %996 = vmatprep.subr.bf16.mxu0 0
      %997 = vmatpush1.bf16.msra.mxu0 0
      %998 = vmatprep.subr.bf16.mxu0 0
      %999 = vmatpush1.bf16.msra.mxu0 0
      %1000 = vmatprep.subr.bf16.mxu0 %v876
      %1001 = vmatpush1.bf16.msra.mxu0 %v875
      %1002 = vmatprep.subr.bf16.mxu0 %v864
      %1003 = vmatpush1.bf16.msra.mxu0 %v863
      %1004 = vmatprep.subr.bf16.mxu0 %v852
      %1005 = vmatpush1.bf16.msra.mxu0 %v851
      %1006 = vmatprep.subr.bf16.mxu0 %v840
      %1007 = vmatpush1.bf16.msra.mxu0 %v839
      %1008 = vmatprep.subr.bf16.mxu0 0
      %1009 = vmatpush2.bf16.msra.mxu0 0
      %1010 = vmatprep.subr.bf16.mxu0 0
      %1011 = vmatpush2.bf16.msra.mxu0 0
      %1012 = vmatprep.subr.bf16.mxu0 0
      %1013 = vmatpush2.bf16.msra.mxu0 0
      %1014 = vmatprep.subr.bf16.mxu0 0
      %1015 = vmatpush2.bf16.msra.mxu0 0
      %1016 = vmatprep.subr.bf16.mxu0 0
      %1017 = vmatpush2.bf16.msra.mxu0 0
      %1018 = vmatprep.subr.bf16.mxu0 0
      %1019 = vmatpush2.bf16.msra.mxu0 0
      %1020 = vmatprep.subr.bf16.mxu0 0
      %1021 = vmatpush2.bf16.msra.mxu0 0
      %1022 = vmatprep.subr.bf16.mxu0 0
      %1023 = vmatpush2.bf16.msra.mxu0 0
      %1024 = vmatprep.mubr.bf16.mxu0 0
      %1025 = vmatmul.mubr.bf16.gmra.mxu0 %v934
      %v1026 = vpop.f32.mrf.mxu0
      %v1027 = vadd.f32 0.0, %v1026
      %v1028 = vpop.f32.mrf.mxu0
      %v1029 = vadd.f32 0.0, %v1028
      %v1030 = vpop.f32.mrf.mxu0
      %v1031 = vadd.f32 0.0, %v1030
      %v1032 = vpop.f32.mrf.mxu0
      %v1033 = vadd.f32 0.0, %v1032
      %1034 = vmatprep.mubr.bf16.mxu0 0
      %1035 = vmatmul.mubr.bf16.gmra.mxu0 %v937
      %v1036 = vpop.f32.mrf.mxu0
      %v1037 = vadd.f32 0.0, %v1036
      %v1038 = vpop.f32.mrf.mxu0
      %v1039 = vadd.f32 0.0, %v1038
      %v1040 = vpop.f32.mrf.mxu0
      %v1041 = vadd.f32 0.0, %v1040
      %v1042 = vpop.f32.mrf.mxu0
      %v1043 = vadd.f32 0.0, %v1042
      %1044 = vdwg.mxu0
      %1045 = vmatprep.subr.bf16.mxu0 0
      %1046 = vmatpush1.bf16.msra.mxu0 0
      %1047 = vmatprep.subr.bf16.mxu0 0
      %1048 = vmatpush1.bf16.msra.mxu0 0
      %1049 = vmatprep.subr.bf16.mxu0 0
      %1050 = vmatpush1.bf16.msra.mxu0 0
      %1051 = vmatprep.subr.bf16.mxu0 0
      %1052 = vmatpush1.bf16.msra.mxu0 0
      %1053 = vmatprep.subr.bf16.mxu0 %v878
      %1054 = vmatpush1.bf16.msra.mxu0 %v877
      %1055 = vmatprep.subr.bf16.mxu0 %v866
      %1056 = vmatpush1.bf16.msra.mxu0 %v865
      %1057 = vmatprep.subr.bf16.mxu0 %v854
      %1058 = vmatpush1.bf16.msra.mxu0 %v853
      %1059 = vmatprep.subr.bf16.mxu0 %v842
      %1060 = vmatpush1.bf16.msra.mxu0 %v841
      %1061 = vmatprep.subr.bf16.mxu0 0
      %1062 = vmatpush2.bf16.msra.mxu0 0
      %1063 = vmatprep.subr.bf16.mxu0 0
      %1064 = vmatpush2.bf16.msra.mxu0 0
      %1065 = vmatprep.subr.bf16.mxu0 0
      %1066 = vmatpush2.bf16.msra.mxu0 0
      %1067 = vmatprep.subr.bf16.mxu0 0
      %1068 = vmatpush2.bf16.msra.mxu0 0
      %1069 = vmatprep.subr.bf16.mxu0 0
      %1070 = vmatpush2.bf16.msra.mxu0 0
      %1071 = vmatprep.subr.bf16.mxu0 0
      %1072 = vmatpush2.bf16.msra.mxu0 0
      %1073 = vmatprep.subr.bf16.mxu0 0
      %1074 = vmatpush2.bf16.msra.mxu0 0
      %1075 = vmatprep.subr.bf16.mxu0 0
      %1076 = vmatpush2.bf16.msra.mxu0 0
      %1077 = vmatprep.mubr.bf16.mxu0 0
      %1078 = vmatmul.mubr.bf16.gmra.mxu0 %v934
      %v1079 = vpop.f32.mrf.mxu0
      %v1080 = vadd.f32 0.0, %v1079
      %v1081 = vpop.f32.mrf.mxu0
      %v1082 = vadd.f32 0.0, %v1081
      %v1083 = vpop.f32.mrf.mxu0
      %v1084 = vadd.f32 0.0, %v1083
      %v1085 = vpop.f32.mrf.mxu0
      %v1086 = vadd.f32 0.0, %v1085
      %1087 = vmatprep.mubr.bf16.mxu0 0
      %1088 = vmatmul.mubr.bf16.gmra.mxu0 %v937
      %v1089 = vpop.f32.mrf.mxu0
      %v1090 = vadd.f32 0.0, %v1089
      %v1091 = vpop.f32.mrf.mxu0
      %v1092 = vadd.f32 0.0, %v1091
      %v1093 = vpop.f32.mrf.mxu0
      %v1094 = vadd.f32 0.0, %v1093
      %v1095 = vpop.f32.mrf.mxu0
      %v1096 = vadd.f32 0.0, %v1095
      %1097 = vdwg.mxu0
      %1098 = vmatprep.subr.bf16.mxu0 0
      %1099 = vmatpush1.bf16.msra.mxu0 0
      %1100 = vmatprep.subr.bf16.mxu0 0
      %1101 = vmatpush1.bf16.msra.mxu0 0
      %1102 = vmatprep.subr.bf16.mxu0 0
      %1103 = vmatpush1.bf16.msra.mxu0 0
      %1104 = vmatprep.subr.bf16.mxu0 0
      %1105 = vmatpush1.bf16.msra.mxu0 0
      %1106 = vmatprep.subr.bf16.mxu0 %v880
      %1107 = vmatpush1.bf16.msra.mxu0 %v879
      %1108 = vmatprep.subr.bf16.mxu0 %v868
      %1109 = vmatpush1.bf16.msra.mxu0 %v867
      %1110 = vmatprep.subr.bf16.mxu0 %v856
      %1111 = vmatpush1.bf16.msra.mxu0 %v855
      %1112 = vmatprep.subr.bf16.mxu0 %v844
      %1113 = vmatpush1.bf16.msra.mxu0 %v843
      %1114 = vmatprep.subr.bf16.mxu0 0
      %1115 = vmatpush2.bf16.msra.mxu0 0
      %1116 = vmatprep.subr.bf16.mxu0 0
      %1117 = vmatpush2.bf16.msra.mxu0 0
      %1118 = vmatprep.subr.bf16.mxu0 0
      %1119 = vmatpush2.bf16.msra.mxu0 0
      %1120 = vmatprep.subr.bf16.mxu0 0
      %1121 = vmatpush2.bf16.msra.mxu0 0
      %1122 = vmatprep.subr.bf16.mxu0 0
      %1123 = vmatpush2.bf16.msra.mxu0 0
      %1124 = vmatprep.subr.bf16.mxu0 0
      %1125 = vmatpush2.bf16.msra.mxu0 0
      %1126 = vmatprep.subr.bf16.mxu0 0
      %1127 = vmatpush2.bf16.msra.mxu0 0
      %1128 = vmatprep.subr.bf16.mxu0 0
      %1129 = vmatpush2.bf16.msra.mxu0 0
      %1130 = vmatprep.mubr.bf16.mxu0 0
      %1131 = vmatmul.mubr.bf16.gmra.mxu0 %v934
      %v1132 = vpop.f32.mrf.mxu0
      %v1133 = vadd.f32 0.0, %v1132
      %v1134 = vpop.f32.mrf.mxu0
      %v1135 = vadd.f32 0.0, %v1134
      %v1136 = vpop.f32.mrf.mxu0
      %v1137 = vadd.f32 0.0, %v1136
      %v1138 = vpop.f32.mrf.mxu0
      %v1139 = vadd.f32 0.0, %v1138
      %1140 = vmatprep.mubr.bf16.mxu0 0
      %1141 = vmatmul.mubr.bf16.gmra.mxu0 %v937
      %v1142 = vpop.f32.mrf.mxu0
      %v1143 = vadd.f32 0.0, %v1142
      %v1144 = vpop.f32.mrf.mxu0
      %v1145 = vadd.f32 0.0, %v1144
      %v1146 = vpop.f32.mrf.mxu0
      %v1147 = vadd.f32 0.0, %v1146
      %v1148 = vpop.f32.mrf.mxu0
      %v1149 = vadd.f32 0.0, %v1148
      %1150 = vdwg.mxu0
      %1151 = vmatprep.subr.bf16.mxu0 0
      %1152 = vmatpush1.bf16.msra.mxu0 0
      %1153 = vmatprep.subr.bf16.mxu0 0
      %1154 = vmatpush1.bf16.msra.mxu0 0
      %1155 = vmatprep.subr.bf16.mxu0 0
      %1156 = vmatpush1.bf16.msra.mxu0 0
      %1157 = vmatprep.subr.bf16.mxu0 0
      %1158 = vmatpush1.bf16.msra.mxu0 0
      %1159 = vmatprep.subr.bf16.mxu0 %v882
      %1160 = vmatpush1.bf16.msra.mxu0 %v881
      %1161 = vmatprep.subr.bf16.mxu0 %v870
      %1162 = vmatpush1.bf16.msra.mxu0 %v869
      %1163 = vmatprep.subr.bf16.mxu0 %v858
      %1164 = vmatpush1.bf16.msra.mxu0 %v857
      %1165 = vmatprep.subr.bf16.mxu0 %v846
      %1166 = vmatpush1.bf16.msra.mxu0 %v845
      %1167 = vmatprep.subr.bf16.mxu0 0
      %1168 = vmatpush2.bf16.msra.mxu0 0
      %1169 = vmatprep.subr.bf16.mxu0 0
      %1170 = vmatpush2.bf16.msra.mxu0 0
      %1171 = vmatprep.subr.bf16.mxu0 0
      %1172 = vmatpush2.bf16.msra.mxu0 0
      %1173 = vmatprep.subr.bf16.mxu0 0
      %1174 = vmatpush2.bf16.msra.mxu0 0
      %1175 = vmatprep.subr.bf16.mxu0 0
      %1176 = vmatpush2.bf16.msra.mxu0 0
      %1177 = vmatprep.subr.bf16.mxu0 0
      %1178 = vmatpush2.bf16.msra.mxu0 0
      %1179 = vmatprep.subr.bf16.mxu0 0
      %1180 = vmatpush2.bf16.msra.mxu0 0
      %1181 = vmatprep.subr.bf16.mxu0 0
      %1182 = vmatpush2.bf16.msra.mxu0 0
      %1183 = vmatprep.mubr.bf16.mxu0 0
      %1184 = vmatmul.mubr.bf16.gmra.mxu0 %v934
      %v1185 = vpop.f32.mrf.mxu0
      %v1186 = vadd.f32 0.0, %v1185
      %v1187 = vpop.f32.mrf.mxu0
      %v1188 = vadd.f32 0.0, %v1187
      %v1189 = vpop.f32.mrf.mxu0
      %v1190 = vadd.f32 0.0, %v1189
      %v1191 = vpop.f32.mrf.mxu0
      %v1192 = vadd.f32 0.0, %v1191
      %1193 = vmatprep.mubr.bf16.mxu0 0
      %1194 = vmatmul.mubr.bf16.gmra.mxu0 %v937
      %v1195 = vpop.f32.mrf.mxu0
      %v1196 = vadd.f32 0.0, %v1195
      %v1197 = vpop.f32.mrf.mxu0
      %v1198 = vadd.f32 0.0, %v1197
      %v1199 = vpop.f32.mrf.mxu0
      %v1200 = vadd.f32 0.0, %v1199
      %v1201 = vpop.f32.mrf.mxu0
      %v1202 = vadd.f32 0.0, %v1201
      %1203 = vdwg.mxu0
      %1204 = vmatprep.subr.bf16.mxu0 0
      %1205 = vmatpush1.bf16.msra.mxu0 0
      %1206 = vmatprep.subr.bf16.mxu0 0
      %1207 = vmatpush1.bf16.msra.mxu0 0
      %1208 = vmatprep.subr.bf16.mxu0 0
      %1209 = vmatpush1.bf16.msra.mxu0 0
      %1210 = vmatprep.subr.bf16.mxu0 0
      %1211 = vmatpush1.bf16.msra.mxu0 0
      %1212 = vmatprep.subr.bf16.mxu0 %v884
      %1213 = vmatpush1.bf16.msra.mxu0 %v883
      %1214 = vmatprep.subr.bf16.mxu0 %v872
      %1215 = vmatpush1.bf16.msra.mxu0 %v871
      %1216 = vmatprep.subr.bf16.mxu0 %v860
      %1217 = vmatpush1.bf16.msra.mxu0 %v859
      %1218 = vmatprep.subr.bf16.mxu0 %v848
      %1219 = vmatpush1.bf16.msra.mxu0 %v847
      %1220 = vmatprep.subr.bf16.mxu0 0
      %1221 = vmatpush2.bf16.msra.mxu0 0
      %1222 = vmatprep.subr.bf16.mxu0 0
      %1223 = vmatpush2.bf16.msra.mxu0 0
      %1224 = vmatprep.subr.bf16.mxu0 0
      %1225 = vmatpush2.bf16.msra.mxu0 0
      %1226 = vmatprep.subr.bf16.mxu0 0
      %1227 = vmatpush2.bf16.msra.mxu0 0
      %1228 = vmatprep.subr.bf16.mxu0 0
      %1229 = vmatpush2.bf16.msra.mxu0 0
      %1230 = vmatprep.subr.bf16.mxu0 0
      %1231 = vmatpush2.bf16.msra.mxu0 0
      %1232 = vmatprep.subr.bf16.mxu0 0
      %1233 = vmatpush2.bf16.msra.mxu0 0
      %1234 = vmatprep.subr.bf16.mxu0 0
      %1235 = vmatpush2.bf16.msra.mxu0 0
      %1236 = vmatprep.mubr.bf16.mxu0 0
      %1237 = vmatmul.mubr.bf16.gmra.mxu0 %v934
      %v1238 = vpop.f32.mrf.mxu0
      %v1239 = vadd.f32 0.0, %v1238
      %v1240 = vpop.f32.mrf.mxu0
      %v1241 = vadd.f32 0.0, %v1240
      %v1242 = vpop.f32.mrf.mxu0
      %v1243 = vadd.f32 0.0, %v1242
      %v1244 = vpop.f32.mrf.mxu0
      %v1245 = vadd.f32 0.0, %v1244
      %1246 = vmatprep.mubr.bf16.mxu0 0
      %1247 = vmatmul.mubr.bf16.gmra.mxu0 %v937
      %v1248 = vpop.f32.mrf.mxu0
      %v1249 = vadd.f32 0.0, %v1248
      %v1250 = vpop.f32.mrf.mxu0
      %v1251 = vadd.f32 0.0, %v1250
      %v1252 = vpop.f32.mrf.mxu0
      %v1253 = vadd.f32 0.0, %v1252
      %v1254 = vpop.f32.mrf.mxu0
      %v1255 = vadd.f32 0.0, %v1254
      %1256 = vdwg.mxu0
      %v1257 = vpack.c.bf16 %v978, %v974
      %v1258 = vpack.c.bf16 %v980, %v976
      %v1259 = vpack.c.bf16 %v1031, %v1027
      %v1260 = vpack.c.bf16 %v1033, %v1029
      %v1261 = vpack.c.bf16 %v1084, %v1080
      %v1262 = vpack.c.bf16 %v1086, %v1082
      %v1263 = vpack.c.bf16 %v1137, %v1133
      %v1264 = vpack.c.bf16 %v1139, %v1135
      %v1265 = vpack.c.bf16 %v1190, %v1186
      %v1266 = vpack.c.bf16 %v1192, %v1188
      %v1267 = vpack.c.bf16 %v1243, %v1239
      %v1268 = vpack.c.bf16 %v1245, %v1241
      %v1269 = vpack.c.bf16 %v988, %v984
      %v1270 = vpack.c.bf16 %v990, %v986
      %v1271 = vpack.c.bf16 %v1041, %v1037
      %v1272 = vpack.c.bf16 %v1043, %v1039
      %v1273 = vpack.c.bf16 %v1094, %v1090
      %v1274 = vpack.c.bf16 %v1096, %v1092
      %v1275 = vpack.c.bf16 %v1147, %v1143
      %v1276 = vpack.c.bf16 %v1149, %v1145
      %v1277 = vpack.c.bf16 %v1200, %v1196
      %v1278 = vpack.c.bf16 %v1202, %v1198
      %v1279 = vpack.c.bf16 %v1253, %v1249
      %v1280 = vpack.c.bf16 %v1255, %v1251
      %v1305 = vunpack.c.l.b16 %v1257
      %v1306 = vunpack.c.l.b16 %v1258
      %v1307 = vunpack.c.l.b16 %v1259
      %v1308 = vunpack.c.l.b16 %v1260
      %v1309 = vunpack.c.l.b16 %v1261
      %v1310 = vunpack.c.l.b16 %v1262
      %v1311 = vunpack.c.l.b16 %v1263
      %v1312 = vunpack.c.l.b16 %v1264
      %v1313 = vunpack.c.l.b16 %v1265
      %v1314 = vunpack.c.l.b16 %v1266
      %v1315 = vunpack.c.l.b16 %v1267
      %v1316 = vunpack.c.l.b16 %v1268
      %v1317 = vunpack.c.h.b16 %v1257
      %v1318 = vunpack.c.h.b16 %v1258
      %v1319 = vunpack.c.h.b16 %v1259
      %v1320 = vunpack.c.h.b16 %v1260
      %v1321 = vunpack.c.h.b16 %v1261
      %v1322 = vunpack.c.h.b16 %v1262
      %v1323 = vunpack.c.h.b16 %v1263
      %v1324 = vunpack.c.h.b16 %v1264
      %v1325 = vunpack.c.h.b16 %v1265
      %v1326 = vunpack.c.h.b16 %v1266
      %v1327 = vunpack.c.h.b16 %v1267
      %v1328 = vunpack.c.h.b16 %v1268
      %v1329 = vunpack.c.l.b16 %v1269
      %v1330 = vunpack.c.l.b16 %v1270
      %v1331 = vunpack.c.l.b16 %v1271
      %v1332 = vunpack.c.l.b16 %v1272
      %v1333 = vunpack.c.l.b16 %v1273
      %v1334 = vunpack.c.l.b16 %v1274
      %v1335 = vunpack.c.l.b16 %v1275
      %v1336 = vunpack.c.l.b16 %v1276
      %v1337 = vunpack.c.l.b16 %v1277
      %v1338 = vunpack.c.l.b16 %v1278
      %v1339 = vunpack.c.l.b16 %v1279
      %v1340 = vunpack.c.l.b16 %v1280
      %v1341 = vunpack.c.h.b16 %v1269
      %v1342 = vunpack.c.h.b16 %v1270
      %v1343 = vunpack.c.h.b16 %v1271
      %v1344 = vunpack.c.h.b16 %v1272
      %v1345 = vunpack.c.h.b16 %v1273
      %v1346 = vunpack.c.h.b16 %v1274
      %v1347 = vunpack.c.h.b16 %v1275
      %v1348 = vunpack.c.h.b16 %v1276
      %v1349 = vunpack.c.h.b16 %v1277
      %v1350 = vunpack.c.h.b16 %v1278
      %v1351 = vunpack.c.h.b16 %v1279
      %v1352 = vunpack.c.h.b16 %v1280
      %v1353 = vpack.c.b16 %v1306, %v1305
      %v1354 = vpack.c.b16 %v1308, %v1307
      %v1355 = vpack.c.b16 %v1310, %v1309
      %v1356 = vpack.c.b16 %v1312, %v1311
      %v1357 = vpack.c.b16 %v1314, %v1313
      %v1358 = vpack.c.b16 %v1316, %v1315
      %v1359 = vpack.c.b16 %v1318, %v1317
      %v1360 = vpack.c.b16 %v1320, %v1319
      %v1361 = vpack.c.b16 %v1322, %v1321
      %v1362 = vpack.c.b16 %v1324, %v1323
      %v1363 = vpack.c.b16 %v1326, %v1325
      %v1364 = vpack.c.b16 %v1328, %v1327
      %v1365 = vpack.c.b16 %v1330, %v1329
      %v1366 = vpack.c.b16 %v1332, %v1331
      %v1367 = vpack.c.b16 %v1334, %v1333
      %v1368 = vpack.c.b16 %v1336, %v1335
      %v1369 = vpack.c.b16 %v1338, %v1337
      %v1370 = vpack.c.b16 %v1340, %v1339
      %v1371 = vpack.c.b16 %v1342, %v1341
      %v1372 = vpack.c.b16 %v1344, %v1343
      %v1373 = vpack.c.b16 %v1346, %v1345
      %v1374 = vpack.c.b16 %v1348, %v1347
      %v1375 = vpack.c.b16 %v1350, %v1349
      %v1376 = vpack.c.b16 %v1352, %v1351
      %1401 = vst [vmem:[#allocation2] sm:$0xff] %v1353
      %1402 = vst [vmem:[#allocation2 + $0x8] sm:$0xff] %v1354
      %1403 = vst [vmem:[#allocation2 + $0x10] sm:$0xff] %v1355
      %1404 = vst [vmem:[#allocation2 + $0x18] sm:$0xff] %v1356
      %1405 = vst [vmem:[#allocation2 + $0x20] sm:$0xff] %v1357
      %1406 = vst [vmem:[#allocation2 + $0x28] sm:$0xff] %v1358
      %1407 = vst [vmem:[#allocation2 + $0x30] sm:$0xff] %v1359
      %1408 = vst [vmem:[#allocation2 + $0x38] sm:$0xff] %v1360
      %1409 = vst [vmem:[#allocation2 + $0x40] sm:$0xff] %v1361
      %1410 = vst [vmem:[#allocation2 + $0x48] sm:$0xff] %v1362
      %1411 = vst [vmem:[#allocation2 + $0x50] sm:$0xff] %v1363
      %1412 = vst [vmem:[#allocation2 + $0x58] sm:$0xff] %v1364
      %1413 = vst [vmem:[#allocation2 + $0x60] sm:$0xff] %v1365
      %1414 = vst [vmem:[#allocation2 + $0x68] sm:$0xff] %v1366
      %1415 = vst [vmem:[#allocation2 + $0x70] sm:$0xff] %v1367
      %1416 = vst [vmem:[#allocation2 + $0x78] sm:$0xff] %v1368
      %1417 = vst [vmem:[#allocation2 + $0x80] sm:$0xff] %v1369
      %1418 = vst [vmem:[#allocation2 + $0x88] sm:$0xff] %v1370
      %1419 = vst [vmem:[#allocation2 + $0x90] sm:$0xff] %v1371
      %1420 = vst [vmem:[#allocation2 + $0x98] sm:$0xff] %v1372
      %1421 = vst [vmem:[#allocation2 + $0xa0] sm:$0xff] %v1373
      %1422 = vst [vmem:[#allocation2 + $0xa8] sm:$0xff] %v1374
      %1423 = vst [vmem:[#allocation2 + $0xb0] sm:$0xff] %v1375
      %1424 = vst [vmem:[#allocation2 + $0xb8] sm:$0xff] %v1376
      %v1425 = vld [vmem:[#allocation2] sm:$0xf]
      %v1426 = vld [vmem:[#allocation2 + $0x30] sm:$0xf]
      %v1427 = vld [vmem:[#allocation2 + $0x60] sm:$0xf]
      %v1428 = vld [vmem:[#allocation2 + $0x90] sm:$0xf]
      %v1429 = vld [vmem:[#allocation2 + $0x10] sm:$0xf]
      %v1430 = vld [vmem:[#allocation2 + $0x40] sm:$0xf]
      %v1431 = vld [vmem:[#allocation2 + $0x70] sm:$0xf]
      %v1432 = vld [vmem:[#allocation2 + $0xa0] sm:$0xf]
      %v1433 = vld [vmem:[#allocation2 + $0x20] sm:$0xf]
      %v1434 = vld [vmem:[#allocation2 + $0x50] sm:$0xf]
      %v1435 = vld [vmem:[#allocation2 + $0x80] sm:$0xf]
      %v1436 = vld [vmem:[#allocation2 + $0xb0] sm:$0xf]
      %v1441 = vunpack.c.l.b16 %v1425
      %v1442 = vunpack.c.l.b16 %v1426
      %v1443 = vunpack.c.l.b16 %v1427
      %v1444 = vunpack.c.l.b16 %v1428
      %v1445 = vpack.c.b16 %v1442, %v1441
      %v1446 = vpack.c.b16 %v1444, %v1443
      %v1451 = vunpack.c.l.b16 %v1429
      %v1452 = vunpack.c.l.b16 %v1430
      %v1453 = vunpack.c.l.b16 %v1431
      %v1454 = vunpack.c.l.b16 %v1432
      %v1455 = vpack.c.b16 %v1452, %v1451
      %v1456 = vpack.c.b16 %v1454, %v1453
      %v1458 = vsel %vm497, %v1445, 0
      %v1461 = vsel %vm497, %v1446, 0
      %v1464 = vsel %vm497, %v1455, 0
      %v1467 = vsel %vm497, %v1456, 0
      %1469 = vmatprep.subr.bf16.mxu0 0
      %1470 = vmatpush1.bf16.xpose.msra.mxu0 0
      %1471 = vmatprep.subr.bf16.mxu0 0
      %1472 = vmatpush1.bf16.xpose.msra.mxu0 0
      %1473 = vmatprep.subr.bf16.mxu0 0
      %1474 = vmatpush1.bf16.xpose.msra.mxu0 0
      %1475 = vmatprep.subr.bf16.mxu0 0
      %1476 = vmatpush1.bf16.xpose.msra.mxu0 0
      %1477 = vmatprep.subr.bf16.mxu0 0
      %1478 = vmatpush1.bf16.xpose.msra.mxu0 0
      %1479 = vmatprep.subr.bf16.mxu0 0
      %1480 = vmatpush1.bf16.xpose.msra.mxu0 0
      %1481 = vmatprep.subr.bf16.mxu0 0
      %1482 = vmatpush1.bf16.xpose.msra.mxu0 %v1467
      %1483 = vmatprep.subr.bf16.mxu0 0
      %1484 = vmatpush1.bf16.xpose.msra.mxu0 %v1464
      %1485 = vmatprep.subr.bf16.mxu0 0
      %1486 = vmatpush2.bf16.xpose.msra.mxu0 0
      %1487 = vmatprep.subr.bf16.mxu0 0
      %1488 = vmatpush2.bf16.xpose.msra.mxu0 0
      %1489 = vmatprep.subr.bf16.mxu0 0
      %1490 = vmatpush2.bf16.xpose.msra.mxu0 0
      %1491 = vmatprep.subr.bf16.mxu0 0
      %1492 = vmatpush2.bf16.xpose.msra.mxu0 0
      %1493 = vmatprep.subr.bf16.mxu0 0
      %1494 = vmatpush2.bf16.xpose.msra.mxu0 0
      %1495 = vmatprep.subr.bf16.mxu0 0
      %1496 = vmatpush2.bf16.xpose.msra.mxu0 0
      %1497 = vmatprep.subr.bf16.mxu0 0
      %1498 = vmatpush2.bf16.xpose.msra.mxu0 0
      %1499 = vmatprep.subr.bf16.mxu0 0
      %1500 = vmatpush2.bf16.xpose.msra.mxu0 0
      %1501 = vmatprep.mubr.bf16.mxu0 0
      %1502 = vmatmul.mubr.bf16.gmra.mxu0 %v1458
      %v1503 = vpop.f32.mrf.mxu0
      %v1504 = vadd.f32 %v315, %v1503
      %v1505 = vpop.f32.mrf.mxu0
      %v1506 = vpop.f32.mrf.mxu0
      %v1507 = vadd.f32 %v315, %v1506
      %v1508 = vpop.f32.mrf.mxu0
      %1509 = vmatprep.mubr.bf16.mxu0 0
      %1510 = vmatmul.mubr.bf16.gmra.mxu0 %v1461
      %v1511 = vpop.f32.mrf.mxu0
      %v1512 = vadd.f32 %v315, %v1511
      %v1513 = vpop.f32.mrf.mxu0
      %v1514 = vpop.f32.mrf.mxu0
      %v1515 = vadd.f32 %v315, %v1514
      %v1516 = vpop.f32.mrf.mxu0
      %1517 = vdwg.mxu0
      %vm1518 = vcmask 261120
      %v1519 = vsel %vm1518, %v1504, -inf
      %1520 = vmax.xlane.f32.xlu0 %v1519
      %v1521 = vpop.xlane.xlu0 %1520
      %v1522 = vsel %vm1518, %v1507, -inf
      %1523 = vmax.xlane.f32.xlu0 %v1522
      %v1524 = vpop.xlane.xlu0 %1523
      %v1525 = vsel %vm1518, %v1512, -inf
      %1526 = vmax.xlane.f32.xlu0 %v1525
      %v1527 = vpop.xlane.xlu0 %1526
      %v1528 = vsel %vm1518, %v1515, -inf
      %1529 = vmax.xlane.f32.xlu0 %v1528
      %v1530 = vpop.xlane.xlu0 %1529
      %v1531 = vsub.f32 %v1504, %v1521
      %v1532 = vsub.f32 %v1507, %v1524
      %v1533 = vsub.f32 %v1512, %v1527
      %v1534 = vsub.f32 %v1515, %v1530
      %v1535 = vmul.f32 %v1531, 1.442695
      %v1536 = vpow.pop %v1535
      %v1537 = vmul.f32 %v1532, 1.442695
      %v1538 = vpow.pop %v1537
      %v1539 = vmul.f32 %v1533, 1.442695
      %v1540 = vpow.pop %v1539
      %v1541 = vmul.f32 %v1534, 1.442695
      %v1542 = vpow.pop %v1541
      %v1543 = vsel %vm1518, %v1536, 0.0
      %1544 = vadd.xlane.f32.xlu0 %v1543
      %v1545 = vpop.xlane.xlu0 %1544
      %v1546 = vsel %vm1518, %v1538, 0.0
      %1547 = vadd.xlane.f32.xlu0 %v1546
      %v1548 = vpop.xlane.xlu0 %1547
      %v1549 = vsel %vm1518, %v1540, 0.0
      %1550 = vadd.xlane.f32.xlu0 %v1549
      %v1551 = vpop.xlane.xlu0 %1550
      %v1552 = vsel %vm1518, %v1542, 0.0
      %1553 = vadd.xlane.f32.xlu0 %v1552
      %v1554 = vpop.xlane.xlu0 %1553
      %v1555 = vrcp.pop %v1545
      %v1556 = vrcp.pop %v1548
      %v1557 = vrcp.pop %v1551
      %v1558 = vrcp.pop %v1554
      %v1559 = vmul.f32 %v1536, %v1555
      %v1560 = vmul.f32 %v1538, %v1556
      %v1561 = vmul.f32 %v1540, %v1557
      %v1562 = vmul.f32 %v1542, %v1558
      %v1563 = vpack.c.bf16 %v1560, %v1559
      %v1564 = vpack.c.bf16 %v1562, %v1561
      %v1569 = vunpack.c.l.b16 %v1433
      %v1570 = vunpack.c.l.b16 %v1434
      %v1571 = vunpack.c.l.b16 %v1435
      %v1572 = vunpack.c.l.b16 %v1436
      %v1573 = vpack.c.b16 %v1570, %v1569
      %v1574 = vpack.c.b16 %v1572, %v1571
      %v1578 = vsel %vm1518, %v1563, 0
      %v1581 = vsel %vm1518, %v1564, 0
      %1583 = vmatprep.subr.bf16.mxu0 0
      %1584 = vmatpush1.bf16.msra.mxu0 0
      %1585 = vmatprep.subr.bf16.mxu0 0
      %1586 = vmatpush1.bf16.msra.mxu0 0
      %1587 = vmatprep.subr.bf16.mxu0 0
      %1588 = vmatpush1.bf16.msra.mxu0 0
      %1589 = vmatprep.subr.bf16.mxu0 0
      %1590 = vmatpush1.bf16.msra.mxu0 0
      %1591 = vmatprep.subr.bf16.mxu0 0
      %1592 = vmatpush1.bf16.msra.mxu0 0
      %1593 = vmatprep.subr.bf16.mxu0 0
      %1594 = vmatpush1.bf16.msra.mxu0 0
      %1595 = vmatprep.subr.bf16.mxu0 0
      %1596 = vmatpush1.bf16.msra.mxu0 %v1574
      %1597 = vmatprep.subr.bf16.mxu0 0
      %1598 = vmatpush1.bf16.msra.mxu0 %v1573
      %1599 = vmatprep.subr.bf16.mxu0 0
      %1600 = vmatpush2.bf16.msra.mxu0 0
      %1601 = vmatprep.subr.bf16.mxu0 0
      %1602 = vmatpush2.bf16.msra.mxu0 0
      %1603 = vmatprep.subr.bf16.mxu0 0
      %1604 = vmatpush2.bf16.msra.mxu0 0
      %1605 = vmatprep.subr.bf16.mxu0 0
      %1606 = vmatpush2.bf16.msra.mxu0 0
      %1607 = vmatprep.subr.bf16.mxu0 0
      %1608 = vmatpush2.bf16.msra.mxu0 0
      %1609 = vmatprep.subr.bf16.mxu0 0
      %1610 = vmatpush2.bf16.msra.mxu0 0
      %1611 = vmatprep.subr.bf16.mxu0 0
      %1612 = vmatpush2.bf16.msra.mxu0 0
      %1613 = vmatprep.subr.bf16.mxu0 0
      %1614 = vmatpush2.bf16.msra.mxu0 0
      %1615 = vmatprep.mubr.bf16.mxu0 0
      %1616 = vmatmul.mubr.bf16.gmra.mxu0 %v1578
      %v1617 = vpop.f32.mrf.mxu0
      %v1618 = vadd.f32 0.0, %v1617
      %v1619 = vpop.f32.mrf.mxu0
      %v1620 = vpop.f32.mrf.mxu0
      %v1621 = vadd.f32 0.0, %v1620
      %v1622 = vpop.f32.mrf.mxu0
      %1623 = vmatprep.mubr.bf16.mxu0 0
      %1624 = vmatmul.mubr.bf16.gmra.mxu0 %v1581
      %v1625 = vpop.f32.mrf.mxu0
      %v1626 = vadd.f32 0.0, %v1625
      %v1627 = vpop.f32.mrf.mxu0
      %v1628 = vpop.f32.mrf.mxu0
      %v1629 = vadd.f32 0.0, %v1628
      %v1630 = vpop.f32.mrf.mxu0
      %1631 = vdwg.mxu0
      %v1632 = vpack.c.bf16 %v1621, %v1618
      %v1633 = vpack.c.bf16 %v1629, %v1626
      %v1634 = vld [vmem:[%s6] sm:$0xf]
      %v1635 = vld [vmem:[%s6 + $0x4] sm:$0xf]
      %v1636 = vld [vmem:[%s6 + $0x8] sm:$0xf]
      %v1637 = vld [vmem:[%s6 + $0xc] sm:$0xf]
      %v1638 = vld [vmem:[%s6 + $0x10] sm:$0xf]
      %v1639 = vld [vmem:[%s6 + $0x14] sm:$0xf]
      %v1640 = vld [vmem:[%s6 + $0x18] sm:$0xf]
      %v1641 = vld [vmem:[%s6 + $0x1c] sm:$0xf]
      %1642 = vrot.lane.b32.xlu0 %v1445, 64
      %v1643 = vpop.permute.xlu0 %1642
      %1644 = vrot.lane.b32.xlu0 %v1446, 64
      %v1645 = vpop.permute.xlu0 %1644
      %1646 = vrot.lane.b32.xlu0 %v1455, 64
      %v1647 = vpop.permute.xlu0 %1646
      %1648 = vrot.lane.b32.xlu0 %v1456, 64
      %v1649 = vpop.permute.xlu0 %1648
      %v1651 = vsel %vm497, %v1643, 0
      %v1654 = vsel %vm497, %v1645, 0
      %v1657 = vsel %vm497, %v1647, 0
      %v1660 = vsel %vm497, %v1649, 0
      %1662 = vmatprep.subr.bf16.mxu0 0
      %1663 = vmatpush1.bf16.xpose.msra.mxu0 0
      %1664 = vmatprep.subr.bf16.mxu0 0
      %1665 = vmatpush1.bf16.xpose.msra.mxu0 0
      %1666 = vmatprep.subr.bf16.mxu0 0
      %1667 = vmatpush1.bf16.xpose.msra.mxu0 0
      %1668 = vmatprep.subr.bf16.mxu0 0
      %1669 = vmatpush1.bf16.xpose.msra.mxu0 0
      %1670 = vmatprep.subr.bf16.mxu0 0
      %1671 = vmatpush1.bf16.xpose.msra.mxu0 0
      %1672 = vmatprep.subr.bf16.mxu0 0
      %1673 = vmatpush1.bf16.xpose.msra.mxu0 0
      %1674 = vmatprep.subr.bf16.mxu0 0
      %1675 = vmatpush1.bf16.xpose.msra.mxu0 %v1660
      %1676 = vmatprep.subr.bf16.mxu0 0
      %1677 = vmatpush1.bf16.xpose.msra.mxu0 %v1657
      %1678 = vmatprep.subr.bf16.mxu0 0
      %1679 = vmatpush2.bf16.xpose.msra.mxu0 0
      %1680 = vmatprep.subr.bf16.mxu0 0
      %1681 = vmatpush2.bf16.xpose.msra.mxu0 0
      %1682 = vmatprep.subr.bf16.mxu0 0
      %1683 = vmatpush2.bf16.xpose.msra.mxu0 0
      %1684 = vmatprep.subr.bf16.mxu0 0
      %1685 = vmatpush2.bf16.xpose.msra.mxu0 0
      %1686 = vmatprep.subr.bf16.mxu0 0
      %1687 = vmatpush2.bf16.xpose.msra.mxu0 0
      %1688 = vmatprep.subr.bf16.mxu0 0
      %1689 = vmatpush2.bf16.xpose.msra.mxu0 0
      %1690 = vmatprep.subr.bf16.mxu0 0
      %1691 = vmatpush2.bf16.xpose.msra.mxu0 0
      %1692 = vmatprep.subr.bf16.mxu0 0
      %1693 = vmatpush2.bf16.xpose.msra.mxu0 0
      %1694 = vmatprep.mubr.bf16.mxu0 0
      %1695 = vmatmul.mubr.bf16.gmra.mxu0 %v1651
      %v1696 = vpop.f32.mrf.mxu0
      %v1697 = vadd.f32 %v315, %v1696
      %v1698 = vpop.f32.mrf.mxu0
      %v1699 = vpop.f32.mrf.mxu0
      %v1700 = vadd.f32 %v315, %v1699
      %v1701 = vpop.f32.mrf.mxu0
      %1702 = vmatprep.mubr.bf16.mxu0 0
      %1703 = vmatmul.mubr.bf16.gmra.mxu0 %v1654
      %v1704 = vpop.f32.mrf.mxu0
      %v1705 = vadd.f32 %v315, %v1704
      %v1706 = vpop.f32.mrf.mxu0
      %v1707 = vpop.f32.mrf.mxu0
      %v1708 = vadd.f32 %v315, %v1707
      %v1709 = vpop.f32.mrf.mxu0
      %1710 = vdwg.mxu0
      %v1711 = vsel %vm1518, %v1697, -inf
      %1712 = vmax.xlane.f32.xlu0 %v1711
      %v1713 = vpop.xlane.xlu0 %1712
      %v1714 = vsel %vm1518, %v1700, -inf
      %1715 = vmax.xlane.f32.xlu0 %v1714
      %v1716 = vpop.xlane.xlu0 %1715
      %v1717 = vsel %vm1518, %v1705, -inf
      %1718 = vmax.xlane.f32.xlu0 %v1717
      %v1719 = vpop.xlane.xlu0 %1718
      %v1720 = vsel %vm1518, %v1708, -inf
      %1721 = vmax.xlane.f32.xlu0 %v1720
      %v1722 = vpop.xlane.xlu0 %1721
      %v1723 = vsub.f32 %v1697, %v1713
      %v1724 = vsub.f32 %v1700, %v1716
      %v1725 = vsub.f32 %v1705, %v1719
      %v1726 = vsub.f32 %v1708, %v1722
      %v1727 = vmul.f32 %v1723, 1.442695
      %v1728 = vpow.pop %v1727
      %v1729 = vmul.f32 %v1724, 1.442695
      %v1730 = vpow.pop %v1729
      %v1731 = vmul.f32 %v1725, 1.442695
      %v1732 = vpow.pop %v1731
      %v1733 = vmul.f32 %v1726, 1.442695
      %v1734 = vpow.pop %v1733
      %v1735 = vsel %vm1518, %v1728, 0.0
      %1736 = vadd.xlane.f32.xlu0 %v1735
      %v1737 = vpop.xlane.xlu0 %1736
      %v1738 = vsel %vm1518, %v1730, 0.0
      %1739 = vadd.xlane.f32.xlu0 %v1738
      %v1740 = vpop.xlane.xlu0 %1739
      %v1741 = vsel %vm1518, %v1732, 0.0
      %1742 = vadd.xlane.f32.xlu0 %v1741
      %v1743 = vpop.xlane.xlu0 %1742
      %v1744 = vsel %vm1518, %v1734, 0.0
      %1745 = vadd.xlane.f32.xlu0 %v1744
      %v1746 = vpop.xlane.xlu0 %1745
      %v1747 = vrcp.pop %v1737
      %v1748 = vrcp.pop %v1740
      %v1749 = vrcp.pop %v1743
      %v1750 = vrcp.pop %v1746
      %v1751 = vmul.f32 %v1728, %v1747
      %v1752 = vmul.f32 %v1730, %v1748
      %v1753 = vmul.f32 %v1732, %v1749
      %v1754 = vmul.f32 %v1734, %v1750
      %v1755 = vpack.c.bf16 %v1752, %v1751
      %v1756 = vpack.c.bf16 %v1754, %v1753
      %1757 = vrot.lane.b32.xlu0 %v1573, 64
      %v1758 = vpop.permute.xlu0 %1757
      %1759 = vrot.lane.b32.xlu0 %v1574, 64
      %v1760 = vpop.permute.xlu0 %1759
      %v1764 = vsel %vm1518, %v1755, 0
      %v1767 = vsel %vm1518, %v1756, 0
      %1769 = vmatprep.subr.bf16.mxu0 0
      %1770 = vmatpush1.bf16.msra.mxu0 0
      %1771 = vmatprep.subr.bf16.mxu0 0
      %1772 = vmatpush1.bf16.msra.mxu0 0
      %1773 = vmatprep.subr.bf16.mxu0 0
      %1774 = vmatpush1.bf16.msra.mxu0 0
      %1775 = vmatprep.subr.bf16.mxu0 0
      %1776 = vmatpush1.bf16.msra.mxu0 0
      %1777 = vmatprep.subr.bf16.mxu0 0
      %1778 = vmatpush1.bf16.msra.mxu0 0
      %1779 = vmatprep.subr.bf16.mxu0 0
      %1780 = vmatpush1.bf16.msra.mxu0 0
      %1781 = vmatprep.subr.bf16.mxu0 0
      %1782 = vmatpush1.bf16.msra.mxu0 %v1760
      %1783 = vmatprep.subr.bf16.mxu0 0
      %1784 = vmatpush1.bf16.msra.mxu0 %v1758
      %1785 = vmatprep.subr.bf16.mxu0 0
      %1786 = vmatpush2.bf16.msra.mxu0 0
      %1787 = vmatprep.subr.bf16.mxu0 0
      %1788 = vmatpush2.bf16.msra.mxu0 0
      %1789 = vmatprep.subr.bf16.mxu0 0
      %1790 = vmatpush2.bf16.msra.mxu0 0
      %1791 = vmatprep.subr.bf16.mxu0 0
      %1792 = vmatpush2.bf16.msra.mxu0 0
      %1793 = vmatprep.subr.bf16.mxu0 0
      %1794 = vmatpush2.bf16.msra.mxu0 0
      %1795 = vmatprep.subr.bf16.mxu0 0
      %1796 = vmatpush2.bf16.msra.mxu0 0
      %1797 = vmatprep.subr.bf16.mxu0 0
      %1798 = vmatpush2.bf16.msra.mxu0 0
      %1799 = vmatprep.subr.bf16.mxu0 0
      %1800 = vmatpush2.bf16.msra.mxu0 0
      %1801 = vmatprep.mubr.bf16.mxu0 0
      %1802 = vmatmul.mubr.bf16.gmra.mxu0 %v1764
      %v1803 = vpop.f32.mrf.mxu0
      %v1804 = vadd.f32 0.0, %v1803
      %v1805 = vpop.f32.mrf.mxu0
      %v1806 = vpop.f32.mrf.mxu0
      %v1807 = vadd.f32 0.0, %v1806
      %v1808 = vpop.f32.mrf.mxu0
      %1809 = vmatprep.mubr.bf16.mxu0 0
      %1810 = vmatmul.mubr.bf16.gmra.mxu0 %v1767
      %v1811 = vpop.f32.mrf.mxu0
      %v1812 = vadd.f32 0.0, %v1811
      %v1813 = vpop.f32.mrf.mxu0
      %v1814 = vpop.f32.mrf.mxu0
      %v1815 = vadd.f32 0.0, %v1814
      %v1816 = vpop.f32.mrf.mxu0
      %1817 = vdwg.mxu0
      %v1818 = vpack.c.bf16 %v1807, %v1804
      %v1819 = vpack.c.bf16 %v1815, %v1812
      %v1820 = vld [vmem:[%s6 + $0x20] sm:$0xf]
      %v1821 = vld [vmem:[%s6 + $0x24] sm:$0xf]
      %v1822 = vld [vmem:[%s6 + $0x28] sm:$0xf]
      %v1823 = vld [vmem:[%s6 + $0x2c] sm:$0xf]
      %v1824 = vld [vmem:[%s6 + $0x30] sm:$0xf]
      %v1825 = vld [vmem:[%s6 + $0x34] sm:$0xf]
      %v1826 = vld [vmem:[%s6 + $0x38] sm:$0xf]
      %v1827 = vld [vmem:[%s6 + $0x3c] sm:$0xf]
      %v1836 = vunpack.c.l.b16 %v1820
      %v1837 = vunpack.c.l.b16 %v1821
      %v1838 = vunpack.c.l.b16 %v1822
      %v1839 = vunpack.c.l.b16 %v1823
      %v1840 = vunpack.c.l.b16 %v1824
      %v1841 = vunpack.c.l.b16 %v1825
      %v1842 = vunpack.c.l.b16 %v1826
      %v1843 = vunpack.c.l.b16 %v1827
      %v1844 = vpack.c.b16 %v1837, %v1836
      %v1845 = vpack.c.b16 %v1839, %v1838
      %v1846 = vpack.c.b16 %v1841, %v1840
      %v1847 = vpack.c.b16 %v1843, %v1842
      %v1853 = vsel %vm497, %v1818, 0
      %v1856 = vsel %vm497, %v1819, 0
      %1858 = vmatprep.subr.bf16.mxu0 0
      %1859 = vmatpush1.bf16.msra.mxu0 0
      %1860 = vmatprep.subr.bf16.mxu0 0
      %1861 = vmatpush1.bf16.msra.mxu0 0
      %1862 = vmatprep.subr.bf16.mxu0 0
      %1863 = vmatpush1.bf16.msra.mxu0 0
      %1864 = vmatprep.subr.bf16.mxu0 0
      %1865 = vmatpush1.bf16.msra.mxu0 0
      %1866 = vmatprep.subr.bf16.mxu0 0
      %1867 = vmatpush1.bf16.msra.mxu0 %v1847
      %1868 = vmatprep.subr.bf16.mxu0 0
      %1869 = vmatpush1.bf16.msra.mxu0 %v1846
      %1870 = vmatprep.subr.bf16.mxu0 0
      %1871 = vmatpush1.bf16.msra.mxu0 %v1845
      %1872 = vmatprep.subr.bf16.mxu0 0
      %1873 = vmatpush1.bf16.msra.mxu0 %v1844
      %1874 = vmatprep.subr.bf16.mxu0 0
      %1875 = vmatpush2.bf16.msra.mxu0 0
      %1876 = vmatprep.subr.bf16.mxu0 0
      %1877 = vmatpush2.bf16.msra.mxu0 0
      %1878 = vmatprep.subr.bf16.mxu0 0
      %1879 = vmatpush2.bf16.msra.mxu0 0
      %1880 = vmatprep.subr.bf16.mxu0 0
      %1881 = vmatpush2.bf16.msra.mxu0 0
      %1882 = vmatprep.subr.bf16.mxu0 0
      %1883 = vmatpush2.bf16.msra.mxu0 0
      %1884 = vmatprep.subr.bf16.mxu0 0
      %1885 = vmatpush2.bf16.msra.mxu0 0
      %1886 = vmatprep.subr.bf16.mxu0 0
      %1887 = vmatpush2.bf16.msra.mxu0 0
      %1888 = vmatprep.subr.bf16.mxu0 0
      %1889 = vmatpush2.bf16.msra.mxu0 0
      %1890 = vmatprep.mubr.bf16.mxu0 0
      %1891 = vmatmul.mubr.bf16.gmra.mxu0 %v1853
      %v1892 = vpop.f32.mrf.mxu0
      %v1893 = vadd.f32 0.0, %v1892
      %v1894 = vpop.f32.mrf.mxu0
      %v1895 = vpop.f32.mrf.mxu0
      %v1896 = vadd.f32 0.0, %v1895
      %v1897 = vpop.f32.mrf.mxu0
      %1898 = vmatprep.mubr.bf16.mxu0 0
      %1899 = vmatmul.mubr.bf16.gmra.mxu0 %v1856
      %v1900 = vpop.f32.mrf.mxu0
      %v1901 = vadd.f32 0.0, %v1900
      %v1902 = vpop.f32.mrf.mxu0
      %v1903 = vpop.f32.mrf.mxu0
      %v1904 = vadd.f32 0.0, %v1903
      %v1905 = vpop.f32.mrf.mxu0
      %1906 = vdwg.mxu0
      %v1915 = vunpack.c.l.b16 %v1634
      %v1916 = vunpack.c.l.b16 %v1635
      %v1917 = vunpack.c.l.b16 %v1636
      %v1918 = vunpack.c.l.b16 %v1637
      %v1919 = vunpack.c.l.b16 %v1638
      %v1920 = vunpack.c.l.b16 %v1639
      %v1921 = vunpack.c.l.b16 %v1640
      %v1922 = vunpack.c.l.b16 %v1641
      %v1923 = vpack.c.b16 %v1916, %v1915
      %v1924 = vpack.c.b16 %v1918, %v1917
      %v1925 = vpack.c.b16 %v1920, %v1919
      %v1926 = vpack.c.b16 %v1922, %v1921
      %v1932 = vsel %vm497, %v1632, 0
      %v1935 = vsel %vm497, %v1633, 0
      %1937 = vmatprep.subr.bf16.mxu0 0
      %1938 = vmatpush1.bf16.msra.mxu0 0
      %1939 = vmatprep.subr.bf16.mxu0 0
      %1940 = vmatpush1.bf16.msra.mxu0 0
      %1941 = vmatprep.subr.bf16.mxu0 0
      %1942 = vmatpush1.bf16.msra.mxu0 0
      %1943 = vmatprep.subr.bf16.mxu0 0
      %1944 = vmatpush1.bf16.msra.mxu0 0
      %1945 = vmatprep.subr.bf16.mxu0 0
      %1946 = vmatpush1.bf16.msra.mxu0 %v1926
      %1947 = vmatprep.subr.bf16.mxu0 0
      %1948 = vmatpush1.bf16.msra.mxu0 %v1925
      %1949 = vmatprep.subr.bf16.mxu0 0
      %1950 = vmatpush1.bf16.msra.mxu0 %v1924
      %1951 = vmatprep.subr.bf16.mxu0 0
      %1952 = vmatpush1.bf16.msra.mxu0 %v1923
      %1953 = vmatprep.subr.bf16.mxu0 0
      %1954 = vmatpush2.bf16.msra.mxu0 0
      %1955 = vmatprep.subr.bf16.mxu0 0
      %1956 = vmatpush2.bf16.msra.mxu0 0
      %1957 = vmatprep.subr.bf16.mxu0 0
      %1958 = vmatpush2.bf16.msra.mxu0 0
      %1959 = vmatprep.subr.bf16.mxu0 0
      %1960 = vmatpush2.bf16.msra.mxu0 0
      %1961 = vmatprep.subr.bf16.mxu0 0
      %1962 = vmatpush2.bf16.msra.mxu0 0
      %1963 = vmatprep.subr.bf16.mxu0 0
      %1964 = vmatpush2.bf16.msra.mxu0 0
      %1965 = vmatprep.subr.bf16.mxu0 0
      %1966 = vmatpush2.bf16.msra.mxu0 0
      %1967 = vmatprep.subr.bf16.mxu0 0
      %1968 = vmatpush2.bf16.msra.mxu0 0
      %1969 = vmatprep.mubr.bf16.mxu0 0
      %1970 = vmatmul.mubr.bf16.gmra.mxu0 %v1932
      %v1971 = vpop.f32.mrf.mxu0
      %v1972 = vadd.f32 %v1893, %v1971
      %v1973 = vpop.f32.mrf.mxu0
      %v1974 = vpop.f32.mrf.mxu0
      %v1975 = vadd.f32 %v1896, %v1974
      %v1976 = vpop.f32.mrf.mxu0
      %1977 = vmatprep.mubr.bf16.mxu0 0
      %1978 = vmatmul.mubr.bf16.gmra.mxu0 %v1935
      %v1979 = vpop.f32.mrf.mxu0
      %v1980 = vadd.f32 %v1901, %v1979
      %v1981 = vpop.f32.mrf.mxu0
      %v1982 = vpop.f32.mrf.mxu0
      %v1983 = vadd.f32 %v1904, %v1982
      %v1984 = vpop.f32.mrf.mxu0
      %1985 = vdwg.mxu0
      %v1986 = vld [vmem:[#allocation2 + $0x4] sm:$0xf]
      %v1987 = vld [vmem:[#allocation2 + $0x34] sm:$0xf]
      %v1988 = vld [vmem:[#allocation2 + $0x64] sm:$0xf]
      %v1989 = vld [vmem:[#allocation2 + $0x94] sm:$0xf]
      %v1990 = vld [vmem:[#allocation2 + $0x14] sm:$0xf]
      %v1991 = vld [vmem:[#allocation2 + $0x44] sm:$0xf]
      %v1992 = vld [vmem:[#allocation2 + $0x74] sm:$0xf]
      %v1993 = vld [vmem:[#allocation2 + $0xa4] sm:$0xf]
      %v1994 = vld [vmem:[#allocation2 + $0x24] sm:$0xf]
      %v1995 = vld [vmem:[#allocation2 + $0x54] sm:$0xf]
      %v1996 = vld [vmem:[#allocation2 + $0x84] sm:$0xf]
      %v1997 = vld [vmem:[#allocation2 + $0xb4] sm:$0xf]
      %v2002 = vunpack.c.l.b16 %v1986
      %v2003 = vunpack.c.l.b16 %v1987
      %v2004 = vunpack.c.l.b16 %v1988
      %v2005 = vunpack.c.l.b16 %v1989
      %v2006 = vpack.c.b16 %v2003, %v2002
      %v2007 = vpack.c.b16 %v2005, %v2004
      %v2012 = vunpack.c.l.b16 %v1990
      %v2013 = vunpack.c.l.b16 %v1991
      %v2014 = vunpack.c.l.b16 %v1992
      %v2015 = vunpack.c.l.b16 %v1993
      %v2016 = vpack.c.b16 %v2013, %v2012
      %v2017 = vpack.c.b16 %v2015, %v2014
      %v2019 = vsel %vm497, %v2006, 0
      %v2022 = vsel %vm497, %v2007, 0
      %v2025 = vsel %vm497, %v2016, 0
      %v2028 = vsel %vm497, %v2017, 0
      %2030 = vmatprep.subr.bf16.mxu0 0
      %2031 = vmatpush1.bf16.xpose.msra.mxu0 0
      %2032 = vmatprep.subr.bf16.mxu0 0
      %2033 = vmatpush1.bf16.xpose.msra.mxu0 0
      %2034 = vmatprep.subr.bf16.mxu0 0
      %2035 = vmatpush1.bf16.xpose.msra.mxu0 0
      %2036 = vmatprep.subr.bf16.mxu0 0
      %2037 = vmatpush1.bf16.xpose.msra.mxu0 0
      %2038 = vmatprep.subr.bf16.mxu0 0
      %2039 = vmatpush1.bf16.xpose.msra.mxu0 0
      %2040 = vmatprep.subr.bf16.mxu0 0
      %2041 = vmatpush1.bf16.xpose.msra.mxu0 0
      %2042 = vmatprep.subr.bf16.mxu0 0
      %2043 = vmatpush1.bf16.xpose.msra.mxu0 %v2028
      %2044 = vmatprep.subr.bf16.mxu0 0
      %2045 = vmatpush1.bf16.xpose.msra.mxu0 %v2025
      %2046 = vmatprep.subr.bf16.mxu0 0
      %2047 = vmatpush2.bf16.xpose.msra.mxu0 0
      %2048 = vmatprep.subr.bf16.mxu0 0
      %2049 = vmatpush2.bf16.xpose.msra.mxu0 0
      %2050 = vmatprep.subr.bf16.mxu0 0
      %2051 = vmatpush2.bf16.xpose.msra.mxu0 0
      %2052 = vmatprep.subr.bf16.mxu0 0
      %2053 = vmatpush2.bf16.xpose.msra.mxu0 0
      %2054 = vmatprep.subr.bf16.mxu0 0
      %2055 = vmatpush2.bf16.xpose.msra.mxu0 0
      %2056 = vmatprep.subr.bf16.mxu0 0
      %2057 = vmatpush2.bf16.xpose.msra.mxu0 0
      %2058 = vmatprep.subr.bf16.mxu0 0
      %2059 = vmatpush2.bf16.xpose.msra.mxu0 0
      %2060 = vmatprep.subr.bf16.mxu0 0
      %2061 = vmatpush2.bf16.xpose.msra.mxu0 0
      %2062 = vmatprep.mubr.bf16.mxu0 0
      %2063 = vmatmul.mubr.bf16.gmra.mxu0 %v2019
      %v2064 = vpop.f32.mrf.mxu0
      %v2065 = vadd.f32 %v315, %v2064
      %v2066 = vpop.f32.mrf.mxu0
      %v2067 = vpop.f32.mrf.mxu0
      %v2068 = vadd.f32 %v315, %v2067
      %v2069 = vpop.f32.mrf.mxu0
      %2070 = vmatprep.mubr.bf16.mxu0 0
      %2071 = vmatmul.mubr.bf16.gmra.mxu0 %v2022
      %v2072 = vpop.f32.mrf.mxu0
      %v2073 = vadd.f32 %v315, %v2072
      %v2074 = vpop.f32.mrf.mxu0
      %v2075 = vpop.f32.mrf.mxu0
      %v2076 = vadd.f32 %v315, %v2075
      %v2077 = vpop.f32.mrf.mxu0
      %2078 = vdwg.mxu0
      %v2079 = vsel %vm1518, %v2065, -inf
      %2080 = vmax.xlane.f32.xlu0 %v2079
      %v2081 = vpop.xlane.xlu0 %2080
      %v2082 = vsel %vm1518, %v2068, -inf
      %2083 = vmax.xlane.f32.xlu0 %v2082
      %v2084 = vpop.xlane.xlu0 %2083
      %v2085 = vsel %vm1518, %v2073, -inf
      %2086 = vmax.xlane.f32.xlu0 %v2085
      %v2087 = vpop.xlane.xlu0 %2086
      %v2088 = vsel %vm1518, %v2076, -inf
      %2089 = vmax.xlane.f32.xlu0 %v2088
      %v2090 = vpop.xlane.xlu0 %2089
      %v2091 = vsub.f32 %v2065, %v2081
      %v2092 = vsub.f32 %v2068, %v2084
      %v2093 = vsub.f32 %v2073, %v2087
      %v2094 = vsub.f32 %v2076, %v2090
      %v2095 = vmul.f32 %v2091, 1.442695
      %v2096 = vpow.pop %v2095
      %v2097 = vmul.f32 %v2092, 1.442695
      %v2098 = vpow.pop %v2097
      %v2099 = vmul.f32 %v2093, 1.442695
      %v2100 = vpow.pop %v2099
      %v2101 = vmul.f32 %v2094, 1.442695
      %v2102 = vpow.pop %v2101
      %v2103 = vsel %vm1518, %v2096, 0.0
      %2104 = vadd.xlane.f32.xlu0 %v2103
      %v2105 = vpop.xlane.xlu0 %2104
      %v2106 = vsel %vm1518, %v2098, 0.0
      %2107 = vadd.xlane.f32.xlu0 %v2106
      %v2108 = vpop.xlane.xlu0 %2107
      %v2109 = vsel %vm1518, %v2100, 0.0
      %2110 = vadd.xlane.f32.xlu0 %v2109
      %v2111 = vpop.xlane.xlu0 %2110
      %v2112 = vsel %vm1518, %v2102, 0.0
      %2113 = vadd.xlane.f32.xlu0 %v2112
      %v2114 = vpop.xlane.xlu0 %2113
      %v2115 = vrcp.pop %v2105
      %v2116 = vrcp.pop %v2108
      %v2117 = vrcp.pop %v2111
      %v2118 = vrcp.pop %v2114
      %v2119 = vmul.f32 %v2096, %v2115
      %v2120 = vmul.f32 %v2098, %v2116
      %v2121 = vmul.f32 %v2100, %v2117
      %v2122 = vmul.f32 %v2102, %v2118
      %v2123 = vpack.c.bf16 %v2120, %v2119
      %v2124 = vpack.c.bf16 %v2122, %v2121
      %v2129 = vunpack.c.l.b16 %v1994
      %v2130 = vunpack.c.l.b16 %v1995
      %v2131 = vunpack.c.l.b16 %v1996
      %v2132 = vunpack.c.l.b16 %v1997
      %v2133 = vpack.c.b16 %v2130, %v2129
      %v2134 = vpack.c.b16 %v2132, %v2131
      %v2138 = vsel %vm1518, %v2123, 0
      %v2141 = vsel %vm1518, %v2124, 0
      %2143 = vmatprep.subr.bf16.mxu0 0
      %2144 = vmatpush1.bf16.msra.mxu0 0
      %2145 = vmatprep.subr.bf16.mxu0 0
      %2146 = vmatpush1.bf16.msra.mxu0 0
      %2147 = vmatprep.subr.bf16.mxu0 0
      %2148 = vmatpush1.bf16.msra.mxu0 0
      %2149 = vmatprep.subr.bf16.mxu0 0
      %2150 = vmatpush1.bf16.msra.mxu0 0
      %2151 = vmatprep.subr.bf16.mxu0 0
      %2152 = vmatpush1.bf16.msra.mxu0 0
      %2153 = vmatprep.subr.bf16.mxu0 0
      %2154 = vmatpush1.bf16.msra.mxu0 0
      %2155 = vmatprep.subr.bf16.mxu0 0
      %2156 = vmatpush1.bf16.msra.mxu0 %v2134
      %2157 = vmatprep.subr.bf16.mxu0 0
      %2158 = vmatpush1.bf16.msra.mxu0 %v2133
      %2159 = vmatprep.subr.bf16.mxu0 0
      %2160 = vmatpush2.bf16.msra.mxu0 0
      %2161 = vmatprep.subr.bf16.mxu0 0
      %2162 = vmatpush2.bf16.msra.mxu0 0
      %2163 = vmatprep.subr.bf16.mxu0 0
      %2164 = vmatpush2.bf16.msra.mxu0 0
      %2165 = vmatprep.subr.bf16.mxu0 0
      %2166 = vmatpush2.bf16.msra.mxu0 0
      %2167 = vmatprep.subr.bf16.mxu0 0
      %2168 = vmatpush2.bf16.msra.mxu0 0
      %2169 = vmatprep.subr.bf16.mxu0 0
      %2170 = vmatpush2.bf16.msra.mxu0 0
      %2171 = vmatprep.subr.bf16.mxu0 0
      %2172 = vmatpush2.bf16.msra.mxu0 0
      %2173 = vmatprep.subr.bf16.mxu0 0
      %2174 = vmatpush2.bf16.msra.mxu0 0
      %2175 = vmatprep.mubr.bf16.mxu0 0
      %2176 = vmatmul.mubr.bf16.gmra.mxu0 %v2138
      %v2177 = vpop.f32.mrf.mxu0
      %v2178 = vadd.f32 0.0, %v2177
      %v2179 = vpop.f32.mrf.mxu0
      %v2180 = vpop.f32.mrf.mxu0
      %v2181 = vadd.f32 0.0, %v2180
      %v2182 = vpop.f32.mrf.mxu0
      %2183 = vmatprep.mubr.bf16.mxu0 0
      %2184 = vmatmul.mubr.bf16.gmra.mxu0 %v2141
      %v2185 = vpop.f32.mrf.mxu0
      %v2186 = vadd.f32 0.0, %v2185
      %v2187 = vpop.f32.mrf.mxu0
      %v2188 = vpop.f32.mrf.mxu0
      %v2189 = vadd.f32 0.0, %v2188
      %v2190 = vpop.f32.mrf.mxu0
      %2191 = vdwg.mxu0
      %v2192 = vpack.c.bf16 %v2181, %v2178
      %v2193 = vpack.c.bf16 %v2189, %v2186
      %v2194 = vld [vmem:[%s6 + $0x40] sm:$0xf]
      %v2195 = vld [vmem:[%s6 + $0x44] sm:$0xf]
      %v2196 = vld [vmem:[%s6 + $0x48] sm:$0xf]
      %v2197 = vld [vmem:[%s6 + $0x4c] sm:$0xf]
      %v2198 = vld [vmem:[%s6 + $0x50] sm:$0xf]
      %v2199 = vld [vmem:[%s6 + $0x54] sm:$0xf]
      %v2200 = vld [vmem:[%s6 + $0x58] sm:$0xf]
      %v2201 = vld [vmem:[%s6 + $0x5c] sm:$0xf]
      %v2210 = vunpack.c.l.b16 %v2194
      %v2211 = vunpack.c.l.b16 %v2195
      %v2212 = vunpack.c.l.b16 %v2196
      %v2213 = vunpack.c.l.b16 %v2197
      %v2214 = vunpack.c.l.b16 %v2198
      %v2215 = vunpack.c.l.b16 %v2199
      %v2216 = vunpack.c.l.b16 %v2200
      %v2217 = vunpack.c.l.b16 %v2201
      %v2218 = vpack.c.b16 %v2211, %v2210
      %v2219 = vpack.c.b16 %v2213, %v2212
      %v2220 = vpack.c.b16 %v2215, %v2214
      %v2221 = vpack.c.b16 %v2217, %v2216
      %v2227 = vsel %vm497, %v2192, 0
      %v2230 = vsel %vm497, %v2193, 0
      %2232 = vmatprep.subr.bf16.mxu0 0
      %2233 = vmatpush1.bf16.msra.mxu0 0
      %2234 = vmatprep.subr.bf16.mxu0 0
      %2235 = vmatpush1.bf16.msra.mxu0 0
      %2236 = vmatprep.subr.bf16.mxu0 0
      %2237 = vmatpush1.bf16.msra.mxu0 0
      %2238 = vmatprep.subr.bf16.mxu0 0
      %2239 = vmatpush1.bf16.msra.mxu0 0
      %2240 = vmatprep.subr.bf16.mxu0 0
      %2241 = vmatpush1.bf16.msra.mxu0 %v2221
      %2242 = vmatprep.subr.bf16.mxu0 0
      %2243 = vmatpush1.bf16.msra.mxu0 %v2220
      %2244 = vmatprep.subr.bf16.mxu0 0
      %2245 = vmatpush1.bf16.msra.mxu0 %v2219
      %2246 = vmatprep.subr.bf16.mxu0 0
      %2247 = vmatpush1.bf16.msra.mxu0 %v2218
      %2248 = vmatprep.subr.bf16.mxu0 0
      %2249 = vmatpush2.bf16.msra.mxu0 0
      %2250 = vmatprep.subr.bf16.mxu0 0
      %2251 = vmatpush2.bf16.msra.mxu0 0
      %2252 = vmatprep.subr.bf16.mxu0 0
      %2253 = vmatpush2.bf16.msra.mxu0 0
      %2254 = vmatprep.subr.bf16.mxu0 0
      %2255 = vmatpush2.bf16.msra.mxu0 0
      %2256 = vmatprep.subr.bf16.mxu0 0
      %2257 = vmatpush2.bf16.msra.mxu0 0
      %2258 = vmatprep.subr.bf16.mxu0 0
      %2259 = vmatpush2.bf16.msra.mxu0 0
      %2260 = vmatprep.subr.bf16.mxu0 0
      %2261 = vmatpush2.bf16.msra.mxu0 0
      %2262 = vmatprep.subr.bf16.mxu0 0
      %2263 = vmatpush2.bf16.msra.mxu0 0
      %2264 = vmatprep.mubr.bf16.mxu0 0
      %2265 = vmatmul.mubr.bf16.gmra.mxu0 %v2227
      %v2266 = vpop.f32.mrf.mxu0
      %v2267 = vadd.f32 0.0, %v2266
      %v2268 = vpop.f32.mrf.mxu0
      %v2269 = vpop.f32.mrf.mxu0
      %v2270 = vadd.f32 0.0, %v2269
      %v2271 = vpop.f32.mrf.mxu0
      %2272 = vmatprep.mubr.bf16.mxu0 0
      %2273 = vmatmul.mubr.bf16.gmra.mxu0 %v2230
      %v2274 = vpop.f32.mrf.mxu0
      %v2275 = vadd.f32 0.0, %v2274
      %v2276 = vpop.f32.mrf.mxu0
      %v2277 = vpop.f32.mrf.mxu0
      %v2278 = vadd.f32 0.0, %v2277
      %v2279 = vpop.f32.mrf.mxu0
      %2280 = vdwg.mxu0
      %v2281 = vadd.f32 %v1972, %v2267
      %v2282 = vadd.f32 %v1975, %v2270
      %v2283 = vadd.f32 %v1980, %v2275
      %v2284 = vadd.f32 %v1983, %v2278
      %2285 = vrot.lane.b32.xlu0 %v2006, 64
      %v2286 = vpop.permute.xlu0 %2285
      %2287 = vrot.lane.b32.xlu0 %v2007, 64
      %v2288 = vpop.permute.xlu0 %2287
      %2289 = vrot.lane.b32.xlu0 %v2016, 64
      %v2290 = vpop.permute.xlu0 %2289
      %2291 = vrot.lane.b32.xlu0 %v2017, 64
      %v2292 = vpop.permute.xlu0 %2291
      %v2294 = vsel %vm497, %v2286, 0
      %v2297 = vsel %vm497, %v2288, 0
      %v2300 = vsel %vm497, %v2290, 0
      %v2303 = vsel %vm497, %v2292, 0
      %2305 = vmatprep.subr.bf16.mxu0 0
      %2306 = vmatpush1.bf16.xpose.msra.mxu0 0
      %2307 = vmatprep.subr.bf16.mxu0 0
      %2308 = vmatpush1.bf16.xpose.msra.mxu0 0
      %2309 = vmatprep.subr.bf16.mxu0 0
      %2310 = vmatpush1.bf16.xpose.msra.mxu0 0
      %2311 = vmatprep.subr.bf16.mxu0 0
      %2312 = vmatpush1.bf16.xpose.msra.mxu0 0
      %2313 = vmatprep.subr.bf16.mxu0 0
      %2314 = vmatpush1.bf16.xpose.msra.mxu0 0
      %2315 = vmatprep.subr.bf16.mxu0 0
      %2316 = vmatpush1.bf16.xpose.msra.mxu0 0
      %2317 = vmatprep.subr.bf16.mxu0 0
      %2318 = vmatpush1.bf16.xpose.msra.mxu0 %v2303
      %2319 = vmatprep.subr.bf16.mxu0 0
      %2320 = vmatpush1.bf16.xpose.msra.mxu0 %v2300
      %2321 = vmatprep.subr.bf16.mxu0 0
      %2322 = vmatpush2.bf16.xpose.msra.mxu0 0
      %2323 = vmatprep.subr.bf16.mxu0 0
      %2324 = vmatpush2.bf16.xpose.msra.mxu0 0
      %2325 = vmatprep.subr.bf16.mxu0 0
      %2326 = vmatpush2.bf16.xpose.msra.mxu0 0
      %2327 = vmatprep.subr.bf16.mxu0 0
      %2328 = vmatpush2.bf16.xpose.msra.mxu0 0
      %2329 = vmatprep.subr.bf16.mxu0 0
      %2330 = vmatpush2.bf16.xpose.msra.mxu0 0
      %2331 = vmatprep.subr.bf16.mxu0 0
      %2332 = vmatpush2.bf16.xpose.msra.mxu0 0
      %2333 = vmatprep.subr.bf16.mxu0 0
      %2334 = vmatpush2.bf16.xpose.msra.mxu0 0
      %2335 = vmatprep.subr.bf16.mxu0 0
      %2336 = vmatpush2.bf16.xpose.msra.mxu0 0
      %2337 = vmatprep.mubr.bf16.mxu0 0
      %2338 = vmatmul.mubr.bf16.gmra.mxu0 %v2294
      %v2339 = vpop.f32.mrf.mxu0
      %v2340 = vadd.f32 %v315, %v2339
      %v2341 = vpop.f32.mrf.mxu0
      %v2342 = vpop.f32.mrf.mxu0
      %v2343 = vadd.f32 %v315, %v2342
      %v2344 = vpop.f32.mrf.mxu0
      %2345 = vmatprep.mubr.bf16.mxu0 0
      %2346 = vmatmul.mubr.bf16.gmra.mxu0 %v2297
      %v2347 = vpop.f32.mrf.mxu0
      %v2348 = vadd.f32 %v315, %v2347
      %v2349 = vpop.f32.mrf.mxu0
      %v2350 = vpop.f32.mrf.mxu0
      %v2351 = vadd.f32 %v315, %v2350
      %v2352 = vpop.f32.mrf.mxu0
      %2353 = vdwg.mxu0
      %v2354 = vsel %vm1518, %v2340, -inf
      %2355 = vmax.xlane.f32.xlu0 %v2354
      %v2356 = vpop.xlane.xlu0 %2355
      %v2357 = vsel %vm1518, %v2343, -inf
      %2358 = vmax.xlane.f32.xlu0 %v2357
      %v2359 = vpop.xlane.xlu0 %2358
      %v2360 = vsel %vm1518, %v2348, -inf
      %2361 = vmax.xlane.f32.xlu0 %v2360
      %v2362 = vpop.xlane.xlu0 %2361
      %v2363 = vsel %vm1518, %v2351, -inf
      %2364 = vmax.xlane.f32.xlu0 %v2363
      %v2365 = vpop.xlane.xlu0 %2364
      %v2366 = vsub.f32 %v2340, %v2356
      %v2367 = vsub.f32 %v2343, %v2359
      %v2368 = vsub.f32 %v2348, %v2362
      %v2369 = vsub.f32 %v2351, %v2365
      %v2370 = vmul.f32 %v2366, 1.442695
      %v2371 = vpow.pop %v2370
      %v2372 = vmul.f32 %v2367, 1.442695
      %v2373 = vpow.pop %v2372
      %v2374 = vmul.f32 %v2368, 1.442695
      %v2375 = vpow.pop %v2374
      %v2376 = vmul.f32 %v2369, 1.442695
      %v2377 = vpow.pop %v2376
      %v2378 = vsel %vm1518, %v2371, 0.0
      %2379 = vadd.xlane.f32.xlu0 %v2378
      %v2380 = vpop.xlane.xlu0 %2379
      %v2381 = vsel %vm1518, %v2373, 0.0
      %2382 = vadd.xlane.f32.xlu0 %v2381
      %v2383 = vpop.xlane.xlu0 %2382
      %v2384 = vsel %vm1518, %v2375, 0.0
      %2385 = vadd.xlane.f32.xlu0 %v2384
      %v2386 = vpop.xlane.xlu0 %2385
      %v2387 = vsel %vm1518, %v2377, 0.0
      %2388 = vadd.xlane.f32.xlu0 %v2387
      %v2389 = vpop.xlane.xlu0 %2388
      %v2390 = vrcp.pop %v2380
      %v2391 = vrcp.pop %v2383
      %v2392 = vrcp.pop %v2386
      %v2393 = vrcp.pop %v2389
      %v2394 = vmul.f32 %v2371, %v2390
      %v2395 = vmul.f32 %v2373, %v2391
      %v2396 = vmul.f32 %v2375, %v2392
      %v2397 = vmul.f32 %v2377, %v2393
      %v2398 = vpack.c.bf16 %v2395, %v2394
      %v2399 = vpack.c.bf16 %v2397, %v2396
      %2400 = vrot.lane.b32.xlu0 %v2133, 64
      %v2401 = vpop.permute.xlu0 %2400
      %2402 = vrot.lane.b32.xlu0 %v2134, 64
      %v2403 = vpop.permute.xlu0 %2402
      %v2407 = vsel %vm1518, %v2398, 0
      %v2410 = vsel %vm1518, %v2399, 0
      %2412 = vmatprep.subr.bf16.mxu0 0
      %2413 = vmatpush1.bf16.msra.mxu0 0
      %2414 = vmatprep.subr.bf16.mxu0 0
      %2415 = vmatpush1.bf16.msra.mxu0 0
      %2416 = vmatprep.subr.bf16.mxu0 0
      %2417 = vmatpush1.bf16.msra.mxu0 0
      %2418 = vmatprep.subr.bf16.mxu0 0
      %2419 = vmatpush1.bf16.msra.mxu0 0
      %2420 = vmatprep.subr.bf16.mxu0 0
      %2421 = vmatpush1.bf16.msra.mxu0 0
      %2422 = vmatprep.subr.bf16.mxu0 0
      %2423 = vmatpush1.bf16.msra.mxu0 0
      %2424 = vmatprep.subr.bf16.mxu0 0
      %2425 = vmatpush1.bf16.msra.mxu0 %v2403
      %2426 = vmatprep.subr.bf16.mxu0 0
      %2427 = vmatpush1.bf16.msra.mxu0 %v2401
      %2428 = vmatprep.subr.bf16.mxu0 0
      %2429 = vmatpush2.bf16.msra.mxu0 0
      %2430 = vmatprep.subr.bf16.mxu0 0
      %2431 = vmatpush2.bf16.msra.mxu0 0
      %2432 = vmatprep.subr.bf16.mxu0 0
      %2433 = vmatpush2.bf16.msra.mxu0 0
      %2434 = vmatprep.subr.bf16.mxu0 0
      %2435 = vmatpush2.bf16.msra.mxu0 0
      %2436 = vmatprep.subr.bf16.mxu0 0
      %2437 = vmatpush2.bf16.msra.mxu0 0
      %2438 = vmatprep.subr.bf16.mxu0 0
      %2439 = vmatpush2.bf16.msra.mxu0 0
      %2440 = vmatprep.subr.bf16.mxu0 0
      %2441 = vmatpush2.bf16.msra.mxu0 0
      %2442 = vmatprep.subr.bf16.mxu0 0
      %2443 = vmatpush2.bf16.msra.mxu0 0
      %2444 = vmatprep.mubr.bf16.mxu0 0
      %2445 = vmatmul.mubr.bf16.gmra.mxu0 %v2407
      %v2446 = vpop.f32.mrf.mxu0
      %v2447 = vadd.f32 0.0, %v2446
      %v2448 = vpop.f32.mrf.mxu0
      %v2449 = vpop.f32.mrf.mxu0
      %v2450 = vadd.f32 0.0, %v2449
      %v2451 = vpop.f32.mrf.mxu0
      %2452 = vmatprep.mubr.bf16.mxu0 0
      %2453 = vmatmul.mubr.bf16.gmra.mxu0 %v2410
      %v2454 = vpop.f32.mrf.mxu0
      %v2455 = vadd.f32 0.0, %v2454
      %v2456 = vpop.f32.mrf.mxu0
      %v2457 = vpop.f32.mrf.mxu0
      %v2458 = vadd.f32 0.0, %v2457
      %v2459 = vpop.f32.mrf.mxu0
      %2460 = vdwg.mxu0
      %v2461 = vpack.c.bf16 %v2450, %v2447
      %v2462 = vpack.c.bf16 %v2458, %v2455
      %v2463 = vld [vmem:[%s6 + $0x60] sm:$0xf]
      %v2464 = vld [vmem:[%s6 + $0x64] sm:$0xf]
      %v2465 = vld [vmem:[%s6 + $0x68] sm:$0xf]
      %v2466 = vld [vmem:[%s6 + $0x6c] sm:$0xf]
      %v2467 = vld [vmem:[%s6 + $0x70] sm:$0xf]
      %v2468 = vld [vmem:[%s6 + $0x74] sm:$0xf]
      %v2469 = vld [vmem:[%s6 + $0x78] sm:$0xf]
      %v2470 = vld [vmem:[%s6 + $0x7c] sm:$0xf]
      %v2479 = vunpack.c.l.b16 %v2463
      %v2480 = vunpack.c.l.b16 %v2464
      %v2481 = vunpack.c.l.b16 %v2465
      %v2482 = vunpack.c.l.b16 %v2466
      %v2483 = vunpack.c.l.b16 %v2467
      %v2484 = vunpack.c.l.b16 %v2468
      %v2485 = vunpack.c.l.b16 %v2469
      %v2486 = vunpack.c.l.b16 %v2470
      %v2487 = vpack.c.b16 %v2480, %v2479
      %v2488 = vpack.c.b16 %v2482, %v2481
      %v2489 = vpack.c.b16 %v2484, %v2483
      %v2490 = vpack.c.b16 %v2486, %v2485
      %v2496 = vsel %vm497, %v2461, 0
      %v2499 = vsel %vm497, %v2462, 0
      %2501 = vmatprep.subr.bf16.mxu0 0
      %2502 = vmatpush1.bf16.msra.mxu0 0
      %2503 = vmatprep.subr.bf16.mxu0 0
      %2504 = vmatpush1.bf16.msra.mxu0 0
      %2505 = vmatprep.subr.bf16.mxu0 0
      %2506 = vmatpush1.bf16.msra.mxu0 0
      %2507 = vmatprep.subr.bf16.mxu0 0
      %2508 = vmatpush1.bf16.msra.mxu0 0
      %2509 = vmatprep.subr.bf16.mxu0 0
      %2510 = vmatpush1.bf16.msra.mxu0 %v2490
      %2511 = vmatprep.subr.bf16.mxu0 0
      %2512 = vmatpush1.bf16.msra.mxu0 %v2489
      %2513 = vmatprep.subr.bf16.mxu0 0
      %2514 = vmatpush1.bf16.msra.mxu0 %v2488
      %2515 = vmatprep.subr.bf16.mxu0 0
      %2516 = vmatpush1.bf16.msra.mxu0 %v2487
      %2517 = vmatprep.subr.bf16.mxu0 0
      %2518 = vmatpush2.bf16.msra.mxu0 0
      %2519 = vmatprep.subr.bf16.mxu0 0
      %2520 = vmatpush2.bf16.msra.mxu0 0
      %2521 = vmatprep.subr.bf16.mxu0 0
      %2522 = vmatpush2.bf16.msra.mxu0 0
      %2523 = vmatprep.subr.bf16.mxu0 0
      %2524 = vmatpush2.bf16.msra.mxu0 0
      %2525 = vmatprep.subr.bf16.mxu0 0
      %2526 = vmatpush2.bf16.msra.mxu0 0
      %2527 = vmatprep.subr.bf16.mxu0 0
      %2528 = vmatpush2.bf16.msra.mxu0 0
      %2529 = vmatprep.subr.bf16.mxu0 0
      %2530 = vmatpush2.bf16.msra.mxu0 0
      %2531 = vmatprep.subr.bf16.mxu0 0
      %2532 = vmatpush2.bf16.msra.mxu0 0
      %2533 = vmatprep.mubr.bf16.mxu0 0
      %2534 = vmatmul.mubr.bf16.gmra.mxu0 %v2496
      %v2535 = vpop.f32.mrf.mxu0
      %v2536 = vadd.f32 0.0, %v2535
      %v2537 = vpop.f32.mrf.mxu0
      %v2538 = vpop.f32.mrf.mxu0
      %v2539 = vadd.f32 0.0, %v2538
      %v2540 = vpop.f32.mrf.mxu0
      %2541 = vmatprep.mubr.bf16.mxu0 0
      %2542 = vmatmul.mubr.bf16.gmra.mxu0 %v2499
      %v2543 = vpop.f32.mrf.mxu0
      %v2544 = vadd.f32 0.0, %v2543
      %v2545 = vpop.f32.mrf.mxu0
      %v2546 = vpop.f32.mrf.mxu0
      %v2547 = vadd.f32 0.0, %v2546
      %v2548 = vpop.f32.mrf.mxu0
      %2549 = vdwg.mxu0
      %v2550 = vadd.f32 %v2281, %v2536
      %v2551 = vadd.f32 %v2282, %v2539
      %v2552 = vadd.f32 %v2283, %v2544
      %v2553 = vadd.f32 %v2284, %v2547
      %v2554 = vld [vmem:[#allocation2 + $0x8] sm:$0xf]
      %v2555 = vld [vmem:[#allocation2 + $0x38] sm:$0xf]
      %v2556 = vld [vmem:[#allocation2 + $0x68] sm:$0xf]
      %v2557 = vld [vmem:[#allocation2 + $0x98] sm:$0xf]
      %v2558 = vld [vmem:[#allocation2 + $0x18] sm:$0xf]
      %v2559 = vld [vmem:[#allocation2 + $0x48] sm:$0xf]
      %v2560 = vld [vmem:[#allocation2 + $0x78] sm:$0xf]
      %v2561 = vld [vmem:[#allocation2 + $0xa8] sm:$0xf]
      %v2562 = vld [vmem:[#allocation2 + $0x28] sm:$0xf]
      %v2563 = vld [vmem:[#allocation2 + $0x58] sm:$0xf]
      %v2564 = vld [vmem:[#allocation2 + $0x88] sm:$0xf]
      %v2565 = vld [vmem:[#allocation2 + $0xb8] sm:$0xf]
      %v2570 = vunpack.c.l.b16 %v2554
      %v2571 = vunpack.c.l.b16 %v2555
      %v2572 = vunpack.c.l.b16 %v2556
      %v2573 = vunpack.c.l.b16 %v2557
      %v2574 = vpack.c.b16 %v2571, %v2570
      %v2575 = vpack.c.b16 %v2573, %v2572
      %v2580 = vunpack.c.l.b16 %v2558
      %v2581 = vunpack.c.l.b16 %v2559
      %v2582 = vunpack.c.l.b16 %v2560
      %v2583 = vunpack.c.l.b16 %v2561
      %v2584 = vpack.c.b16 %v2581, %v2580
      %v2585 = vpack.c.b16 %v2583, %v2582
      %v2587 = vsel %vm497, %v2574, 0
      %v2590 = vsel %vm497, %v2575, 0
      %v2593 = vsel %vm497, %v2584, 0
      %v2596 = vsel %vm497, %v2585, 0
      %2598 = vmatprep.subr.bf16.mxu0 0
      %2599 = vmatpush1.bf16.xpose.msra.mxu0 0
      %2600 = vmatprep.subr.bf16.mxu0 0
      %2601 = vmatpush1.bf16.xpose.msra.mxu0 0
      %2602 = vmatprep.subr.bf16.mxu0 0
      %2603 = vmatpush1.bf16.xpose.msra.mxu0 0
      %2604 = vmatprep.subr.bf16.mxu0 0
      %2605 = vmatpush1.bf16.xpose.msra.mxu0 0
      %2606 = vmatprep.subr.bf16.mxu0 0
      %2607 = vmatpush1.bf16.xpose.msra.mxu0 0
      %2608 = vmatprep.subr.bf16.mxu0 0
      %2609 = vmatpush1.bf16.xpose.msra.mxu0 0
      %2610 = vmatprep.subr.bf16.mxu0 0
      %2611 = vmatpush1.bf16.xpose.msra.mxu0 %v2596
      %2612 = vmatprep.subr.bf16.mxu0 0
      %2613 = vmatpush1.bf16.xpose.msra.mxu0 %v2593
      %2614 = vmatprep.subr.bf16.mxu0 0
      %2615 = vmatpush2.bf16.xpose.msra.mxu0 0
      %2616 = vmatprep.subr.bf16.mxu0 0
      %2617 = vmatpush2.bf16.xpose.msra.mxu0 0
      %2618 = vmatprep.subr.bf16.mxu0 0
      %2619 = vmatpush2.bf16.xpose.msra.mxu0 0
      %2620 = vmatprep.subr.bf16.mxu0 0
      %2621 = vmatpush2.bf16.xpose.msra.mxu0 0
      %2622 = vmatprep.subr.bf16.mxu0 0
      %2623 = vmatpush2.bf16.xpose.msra.mxu0 0
      %2624 = vmatprep.subr.bf16.mxu0 0
      %2625 = vmatpush2.bf16.xpose.msra.mxu0 0
      %2626 = vmatprep.subr.bf16.mxu0 0
      %2627 = vmatpush2.bf16.xpose.msra.mxu0 0
      %2628 = vmatprep.subr.bf16.mxu0 0
      %2629 = vmatpush2.bf16.xpose.msra.mxu0 0
      %2630 = vmatprep.mubr.bf16.mxu0 0
      %2631 = vmatmul.mubr.bf16.gmra.mxu0 %v2587
      %v2632 = vpop.f32.mrf.mxu0
      %v2633 = vadd.f32 %v315, %v2632
      %v2634 = vpop.f32.mrf.mxu0
      %v2635 = vpop.f32.mrf.mxu0
      %v2636 = vadd.f32 %v315, %v2635
      %v2637 = vpop.f32.mrf.mxu0
      %2638 = vmatprep.mubr.bf16.mxu0 0
      %2639 = vmatmul.mubr.bf16.gmra.mxu0 %v2590
      %v2640 = vpop.f32.mrf.mxu0
      %v2641 = vadd.f32 %v315, %v2640
      %v2642 = vpop.f32.mrf.mxu0
      %v2643 = vpop.f32.mrf.mxu0
      %v2644 = vadd.f32 %v315, %v2643
      %v2645 = vpop.f32.mrf.mxu0
      %2646 = vdwg.mxu0
      %v2647 = vsel %vm1518, %v2633, -inf
      %2648 = vmax.xlane.f32.xlu0 %v2647
      %v2649 = vpop.xlane.xlu0 %2648
      %v2650 = vsel %vm1518, %v2636, -inf
      %2651 = vmax.xlane.f32.xlu0 %v2650
      %v2652 = vpop.xlane.xlu0 %2651
      %v2653 = vsel %vm1518, %v2641, -inf
      %2654 = vmax.xlane.f32.xlu0 %v2653
      %v2655 = vpop.xlane.xlu0 %2654
      %v2656 = vsel %vm1518, %v2644, -inf
      %2657 = vmax.xlane.f32.xlu0 %v2656
      %v2658 = vpop.xlane.xlu0 %2657
      %v2659 = vsub.f32 %v2633, %v2649
      %v2660 = vsub.f32 %v2636, %v2652
      %v2661 = vsub.f32 %v2641, %v2655
      %v2662 = vsub.f32 %v2644, %v2658
      %v2663 = vmul.f32 %v2659, 1.442695
      %v2664 = vpow.pop %v2663
      %v2665 = vmul.f32 %v2660, 1.442695
      %v2666 = vpow.pop %v2665
      %v2667 = vmul.f32 %v2661, 1.442695
      %v2668 = vpow.pop %v2667
      %v2669 = vmul.f32 %v2662, 1.442695
      %v2670 = vpow.pop %v2669
      %v2671 = vsel %vm1518, %v2664, 0.0
      %2672 = vadd.xlane.f32.xlu0 %v2671
      %v2673 = vpop.xlane.xlu0 %2672
      %v2674 = vsel %vm1518, %v2666, 0.0
      %2675 = vadd.xlane.f32.xlu0 %v2674
      %v2676 = vpop.xlane.xlu0 %2675
      %v2677 = vsel %vm1518, %v2668, 0.0
      %2678 = vadd.xlane.f32.xlu0 %v2677
      %v2679 = vpop.xlane.xlu0 %2678
      %v2680 = vsel %vm1518, %v2670, 0.0
      %2681 = vadd.xlane.f32.xlu0 %v2680
      %v2682 = vpop.xlane.xlu0 %2681
      %v2683 = vrcp.pop %v2673
      %v2684 = vrcp.pop %v2676
      %v2685 = vrcp.pop %v2679
      %v2686 = vrcp.pop %v2682
      %v2687 = vmul.f32 %v2664, %v2683
      %v2688 = vmul.f32 %v2666, %v2684
      %v2689 = vmul.f32 %v2668, %v2685
      %v2690 = vmul.f32 %v2670, %v2686
      %v2691 = vpack.c.bf16 %v2688, %v2687
      %v2692 = vpack.c.bf16 %v2690, %v2689
      %v2697 = vunpack.c.l.b16 %v2562
      %v2698 = vunpack.c.l.b16 %v2563
      %v2699 = vunpack.c.l.b16 %v2564
      %v2700 = vunpack.c.l.b16 %v2565
      %v2701 = vpack.c.b16 %v2698, %v2697
      %v2702 = vpack.c.b16 %v2700, %v2699
      %v2706 = vsel %vm1518, %v2691, 0
      %v2709 = vsel %vm1518, %v2692, 0
      %2711 = vmatprep.subr.bf16.mxu0 0
      %2712 = vmatpush1.bf16.msra.mxu0 0
      %2713 = vmatprep.subr.bf16.mxu0 0
      %2714 = vmatpush1.bf16.msra.mxu0 0
      %2715 = vmatprep.subr.bf16.mxu0 0
      %2716 = vmatpush1.bf16.msra.mxu0 0
      %2717 = vmatprep.subr.bf16.mxu0 0
      %2718 = vmatpush1.bf16.msra.mxu0 0
      %2719 = vmatprep.subr.bf16.mxu0 0
      %2720 = vmatpush1.bf16.msra.mxu0 0
      %2721 = vmatprep.subr.bf16.mxu0 0
      %2722 = vmatpush1.bf16.msra.mxu0 0
      %2723 = vmatprep.subr.bf16.mxu0 0
      %2724 = vmatpush1.bf16.msra.mxu0 %v2702
      %2725 = vmatprep.subr.bf16.mxu0 0
      %2726 = vmatpush1.bf16.msra.mxu0 %v2701
      %2727 = vmatprep.subr.bf16.mxu0 0
      %2728 = vmatpush2.bf16.msra.mxu0 0
      %2729 = vmatprep.subr.bf16.mxu0 0
      %2730 = vmatpush2.bf16.msra.mxu0 0
      %2731 = vmatprep.subr.bf16.mxu0 0
      %2732 = vmatpush2.bf16.msra.mxu0 0
      %2733 = vmatprep.subr.bf16.mxu0 0
      %2734 = vmatpush2.bf16.msra.mxu0 0
      %2735 = vmatprep.subr.bf16.mxu0 0
      %2736 = vmatpush2.bf16.msra.mxu0 0
      %2737 = vmatprep.subr.bf16.mxu0 0
      %2738 = vmatpush2.bf16.msra.mxu0 0
      %2739 = vmatprep.subr.bf16.mxu0 0
      %2740 = vmatpush2.bf16.msra.mxu0 0
      %2741 = vmatprep.subr.bf16.mxu0 0
      %2742 = vmatpush2.bf16.msra.mxu0 0
      %2743 = vmatprep.mubr.bf16.mxu0 0
      %2744 = vmatmul.mubr.bf16.gmra.mxu0 %v2706
      %v2745 = vpop.f32.mrf.mxu0
      %v2746 = vadd.f32 0.0, %v2745
      %v2747 = vpop.f32.mrf.mxu0
      %v2748 = vpop.f32.mrf.mxu0
      %v2749 = vadd.f32 0.0, %v2748
      %v2750 = vpop.f32.mrf.mxu0
      %2751 = vmatprep.mubr.bf16.mxu0 0
      %2752 = vmatmul.mubr.bf16.gmra.mxu0 %v2709
      %v2753 = vpop.f32.mrf.mxu0
      %v2754 = vadd.f32 0.0, %v2753
      %v2755 = vpop.f32.mrf.mxu0
      %v2756 = vpop.f32.mrf.mxu0
      %v2757 = vadd.f32 0.0, %v2756
      %v2758 = vpop.f32.mrf.mxu0
      %2759 = vdwg.mxu0
      %v2760 = vpack.c.bf16 %v2749, %v2746
      %v2761 = vpack.c.bf16 %v2757, %v2754
      %v2762 = vld [vmem:[%s6 + $0x80] sm:$0xf]
      %v2763 = vld [vmem:[%s6 + $0x84] sm:$0xf]
      %v2764 = vld [vmem:[%s6 + $0x88] sm:$0xf]
      %v2765 = vld [vmem:[%s6 + $0x8c] sm:$0xf]
      %v2766 = vld [vmem:[%s6 + $0x90] sm:$0xf]
      %v2767 = vld [vmem:[%s6 + $0x94] sm:$0xf]
      %v2768 = vld [vmem:[%s6 + $0x98] sm:$0xf]
      %v2769 = vld [vmem:[%s6 + $0x9c] sm:$0xf]
      %v2778 = vunpack.c.l.b16 %v2762
      %v2779 = vunpack.c.l.b16 %v2763
      %v2780 = vunpack.c.l.b16 %v2764
      %v2781 = vunpack.c.l.b16 %v2765
      %v2782 = vunpack.c.l.b16 %v2766
      %v2783 = vunpack.c.l.b16 %v2767
      %v2784 = vunpack.c.l.b16 %v2768
      %v2785 = vunpack.c.l.b16 %v2769
      %v2786 = vpack.c.b16 %v2779, %v2778
      %v2787 = vpack.c.b16 %v2781, %v2780
      %v2788 = vpack.c.b16 %v2783, %v2782
      %v2789 = vpack.c.b16 %v2785, %v2784
      %v2795 = vsel %vm497, %v2760, 0
      %v2798 = vsel %vm497, %v2761, 0
      %2800 = vmatprep.subr.bf16.mxu0 0
      %2801 = vmatpush1.bf16.msra.mxu0 0
      %2802 = vmatprep.subr.bf16.mxu0 0
      %2803 = vmatpush1.bf16.msra.mxu0 0
      %2804 = vmatprep.subr.bf16.mxu0 0
      %2805 = vmatpush1.bf16.msra.mxu0 0
      %2806 = vmatprep.subr.bf16.mxu0 0
      %2807 = vmatpush1.bf16.msra.mxu0 0
      %2808 = vmatprep.subr.bf16.mxu0 0
      %2809 = vmatpush1.bf16.msra.mxu0 %v2789
      %2810 = vmatprep.subr.bf16.mxu0 0
      %2811 = vmatpush1.bf16.msra.mxu0 %v2788
      %2812 = vmatprep.subr.bf16.mxu0 0
      %2813 = vmatpush1.bf16.msra.mxu0 %v2787
      %2814 = vmatprep.subr.bf16.mxu0 0
      %2815 = vmatpush1.bf16.msra.mxu0 %v2786
      %2816 = vmatprep.subr.bf16.mxu0 0
      %2817 = vmatpush2.bf16.msra.mxu0 0
      %2818 = vmatprep.subr.bf16.mxu0 0
      %2819 = vmatpush2.bf16.msra.mxu0 0
      %2820 = vmatprep.subr.bf16.mxu0 0
      %2821 = vmatpush2.bf16.msra.mxu0 0
      %2822 = vmatprep.subr.bf16.mxu0 0
      %2823 = vmatpush2.bf16.msra.mxu0 0
      %2824 = vmatprep.subr.bf16.mxu0 0
      %2825 = vmatpush2.bf16.msra.mxu0 0
      %2826 = vmatprep.subr.bf16.mxu0 0
      %2827 = vmatpush2.bf16.msra.mxu0 0
      %2828 = vmatprep.subr.bf16.mxu0 0
      %2829 = vmatpush2.bf16.msra.mxu0 0
      %2830 = vmatprep.subr.bf16.mxu0 0
      %2831 = vmatpush2.bf16.msra.mxu0 0
      %2832 = vmatprep.mubr.bf16.mxu0 0
      %2833 = vmatmul.mubr.bf16.gmra.mxu0 %v2795
      %v2834 = vpop.f32.mrf.mxu0
      %v2835 = vadd.f32 0.0, %v2834
      %v2836 = vpop.f32.mrf.mxu0
      %v2837 = vpop.f32.mrf.mxu0
      %v2838 = vadd.f32 0.0, %v2837
      %v2839 = vpop.f32.mrf.mxu0
      %2840 = vmatprep.mubr.bf16.mxu0 0
      %2841 = vmatmul.mubr.bf16.gmra.mxu0 %v2798
      %v2842 = vpop.f32.mrf.mxu0
      %v2843 = vadd.f32 0.0, %v2842
      %v2844 = vpop.f32.mrf.mxu0
      %v2845 = vpop.f32.mrf.mxu0
      %v2846 = vadd.f32 0.0, %v2845
      %v2847 = vpop.f32.mrf.mxu0
      %2848 = vdwg.mxu0
      %v2849 = vadd.f32 %v2550, %v2835
      %v2850 = vadd.f32 %v2551, %v2838
      %v2851 = vadd.f32 %v2552, %v2843
      %v2852 = vadd.f32 %v2553, %v2846
      %2853 = vrot.lane.b32.xlu0 %v2574, 64
      %v2854 = vpop.permute.xlu0 %2853
      %2855 = vrot.lane.b32.xlu0 %v2575, 64
      %v2856 = vpop.permute.xlu0 %2855
      %2857 = vrot.lane.b32.xlu0 %v2584, 64
      %v2858 = vpop.permute.xlu0 %2857
      %2859 = vrot.lane.b32.xlu0 %v2585, 64
      %v2860 = vpop.permute.xlu0 %2859
      %v2862 = vsel %vm497, %v2854, 0
      %v2865 = vsel %vm497, %v2856, 0
      %v2868 = vsel %vm497, %v2858, 0
      %v2871 = vsel %vm497, %v2860, 0
      %2873 = vmatprep.subr.bf16.mxu0 0
      %2874 = vmatpush1.bf16.xpose.msra.mxu0 0
      %2875 = vmatprep.subr.bf16.mxu0 0
      %2876 = vmatpush1.bf16.xpose.msra.mxu0 0
      %2877 = vmatprep.subr.bf16.mxu0 0
      %2878 = vmatpush1.bf16.xpose.msra.mxu0 0
      %2879 = vmatprep.subr.bf16.mxu0 0
      %2880 = vmatpush1.bf16.xpose.msra.mxu0 0
      %2881 = vmatprep.subr.bf16.mxu0 0
      %2882 = vmatpush1.bf16.xpose.msra.mxu0 0
      %2883 = vmatprep.subr.bf16.mxu0 0
      %2884 = vmatpush1.bf16.xpose.msra.mxu0 0
      %2885 = vmatprep.subr.bf16.mxu0 0
      %2886 = vmatpush1.bf16.xpose.msra.mxu0 %v2871
      %2887 = vmatprep.subr.bf16.mxu0 0
      %2888 = vmatpush1.bf16.xpose.msra.mxu0 %v2868
      %2889 = vmatprep.subr.bf16.mxu0 0
      %2890 = vmatpush2.bf16.xpose.msra.mxu0 0
      %2891 = vmatprep.subr.bf16.mxu0 0
      %2892 = vmatpush2.bf16.xpose.msra.mxu0 0
      %2893 = vmatprep.subr.bf16.mxu0 0
      %2894 = vmatpush2.bf16.xpose.msra.mxu0 0
      %2895 = vmatprep.subr.bf16.mxu0 0
      %2896 = vmatpush2.bf16.xpose.msra.mxu0 0
      %2897 = vmatprep.subr.bf16.mxu0 0
      %2898 = vmatpush2.bf16.xpose.msra.mxu0 0
      %2899 = vmatprep.subr.bf16.mxu0 0
      %2900 = vmatpush2.bf16.xpose.msra.mxu0 0
      %2901 = vmatprep.subr.bf16.mxu0 0
      %2902 = vmatpush2.bf16.xpose.msra.mxu0 0
      %2903 = vmatprep.subr.bf16.mxu0 0
      %2904 = vmatpush2.bf16.xpose.msra.mxu0 0
      %2905 = vmatprep.mubr.bf16.mxu0 0
      %2906 = vmatmul.mubr.bf16.gmra.mxu0 %v2862
      %v2907 = vpop.f32.mrf.mxu0
      %v2908 = vadd.f32 %v315, %v2907
      %v2909 = vpop.f32.mrf.mxu0
      %v2910 = vpop.f32.mrf.mxu0
      %v2911 = vadd.f32 %v315, %v2910
      %v2912 = vpop.f32.mrf.mxu0
      %2913 = vmatprep.mubr.bf16.mxu0 0
      %2914 = vmatmul.mubr.bf16.gmra.mxu0 %v2865
      %v2915 = vpop.f32.mrf.mxu0
      %v2916 = vadd.f32 %v315, %v2915
      %v2917 = vpop.f32.mrf.mxu0
      %v2918 = vpop.f32.mrf.mxu0
      %v2919 = vadd.f32 %v315, %v2918
      %v2920 = vpop.f32.mrf.mxu0
      %2921 = vdwg.mxu0
      %v2922 = vsel %vm1518, %v2908, -inf
      %2923 = vmax.xlane.f32.xlu0 %v2922
      %v2924 = vpop.xlane.xlu0 %2923
      %v2925 = vsel %vm1518, %v2911, -inf
      %2926 = vmax.xlane.f32.xlu0 %v2925
      %v2927 = vpop.xlane.xlu0 %2926
      %v2928 = vsel %vm1518, %v2916, -inf
      %2929 = vmax.xlane.f32.xlu0 %v2928
      %v2930 = vpop.xlane.xlu0 %2929
      %v2931 = vsel %vm1518, %v2919, -inf
      %2932 = vmax.xlane.f32.xlu0 %v2931
      %v2933 = vpop.xlane.xlu0 %2932
      %v2934 = vsub.f32 %v2908, %v2924
      %v2935 = vsub.f32 %v2911, %v2927
      %v2936 = vsub.f32 %v2916, %v2930
      %v2937 = vsub.f32 %v2919, %v2933
      %v2938 = vmul.f32 %v2934, 1.442695
      %v2939 = vpow.pop %v2938
      %v2940 = vmul.f32 %v2935, 1.442695
      %v2941 = vpow.pop %v2940
      %v2942 = vmul.f32 %v2936, 1.442695
      %v2943 = vpow.pop %v2942
      %v2944 = vmul.f32 %v2937, 1.442695
      %v2945 = vpow.pop %v2944
      %v2946 = vsel %vm1518, %v2939, 0.0
      %2947 = vadd.xlane.f32.xlu0 %v2946
      %v2948 = vpop.xlane.xlu0 %2947
      %v2949 = vsel %vm1518, %v2941, 0.0
      %2950 = vadd.xlane.f32.xlu0 %v2949
      %v2951 = vpop.xlane.xlu0 %2950
      %v2952 = vsel %vm1518, %v2943, 0.0
      %2953 = vadd.xlane.f32.xlu0 %v2952
      %v2954 = vpop.xlane.xlu0 %2953
      %v2955 = vsel %vm1518, %v2945, 0.0
      %2956 = vadd.xlane.f32.xlu0 %v2955
      %v2957 = vpop.xlane.xlu0 %2956
      %v2958 = vrcp.pop %v2948
      %v2959 = vrcp.pop %v2951
      %v2960 = vrcp.pop %v2954
      %v2961 = vrcp.pop %v2957
      %v2962 = vmul.f32 %v2939, %v2958
      %v2963 = vmul.f32 %v2941, %v2959
      %v2964 = vmul.f32 %v2943, %v2960
      %v2965 = vmul.f32 %v2945, %v2961
      %v2966 = vpack.c.bf16 %v2963, %v2962
      %v2967 = vpack.c.bf16 %v2965, %v2964
      %2968 = vrot.lane.b32.xlu0 %v2701, 64
      %v2969 = vpop.permute.xlu0 %2968
      %2970 = vrot.lane.b32.xlu0 %v2702, 64
      %v2971 = vpop.permute.xlu0 %2970
      %v2975 = vsel %vm1518, %v2966, 0
      %v2978 = vsel %vm1518, %v2967, 0
      %2980 = vmatprep.subr.bf16.mxu0 0
      %2981 = vmatpush1.bf16.msra.mxu0 0
      %2982 = vmatprep.subr.bf16.mxu0 0
      %2983 = vmatpush1.bf16.msra.mxu0 0
      %2984 = vmatprep.subr.bf16.mxu0 0
      %2985 = vmatpush1.bf16.msra.mxu0 0
      %2986 = vmatprep.subr.bf16.mxu0 0
      %2987 = vmatpush1.bf16.msra.mxu0 0
      %2988 = vmatprep.subr.bf16.mxu0 0
      %2989 = vmatpush1.bf16.msra.mxu0 0
      %2990 = vmatprep.subr.bf16.mxu0 0
      %2991 = vmatpush1.bf16.msra.mxu0 0
      %2992 = vmatprep.subr.bf16.mxu0 0
      %2993 = vmatpush1.bf16.msra.mxu0 %v2971
      %2994 = vmatprep.subr.bf16.mxu0 0
      %2995 = vmatpush1.bf16.msra.mxu0 %v2969
      %2996 = vmatprep.subr.bf16.mxu0 0
      %2997 = vmatpush2.bf16.msra.mxu0 0
      %2998 = vmatprep.subr.bf16.mxu0 0
      %2999 = vmatpush2.bf16.msra.mxu0 0
      %3000 = vmatprep.subr.bf16.mxu0 0
      %3001 = vmatpush2.bf16.msra.mxu0 0
      %3002 = vmatprep.subr.bf16.mxu0 0
      %3003 = vmatpush2.bf16.msra.mxu0 0
      %3004 = vmatprep.subr.bf16.mxu0 0
      %3005 = vmatpush2.bf16.msra.mxu0 0
      %3006 = vmatprep.subr.bf16.mxu0 0
      %3007 = vmatpush2.bf16.msra.mxu0 0
      %3008 = vmatprep.subr.bf16.mxu0 0
      %3009 = vmatpush2.bf16.msra.mxu0 0
      %3010 = vmatprep.subr.bf16.mxu0 0
      %3011 = vmatpush2.bf16.msra.mxu0 0
      %3012 = vmatprep.mubr.bf16.mxu0 0
      %3013 = vmatmul.mubr.bf16.gmra.mxu0 %v2975
      %v3014 = vpop.f32.mrf.mxu0
      %v3015 = vadd.f32 0.0, %v3014
      %v3016 = vpop.f32.mrf.mxu0
      %v3017 = vpop.f32.mrf.mxu0
      %v3018 = vadd.f32 0.0, %v3017
      %v3019 = vpop.f32.mrf.mxu0
      %3020 = vmatprep.mubr.bf16.mxu0 0
      %3021 = vmatmul.mubr.bf16.gmra.mxu0 %v2978
      %v3022 = vpop.f32.mrf.mxu0
      %v3023 = vadd.f32 0.0, %v3022
      %v3024 = vpop.f32.mrf.mxu0
      %v3025 = vpop.f32.mrf.mxu0
      %v3026 = vadd.f32 0.0, %v3025
      %v3027 = vpop.f32.mrf.mxu0
      %3028 = vdwg.mxu0
      %v3029 = vpack.c.bf16 %v3018, %v3015
      %v3030 = vpack.c.bf16 %v3026, %v3023
      %v3031 = vld [vmem:[%s6 + $0xa0] sm:$0xf]
      %v3032 = vld [vmem:[%s6 + $0xa4] sm:$0xf]
      %v3033 = vld [vmem:[%s6 + $0xa8] sm:$0xf]
      %v3034 = vld [vmem:[%s6 + $0xac] sm:$0xf]
      %v3035 = vld [vmem:[%s6 + $0xb0] sm:$0xf]
      %v3036 = vld [vmem:[%s6 + $0xb4] sm:$0xf]
      %v3037 = vld [vmem:[%s6 + $0xb8] sm:$0xf]
      %v3038 = vld [vmem:[%s6 + $0xbc] sm:$0xf]
      %v3047 = vunpack.c.l.b16 %v3031
      %v3048 = vunpack.c.l.b16 %v3032
      %v3049 = vunpack.c.l.b16 %v3033
      %v3050 = vunpack.c.l.b16 %v3034
      %v3051 = vunpack.c.l.b16 %v3035
      %v3052 = vunpack.c.l.b16 %v3036
      %v3053 = vunpack.c.l.b16 %v3037
      %v3054 = vunpack.c.l.b16 %v3038
      %v3055 = vpack.c.b16 %v3048, %v3047
      %v3056 = vpack.c.b16 %v3050, %v3049
      %v3057 = vpack.c.b16 %v3052, %v3051
      %v3058 = vpack.c.b16 %v3054, %v3053
      %v3064 = vsel %vm497, %v3029, 0
      %v3067 = vsel %vm497, %v3030, 0
      %3069 = vmatprep.subr.bf16.mxu0 0
      %3070 = vmatpush1.bf16.msra.mxu0 0
      %3071 = vmatprep.subr.bf16.mxu0 0
      %3072 = vmatpush1.bf16.msra.mxu0 0
      %3073 = vmatprep.subr.bf16.mxu0 0
      %3074 = vmatpush1.bf16.msra.mxu0 0
      %3075 = vmatprep.subr.bf16.mxu0 0
      %3076 = vmatpush1.bf16.msra.mxu0 0
      %3077 = vmatprep.subr.bf16.mxu0 0
      %3078 = vmatpush1.bf16.msra.mxu0 %v3058
      %3079 = vmatprep.subr.bf16.mxu0 0
      %3080 = vmatpush1.bf16.msra.mxu0 %v3057
      %3081 = vmatprep.subr.bf16.mxu0 0
      %3082 = vmatpush1.bf16.msra.mxu0 %v3056
      %3083 = vmatprep.subr.bf16.mxu0 0
      %3084 = vmatpush1.bf16.msra.mxu0 %v3055
      %3085 = vmatprep.subr.bf16.mxu0 0
      %3086 = vmatpush2.bf16.msra.mxu0 0
      %3087 = vmatprep.subr.bf16.mxu0 0
      %3088 = vmatpush2.bf16.msra.mxu0 0
      %3089 = vmatprep.subr.bf16.mxu0 0
      %3090 = vmatpush2.bf16.msra.mxu0 0
      %3091 = vmatprep.subr.bf16.mxu0 0
      %3092 = vmatpush2.bf16.msra.mxu0 0
      %3093 = vmatprep.subr.bf16.mxu0 0
      %3094 = vmatpush2.bf16.msra.mxu0 0
      %3095 = vmatprep.subr.bf16.mxu0 0
      %3096 = vmatpush2.bf16.msra.mxu0 0
      %3097 = vmatprep.subr.bf16.mxu0 0
      %3098 = vmatpush2.bf16.msra.mxu0 0
      %3099 = vmatprep.subr.bf16.mxu0 0
      %3100 = vmatpush2.bf16.msra.mxu0 0
      %3101 = vmatprep.mubr.bf16.mxu0 0
      %3102 = vmatmul.mubr.bf16.gmra.mxu0 %v3064
      %v3103 = vpop.f32.mrf.mxu0
      %v3104 = vadd.f32 0.0, %v3103
      %v3105 = vpop.f32.mrf.mxu0
      %v3106 = vpop.f32.mrf.mxu0
      %v3107 = vadd.f32 0.0, %v3106
      %v3108 = vpop.f32.mrf.mxu0
      %3109 = vmatprep.mubr.bf16.mxu0 0
      %3110 = vmatmul.mubr.bf16.gmra.mxu0 %v3067
      %v3111 = vpop.f32.mrf.mxu0
      %v3112 = vadd.f32 0.0, %v3111
      %v3113 = vpop.f32.mrf.mxu0
      %v3114 = vpop.f32.mrf.mxu0
      %v3115 = vadd.f32 0.0, %v3114
      %v3116 = vpop.f32.mrf.mxu0
      %3117 = vdwg.mxu0
      %v3118 = vadd.f32 %v2849, %v3104
      %v3119 = vadd.f32 %v2850, %v3107
      %v3120 = vadd.f32 %v2851, %v3112
      %v3121 = vadd.f32 %v2852, %v3115
      %v3122 = vld [vmem:[#allocation2 + $0xc] sm:$0xf]
      %v3123 = vld [vmem:[#allocation2 + $0x3c] sm:$0xf]
      %v3124 = vld [vmem:[#allocation2 + $0x6c] sm:$0xf]
      %v3125 = vld [vmem:[#allocation2 + $0x9c] sm:$0xf]
      %v3126 = vld [vmem:[#allocation2 + $0x1c] sm:$0xf]
      %v3127 = vld [vmem:[#allocation2 + $0x4c] sm:$0xf]
      %v3128 = vld [vmem:[#allocation2 + $0x7c] sm:$0xf]
      %v3129 = vld [vmem:[#allocation2 + $0xac] sm:$0xf]
      %v3130 = vld [vmem:[#allocation2 + $0x2c] sm:$0xf]
      %v3131 = vld [vmem:[#allocation2 + $0x5c] sm:$0xf]
      %v3132 = vld [vmem:[#allocation2 + $0x8c] sm:$0xf]
      %v3133 = vld [vmem:[#allocation2 + $0xbc] sm:$0xf]
      %v3138 = vunpack.c.l.b16 %v3122
      %v3139 = vunpack.c.l.b16 %v3123
      %v3140 = vunpack.c.l.b16 %v3124
      %v3141 = vunpack.c.l.b16 %v3125
      %v3142 = vpack.c.b16 %v3139, %v3138
      %v3143 = vpack.c.b16 %v3141, %v3140
      %v3148 = vunpack.c.l.b16 %v3126
      %v3149 = vunpack.c.l.b16 %v3127
      %v3150 = vunpack.c.l.b16 %v3128
      %v3151 = vunpack.c.l.b16 %v3129
      %v3152 = vpack.c.b16 %v3149, %v3148
      %v3153 = vpack.c.b16 %v3151, %v3150
      %v3155 = vsel %vm497, %v3142, 0
      %v3158 = vsel %vm497, %v3143, 0
      %v3161 = vsel %vm497, %v3152, 0
      %v3164 = vsel %vm497, %v3153, 0
      %3166 = vmatprep.subr.bf16.mxu0 0
      %3167 = vmatpush1.bf16.xpose.msra.mxu0 0
      %3168 = vmatprep.subr.bf16.mxu0 0
      %3169 = vmatpush1.bf16.xpose.msra.mxu0 0
      %3170 = vmatprep.subr.bf16.mxu0 0
      %3171 = vmatpush1.bf16.xpose.msra.mxu0 0
      %3172 = vmatprep.subr.bf16.mxu0 0
      %3173 = vmatpush1.bf16.xpose.msra.mxu0 0
      %3174 = vmatprep.subr.bf16.mxu0 0
      %3175 = vmatpush1.bf16.xpose.msra.mxu0 0
      %3176 = vmatprep.subr.bf16.mxu0 0
      %3177 = vmatpush1.bf16.xpose.msra.mxu0 0
      %3178 = vmatprep.subr.bf16.mxu0 0
      %3179 = vmatpush1.bf16.xpose.msra.mxu0 %v3164
      %3180 = vmatprep.subr.bf16.mxu0 0
      %3181 = vmatpush1.bf16.xpose.msra.mxu0 %v3161
      %3182 = vmatprep.subr.bf16.mxu0 0
      %3183 = vmatpush2.bf16.xpose.msra.mxu0 0
      %3184 = vmatprep.subr.bf16.mxu0 0
      %3185 = vmatpush2.bf16.xpose.msra.mxu0 0
      %3186 = vmatprep.subr.bf16.mxu0 0
      %3187 = vmatpush2.bf16.xpose.msra.mxu0 0
      %3188 = vmatprep.subr.bf16.mxu0 0
      %3189 = vmatpush2.bf16.xpose.msra.mxu0 0
      %3190 = vmatprep.subr.bf16.mxu0 0
      %3191 = vmatpush2.bf16.xpose.msra.mxu0 0
      %3192 = vmatprep.subr.bf16.mxu0 0
      %3193 = vmatpush2.bf16.xpose.msra.mxu0 0
      %3194 = vmatprep.subr.bf16.mxu0 0
      %3195 = vmatpush2.bf16.xpose.msra.mxu0 0
      %3196 = vmatprep.subr.bf16.mxu0 0
      %3197 = vmatpush2.bf16.xpose.msra.mxu0 0
      %3198 = vmatprep.mubr.bf16.mxu0 0
      %3199 = vmatmul.mubr.bf16.gmra.mxu0 %v3155
      %v3200 = vpop.f32.mrf.mxu0
      %v3201 = vadd.f32 %v315, %v3200
      %v3202 = vpop.f32.mrf.mxu0
      %v3203 = vpop.f32.mrf.mxu0
      %v3204 = vadd.f32 %v315, %v3203
      %v3205 = vpop.f32.mrf.mxu0
      %3206 = vmatprep.mubr.bf16.mxu0 0
      %3207 = vmatmul.mubr.bf16.gmra.mxu0 %v3158
      %v3208 = vpop.f32.mrf.mxu0
      %v3209 = vadd.f32 %v315, %v3208
      %v3210 = vpop.f32.mrf.mxu0
      %v3211 = vpop.f32.mrf.mxu0
      %v3212 = vadd.f32 %v315, %v3211
      %v3213 = vpop.f32.mrf.mxu0
      %3214 = vdwg.mxu0
      %v3215 = vsel %vm1518, %v3201, -inf
      %3216 = vmax.xlane.f32.xlu0 %v3215
      %v3217 = vpop.xlane.xlu0 %3216
      %v3218 = vsel %vm1518, %v3204, -inf
      %3219 = vmax.xlane.f32.xlu0 %v3218
      %v3220 = vpop.xlane.xlu0 %3219
      %v3221 = vsel %vm1518, %v3209, -inf
      %3222 = vmax.xlane.f32.xlu0 %v3221
      %v3223 = vpop.xlane.xlu0 %3222
      %v3224 = vsel %vm1518, %v3212, -inf
      %3225 = vmax.xlane.f32.xlu0 %v3224
      %v3226 = vpop.xlane.xlu0 %3225
      %v3227 = vsub.f32 %v3201, %v3217
      %v3228 = vsub.f32 %v3204, %v3220
      %v3229 = vsub.f32 %v3209, %v3223
      %v3230 = vsub.f32 %v3212, %v3226
      %v3231 = vmul.f32 %v3227, 1.442695
      %v3232 = vpow.pop %v3231
      %v3233 = vmul.f32 %v3228, 1.442695
      %v3234 = vpow.pop %v3233
      %v3235 = vmul.f32 %v3229, 1.442695
      %v3236 = vpow.pop %v3235
      %v3237 = vmul.f32 %v3230, 1.442695
      %v3238 = vpow.pop %v3237
      %v3239 = vsel %vm1518, %v3232, 0.0
      %3240 = vadd.xlane.f32.xlu0 %v3239
      %v3241 = vpop.xlane.xlu0 %3240
      %v3242 = vsel %vm1518, %v3234, 0.0
      %3243 = vadd.xlane.f32.xlu0 %v3242
      %v3244 = vpop.xlane.xlu0 %3243
      %v3245 = vsel %vm1518, %v3236, 0.0
      %3246 = vadd.xlane.f32.xlu0 %v3245
      %v3247 = vpop.xlane.xlu0 %3246
      %v3248 = vsel %vm1518, %v3238, 0.0
      %3249 = vadd.xlane.f32.xlu0 %v3248
      %v3250 = vpop.xlane.xlu0 %3249
      %v3251 = vrcp.pop %v3241
      %v3252 = vrcp.pop %v3244
      %v3253 = vrcp.pop %v3247
      %v3254 = vrcp.pop %v3250
      %v3255 = vmul.f32 %v3232, %v3251
      %v3256 = vmul.f32 %v3234, %v3252
      %v3257 = vmul.f32 %v3236, %v3253
      %v3258 = vmul.f32 %v3238, %v3254
      %v3259 = vpack.c.bf16 %v3256, %v3255
      %v3260 = vpack.c.bf16 %v3258, %v3257
      %v3265 = vunpack.c.l.b16 %v3130
      %v3266 = vunpack.c.l.b16 %v3131
      %v3267 = vunpack.c.l.b16 %v3132
      %v3268 = vunpack.c.l.b16 %v3133
      %v3269 = vpack.c.b16 %v3266, %v3265
      %v3270 = vpack.c.b16 %v3268, %v3267
      %v3274 = vsel %vm1518, %v3259, 0
      %v3277 = vsel %vm1518, %v3260, 0
      %3279 = vmatprep.subr.bf16.mxu0 0
      %3280 = vmatpush1.bf16.msra.mxu0 0
      %3281 = vmatprep.subr.bf16.mxu0 0
      %3282 = vmatpush1.bf16.msra.mxu0 0
      %3283 = vmatprep.subr.bf16.mxu0 0
      %3284 = vmatpush1.bf16.msra.mxu0 0
      %3285 = vmatprep.subr.bf16.mxu0 0
      %3286 = vmatpush1.bf16.msra.mxu0 0
      %3287 = vmatprep.subr.bf16.mxu0 0
      %3288 = vmatpush1.bf16.msra.mxu0 0
      %3289 = vmatprep.subr.bf16.mxu0 0
      %3290 = vmatpush1.bf16.msra.mxu0 0
      %3291 = vmatprep.subr.bf16.mxu0 0
      %3292 = vmatpush1.bf16.msra.mxu0 %v3270
      %3293 = vmatprep.subr.bf16.mxu0 0
      %3294 = vmatpush1.bf16.msra.mxu0 %v3269
      %3295 = vmatprep.subr.bf16.mxu0 0
      %3296 = vmatpush2.bf16.msra.mxu0 0
      %3297 = vmatprep.subr.bf16.mxu0 0
      %3298 = vmatpush2.bf16.msra.mxu0 0
      %3299 = vmatprep.subr.bf16.mxu0 0
      %3300 = vmatpush2.bf16.msra.mxu0 0
      %3301 = vmatprep.subr.bf16.mxu0 0
      %3302 = vmatpush2.bf16.msra.mxu0 0
      %3303 = vmatprep.subr.bf16.mxu0 0
      %3304 = vmatpush2.bf16.msra.mxu0 0
      %3305 = vmatprep.subr.bf16.mxu0 0
      %3306 = vmatpush2.bf16.msra.mxu0 0
      %3307 = vmatprep.subr.bf16.mxu0 0
      %3308 = vmatpush2.bf16.msra.mxu0 0
      %3309 = vmatprep.subr.bf16.mxu0 0
      %3310 = vmatpush2.bf16.msra.mxu0 0
      %3311 = vmatprep.mubr.bf16.mxu0 0
      %3312 = vmatmul.mubr.bf16.gmra.mxu0 %v3274
      %v3313 = vpop.f32.mrf.mxu0
      %v3314 = vadd.f32 0.0, %v3313
      %v3315 = vpop.f32.mrf.mxu0
      %v3316 = vpop.f32.mrf.mxu0
      %v3317 = vadd.f32 0.0, %v3316
      %v3318 = vpop.f32.mrf.mxu0
      %3319 = vmatprep.mubr.bf16.mxu0 0
      %3320 = vmatmul.mubr.bf16.gmra.mxu0 %v3277
      %v3321 = vpop.f32.mrf.mxu0
      %v3322 = vadd.f32 0.0, %v3321
      %v3323 = vpop.f32.mrf.mxu0
      %v3324 = vpop.f32.mrf.mxu0
      %v3325 = vadd.f32 0.0, %v3324
      %v3326 = vpop.f32.mrf.mxu0
      %3327 = vdwg.mxu0
      %v3328 = vpack.c.bf16 %v3317, %v3314
      %v3329 = vpack.c.bf16 %v3325, %v3322
      %v3330 = vld [vmem:[%s6 + $0xc0] sm:$0xf]
      %v3331 = vld [vmem:[%s6 + $0xc4] sm:$0xf]
      %v3332 = vld [vmem:[%s6 + $0xc8] sm:$0xf]
      %v3333 = vld [vmem:[%s6 + $0xcc] sm:$0xf]
      %v3334 = vld [vmem:[%s6 + $0xd0] sm:$0xf]
      %v3335 = vld [vmem:[%s6 + $0xd4] sm:$0xf]
      %v3336 = vld [vmem:[%s6 + $0xd8] sm:$0xf]
      %v3337 = vld [vmem:[%s6 + $0xdc] sm:$0xf]
      %v3346 = vunpack.c.l.b16 %v3330
      %v3347 = vunpack.c.l.b16 %v3331
      %v3348 = vunpack.c.l.b16 %v3332
      %v3349 = vunpack.c.l.b16 %v3333
      %v3350 = vunpack.c.l.b16 %v3334
      %v3351 = vunpack.c.l.b16 %v3335
      %v3352 = vunpack.c.l.b16 %v3336
      %v3353 = vunpack.c.l.b16 %v3337
      %v3354 = vpack.c.b16 %v3347, %v3346
      %v3355 = vpack.c.b16 %v3349, %v3348
      %v3356 = vpack.c.b16 %v3351, %v3350
      %v3357 = vpack.c.b16 %v3353, %v3352
      %v3363 = vsel %vm497, %v3328, 0
      %v3366 = vsel %vm497, %v3329, 0
      %3368 = vmatprep.subr.bf16.mxu0 0
      %3369 = vmatpush1.bf16.msra.mxu0 0
      %3370 = vmatprep.subr.bf16.mxu0 0
      %3371 = vmatpush1.bf16.msra.mxu0 0
      %3372 = vmatprep.subr.bf16.mxu0 0
      %3373 = vmatpush1.bf16.msra.mxu0 0
      %3374 = vmatprep.subr.bf16.mxu0 0
      %3375 = vmatpush1.bf16.msra.mxu0 0
      %3376 = vmatprep.subr.bf16.mxu0 0
      %3377 = vmatpush1.bf16.msra.mxu0 %v3357
      %3378 = vmatprep.subr.bf16.mxu0 0
      %3379 = vmatpush1.bf16.msra.mxu0 %v3356
      %3380 = vmatprep.subr.bf16.mxu0 0
      %3381 = vmatpush1.bf16.msra.mxu0 %v3355
      %3382 = vmatprep.subr.bf16.mxu0 0
      %3383 = vmatpush1.bf16.msra.mxu0 %v3354
      %3384 = vmatprep.subr.bf16.mxu0 0
      %3385 = vmatpush2.bf16.msra.mxu0 0
      %3386 = vmatprep.subr.bf16.mxu0 0
      %3387 = vmatpush2.bf16.msra.mxu0 0
      %3388 = vmatprep.subr.bf16.mxu0 0
      %3389 = vmatpush2.bf16.msra.mxu0 0
      %3390 = vmatprep.subr.bf16.mxu0 0
      %3391 = vmatpush2.bf16.msra.mxu0 0
      %3392 = vmatprep.subr.bf16.mxu0 0
      %3393 = vmatpush2.bf16.msra.mxu0 0
      %3394 = vmatprep.subr.bf16.mxu0 0
      %3395 = vmatpush2.bf16.msra.mxu0 0
      %3396 = vmatprep.subr.bf16.mxu0 0
      %3397 = vmatpush2.bf16.msra.mxu0 0
      %3398 = vmatprep.subr.bf16.mxu0 0
      %3399 = vmatpush2.bf16.msra.mxu0 0
      %3400 = vmatprep.mubr.bf16.mxu0 0
      %3401 = vmatmul.mubr.bf16.gmra.mxu0 %v3363
      %v3402 = vpop.f32.mrf.mxu0
      %v3403 = vadd.f32 0.0, %v3402
      %v3404 = vpop.f32.mrf.mxu0
      %v3405 = vpop.f32.mrf.mxu0
      %v3406 = vadd.f32 0.0, %v3405
      %v3407 = vpop.f32.mrf.mxu0
      %3408 = vmatprep.mubr.bf16.mxu0 0
      %3409 = vmatmul.mubr.bf16.gmra.mxu0 %v3366
      %v3410 = vpop.f32.mrf.mxu0
      %v3411 = vadd.f32 0.0, %v3410
      %v3412 = vpop.f32.mrf.mxu0
      %v3413 = vpop.f32.mrf.mxu0
      %v3414 = vadd.f32 0.0, %v3413
      %v3415 = vpop.f32.mrf.mxu0
      %3416 = vdwg.mxu0
      %v3417 = vadd.f32 %v3118, %v3403
      %v3418 = vadd.f32 %v3119, %v3406
      %v3419 = vadd.f32 %v3120, %v3411
      %v3420 = vadd.f32 %v3121, %v3414
      %3421 = vrot.lane.b32.xlu0 %v3142, 64
      %v3422 = vpop.permute.xlu0 %3421
      %3423 = vrot.lane.b32.xlu0 %v3143, 64
      %v3424 = vpop.permute.xlu0 %3423
      %3425 = vrot.lane.b32.xlu0 %v3152, 64
      %v3426 = vpop.permute.xlu0 %3425
      %3427 = vrot.lane.b32.xlu0 %v3153, 64
      %v3428 = vpop.permute.xlu0 %3427
      %v3430 = vsel %vm497, %v3422, 0
      %v3433 = vsel %vm497, %v3424, 0
      %v3436 = vsel %vm497, %v3426, 0
      %v3439 = vsel %vm497, %v3428, 0
      %3441 = vmatprep.subr.bf16.mxu0 0
      %3442 = vmatpush1.bf16.xpose.msra.mxu0 0
      %3443 = vmatprep.subr.bf16.mxu0 0
      %3444 = vmatpush1.bf16.xpose.msra.mxu0 0
      %3445 = vmatprep.subr.bf16.mxu0 0
      %3446 = vmatpush1.bf16.xpose.msra.mxu0 0
      %3447 = vmatprep.subr.bf16.mxu0 0
      %3448 = vmatpush1.bf16.xpose.msra.mxu0 0
      %3449 = vmatprep.subr.bf16.mxu0 0
      %3450 = vmatpush1.bf16.xpose.msra.mxu0 0
      %3451 = vmatprep.subr.bf16.mxu0 0
      %3452 = vmatpush1.bf16.xpose.msra.mxu0 0
      %3453 = vmatprep.subr.bf16.mxu0 0
      %3454 = vmatpush1.bf16.xpose.msra.mxu0 %v3439
      %3455 = vmatprep.subr.bf16.mxu0 0
      %3456 = vmatpush1.bf16.xpose.msra.mxu0 %v3436
      %3457 = vmatprep.subr.bf16.mxu0 0
      %3458 = vmatpush2.bf16.xpose.msra.mxu0 0
      %3459 = vmatprep.subr.bf16.mxu0 0
      %3460 = vmatpush2.bf16.xpose.msra.mxu0 0
      %3461 = vmatprep.subr.bf16.mxu0 0
      %3462 = vmatpush2.bf16.xpose.msra.mxu0 0
      %3463 = vmatprep.subr.bf16.mxu0 0
      %3464 = vmatpush2.bf16.xpose.msra.mxu0 0
      %3465 = vmatprep.subr.bf16.mxu0 0
      %3466 = vmatpush2.bf16.xpose.msra.mxu0 0
      %3467 = vmatprep.subr.bf16.mxu0 0
      %3468 = vmatpush2.bf16.xpose.msra.mxu0 0
      %3469 = vmatprep.subr.bf16.mxu0 0
      %3470 = vmatpush2.bf16.xpose.msra.mxu0 0
      %3471 = vmatprep.subr.bf16.mxu0 0
      %3472 = vmatpush2.bf16.xpose.msra.mxu0 0
      %3473 = vmatprep.mubr.bf16.mxu0 0
      %3474 = vmatmul.mubr.bf16.gmra.mxu0 %v3430
      %v3475 = vpop.f32.mrf.mxu0
      %v3476 = vadd.f32 %v315, %v3475
      %v3477 = vpop.f32.mrf.mxu0
      %v3478 = vpop.f32.mrf.mxu0
      %v3479 = vadd.f32 %v315, %v3478
      %v3480 = vpop.f32.mrf.mxu0
      %3481 = vmatprep.mubr.bf16.mxu0 0
      %3482 = vmatmul.mubr.bf16.gmra.mxu0 %v3433
      %v3483 = vpop.f32.mrf.mxu0
      %v3484 = vadd.f32 %v315, %v3483
      %v3485 = vpop.f32.mrf.mxu0
      %v3486 = vpop.f32.mrf.mxu0
      %v3487 = vadd.f32 %v315, %v3486
      %v3488 = vpop.f32.mrf.mxu0
      %3489 = vdwg.mxu0
      %v3490 = vsel %vm1518, %v3476, -inf
      %3491 = vmax.xlane.f32.xlu0 %v3490
      %v3492 = vpop.xlane.xlu0 %3491
      %v3493 = vsel %vm1518, %v3479, -inf
      %3494 = vmax.xlane.f32.xlu0 %v3493
      %v3495 = vpop.xlane.xlu0 %3494
      %v3496 = vsel %vm1518, %v3484, -inf
      %3497 = vmax.xlane.f32.xlu0 %v3496
      %v3498 = vpop.xlane.xlu0 %3497
      %v3499 = vsel %vm1518, %v3487, -inf
      %3500 = vmax.xlane.f32.xlu0 %v3499
      %v3501 = vpop.xlane.xlu0 %3500
      %v3502 = vsub.f32 %v3476, %v3492
      %v3503 = vsub.f32 %v3479, %v3495
      %v3504 = vsub.f32 %v3484, %v3498
      %v3505 = vsub.f32 %v3487, %v3501
      %v3506 = vmul.f32 %v3502, 1.442695
      %v3507 = vpow.pop %v3506
      %v3508 = vmul.f32 %v3503, 1.442695
      %v3509 = vpow.pop %v3508
      %v3510 = vmul.f32 %v3504, 1.442695
      %v3511 = vpow.pop %v3510
      %v3512 = vmul.f32 %v3505, 1.442695
      %v3513 = vpow.pop %v3512
      %v3514 = vsel %vm1518, %v3507, 0.0
      %3515 = vadd.xlane.f32.xlu0 %v3514
      %v3516 = vpop.xlane.xlu0 %3515
      %v3517 = vsel %vm1518, %v3509, 0.0
      %3518 = vadd.xlane.f32.xlu0 %v3517
      %v3519 = vpop.xlane.xlu0 %3518
      %v3520 = vsel %vm1518, %v3511, 0.0
      %3521 = vadd.xlane.f32.xlu0 %v3520
      %v3522 = vpop.xlane.xlu0 %3521
      %v3523 = vsel %vm1518, %v3513, 0.0
      %3524 = vadd.xlane.f32.xlu0 %v3523
      %v3525 = vpop.xlane.xlu0 %3524
      %v3526 = vrcp.pop %v3516
      %v3527 = vrcp.pop %v3519
      %v3528 = vrcp.pop %v3522
      %v3529 = vrcp.pop %v3525
      %v3530 = vmul.f32 %v3507, %v3526
      %v3531 = vmul.f32 %v3509, %v3527
      %v3532 = vmul.f32 %v3511, %v3528
      %v3533 = vmul.f32 %v3513, %v3529
      %v3534 = vpack.c.bf16 %v3531, %v3530
      %v3535 = vpack.c.bf16 %v3533, %v3532
      %3536 = vrot.lane.b32.xlu0 %v3269, 64
      %v3537 = vpop.permute.xlu0 %3536
      %3538 = vrot.lane.b32.xlu0 %v3270, 64
      %v3539 = vpop.permute.xlu0 %3538
      %v3543 = vsel %vm1518, %v3534, 0
      %v3546 = vsel %vm1518, %v3535, 0
      %3548 = vmatprep.subr.bf16.mxu0 0
      %3549 = vmatpush1.bf16.msra.mxu0 0
      %3550 = vmatprep.subr.bf16.mxu0 0
      %3551 = vmatpush1.bf16.msra.mxu0 0
      %3552 = vmatprep.subr.bf16.mxu0 0
      %3553 = vmatpush1.bf16.msra.mxu0 0
      %3554 = vmatprep.subr.bf16.mxu0 0
      %3555 = vmatpush1.bf16.msra.mxu0 0
      %3556 = vmatprep.subr.bf16.mxu0 0
      %3557 = vmatpush1.bf16.msra.mxu0 0
      %3558 = vmatprep.subr.bf16.mxu0 0
      %3559 = vmatpush1.bf16.msra.mxu0 0
      %3560 = vmatprep.subr.bf16.mxu0 0
      %3561 = vmatpush1.bf16.msra.mxu0 %v3539
      %3562 = vmatprep.subr.bf16.mxu0 0
      %3563 = vmatpush1.bf16.msra.mxu0 %v3537
      %3564 = vmatprep.subr.bf16.mxu0 0
      %3565 = vmatpush2.bf16.msra.mxu0 0
      %3566 = vmatprep.subr.bf16.mxu0 0
      %3567 = vmatpush2.bf16.msra.mxu0 0
      %3568 = vmatprep.subr.bf16.mxu0 0
      %3569 = vmatpush2.bf16.msra.mxu0 0
      %3570 = vmatprep.subr.bf16.mxu0 0
      %3571 = vmatpush2.bf16.msra.mxu0 0
      %3572 = vmatprep.subr.bf16.mxu0 0
      %3573 = vmatpush2.bf16.msra.mxu0 0
      %3574 = vmatprep.subr.bf16.mxu0 0
      %3575 = vmatpush2.bf16.msra.mxu0 0
      %3576 = vmatprep.subr.bf16.mxu0 0
      %3577 = vmatpush2.bf16.msra.mxu0 0
      %3578 = vmatprep.subr.bf16.mxu0 0
      %3579 = vmatpush2.bf16.msra.mxu0 0
      %3580 = vmatprep.mubr.bf16.mxu0 0
      %3581 = vmatmul.mubr.bf16.gmra.mxu0 %v3543
      %v3582 = vpop.f32.mrf.mxu0
      %v3583 = vadd.f32 0.0, %v3582
      %v3584 = vpop.f32.mrf.mxu0
      %v3585 = vpop.f32.mrf.mxu0
      %v3586 = vadd.f32 0.0, %v3585
      %v3587 = vpop.f32.mrf.mxu0
      %3588 = vmatprep.mubr.bf16.mxu0 0
      %3589 = vmatmul.mubr.bf16.gmra.mxu0 %v3546
      %v3590 = vpop.f32.mrf.mxu0
      %v3591 = vadd.f32 0.0, %v3590
      %v3592 = vpop.f32.mrf.mxu0
      %v3593 = vpop.f32.mrf.mxu0
      %v3594 = vadd.f32 0.0, %v3593
      %v3595 = vpop.f32.mrf.mxu0
      %3596 = vdwg.mxu0
      %v3597 = vpack.c.bf16 %v3586, %v3583
      %v3598 = vpack.c.bf16 %v3594, %v3591
      %v3599 = vld [vmem:[%s6 + $0xe0] sm:$0xf]
      %v3600 = vld [vmem:[%s6 + $0xe4] sm:$0xf]
      %v3601 = vld [vmem:[%s6 + $0xe8] sm:$0xf]
      %v3602 = vld [vmem:[%s6 + $0xec] sm:$0xf]
      %v3603 = vld [vmem:[%s6 + $0xf0] sm:$0xf]
      %v3604 = vld [vmem:[%s6 + $0xf4] sm:$0xf]
      %v3605 = vld [vmem:[%s6 + $0xf8] sm:$0xf]
      %v3606 = vld [vmem:[%s6 + $0xfc] sm:$0xf]
      %v3615 = vunpack.c.l.b16 %v3599
      %v3616 = vunpack.c.l.b16 %v3600
      %v3617 = vunpack.c.l.b16 %v3601
      %v3618 = vunpack.c.l.b16 %v3602
      %v3619 = vunpack.c.l.b16 %v3603
      %v3620 = vunpack.c.l.b16 %v3604
      %v3621 = vunpack.c.l.b16 %v3605
      %v3622 = vunpack.c.l.b16 %v3606
      %v3623 = vpack.c.b16 %v3616, %v3615
      %v3624 = vpack.c.b16 %v3618, %v3617
      %v3625 = vpack.c.b16 %v3620, %v3619
      %v3626 = vpack.c.b16 %v3622, %v3621
      %v3632 = vsel %vm497, %v3597, 0
      %v3635 = vsel %vm497, %v3598, 0
      %3637 = vmatprep.subr.bf16.mxu0 0
      %3638 = vmatpush1.bf16.msra.mxu0 0
      %3639 = vmatprep.subr.bf16.mxu0 0
      %3640 = vmatpush1.bf16.msra.mxu0 0
      %3641 = vmatprep.subr.bf16.mxu0 0
      %3642 = vmatpush1.bf16.msra.mxu0 0
      %3643 = vmatprep.subr.bf16.mxu0 0
      %3644 = vmatpush1.bf16.msra.mxu0 0
      %3645 = vmatprep.subr.bf16.mxu0 0
      %3646 = vmatpush1.bf16.msra.mxu0 %v3626
      %3647 = vmatprep.subr.bf16.mxu0 0
      %3648 = vmatpush1.bf16.msra.mxu0 %v3625
      %3649 = vmatprep.subr.bf16.mxu0 0
      %3650 = vmatpush1.bf16.msra.mxu0 %v3624
      %3651 = vmatprep.subr.bf16.mxu0 0
      %3652 = vmatpush1.bf16.msra.mxu0 %v3623
      %3653 = vmatprep.subr.bf16.mxu0 0
      %3654 = vmatpush2.bf16.msra.mxu0 0
      %3655 = vmatprep.subr.bf16.mxu0 0
      %3656 = vmatpush2.bf16.msra.mxu0 0
      %3657 = vmatprep.subr.bf16.mxu0 0
      %3658 = vmatpush2.bf16.msra.mxu0 0
      %3659 = vmatprep.subr.bf16.mxu0 0
      %3660 = vmatpush2.bf16.msra.mxu0 0
      %3661 = vmatprep.subr.bf16.mxu0 0
      %3662 = vmatpush2.bf16.msra.mxu0 0
      %3663 = vmatprep.subr.bf16.mxu0 0
      %3664 = vmatpush2.bf16.msra.mxu0 0
      %3665 = vmatprep.subr.bf16.mxu0 0
      %3666 = vmatpush2.bf16.msra.mxu0 0
      %3667 = vmatprep.subr.bf16.mxu0 0
      %3668 = vmatpush2.bf16.msra.mxu0 0
      %3669 = vmatprep.mubr.bf16.mxu0 0
      %3670 = vmatmul.mubr.bf16.gmra.mxu0 %v3632
      %v3671 = vpop.f32.mrf.mxu0
      %v3672 = vadd.f32 0.0, %v3671
      %v3673 = vpop.f32.mrf.mxu0
      %v3674 = vpop.f32.mrf.mxu0
      %v3675 = vadd.f32 0.0, %v3674
      %v3676 = vpop.f32.mrf.mxu0
      %3677 = vmatprep.mubr.bf16.mxu0 0
      %3678 = vmatmul.mubr.bf16.gmra.mxu0 %v3635
      %v3679 = vpop.f32.mrf.mxu0
      %v3680 = vadd.f32 0.0, %v3679
      %v3681 = vpop.f32.mrf.mxu0
      %v3682 = vpop.f32.mrf.mxu0
      %v3683 = vadd.f32 0.0, %v3682
      %v3684 = vpop.f32.mrf.mxu0
      %3685 = vdwg.mxu0
      %v3686 = vadd.f32 %v3417, %v3672
      %v3687 = vadd.f32 %v3418, %v3675
      %v3688 = vadd.f32 %v3419, %v3680
      %v3689 = vadd.f32 %v3420, %v3683
      %v3690 = vlaneseq
      %v3691 = vshrl.u32 %v3690, 7
      %v3692 = vsub.s32 7, %v3691
      %v3693 = vrot.slane %v310, %v3692
      %v3694 = vadd.f32 %v3686, %v3693
      %v3695 = vadd.f32 %v3687, %v3693
      %v3696 = vadd.f32 %v3688, %v3693
      %v3697 = vadd.f32 %v3689, %v3693
      %v3698 = vadd.f32 %v3694, %v571
      %v3699 = vadd.f32 %v3695, %v572
      %v3700 = vadd.f32 %v3696, %v573
      %v3701 = vadd.f32 %v3697, %v574
      %v3702 = vsel %vm497, %v3698, 0.0
      %3703 = vadd.xlane.f32.xlu0 %v3702
      %v3704 = vpop.xlane.xlu0 %3703
      %v3705 = vsel %vm497, %v3699, 0.0
      %3706 = vadd.xlane.f32.xlu0 %v3705
      %v3707 = vpop.xlane.xlu0 %3706
      %v3708 = vsel %vm497, %v3700, 0.0
      %3709 = vadd.xlane.f32.xlu0 %v3708
      %v3710 = vpop.xlane.xlu0 %3709
      %v3711 = vsel %vm497, %v3701, 0.0
      %3712 = vadd.xlane.f32.xlu0 %v3711
      %v3713 = vpop.xlane.xlu0 %3712
      %v3714 = vmul.f32 %v3704, %v510
      %v3715 = vmul.f32 %v3707, %v510
      %v3716 = vmul.f32 %v3710, %v510
      %v3717 = vmul.f32 %v3713, %v510
      %v3718 = vsub.f32 %v3698, %v3714
      %v3719 = vsub.f32 %v3699, %v3715
      %v3720 = vsub.f32 %v3700, %v3716
      %v3721 = vsub.f32 %v3701, %v3717
      %v3722 = vmul.f32 %v3718, %v3718
      %v3723 = vmul.f32 %v3719, %v3719
      %v3724 = vmul.f32 %v3720, %v3720
      %v3725 = vmul.f32 %v3721, %v3721
      %v3726 = vsel %vm497, %v3722, 0.0
      %3727 = vadd.xlane.f32.xlu0 %v3726
      %v3728 = vpop.xlane.xlu0 %3727
      %v3729 = vsel %vm497, %v3723, 0.0
      %3730 = vadd.xlane.f32.xlu0 %v3729
      %v3731 = vpop.xlane.xlu0 %3730
      %v3732 = vsel %vm497, %v3724, 0.0
      %3733 = vadd.xlane.f32.xlu0 %v3732
      %v3734 = vpop.xlane.xlu0 %3733
      %v3735 = vsel %vm497, %v3725, 0.0
      %3736 = vadd.xlane.f32.xlu0 %v3735
      %v3737 = vpop.xlane.xlu0 %3736
      %v3738 = vmul.f32 %v3728, %v510
      %v3739 = vmul.f32 %v3731, %v510
      %v3740 = vmul.f32 %v3734, %v510
      %v3741 = vmul.f32 %v3737, %v510
      %v3742 = vadd.f32 %v3738, 1e-05
      %v3743 = vadd.f32 %v3739, 1e-05
      %v3744 = vadd.f32 %v3740, 1e-05
      %v3745 = vadd.f32 %v3741, 1e-05
      %v3746 = vrsqrt.pop %v3742
      %v3747 = vrsqrt.pop %v3743
      %v3748 = vrsqrt.pop %v3744
      %v3749 = vrsqrt.pop %v3745
      %v3750 = vmul.f32 %v3718, %v3746
      %v3751 = vmul.f32 %v3719, %v3747
      %v3752 = vmul.f32 %v3720, %v3748
      %v3753 = vmul.f32 %v3721, %v3749
      %v3754 = vlaneseq
      %v3755 = vshrl.u32 %v3754, 7
      %v3756 = vsub.s32 0, %v3755
      %v3757 = vrot.slane %v311, %v3756
      %v3758 = vmul.f32 %v3750, %v3757
      %v3759 = vmul.f32 %v3751, %v3757
      %v3760 = vmul.f32 %v3752, %v3757
      %v3761 = vmul.f32 %v3753, %v3757
      %v3762 = vlaneseq
      %v3763 = vshrl.u32 %v3762, 7
      %v3764 = vsub.s32 1, %v3763
      %v3765 = vrot.slane %v311, %v3764
      %v3766 = vadd.f32 %v3758, %v3765
      %v3767 = vadd.f32 %v3759, %v3765
      %v3768 = vadd.f32 %v3760, %v3765
      %v3769 = vadd.f32 %v3761, %v3765
      %v3770 = vpack.c.bf16 %v3767, %v3766
      %v3771 = vpack.c.bf16 %v3769, %v3768
      %v3772 = vld [vmem:[%s7] sm:$0xf]
      %v3773 = vld [vmem:[%s7 + $0x4] sm:$0xf]
      %v3774 = vld [vmem:[%s7 + $0x8] sm:$0xf]
      %v3775 = vld [vmem:[%s7 + $0xc] sm:$0xf]
      %v3776 = vld [vmem:[%s7 + $0x10] sm:$0xf]
      %v3777 = vld [vmem:[%s7 + $0x14] sm:$0xf]
      %v3778 = vld [vmem:[%s7 + $0x18] sm:$0xf]
      %v3779 = vld [vmem:[%s7 + $0x1c] sm:$0xf]
      %v3780 = vlaneseq
      %v3781 = vshrl.u32 %v3780, 7
      %v3782 = vsub.s32 2, %v3781
      %v3783 = vrot.slane %v311, %v3782
      %v3792 = vunpack.c.l.b16 %v3772
      %v3793 = vunpack.c.l.b16 %v3773
      %v3794 = vunpack.c.l.b16 %v3774
      %v3795 = vunpack.c.l.b16 %v3775
      %v3796 = vunpack.c.l.b16 %v3776
      %v3797 = vunpack.c.l.b16 %v3777
      %v3798 = vunpack.c.l.b16 %v3778
      %v3799 = vunpack.c.l.b16 %v3779
      %v3800 = vpack.c.b16 %v3793, %v3792
      %v3801 = vpack.c.b16 %v3795, %v3794
      %v3802 = vpack.c.b16 %v3797, %v3796
      %v3803 = vpack.c.b16 %v3799, %v3798
      %v3809 = vsel %vm497, %v3770, 0
      %v3812 = vsel %vm497, %v3771, 0
      %3814 = vmatprep.subr.bf16.mxu0 0
      %3815 = vmatpush1.bf16.msra.mxu0 0
      %3816 = vmatprep.subr.bf16.mxu0 0
      %3817 = vmatpush1.bf16.msra.mxu0 0
      %3818 = vmatprep.subr.bf16.mxu0 0
      %3819 = vmatpush1.bf16.msra.mxu0 0
      %3820 = vmatprep.subr.bf16.mxu0 0
      %3821 = vmatpush1.bf16.msra.mxu0 0
      %3822 = vmatprep.subr.bf16.mxu0 0
      %3823 = vmatpush1.bf16.msra.mxu0 %v3803
      %3824 = vmatprep.subr.bf16.mxu0 0
      %3825 = vmatpush1.bf16.msra.mxu0 %v3802
      %3826 = vmatprep.subr.bf16.mxu0 0
      %3827 = vmatpush1.bf16.msra.mxu0 %v3801
      %3828 = vmatprep.subr.bf16.mxu0 0
      %3829 = vmatpush1.bf16.msra.mxu0 %v3800
      %3830 = vmatprep.subr.bf16.mxu0 0
      %3831 = vmatpush2.bf16.msra.mxu0 0
      %3832 = vmatprep.subr.bf16.mxu0 0
      %3833 = vmatpush2.bf16.msra.mxu0 0
      %3834 = vmatprep.subr.bf16.mxu0 0
      %3835 = vmatpush2.bf16.msra.mxu0 0
      %3836 = vmatprep.subr.bf16.mxu0 0
      %3837 = vmatpush2.bf16.msra.mxu0 0
      %3838 = vmatprep.subr.bf16.mxu0 0
      %3839 = vmatpush2.bf16.msra.mxu0 0
      %3840 = vmatprep.subr.bf16.mxu0 0
      %3841 = vmatpush2.bf16.msra.mxu0 0
      %3842 = vmatprep.subr.bf16.mxu0 0
      %3843 = vmatpush2.bf16.msra.mxu0 0
      %3844 = vmatprep.subr.bf16.mxu0 0
      %3845 = vmatpush2.bf16.msra.mxu0 0
      %3846 = vmatprep.mubr.bf16.mxu0 0
      %3847 = vmatmul.mubr.bf16.gmra.mxu0 %v3809
      %v3848 = vpop.f32.mrf.mxu0
      %v3849 = vadd.f32 %v3783, %v3848
      %v3850 = vpop.f32.mrf.mxu0
      %v3851 = vpop.f32.mrf.mxu0
      %v3852 = vadd.f32 %v3783, %v3851
      %v3853 = vpop.f32.mrf.mxu0
      %3854 = vmatprep.mubr.bf16.mxu0 0
      %3855 = vmatmul.mubr.bf16.gmra.mxu0 %v3812
      %v3856 = vpop.f32.mrf.mxu0
      %v3857 = vadd.f32 %v3783, %v3856
      %v3858 = vpop.f32.mrf.mxu0
      %v3859 = vpop.f32.mrf.mxu0
      %v3860 = vadd.f32 %v3783, %v3859
      %v3861 = vpop.f32.mrf.mxu0
      %3862 = vdwg.mxu0
      %v3863 = vmax.f32 %v3849, 0.0
      %v3864 = vmax.f32 %v3852, 0.0
      %v3865 = vmax.f32 %v3857, 0.0
      %v3866 = vmax.f32 %v3860, 0.0
      %v3867 = vpack.c.bf16 %v3864, %v3863
      %v3868 = vpack.c.bf16 %v3866, %v3865
      %v3869 = vld [vmem:[%s7 + $0x20] sm:$0xf]
      %v3870 = vld [vmem:[%s7 + $0x24] sm:$0xf]
      %v3871 = vld [vmem:[%s7 + $0x28] sm:$0xf]
      %v3872 = vld [vmem:[%s7 + $0x2c] sm:$0xf]
      %v3873 = vld [vmem:[%s7 + $0x30] sm:$0xf]
      %v3874 = vld [vmem:[%s7 + $0x34] sm:$0xf]
      %v3875 = vld [vmem:[%s7 + $0x38] sm:$0xf]
      %v3876 = vld [vmem:[%s7 + $0x3c] sm:$0xf]
      %v3877 = vlaneseq
      %v3878 = vshrl.u32 %v3877, 7
      %v3879 = vsub.s32 3, %v3878
      %v3880 = vrot.slane %v311, %v3879
      %v3889 = vunpack.c.l.b16 %v3869
      %v3890 = vunpack.c.l.b16 %v3870
      %v3891 = vunpack.c.l.b16 %v3871
      %v3892 = vunpack.c.l.b16 %v3872
      %v3893 = vunpack.c.l.b16 %v3873
      %v3894 = vunpack.c.l.b16 %v3874
      %v3895 = vunpack.c.l.b16 %v3875
      %v3896 = vunpack.c.l.b16 %v3876
      %v3897 = vpack.c.b16 %v3890, %v3889
      %v3898 = vpack.c.b16 %v3892, %v3891
      %v3899 = vpack.c.b16 %v3894, %v3893
      %v3900 = vpack.c.b16 %v3896, %v3895
      %v3906 = vsel %vm497, %v3867, 0
      %v3909 = vsel %vm497, %v3868, 0
      %3911 = vmatprep.subr.bf16.mxu0 0
      %3912 = vmatpush1.bf16.msra.mxu0 0
      %3913 = vmatprep.subr.bf16.mxu0 0
      %3914 = vmatpush1.bf16.msra.mxu0 0
      %3915 = vmatprep.subr.bf16.mxu0 0
      %3916 = vmatpush1.bf16.msra.mxu0 0
      %3917 = vmatprep.subr.bf16.mxu0 0
      %3918 = vmatpush1.bf16.msra.mxu0 0
      %3919 = vmatprep.subr.bf16.mxu0 0
      %3920 = vmatpush1.bf16.msra.mxu0 %v3900
      %3921 = vmatprep.subr.bf16.mxu0 0
      %3922 = vmatpush1.bf16.msra.mxu0 %v3899
      %3923 = vmatprep.subr.bf16.mxu0 0
      %3924 = vmatpush1.bf16.msra.mxu0 %v3898
      %3925 = vmatprep.subr.bf16.mxu0 0
      %3926 = vmatpush1.bf16.msra.mxu0 %v3897
      %3927 = vmatprep.subr.bf16.mxu0 0
      %3928 = vmatpush2.bf16.msra.mxu0 0
      %3929 = vmatprep.subr.bf16.mxu0 0
      %3930 = vmatpush2.bf16.msra.mxu0 0
      %3931 = vmatprep.subr.bf16.mxu0 0
      %3932 = vmatpush2.bf16.msra.mxu0 0
      %3933 = vmatprep.subr.bf16.mxu0 0
      %3934 = vmatpush2.bf16.msra.mxu0 0
      %3935 = vmatprep.subr.bf16.mxu0 0
      %3936 = vmatpush2.bf16.msra.mxu0 0
      %3937 = vmatprep.subr.bf16.mxu0 0
      %3938 = vmatpush2.bf16.msra.mxu0 0
      %3939 = vmatprep.subr.bf16.mxu0 0
      %3940 = vmatpush2.bf16.msra.mxu0 0
      %3941 = vmatprep.subr.bf16.mxu0 0
      %3942 = vmatpush2.bf16.msra.mxu0 0
      %3943 = vmatprep.mubr.bf16.mxu0 0
      %3944 = vmatmul.mubr.bf16.gmra.mxu0 %v3906
      %v3945 = vpop.f32.mrf.mxu0
      %v3946 = vadd.f32 %v3880, %v3945
      %v3947 = vpop.f32.mrf.mxu0
      %v3948 = vpop.f32.mrf.mxu0
      %v3949 = vadd.f32 %v3880, %v3948
      %v3950 = vpop.f32.mrf.mxu0
      %3951 = vmatprep.mubr.bf16.mxu0 0
      %3952 = vmatmul.mubr.bf16.gmra.mxu0 %v3909
      %v3953 = vpop.f32.mrf.mxu0
      %v3954 = vadd.f32 %v3880, %v3953
      %v3955 = vpop.f32.mrf.mxu0
      %v3956 = vpop.f32.mrf.mxu0
      %v3957 = vadd.f32 %v3880, %v3956
      %v3958 = vpop.f32.mrf.mxu0
      %3959 = vdwg.mxu0
      %v3960 = vadd.f32 %v3946, %v3698
      %v3961 = vadd.f32 %v3949, %v3699
      %v3962 = vadd.f32 %v3954, %v3700
      %v3963 = vadd.f32 %v3957, %v3701
      %v3964 = vpack.c.bf16 %v3961, %v3960
      %v3965 = vpack.c.bf16 %v3963, %v3962
      %v3966 = vld [vmem:[%s5 + $0x180] sm:$0xff]
      %v3967 = vld [vmem:[%s5 + $0x188] sm:$0xff]
      %v3968 = vld [vmem:[%s5 + $0x190] sm:$0xff]
      %v3969 = vld [vmem:[%s5 + $0x198] sm:$0xff]
      %v3970 = vld [vmem:[%s5 + $0x1a0] sm:$0xff]
      %v3971 = vld [vmem:[%s5 + $0x1a8] sm:$0xff]
      %v3972 = vld [vmem:[%s5 + $0x1b0] sm:$0xff]
      %v3973 = vld [vmem:[%s5 + $0x1b8] sm:$0xff]
      %v3974 = vld [vmem:[%s5 + $0x1c0] sm:$0xff]
      %v3975 = vld [vmem:[%s5 + $0x1c8] sm:$0xff]
      %v3976 = vld [vmem:[%s5 + $0x1d0] sm:$0xff]
      %v3977 = vld [vmem:[%s5 + $0x1d8] sm:$0xff]
      %v3978 = vld [vmem:[%s5 + $0x1e0] sm:$0xff]
      %v3979 = vld [vmem:[%s5 + $0x1e8] sm:$0xff]
      %v3980 = vld [vmem:[%s5 + $0x1f0] sm:$0xff]
      %v3981 = vld [vmem:[%s5 + $0x1f8] sm:$0xff]
      %v3982 = vld [vmem:[%s5 + $0x200] sm:$0xff]
      %v3983 = vld [vmem:[%s5 + $0x208] sm:$0xff]
      %v3984 = vld [vmem:[%s5 + $0x210] sm:$0xff]
      %v3985 = vld [vmem:[%s5 + $0x218] sm:$0xff]
      %v3986 = vld [vmem:[%s5 + $0x220] sm:$0xff]
      %v3987 = vld [vmem:[%s5 + $0x228] sm:$0xff]
      %v3988 = vld [vmem:[%s5 + $0x230] sm:$0xff]
      %v3989 = vld [vmem:[%s5 + $0x238] sm:$0xff]
      %v3990 = vld [vmem:[%s5 + $0x240] sm:$0xff]
      %v3991 = vld [vmem:[%s5 + $0x248] sm:$0xff]
      %v3992 = vld [vmem:[%s5 + $0x250] sm:$0xff]
      %v3993 = vld [vmem:[%s5 + $0x258] sm:$0xff]
      %v3994 = vld [vmem:[%s5 + $0x260] sm:$0xff]
      %v3995 = vld [vmem:[%s5 + $0x268] sm:$0xff]
      %v3996 = vld [vmem:[%s5 + $0x270] sm:$0xff]
      %v3997 = vld [vmem:[%s5 + $0x278] sm:$0xff]
      %v3998 = vld [vmem:[%s5 + $0x280] sm:$0xff]
      %v3999 = vld [vmem:[%s5 + $0x288] sm:$0xff]
      %v4000 = vld [vmem:[%s5 + $0x290] sm:$0xff]
      %v4001 = vld [vmem:[%s5 + $0x298] sm:$0xff]
      %v4002 = vld [vmem:[%s5 + $0x2a0] sm:$0xff]
      %v4003 = vld [vmem:[%s5 + $0x2a8] sm:$0xff]
      %v4004 = vld [vmem:[%s5 + $0x2b0] sm:$0xff]
      %v4005 = vld [vmem:[%s5 + $0x2b8] sm:$0xff]
      %v4006 = vld [vmem:[%s5 + $0x2c0] sm:$0xff]
      %v4007 = vld [vmem:[%s5 + $0x2c8] sm:$0xff]
      %v4008 = vld [vmem:[%s5 + $0x2d0] sm:$0xff]
      %v4009 = vld [vmem:[%s5 + $0x2d8] sm:$0xff]
      %v4010 = vld [vmem:[%s5 + $0x2e0] sm:$0xff]
      %v4011 = vld [vmem:[%s5 + $0x2e8] sm:$0xff]
      %v4012 = vld [vmem:[%s5 + $0x2f0] sm:$0xff]
      %v4013 = vld [vmem:[%s5 + $0x2f8] sm:$0xff]
      %v4014 = vld [vmem:[%s3] sm:$0xff]
      %v4015 = vld [vmem:[%s3 + $0x8] sm:$0xf]
      %v4018 = vlaneseq
      %v4019 = vshrl.u32 %v4018, 7
      %v4020 = vsub.s32 0, %v4019
      %v4021 = vrot.slane %v4014, %v4020
      %v4022 = vlaneseq
      %v4023 = vshrl.u32 %v4022, 7
      %v4024 = vsub.s32 1, %v4023
      %v4025 = vrot.slane %v4014, %v4024
      %v4026 = vlaneseq
      %v4027 = vshrl.u32 %v4026, 7
      %v4028 = vsub.s32 2, %v4027
      %v4029 = vrot.slane %v4014, %v4028
      %v4030 = vlaneseq
      %v4031 = vshrl.u32 %v4030, 7
      %v4032 = vsub.s32 3, %v4031
      %v4033 = vrot.slane %v4014, %v4032
      %v4034 = vlaneseq
      %v4035 = vshrl.u32 %v4034, 7
      %v4036 = vsub.s32 4, %v4035
      %v4037 = vrot.slane %v4014, %v4036
      %v4038 = vlaneseq
      %v4039 = vshrl.u32 %v4038, 7
      %v4040 = vsub.s32 5, %v4039
      %v4041 = vrot.slane %v4014, %v4040
      %v4042 = vlaneseq
      %v4043 = vshrl.u32 %v4042, 7
      %v4044 = vsub.s32 6, %v4043
      %v4045 = vrot.slane %v4014, %v4044
      %v4046 = vlaneseq
      %v4047 = vshrl.u32 %v4046, 7
      %v4048 = vsub.s32 7, %v4047
      %v4049 = vrot.slane %v4014, %v4048
      %v4050 = vlaneseq
      %v4051 = vshrl.u32 %v4050, 7
      %v4052 = vsub.s32 0, %v4051
      %v4053 = vrot.slane %v4015, %v4052
      %v4054 = vlaneseq
      %v4055 = vshrl.u32 %v4054, 7
      %v4056 = vsub.s32 1, %v4055
      %v4057 = vrot.slane %v4015, %v4056
      %v4058 = vlaneseq
      %v4059 = vshrl.u32 %v4058, 7
      %v4060 = vsub.s32 2, %v4059
      %v4061 = vrot.slane %v4015, %v4060
      %v4062 = vlaneseq
      %v4063 = vshrl.u32 %v4062, 7
      %v4064 = vsub.s32 3, %v4063
      %v4065 = vrot.slane %v4015, %v4064
      %v4126 = vunpack.c.l.b16 %v3966
      %v4127 = vunpack.c.h.b16 %v3966
      %v4128 = vunpack.c.l.b16 %v3967
      %v4129 = vunpack.c.h.b16 %v3967
      %v4130 = vunpack.c.l.b16 %v3968
      %v4131 = vunpack.c.h.b16 %v3968
      %v4132 = vunpack.c.l.b16 %v3969
      %v4133 = vunpack.c.h.b16 %v3969
      %v4134 = vunpack.c.l.b16 %v3970
      %v4135 = vunpack.c.h.b16 %v3970
      %v4136 = vunpack.c.l.b16 %v3971
      %v4137 = vunpack.c.h.b16 %v3971
      %v4138 = vunpack.c.l.b16 %v3972
      %v4139 = vunpack.c.h.b16 %v3972
      %v4140 = vunpack.c.l.b16 %v3973
      %v4141 = vunpack.c.h.b16 %v3973
      %v4142 = vunpack.c.l.b16 %v3974
      %v4143 = vunpack.c.h.b16 %v3974
      %v4144 = vunpack.c.l.b16 %v3975
      %v4145 = vunpack.c.h.b16 %v3975
      %v4146 = vunpack.c.l.b16 %v3976
      %v4147 = vunpack.c.h.b16 %v3976
      %v4148 = vunpack.c.l.b16 %v3977
      %v4149 = vunpack.c.h.b16 %v3977
      %v4150 = vunpack.c.l.b16 %v3978
      %v4151 = vunpack.c.h.b16 %v3978
      %v4152 = vunpack.c.l.b16 %v3979
      %v4153 = vunpack.c.h.b16 %v3979
      %v4154 = vunpack.c.l.b16 %v3980
      %v4155 = vunpack.c.h.b16 %v3980
      %v4156 = vunpack.c.l.b16 %v3981
      %v4157 = vunpack.c.h.b16 %v3981
      %v4158 = vunpack.c.l.b16 %v3982
      %v4159 = vunpack.c.h.b16 %v3982
      %v4160 = vunpack.c.l.b16 %v3983
      %v4161 = vunpack.c.h.b16 %v3983
      %v4162 = vunpack.c.l.b16 %v3984
      %v4163 = vunpack.c.h.b16 %v3984
      %v4164 = vunpack.c.l.b16 %v3985
      %v4165 = vunpack.c.h.b16 %v3985
      %v4166 = vunpack.c.l.b16 %v3986
      %v4167 = vunpack.c.h.b16 %v3986
      %v4168 = vunpack.c.l.b16 %v3987
      %v4169 = vunpack.c.h.b16 %v3987
      %v4170 = vunpack.c.l.b16 %v3988
      %v4171 = vunpack.c.h.b16 %v3988
      %v4172 = vunpack.c.l.b16 %v3989
      %v4173 = vunpack.c.h.b16 %v3989
      %v4174 = vunpack.c.l.b16 %v3990
      %v4175 = vunpack.c.h.b16 %v3990
      %v4176 = vunpack.c.l.b16 %v3991
      %v4177 = vunpack.c.h.b16 %v3991
      %v4178 = vunpack.c.l.b16 %v3992
      %v4179 = vunpack.c.h.b16 %v3992
      %v4180 = vunpack.c.l.b16 %v3993
      %v4181 = vunpack.c.h.b16 %v3993
      %v4182 = vunpack.c.l.b16 %v3994
      %v4183 = vunpack.c.h.b16 %v3994
      %v4184 = vunpack.c.l.b16 %v3995
      %v4185 = vunpack.c.h.b16 %v3995
      %v4186 = vunpack.c.l.b16 %v3996
      %v4187 = vunpack.c.h.b16 %v3996
      %v4188 = vunpack.c.l.b16 %v3997
      %v4189 = vunpack.c.h.b16 %v3997
      %v4190 = vunpack.c.l.b16 %v3998
      %v4191 = vunpack.c.h.b16 %v3998
      %v4192 = vunpack.c.l.b16 %v3999
      %v4193 = vunpack.c.h.b16 %v3999
      %v4194 = vunpack.c.l.b16 %v4000
      %v4195 = vunpack.c.h.b16 %v4000
      %v4196 = vunpack.c.l.b16 %v4001
      %v4197 = vunpack.c.h.b16 %v4001
      %v4198 = vunpack.c.l.b16 %v4002
      %v4199 = vunpack.c.h.b16 %v4002
      %v4200 = vunpack.c.l.b16 %v4003
      %v4201 = vunpack.c.h.b16 %v4003
      %v4202 = vunpack.c.l.b16 %v4004
      %v4203 = vunpack.c.h.b16 %v4004
      %v4204 = vunpack.c.l.b16 %v4005
      %v4205 = vunpack.c.h.b16 %v4005
      %v4206 = vunpack.c.l.b16 %v4006
      %v4207 = vunpack.c.h.b16 %v4006
      %v4208 = vunpack.c.l.b16 %v4007
      %v4209 = vunpack.c.h.b16 %v4007
      %v4210 = vunpack.c.l.b16 %v4008
      %v4211 = vunpack.c.h.b16 %v4008
      %v4212 = vunpack.c.l.b16 %v4009
      %v4213 = vunpack.c.h.b16 %v4009
      %v4214 = vunpack.c.l.b16 %v4010
      %v4215 = vunpack.c.h.b16 %v4010
      %v4216 = vunpack.c.l.b16 %v4011
      %v4217 = vunpack.c.h.b16 %v4011
      %v4218 = vunpack.c.l.b16 %v4012
      %v4219 = vunpack.c.h.b16 %v4012
      %v4220 = vunpack.c.l.b16 %v4013
      %v4221 = vunpack.c.h.b16 %v4013
      %v4222 = vpack.c.b16 %v4138, %v4126
      %v4223 = vpack.c.b16 %v4139, %v4127
      %v4224 = vpack.c.b16 %v4140, %v4128
      %v4225 = vpack.c.b16 %v4141, %v4129
      %v4226 = vpack.c.b16 %v4142, %v4130
      %v4227 = vpack.c.b16 %v4143, %v4131
      %v4228 = vpack.c.b16 %v4144, %v4132
      %v4229 = vpack.c.b16 %v4145, %v4133
      %v4230 = vpack.c.b16 %v4146, %v4134
      %v4231 = vpack.c.b16 %v4147, %v4135
      %v4232 = vpack.c.b16 %v4148, %v4136
      %v4233 = vpack.c.b16 %v4149, %v4137
      %v4234 = vpack.c.b16 %v4162, %v4150
      %v4235 = vpack.c.b16 %v4163, %v4151
      %v4236 = vpack.c.b16 %v4164, %v4152
      %v4237 = vpack.c.b16 %v4165, %v4153
      %v4238 = vpack.c.b16 %v4166, %v4154
      %v4239 = vpack.c.b16 %v4167, %v4155
      %v4240 = vpack.c.b16 %v4168, %v4156
      %v4241 = vpack.c.b16 %v4169, %v4157
      %v4242 = vpack.c.b16 %v4170, %v4158
      %v4243 = vpack.c.b16 %v4171, %v4159
      %v4244 = vpack.c.b16 %v4172, %v4160
      %v4245 = vpack.c.b16 %v4173, %v4161
      %v4246 = vpack.c.b16 %v4186, %v4174
      %v4247 = vpack.c.b16 %v4187, %v4175
      %v4248 = vpack.c.b16 %v4188, %v4176
      %v4249 = vpack.c.b16 %v4189, %v4177
      %v4250 = vpack.c.b16 %v4190, %v4178
      %v4251 = vpack.c.b16 %v4191, %v4179
      %v4252 = vpack.c.b16 %v4192, %v4180
      %v4253 = vpack.c.b16 %v4193, %v4181
      %v4254 = vpack.c.b16 %v4194, %v4182
      %v4255 = vpack.c.b16 %v4195, %v4183
      %v4256 = vpack.c.b16 %v4196, %v4184
      %v4257 = vpack.c.b16 %v4197, %v4185
      %v4258 = vpack.c.b16 %v4210, %v4198
      %v4259 = vpack.c.b16 %v4211, %v4199
      %v4260 = vpack.c.b16 %v4212, %v4200
      %v4261 = vpack.c.b16 %v4213, %v4201
      %v4262 = vpack.c.b16 %v4214, %v4202
      %v4263 = vpack.c.b16 %v4215, %v4203
      %v4264 = vpack.c.b16 %v4216, %v4204
      %v4265 = vpack.c.b16 %v4217, %v4205
      %v4266 = vpack.c.b16 %v4218, %v4206
      %v4267 = vpack.c.b16 %v4219, %v4207
      %v4268 = vpack.c.b16 %v4220, %v4208
      %v4269 = vpack.c.b16 %v4221, %v4209
      %v4319 = vsel %vm497, %v3964, 0
      %v4322 = vsel %vm497, %v3965, 0
      %4324 = vmatprep.subr.bf16.mxu0 0
      %4325 = vmatpush1.bf16.msra.mxu0 0
      %4326 = vmatprep.subr.bf16.mxu0 0
      %4327 = vmatpush1.bf16.msra.mxu0 0
      %4328 = vmatprep.subr.bf16.mxu0 0
      %4329 = vmatpush1.bf16.msra.mxu0 0
      %4330 = vmatprep.subr.bf16.mxu0 0
      %4331 = vmatpush1.bf16.msra.mxu0 0
      %4332 = vmatprep.subr.bf16.mxu0 %v4259
      %4333 = vmatpush1.bf16.msra.mxu0 %v4258
      %4334 = vmatprep.subr.bf16.mxu0 %v4247
      %4335 = vmatpush1.bf16.msra.mxu0 %v4246
      %4336 = vmatprep.subr.bf16.mxu0 %v4235
      %4337 = vmatpush1.bf16.msra.mxu0 %v4234
      %4338 = vmatprep.subr.bf16.mxu0 %v4223
      %4339 = vmatpush1.bf16.msra.mxu0 %v4222
      %4340 = vmatprep.subr.bf16.mxu0 0
      %4341 = vmatpush2.bf16.msra.mxu0 0
      %4342 = vmatprep.subr.bf16.mxu0 0
      %4343 = vmatpush2.bf16.msra.mxu0 0
      %4344 = vmatprep.subr.bf16.mxu0 0
      %4345 = vmatpush2.bf16.msra.mxu0 0
      %4346 = vmatprep.subr.bf16.mxu0 0
      %4347 = vmatpush2.bf16.msra.mxu0 0
      %4348 = vmatprep.subr.bf16.mxu0 0
      %4349 = vmatpush2.bf16.msra.mxu0 0
      %4350 = vmatprep.subr.bf16.mxu0 0
      %4351 = vmatpush2.bf16.msra.mxu0 0
      %4352 = vmatprep.subr.bf16.mxu0 0
      %4353 = vmatpush2.bf16.msra.mxu0 0
      %4354 = vmatprep.subr.bf16.mxu0 0
      %4355 = vmatpush2.bf16.msra.mxu0 0
      %4356 = vmatprep.mubr.bf16.mxu0 0
      %4357 = vmatmul.mubr.bf16.gmra.mxu0 %v4319
      %v4358 = vpop.f32.mrf.mxu0
      %v4359 = vadd.f32 %v4021, %v4358
      %v4360 = vpop.f32.mrf.mxu0
      %v4361 = vadd.f32 %v4025, %v4360
      %v4362 = vpop.f32.mrf.mxu0
      %v4363 = vadd.f32 %v4021, %v4362
      %v4364 = vpop.f32.mrf.mxu0
      %v4365 = vadd.f32 %v4025, %v4364
      %4366 = vmatprep.mubr.bf16.mxu0 0
      %4367 = vmatmul.mubr.bf16.gmra.mxu0 %v4322
      %v4368 = vpop.f32.mrf.mxu0
      %v4369 = vadd.f32 %v4021, %v4368
      %v4370 = vpop.f32.mrf.mxu0
      %v4371 = vadd.f32 %v4025, %v4370
      %v4372 = vpop.f32.mrf.mxu0
      %v4373 = vadd.f32 %v4021, %v4372
      %v4374 = vpop.f32.mrf.mxu0
      %v4375 = vadd.f32 %v4025, %v4374
      %4376 = vdwg.mxu0
      %4377 = vmatprep.subr.bf16.mxu0 0
      %4378 = vmatpush1.bf16.msra.mxu0 0
      %4379 = vmatprep.subr.bf16.mxu0 0
      %4380 = vmatpush1.bf16.msra.mxu0 0
      %4381 = vmatprep.subr.bf16.mxu0 0
      %4382 = vmatpush1.bf16.msra.mxu0 0
      %4383 = vmatprep.subr.bf16.mxu0 0
      %4384 = vmatpush1.bf16.msra.mxu0 0
      %4385 = vmatprep.subr.bf16.mxu0 %v4261
      %4386 = vmatpush1.bf16.msra.mxu0 %v4260
      %4387 = vmatprep.subr.bf16.mxu0 %v4249
      %4388 = vmatpush1.bf16.msra.mxu0 %v4248
      %4389 = vmatprep.subr.bf16.mxu0 %v4237
      %4390 = vmatpush1.bf16.msra.mxu0 %v4236
      %4391 = vmatprep.subr.bf16.mxu0 %v4225
      %4392 = vmatpush1.bf16.msra.mxu0 %v4224
      %4393 = vmatprep.subr.bf16.mxu0 0
      %4394 = vmatpush2.bf16.msra.mxu0 0
      %4395 = vmatprep.subr.bf16.mxu0 0
      %4396 = vmatpush2.bf16.msra.mxu0 0
      %4397 = vmatprep.subr.bf16.mxu0 0
      %4398 = vmatpush2.bf16.msra.mxu0 0
      %4399 = vmatprep.subr.bf16.mxu0 0
      %4400 = vmatpush2.bf16.msra.mxu0 0
      %4401 = vmatprep.subr.bf16.mxu0 0
      %4402 = vmatpush2.bf16.msra.mxu0 0
      %4403 = vmatprep.subr.bf16.mxu0 0
      %4404 = vmatpush2.bf16.msra.mxu0 0
      %4405 = vmatprep.subr.bf16.mxu0 0
      %4406 = vmatpush2.bf16.msra.mxu0 0
      %4407 = vmatprep.subr.bf16.mxu0 0
      %4408 = vmatpush2.bf16.msra.mxu0 0
      %4409 = vmatprep.mubr.bf16.mxu0 0
      %4410 = vmatmul.mubr.bf16.gmra.mxu0 %v4319
      %v4411 = vpop.f32.mrf.mxu0
      %v4412 = vadd.f32 %v4029, %v4411
      %v4413 = vpop.f32.mrf.mxu0
      %v4414 = vadd.f32 %v4033, %v4413
      %v4415 = vpop.f32.mrf.mxu0
      %v4416 = vadd.f32 %v4029, %v4415
      %v4417 = vpop.f32.mrf.mxu0
      %v4418 = vadd.f32 %v4033, %v4417
      %4419 = vmatprep.mubr.bf16.mxu0 0
      %4420 = vmatmul.mubr.bf16.gmra.mxu0 %v4322
      %v4421 = vpop.f32.mrf.mxu0
      %v4422 = vadd.f32 %v4029, %v4421
      %v4423 = vpop.f32.mrf.mxu0
      %v4424 = vadd.f32 %v4033, %v4423
      %v4425 = vpop.f32.mrf.mxu0
      %v4426 = vadd.f32 %v4029, %v4425
      %v4427 = vpop.f32.mrf.mxu0
      %v4428 = vadd.f32 %v4033, %v4427
      %4429 = vdwg.mxu0
      %4430 = vmatprep.subr.bf16.mxu0 0
      %4431 = vmatpush1.bf16.msra.mxu0 0
      %4432 = vmatprep.subr.bf16.mxu0 0
      %4433 = vmatpush1.bf16.msra.mxu0 0
      %4434 = vmatprep.subr.bf16.mxu0 0
      %4435 = vmatpush1.bf16.msra.mxu0 0
      %4436 = vmatprep.subr.bf16.mxu0 0
      %4437 = vmatpush1.bf16.msra.mxu0 0
      %4438 = vmatprep.subr.bf16.mxu0 %v4263
      %4439 = vmatpush1.bf16.msra.mxu0 %v4262
      %4440 = vmatprep.subr.bf16.mxu0 %v4251
      %4441 = vmatpush1.bf16.msra.mxu0 %v4250
      %4442 = vmatprep.subr.bf16.mxu0 %v4239
      %4443 = vmatpush1.bf16.msra.mxu0 %v4238
      %4444 = vmatprep.subr.bf16.mxu0 %v4227
      %4445 = vmatpush1.bf16.msra.mxu0 %v4226
      %4446 = vmatprep.subr.bf16.mxu0 0
      %4447 = vmatpush2.bf16.msra.mxu0 0
      %4448 = vmatprep.subr.bf16.mxu0 0
      %4449 = vmatpush2.bf16.msra.mxu0 0
      %4450 = vmatprep.subr.bf16.mxu0 0
      %4451 = vmatpush2.bf16.msra.mxu0 0
      %4452 = vmatprep.subr.bf16.mxu0 0
      %4453 = vmatpush2.bf16.msra.mxu0 0
      %4454 = vmatprep.subr.bf16.mxu0 0
      %4455 = vmatpush2.bf16.msra.mxu0 0
      %4456 = vmatprep.subr.bf16.mxu0 0
      %4457 = vmatpush2.bf16.msra.mxu0 0
      %4458 = vmatprep.subr.bf16.mxu0 0
      %4459 = vmatpush2.bf16.msra.mxu0 0
      %4460 = vmatprep.subr.bf16.mxu0 0
      %4461 = vmatpush2.bf16.msra.mxu0 0
      %4462 = vmatprep.mubr.bf16.mxu0 0
      %4463 = vmatmul.mubr.bf16.gmra.mxu0 %v4319
      %v4464 = vpop.f32.mrf.mxu0
      %v4465 = vadd.f32 %v4037, %v4464
      %v4466 = vpop.f32.mrf.mxu0
      %v4467 = vadd.f32 %v4041, %v4466
      %v4468 = vpop.f32.mrf.mxu0
      %v4469 = vadd.f32 %v4037, %v4468
      %v4470 = vpop.f32.mrf.mxu0
      %v4471 = vadd.f32 %v4041, %v4470
      %4472 = vmatprep.mubr.bf16.mxu0 0
      %4473 = vmatmul.mubr.bf16.gmra.mxu0 %v4322
      %v4474 = vpop.f32.mrf.mxu0
      %v4475 = vadd.f32 %v4037, %v4474
      %v4476 = vpop.f32.mrf.mxu0
      %v4477 = vadd.f32 %v4041, %v4476
      %v4478 = vpop.f32.mrf.mxu0
      %v4479 = vadd.f32 %v4037, %v4478
      %v4480 = vpop.f32.mrf.mxu0
      %v4481 = vadd.f32 %v4041, %v4480
      %4482 = vdwg.mxu0
      %4483 = vmatprep.subr.bf16.mxu0 0
      %4484 = vmatpush1.bf16.msra.mxu0 0
      %4485 = vmatprep.subr.bf16.mxu0 0
      %4486 = vmatpush1.bf16.msra.mxu0 0
      %4487 = vmatprep.subr.bf16.mxu0 0
      %4488 = vmatpush1.bf16.msra.mxu0 0
      %4489 = vmatprep.subr.bf16.mxu0 0
      %4490 = vmatpush1.bf16.msra.mxu0 0
      %4491 = vmatprep.subr.bf16.mxu0 %v4265
      %4492 = vmatpush1.bf16.msra.mxu0 %v4264
      %4493 = vmatprep.subr.bf16.mxu0 %v4253
      %4494 = vmatpush1.bf16.msra.mxu0 %v4252
      %4495 = vmatprep.subr.bf16.mxu0 %v4241
      %4496 = vmatpush1.bf16.msra.mxu0 %v4240
      %4497 = vmatprep.subr.bf16.mxu0 %v4229
      %4498 = vmatpush1.bf16.msra.mxu0 %v4228
      %4499 = vmatprep.subr.bf16.mxu0 0
      %4500 = vmatpush2.bf16.msra.mxu0 0
      %4501 = vmatprep.subr.bf16.mxu0 0
      %4502 = vmatpush2.bf16.msra.mxu0 0
      %4503 = vmatprep.subr.bf16.mxu0 0
      %4504 = vmatpush2.bf16.msra.mxu0 0
      %4505 = vmatprep.subr.bf16.mxu0 0
      %4506 = vmatpush2.bf16.msra.mxu0 0
      %4507 = vmatprep.subr.bf16.mxu0 0
      %4508 = vmatpush2.bf16.msra.mxu0 0
      %4509 = vmatprep.subr.bf16.mxu0 0
      %4510 = vmatpush2.bf16.msra.mxu0 0
      %4511 = vmatprep.subr.bf16.mxu0 0
      %4512 = vmatpush2.bf16.msra.mxu0 0
      %4513 = vmatprep.subr.bf16.mxu0 0
      %4514 = vmatpush2.bf16.msra.mxu0 0
      %4515 = vmatprep.mubr.bf16.mxu0 0
      %4516 = vmatmul.mubr.bf16.gmra.mxu0 %v4319
      %v4517 = vpop.f32.mrf.mxu0
      %v4518 = vadd.f32 %v4045, %v4517
      %v4519 = vpop.f32.mrf.mxu0
      %v4520 = vadd.f32 %v4049, %v4519
      %v4521 = vpop.f32.mrf.mxu0
      %v4522 = vadd.f32 %v4045, %v4521
      %v4523 = vpop.f32.mrf.mxu0
      %v4524 = vadd.f32 %v4049, %v4523
      %4525 = vmatprep.mubr.bf16.mxu0 0
      %4526 = vmatmul.mubr.bf16.gmra.mxu0 %v4322
      %v4527 = vpop.f32.mrf.mxu0
      %v4528 = vadd.f32 %v4045, %v4527
      %v4529 = vpop.f32.mrf.mxu0
      %v4530 = vadd.f32 %v4049, %v4529
      %v4531 = vpop.f32.mrf.mxu0
      %v4532 = vadd.f32 %v4045, %v4531
      %v4533 = vpop.f32.mrf.mxu0
      %v4534 = vadd.f32 %v4049, %v4533
      %4535 = vdwg.mxu0
      %4536 = vmatprep.subr.bf16.mxu0 0
      %4537 = vmatpush1.bf16.msra.mxu0 0
      %4538 = vmatprep.subr.bf16.mxu0 0
      %4539 = vmatpush1.bf16.msra.mxu0 0
      %4540 = vmatprep.subr.bf16.mxu0 0
      %4541 = vmatpush1.bf16.msra.mxu0 0
      %4542 = vmatprep.subr.bf16.mxu0 0
      %4543 = vmatpush1.bf16.msra.mxu0 0
      %4544 = vmatprep.subr.bf16.mxu0 %v4267
      %4545 = vmatpush1.bf16.msra.mxu0 %v4266
      %4546 = vmatprep.subr.bf16.mxu0 %v4255
      %4547 = vmatpush1.bf16.msra.mxu0 %v4254
      %4548 = vmatprep.subr.bf16.mxu0 %v4243
      %4549 = vmatpush1.bf16.msra.mxu0 %v4242
      %4550 = vmatprep.subr.bf16.mxu0 %v4231
      %4551 = vmatpush1.bf16.msra.mxu0 %v4230
      %4552 = vmatprep.subr.bf16.mxu0 0
      %4553 = vmatpush2.bf16.msra.mxu0 0
      %4554 = vmatprep.subr.bf16.mxu0 0
      %4555 = vmatpush2.bf16.msra.mxu0 0
      %4556 = vmatprep.subr.bf16.mxu0 0
      %4557 = vmatpush2.bf16.msra.mxu0 0
      %4558 = vmatprep.subr.bf16.mxu0 0
      %4559 = vmatpush2.bf16.msra.mxu0 0
      %4560 = vmatprep.subr.bf16.mxu0 0
      %4561 = vmatpush2.bf16.msra.mxu0 0
      %4562 = vmatprep.subr.bf16.mxu0 0
      %4563 = vmatpush2.bf16.msra.mxu0 0
      %4564 = vmatprep.subr.bf16.mxu0 0
      %4565 = vmatpush2.bf16.msra.mxu0 0
      %4566 = vmatprep.subr.bf16.mxu0 0
      %4567 = vmatpush2.bf16.msra.mxu0 0
      %4568 = vmatprep.mubr.bf16.mxu0 0
      %4569 = vmatmul.mubr.bf16.gmra.mxu0 %v4319
      %v4570 = vpop.f32.mrf.mxu0
      %v4571 = vadd.f32 %v4053, %v4570
      %v4572 = vpop.f32.mrf.mxu0
      %v4573 = vadd.f32 %v4057, %v4572
      %v4574 = vpop.f32.mrf.mxu0
      %v4575 = vadd.f32 %v4053, %v4574
      %v4576 = vpop.f32.mrf.mxu0
      %v4577 = vadd.f32 %v4057, %v4576
      %4578 = vmatprep.mubr.bf16.mxu0 0
      %4579 = vmatmul.mubr.bf16.gmra.mxu0 %v4322
      %v4580 = vpop.f32.mrf.mxu0
      %v4581 = vadd.f32 %v4053, %v4580
      %v4582 = vpop.f32.mrf.mxu0
      %v4583 = vadd.f32 %v4057, %v4582
      %v4584 = vpop.f32.mrf.mxu0
      %v4585 = vadd.f32 %v4053, %v4584
      %v4586 = vpop.f32.mrf.mxu0
      %v4587 = vadd.f32 %v4057, %v4586
      %4588 = vdwg.mxu0
      %4589 = vmatprep.subr.bf16.mxu0 0
      %4590 = vmatpush1.bf16.msra.mxu0 0
      %4591 = vmatprep.subr.bf16.mxu0 0
      %4592 = vmatpush1.bf16.msra.mxu0 0
      %4593 = vmatprep.subr.bf16.mxu0 0
      %4594 = vmatpush1.bf16.msra.mxu0 0
      %4595 = vmatprep.subr.bf16.mxu0 0
      %4596 = vmatpush1.bf16.msra.mxu0 0
      %4597 = vmatprep.subr.bf16.mxu0 %v4269
      %4598 = vmatpush1.bf16.msra.mxu0 %v4268
      %4599 = vmatprep.subr.bf16.mxu0 %v4257
      %4600 = vmatpush1.bf16.msra.mxu0 %v4256
      %4601 = vmatprep.subr.bf16.mxu0 %v4245
      %4602 = vmatpush1.bf16.msra.mxu0 %v4244
      %4603 = vmatprep.subr.bf16.mxu0 %v4233
      %4604 = vmatpush1.bf16.msra.mxu0 %v4232
      %4605 = vmatprep.subr.bf16.mxu0 0
      %4606 = vmatpush2.bf16.msra.mxu0 0
      %4607 = vmatprep.subr.bf16.mxu0 0
      %4608 = vmatpush2.bf16.msra.mxu0 0
      %4609 = vmatprep.subr.bf16.mxu0 0
      %4610 = vmatpush2.bf16.msra.mxu0 0
      %4611 = vmatprep.subr.bf16.mxu0 0
      %4612 = vmatpush2.bf16.msra.mxu0 0
      %4613 = vmatprep.subr.bf16.mxu0 0
      %4614 = vmatpush2.bf16.msra.mxu0 0
      %4615 = vmatprep.subr.bf16.mxu0 0
      %4616 = vmatpush2.bf16.msra.mxu0 0
      %4617 = vmatprep.subr.bf16.mxu0 0
      %4618 = vmatpush2.bf16.msra.mxu0 0
      %4619 = vmatprep.subr.bf16.mxu0 0
      %4620 = vmatpush2.bf16.msra.mxu0 0
      %4621 = vmatprep.mubr.bf16.mxu0 0
      %4622 = vmatmul.mubr.bf16.gmra.mxu0 %v4319
      %v4623 = vpop.f32.mrf.mxu0
      %v4624 = vadd.f32 %v4061, %v4623
      %v4625 = vpop.f32.mrf.mxu0
      %v4626 = vadd.f32 %v4065, %v4625
      %v4627 = vpop.f32.mrf.mxu0
      %v4628 = vadd.f32 %v4061, %v4627
      %v4629 = vpop.f32.mrf.mxu0
      %v4630 = vadd.f32 %v4065, %v4629
      %4631 = vmatprep.mubr.bf16.mxu0 0
      %4632 = vmatmul.mubr.bf16.gmra.mxu0 %v4322
      %v4633 = vpop.f32.mrf.mxu0
      %v4634 = vadd.f32 %v4061, %v4633
      %v4635 = vpop.f32.mrf.mxu0
      %v4636 = vadd.f32 %v4065, %v4635
      %v4637 = vpop.f32.mrf.mxu0
      %v4638 = vadd.f32 %v4061, %v4637
      %v4639 = vpop.f32.mrf.mxu0
      %v4640 = vadd.f32 %v4065, %v4639
      %4641 = vdwg.mxu0
      %v4642 = vpack.c.bf16 %v4363, %v4359
      %v4643 = vpack.c.bf16 %v4365, %v4361
      %v4644 = vpack.c.bf16 %v4416, %v4412
      %v4645 = vpack.c.bf16 %v4418, %v4414
      %v4646 = vpack.c.bf16 %v4469, %v4465
      %v4647 = vpack.c.bf16 %v4471, %v4467
      %v4648 = vpack.c.bf16 %v4522, %v4518
      %v4649 = vpack.c.bf16 %v4524, %v4520
      %v4650 = vpack.c.bf16 %v4575, %v4571
      %v4651 = vpack.c.bf16 %v4577, %v4573
      %v4652 = vpack.c.bf16 %v4628, %v4624
      %v4653 = vpack.c.bf16 %v4630, %v4626
      %v4654 = vpack.c.bf16 %v4373, %v4369
      %v4655 = vpack.c.bf16 %v4375, %v4371
      %v4656 = vpack.c.bf16 %v4426, %v4422
      %v4657 = vpack.c.bf16 %v4428, %v4424
      %v4658 = vpack.c.bf16 %v4479, %v4475
      %v4659 = vpack.c.bf16 %v4481, %v4477
      %v4660 = vpack.c.bf16 %v4532, %v4528
      %v4661 = vpack.c.bf16 %v4534, %v4530
      %v4662 = vpack.c.bf16 %v4585, %v4581
      %v4663 = vpack.c.bf16 %v4587, %v4583
      %v4664 = vpack.c.bf16 %v4638, %v4634
      %v4665 = vpack.c.bf16 %v4640, %v4636
      %v4690 = vunpack.c.l.b16 %v4642
      %v4691 = vunpack.c.l.b16 %v4643
      %v4692 = vunpack.c.l.b16 %v4644
      %v4693 = vunpack.c.l.b16 %v4645
      %v4694 = vunpack.c.l.b16 %v4646
      %v4695 = vunpack.c.l.b16 %v4647
      %v4696 = vunpack.c.l.b16 %v4648
      %v4697 = vunpack.c.l.b16 %v4649
      %v4698 = vunpack.c.l.b16 %v4650
      %v4699 = vunpack.c.l.b16 %v4651
      %v4700 = vunpack.c.l.b16 %v4652
      %v4701 = vunpack.c.l.b16 %v4653
      %v4702 = vunpack.c.h.b16 %v4642
      %v4703 = vunpack.c.h.b16 %v4643
      %v4704 = vunpack.c.h.b16 %v4644
      %v4705 = vunpack.c.h.b16 %v4645
      %v4706 = vunpack.c.h.b16 %v4646
      %v4707 = vunpack.c.h.b16 %v4647
      %v4708 = vunpack.c.h.b16 %v4648
      %v4709 = vunpack.c.h.b16 %v4649
      %v4710 = vunpack.c.h.b16 %v4650
      %v4711 = vunpack.c.h.b16 %v4651
      %v4712 = vunpack.c.h.b16 %v4652
      %v4713 = vunpack.c.h.b16 %v4653
      %v4714 = vunpack.c.l.b16 %v4654
      %v4715 = vunpack.c.l.b16 %v4655
      %v4716 = vunpack.c.l.b16 %v4656
      %v4717 = vunpack.c.l.b16 %v4657
      %v4718 = vunpack.c.l.b16 %v4658
      %v4719 = vunpack.c.l.b16 %v4659
      %v4720 = vunpack.c.l.b16 %v4660
      %v4721 = vunpack.c.l.b16 %v4661
      %v4722 = vunpack.c.l.b16 %v4662
      %v4723 = vunpack.c.l.b16 %v4663
      %v4724 = vunpack.c.l.b16 %v4664
      %v4725 = vunpack.c.l.b16 %v4665
      %v4726 = vunpack.c.h.b16 %v4654
      %v4727 = vunpack.c.h.b16 %v4655
      %v4728 = vunpack.c.h.b16 %v4656
      %v4729 = vunpack.c.h.b16 %v4657
      %v4730 = vunpack.c.h.b16 %v4658
      %v4731 = vunpack.c.h.b16 %v4659
      %v4732 = vunpack.c.h.b16 %v4660
      %v4733 = vunpack.c.h.b16 %v4661
      %v4734 = vunpack.c.h.b16 %v4662
      %v4735 = vunpack.c.h.b16 %v4663
      %v4736 = vunpack.c.h.b16 %v4664
      %v4737 = vunpack.c.h.b16 %v4665
      %v4738 = vpack.c.b16 %v4691, %v4690
      %v4739 = vpack.c.b16 %v4693, %v4692
      %v4740 = vpack.c.b16 %v4695, %v4694
      %v4741 = vpack.c.b16 %v4697, %v4696
      %v4742 = vpack.c.b16 %v4699, %v4698
      %v4743 = vpack.c.b16 %v4701, %v4700
      %v4744 = vpack.c.b16 %v4703, %v4702
      %v4745 = vpack.c.b16 %v4705, %v4704
      %v4746 = vpack.c.b16 %v4707, %v4706
      %v4747 = vpack.c.b16 %v4709, %v4708
      %v4748 = vpack.c.b16 %v4711, %v4710
      %v4749 = vpack.c.b16 %v4713, %v4712
      %v4750 = vpack.c.b16 %v4715, %v4714
      %v4751 = vpack.c.b16 %v4717, %v4716
      %v4752 = vpack.c.b16 %v4719, %v4718
      %v4753 = vpack.c.b16 %v4721, %v4720
      %v4754 = vpack.c.b16 %v4723, %v4722
      %v4755 = vpack.c.b16 %v4725, %v4724
      %v4756 = vpack.c.b16 %v4727, %v4726
      %v4757 = vpack.c.b16 %v4729, %v4728
      %v4758 = vpack.c.b16 %v4731, %v4730
      %v4759 = vpack.c.b16 %v4733, %v4732
      %v4760 = vpack.c.b16 %v4735, %v4734
      %v4761 = vpack.c.b16 %v4737, %v4736
      %4786 = vst [vmem:[#allocation2] sm:$0xff] %v4738
      %4787 = vst [vmem:[#allocation2 + $0x8] sm:$0xff] %v4739
      %4788 = vst [vmem:[#allocation2 + $0x10] sm:$0xff] %v4740
      %4789 = vst [vmem:[#allocation2 + $0x18] sm:$0xff] %v4741
      %4790 = vst [vmem:[#allocation2 + $0x20] sm:$0xff] %v4742
      %4791 = vst [vmem:[#allocation2 + $0x28] sm:$0xff] %v4743
      %4792 = vst [vmem:[#allocation2 + $0x30] sm:$0xff] %v4744
      %4793 = vst [vmem:[#allocation2 + $0x38] sm:$0xff] %v4745
      %4794 = vst [vmem:[#allocation2 + $0x40] sm:$0xff] %v4746
      %4795 = vst [vmem:[#allocation2 + $0x48] sm:$0xff] %v4747
      %4796 = vst [vmem:[#allocation2 + $0x50] sm:$0xff] %v4748
      %4797 = vst [vmem:[#allocation2 + $0x58] sm:$0xff] %v4749
      %4798 = vst [vmem:[#allocation2 + $0x60] sm:$0xff] %v4750
      %4799 = vst [vmem:[#allocation2 + $0x68] sm:$0xff] %v4751
      %4800 = vst [vmem:[#allocation2 + $0x70] sm:$0xff] %v4752
      %4801 = vst [vmem:[#allocation2 + $0x78] sm:$0xff] %v4753
      %4802 = vst [vmem:[#allocation2 + $0x80] sm:$0xff] %v4754
      %4803 = vst [vmem:[#allocation2 + $0x88] sm:$0xff] %v4755
      %4804 = vst [vmem:[#allocation2 + $0x90] sm:$0xff] %v4756
      %4805 = vst [vmem:[#allocation2 + $0x98] sm:$0xff] %v4757
      %4806 = vst [vmem:[#allocation2 + $0xa0] sm:$0xff] %v4758
      %4807 = vst [vmem:[#allocation2 + $0xa8] sm:$0xff] %v4759
      %4808 = vst [vmem:[#allocation2 + $0xb0] sm:$0xff] %v4760
      %4809 = vst [vmem:[#allocation2 + $0xb8] sm:$0xff] %v4761
      %v4810 = vld [vmem:[#allocation2] sm:$0xf]
      %v4811 = vld [vmem:[#allocation2 + $0x30] sm:$0xf]
      %v4812 = vld [vmem:[#allocation2 + $0x60] sm:$0xf]
      %v4813 = vld [vmem:[#allocation2 + $0x90] sm:$0xf]
      %v4814 = vld [vmem:[#allocation2 + $0x10] sm:$0xf]
      %v4815 = vld [vmem:[#allocation2 + $0x40] sm:$0xf]
      %v4816 = vld [vmem:[#allocation2 + $0x70] sm:$0xf]
      %v4817 = vld [vmem:[#allocation2 + $0xa0] sm:$0xf]
      %v4818 = vld [vmem:[#allocation2 + $0x20] sm:$0xf]
      %v4819 = vld [vmem:[#allocation2 + $0x50] sm:$0xf]
      %v4820 = vld [vmem:[#allocation2 + $0x80] sm:$0xf]
      %v4821 = vld [vmem:[#allocation2 + $0xb0] sm:$0xf]
      %v4826 = vunpack.c.l.b16 %v4810
      %v4827 = vunpack.c.l.b16 %v4811
      %v4828 = vunpack.c.l.b16 %v4812
      %v4829 = vunpack.c.l.b16 %v4813
      %v4830 = vpack.c.b16 %v4827, %v4826
      %v4831 = vpack.c.b16 %v4829, %v4828
      %v4836 = vunpack.c.l.b16 %v4814
      %v4837 = vunpack.c.l.b16 %v4815
      %v4838 = vunpack.c.l.b16 %v4816
      %v4839 = vunpack.c.l.b16 %v4817
      %v4840 = vpack.c.b16 %v4837, %v4836
      %v4841 = vpack.c.b16 %v4839, %v4838
      %v4843 = vsel %vm497, %v4830, 0
      %v4846 = vsel %vm497, %v4831, 0
      %v4849 = vsel %vm497, %v4840, 0
      %v4852 = vsel %vm497, %v4841, 0
      %4854 = vmatprep.subr.bf16.mxu0 0
      %4855 = vmatpush1.bf16.xpose.msra.mxu0 0
      %4856 = vmatprep.subr.bf16.mxu0 0
      %4857 = vmatpush1.bf16.xpose.msra.mxu0 0
      %4858 = vmatprep.subr.bf16.mxu0 0
      %4859 = vmatpush1.bf16.xpose.msra.mxu0 0
      %4860 = vmatprep.subr.bf16.mxu0 0
      %4861 = vmatpush1.bf16.xpose.msra.mxu0 0
      %4862 = vmatprep.subr.bf16.mxu0 0
      %4863 = vmatpush1.bf16.xpose.msra.mxu0 0
      %4864 = vmatprep.subr.bf16.mxu0 0
      %4865 = vmatpush1.bf16.xpose.msra.mxu0 0
      %4866 = vmatprep.subr.bf16.mxu0 0
      %4867 = vmatpush1.bf16.xpose.msra.mxu0 %v4852
      %4868 = vmatprep.subr.bf16.mxu0 0
      %4869 = vmatpush1.bf16.xpose.msra.mxu0 %v4849
      %4870 = vmatprep.subr.bf16.mxu0 0
      %4871 = vmatpush2.bf16.xpose.msra.mxu0 0
      %4872 = vmatprep.subr.bf16.mxu0 0
      %4873 = vmatpush2.bf16.xpose.msra.mxu0 0
      %4874 = vmatprep.subr.bf16.mxu0 0
      %4875 = vmatpush2.bf16.xpose.msra.mxu0 0
      %4876 = vmatprep.subr.bf16.mxu0 0
      %4877 = vmatpush2.bf16.xpose.msra.mxu0 0
      %4878 = vmatprep.subr.bf16.mxu0 0
      %4879 = vmatpush2.bf16.xpose.msra.mxu0 0
      %4880 = vmatprep.subr.bf16.mxu0 0
      %4881 = vmatpush2.bf16.xpose.msra.mxu0 0
      %4882 = vmatprep.subr.bf16.mxu0 0
      %4883 = vmatpush2.bf16.xpose.msra.mxu0 0
      %4884 = vmatprep.subr.bf16.mxu0 0
      %4885 = vmatpush2.bf16.xpose.msra.mxu0 0
      %4886 = vmatprep.mubr.bf16.mxu0 0
      %4887 = vmatmul.mubr.bf16.gmra.mxu0 %v4843
      %v4888 = vpop.f32.mrf.mxu0
      %v4889 = vadd.f32 %v315, %v4888
      %v4890 = vpop.f32.mrf.mxu0
      %v4891 = vpop.f32.mrf.mxu0
      %v4892 = vadd.f32 %v315, %v4891
      %v4893 = vpop.f32.mrf.mxu0
      %4894 = vmatprep.mubr.bf16.mxu0 0
      %4895 = vmatmul.mubr.bf16.gmra.mxu0 %v4846
      %v4896 = vpop.f32.mrf.mxu0
      %v4897 = vadd.f32 %v315, %v4896
      %v4898 = vpop.f32.mrf.mxu0
      %v4899 = vpop.f32.mrf.mxu0
      %v4900 = vadd.f32 %v315, %v4899
      %v4901 = vpop.f32.mrf.mxu0
      %4902 = vdwg.mxu0
      %v4903 = vsel %vm1518, %v4889, -inf
      %4904 = vmax.xlane.f32.xlu0 %v4903
      %v4905 = vpop.xlane.xlu0 %4904
      %v4906 = vsel %vm1518, %v4892, -inf
      %4907 = vmax.xlane.f32.xlu0 %v4906
      %v4908 = vpop.xlane.xlu0 %4907
      %v4909 = vsel %vm1518, %v4897, -inf
      %4910 = vmax.xlane.f32.xlu0 %v4909
      %v4911 = vpop.xlane.xlu0 %4910
      %v4912 = vsel %vm1518, %v4900, -inf
      %4913 = vmax.xlane.f32.xlu0 %v4912
      %v4914 = vpop.xlane.xlu0 %4913
      %v4915 = vsub.f32 %v4889, %v4905
      %v4916 = vsub.f32 %v4892, %v4908
      %v4917 = vsub.f32 %v4897, %v4911
      %v4918 = vsub.f32 %v4900, %v4914
      %v4919 = vmul.f32 %v4915, 1.442695
      %v4920 = vpow.pop %v4919
      %v4921 = vmul.f32 %v4916, 1.442695
      %v4922 = vpow.pop %v4921
      %v4923 = vmul.f32 %v4917, 1.442695
      %v4924 = vpow.pop %v4923
      %v4925 = vmul.f32 %v4918, 1.442695
      %v4926 = vpow.pop %v4925
      %v4927 = vsel %vm1518, %v4920, 0.0
      %4928 = vadd.xlane.f32.xlu0 %v4927
      %v4929 = vpop.xlane.xlu0 %4928
      %v4930 = vsel %vm1518, %v4922, 0.0
      %4931 = vadd.xlane.f32.xlu0 %v4930
      %v4932 = vpop.xlane.xlu0 %4931
      %v4933 = vsel %vm1518, %v4924, 0.0
      %4934 = vadd.xlane.f32.xlu0 %v4933
      %v4935 = vpop.xlane.xlu0 %4934
      %v4936 = vsel %vm1518, %v4926, 0.0
      %4937 = vadd.xlane.f32.xlu0 %v4936
      %v4938 = vpop.xlane.xlu0 %4937
      %v4939 = vrcp.pop %v4929
      %v4940 = vrcp.pop %v4932
      %v4941 = vrcp.pop %v4935
      %v4942 = vrcp.pop %v4938
      %v4943 = vmul.f32 %v4920, %v4939
      %v4944 = vmul.f32 %v4922, %v4940
      %v4945 = vmul.f32 %v4924, %v4941
      %v4946 = vmul.f32 %v4926, %v4942
      %v4947 = vpack.c.bf16 %v4944, %v4943
      %v4948 = vpack.c.bf16 %v4946, %v4945
      %v4953 = vunpack.c.l.b16 %v4818
      %v4954 = vunpack.c.l.b16 %v4819
      %v4955 = vunpack.c.l.b16 %v4820
      %v4956 = vunpack.c.l.b16 %v4821
      %v4957 = vpack.c.b16 %v4954, %v4953
      %v4958 = vpack.c.b16 %v4956, %v4955
      %v4962 = vsel %vm1518, %v4947, 0
      %v4965 = vsel %vm1518, %v4948, 0
      %4967 = vmatprep.subr.bf16.mxu0 0
      %4968 = vmatpush1.bf16.msra.mxu0 0
      %4969 = vmatprep.subr.bf16.mxu0 0
      %4970 = vmatpush1.bf16.msra.mxu0 0
      %4971 = vmatprep.subr.bf16.mxu0 0
      %4972 = vmatpush1.bf16.msra.mxu0 0
      %4973 = vmatprep.subr.bf16.mxu0 0
      %4974 = vmatpush1.bf16.msra.mxu0 0
      %4975 = vmatprep.subr.bf16.mxu0 0
      %4976 = vmatpush1.bf16.msra.mxu0 0
      %4977 = vmatprep.subr.bf16.mxu0 0
      %4978 = vmatpush1.bf16.msra.mxu0 0
      %4979 = vmatprep.subr.bf16.mxu0 0
      %4980 = vmatpush1.bf16.msra.mxu0 %v4958
      %4981 = vmatprep.subr.bf16.mxu0 0
      %4982 = vmatpush1.bf16.msra.mxu0 %v4957
      %4983 = vmatprep.subr.bf16.mxu0 0
      %4984 = vmatpush2.bf16.msra.mxu0 0
      %4985 = vmatprep.subr.bf16.mxu0 0
      %4986 = vmatpush2.bf16.msra.mxu0 0
      %4987 = vmatprep.subr.bf16.mxu0 0
      %4988 = vmatpush2.bf16.msra.mxu0 0
      %4989 = vmatprep.subr.bf16.mxu0 0
      %4990 = vmatpush2.bf16.msra.mxu0 0
      %4991 = vmatprep.subr.bf16.mxu0 0
      %4992 = vmatpush2.bf16.msra.mxu0 0
      %4993 = vmatprep.subr.bf16.mxu0 0
      %4994 = vmatpush2.bf16.msra.mxu0 0
      %4995 = vmatprep.subr.bf16.mxu0 0
      %4996 = vmatpush2.bf16.msra.mxu0 0
      %4997 = vmatprep.subr.bf16.mxu0 0
      %4998 = vmatpush2.bf16.msra.mxu0 0
      %4999 = vmatprep.mubr.bf16.mxu0 0
      %5000 = vmatmul.mubr.bf16.gmra.mxu0 %v4962
      %v5001 = vpop.f32.mrf.mxu0
      %v5002 = vadd.f32 0.0, %v5001
      %v5003 = vpop.f32.mrf.mxu0
      %v5004 = vpop.f32.mrf.mxu0
      %v5005 = vadd.f32 0.0, %v5004
      %v5006 = vpop.f32.mrf.mxu0
      %5007 = vmatprep.mubr.bf16.mxu0 0
      %5008 = vmatmul.mubr.bf16.gmra.mxu0 %v4965
      %v5009 = vpop.f32.mrf.mxu0
      %v5010 = vadd.f32 0.0, %v5009
      %v5011 = vpop.f32.mrf.mxu0
      %v5012 = vpop.f32.mrf.mxu0
      %v5013 = vadd.f32 0.0, %v5012
      %v5014 = vpop.f32.mrf.mxu0
      %5015 = vdwg.mxu0
      %v5016 = vpack.c.bf16 %v5005, %v5002
      %v5017 = vpack.c.bf16 %v5013, %v5010
      %v5018 = vld [vmem:[%s6 + $0x100] sm:$0xf]
      %v5019 = vld [vmem:[%s6 + $0x104] sm:$0xf]
      %v5020 = vld [vmem:[%s6 + $0x108] sm:$0xf]
      %v5021 = vld [vmem:[%s6 + $0x10c] sm:$0xf]
      %v5022 = vld [vmem:[%s6 + $0x110] sm:$0xf]
      %v5023 = vld [vmem:[%s6 + $0x114] sm:$0xf]
      %v5024 = vld [vmem:[%s6 + $0x118] sm:$0xf]
      %v5025 = vld [vmem:[%s6 + $0x11c] sm:$0xf]
      %5026 = vrot.lane.b32.xlu0 %v4830, 64
      %v5027 = vpop.permute.xlu0 %5026
      %5028 = vrot.lane.b32.xlu0 %v4831, 64
      %v5029 = vpop.permute.xlu0 %5028
      %5030 = vrot.lane.b32.xlu0 %v4840, 64
      %v5031 = vpop.permute.xlu0 %5030
      %5032 = vrot.lane.b32.xlu0 %v4841, 64
      %v5033 = vpop.permute.xlu0 %5032
      %v5035 = vsel %vm497, %v5027, 0
      %v5038 = vsel %vm497, %v5029, 0
      %v5041 = vsel %vm497, %v5031, 0
      %v5044 = vsel %vm497, %v5033, 0
      %5046 = vmatprep.subr.bf16.mxu0 0
      %5047 = vmatpush1.bf16.xpose.msra.mxu0 0
      %5048 = vmatprep.subr.bf16.mxu0 0
      %5049 = vmatpush1.bf16.xpose.msra.mxu0 0
      %5050 = vmatprep.subr.bf16.mxu0 0
      %5051 = vmatpush1.bf16.xpose.msra.mxu0 0
      %5052 = vmatprep.subr.bf16.mxu0 0
      %5053 = vmatpush1.bf16.xpose.msra.mxu0 0
      %5054 = vmatprep.subr.bf16.mxu0 0
      %5055 = vmatpush1.bf16.xpose.msra.mxu0 0
      %5056 = vmatprep.subr.bf16.mxu0 0
      %5057 = vmatpush1.bf16.xpose.msra.mxu0 0
      %5058 = vmatprep.subr.bf16.mxu0 0
      %5059 = vmatpush1.bf16.xpose.msra.mxu0 %v5044
      %5060 = vmatprep.subr.bf16.mxu0 0
      %5061 = vmatpush1.bf16.xpose.msra.mxu0 %v5041
      %5062 = vmatprep.subr.bf16.mxu0 0
      %5063 = vmatpush2.bf16.xpose.msra.mxu0 0
      %5064 = vmatprep.subr.bf16.mxu0 0
      %5065 = vmatpush2.bf16.xpose.msra.mxu0 0
      %5066 = vmatprep.subr.bf16.mxu0 0
      %5067 = vmatpush2.bf16.xpose.msra.mxu0 0
      %5068 = vmatprep.subr.bf16.mxu0 0
      %5069 = vmatpush2.bf16.xpose.msra.mxu0 0
      %5070 = vmatprep.subr.bf16.mxu0 0
      %5071 = vmatpush2.bf16.xpose.msra.mxu0 0
      %5072 = vmatprep.subr.bf16.mxu0 0
      %5073 = vmatpush2.bf16.xpose.msra.mxu0 0
      %5074 = vmatprep.subr.bf16.mxu0 0
      %5075 = vmatpush2.bf16.xpose.msra.mxu0 0
      %5076 = vmatprep.subr.bf16.mxu0 0
      %5077 = vmatpush2.bf16.xpose.msra.mxu0 0
      %5078 = vmatprep.mubr.bf16.mxu0 0
      %5079 = vmatmul.mubr.bf16.gmra.mxu0 %v5035
      %v5080 = vpop.f32.mrf.mxu0
      %v5081 = vadd.f32 %v315, %v5080
      %v5082 = vpop.f32.mrf.mxu0
      %v5083 = vpop.f32.mrf.mxu0
      %v5084 = vadd.f32 %v315, %v5083
      %v5085 = vpop.f32.mrf.mxu0
      %5086 = vmatprep.mubr.bf16.mxu0 0
      %5087 = vmatmul.mubr.bf16.gmra.mxu0 %v5038
      %v5088 = vpop.f32.mrf.mxu0
      %v5089 = vadd.f32 %v315, %v5088
      %v5090 = vpop.f32.mrf.mxu0
      %v5091 = vpop.f32.mrf.mxu0
      %v5092 = vadd.f32 %v315, %v5091
      %v5093 = vpop.f32.mrf.mxu0
      %5094 = vdwg.mxu0
      %v5095 = vsel %vm1518, %v5081, -inf
      %5096 = vmax.xlane.f32.xlu0 %v5095
      %v5097 = vpop.xlane.xlu0 %5096
      %v5098 = vsel %vm1518, %v5084, -inf
      %5099 = vmax.xlane.f32.xlu0 %v5098
      %v5100 = vpop.xlane.xlu0 %5099
      %v5101 = vsel %vm1518, %v5089, -inf
      %5102 = vmax.xlane.f32.xlu0 %v5101
      %v5103 = vpop.xlane.xlu0 %5102
      %v5104 = vsel %vm1518, %v5092, -inf
      %5105 = vmax.xlane.f32.xlu0 %v5104
      %v5106 = vpop.xlane.xlu0 %5105
      %v5107 = vsub.f32 %v5081, %v5097
      %v5108 = vsub.f32 %v5084, %v5100
      %v5109 = vsub.f32 %v5089, %v5103
      %v5110 = vsub.f32 %v5092, %v5106
      %v5111 = vmul.f32 %v5107, 1.442695
      %v5112 = vpow.pop %v5111
      %v5113 = vmul.f32 %v5108, 1.442695
      %v5114 = vpow.pop %v5113
      %v5115 = vmul.f32 %v5109, 1.442695
      %v5116 = vpow.pop %v5115
      %v5117 = vmul.f32 %v5110, 1.442695
      %v5118 = vpow.pop %v5117
      %v5119 = vsel %vm1518, %v5112, 0.0
      %5120 = vadd.xlane.f32.xlu0 %v5119
      %v5121 = vpop.xlane.xlu0 %5120
      %v5122 = vsel %vm1518, %v5114, 0.0
      %5123 = vadd.xlane.f32.xlu0 %v5122
      %v5124 = vpop.xlane.xlu0 %5123
      %v5125 = vsel %vm1518, %v5116, 0.0
      %5126 = vadd.xlane.f32.xlu0 %v5125
      %v5127 = vpop.xlane.xlu0 %5126
      %v5128 = vsel %vm1518, %v5118, 0.0
      %5129 = vadd.xlane.f32.xlu0 %v5128
      %v5130 = vpop.xlane.xlu0 %5129
      %v5131 = vrcp.pop %v5121
      %v5132 = vrcp.pop %v5124
      %v5133 = vrcp.pop %v5127
      %v5134 = vrcp.pop %v5130
      %v5135 = vmul.f32 %v5112, %v5131
      %v5136 = vmul.f32 %v5114, %v5132
      %v5137 = vmul.f32 %v5116, %v5133
      %v5138 = vmul.f32 %v5118, %v5134
      %v5139 = vpack.c.bf16 %v5136, %v5135
      %v5140 = vpack.c.bf16 %v5138, %v5137
      %5141 = vrot.lane.b32.xlu0 %v4957, 64
      %v5142 = vpop.permute.xlu0 %5141
      %5143 = vrot.lane.b32.xlu0 %v4958, 64
      %v5144 = vpop.permute.xlu0 %5143
      %v5148 = vsel %vm1518, %v5139, 0
      %v5151 = vsel %vm1518, %v5140, 0
      %5153 = vmatprep.subr.bf16.mxu0 0
      %5154 = vmatpush1.bf16.msra.mxu0 0
      %5155 = vmatprep.subr.bf16.mxu0 0
      %5156 = vmatpush1.bf16.msra.mxu0 0
      %5157 = vmatprep.subr.bf16.mxu0 0
      %5158 = vmatpush1.bf16.msra.mxu0 0
      %5159 = vmatprep.subr.bf16.mxu0 0
      %5160 = vmatpush1.bf16.msra.mxu0 0
      %5161 = vmatprep.subr.bf16.mxu0 0
      %5162 = vmatpush1.bf16.msra.mxu0 0
      %5163 = vmatprep.subr.bf16.mxu0 0
      %5164 = vmatpush1.bf16.msra.mxu0 0
      %5165 = vmatprep.subr.bf16.mxu0 0
      %5166 = vmatpush1.bf16.msra.mxu0 %v5144
      %5167 = vmatprep.subr.bf16.mxu0 0
      %5168 = vmatpush1.bf16.msra.mxu0 %v5142
      %5169 = vmatprep.subr.bf16.mxu0 0
      %5170 = vmatpush2.bf16.msra.mxu0 0
      %5171 = vmatprep.subr.bf16.mxu0 0
      %5172 = vmatpush2.bf16.msra.mxu0 0
      %5173 = vmatprep.subr.bf16.mxu0 0
      %5174 = vmatpush2.bf16.msra.mxu0 0
      %5175 = vmatprep.subr.bf16.mxu0 0
      %5176 = vmatpush2.bf16.msra.mxu0 0
      %5177 = vmatprep.subr.bf16.mxu0 0
      %5178 = vmatpush2.bf16.msra.mxu0 0
      %5179 = vmatprep.subr.bf16.mxu0 0
      %5180 = vmatpush2.bf16.msra.mxu0 0
      %5181 = vmatprep.subr.bf16.mxu0 0
      %5182 = vmatpush2.bf16.msra.mxu0 0
      %5183 = vmatprep.subr.bf16.mxu0 0
      %5184 = vmatpush2.bf16.msra.mxu0 0
      %5185 = vmatprep.mubr.bf16.mxu0 0
      %5186 = vmatmul.mubr.bf16.gmra.mxu0 %v5148
      %v5187 = vpop.f32.mrf.mxu0
      %v5188 = vadd.f32 0.0, %v5187
      %v5189 = vpop.f32.mrf.mxu0
      %v5190 = vpop.f32.mrf.mxu0
      %v5191 = vadd.f32 0.0, %v5190
      %v5192 = vpop.f32.mrf.mxu0
      %5193 = vmatprep.mubr.bf16.mxu0 0
      %5194 = vmatmul.mubr.bf16.gmra.mxu0 %v5151
      %v5195 = vpop.f32.mrf.mxu0
      %v5196 = vadd.f32 0.0, %v5195
      %v5197 = vpop.f32.mrf.mxu0
      %v5198 = vpop.f32.mrf.mxu0
      %v5199 = vadd.f32 0.0, %v5198
      %v5200 = vpop.f32.mrf.mxu0
      %5201 = vdwg.mxu0
      %v5202 = vpack.c.bf16 %v5191, %v5188
      %v5203 = vpack.c.bf16 %v5199, %v5196
      %v5204 = vld [vmem:[%s6 + $0x120] sm:$0xf]
      %v5205 = vld [vmem:[%s6 + $0x124] sm:$0xf]
      %v5206 = vld [vmem:[%s6 + $0x128] sm:$0xf]
      %v5207 = vld [vmem:[%s6 + $0x12c] sm:$0xf]
      %v5208 = vld [vmem:[%s6 + $0x130] sm:$0xf]
      %v5209 = vld [vmem:[%s6 + $0x134] sm:$0xf]
      %v5210 = vld [vmem:[%s6 + $0x138] sm:$0xf]
      %v5211 = vld [vmem:[%s6 + $0x13c] sm:$0xf]
      %v5220 = vunpack.c.l.b16 %v5204
      %v5221 = vunpack.c.l.b16 %v5205
      %v5222 = vunpack.c.l.b16 %v5206
      %v5223 = vunpack.c.l.b16 %v5207
      %v5224 = vunpack.c.l.b16 %v5208
      %v5225 = vunpack.c.l.b16 %v5209
      %v5226 = vunpack.c.l.b16 %v5210
      %v5227 = vunpack.c.l.b16 %v5211
      %v5228 = vpack.c.b16 %v5221, %v5220
      %v5229 = vpack.c.b16 %v5223, %v5222
      %v5230 = vpack.c.b16 %v5225, %v5224
      %v5231 = vpack.c.b16 %v5227, %v5226
      %v5237 = vsel %vm497, %v5202, 0
      %v5240 = vsel %vm497, %v5203, 0
      %5242 = vmatprep.subr.bf16.mxu0 0
      %5243 = vmatpush1.bf16.msra.mxu0 0
      %5244 = vmatprep.subr.bf16.mxu0 0
      %5245 = vmatpush1.bf16.msra.mxu0 0
      %5246 = vmatprep.subr.bf16.mxu0 0
      %5247 = vmatpush1.bf16.msra.mxu0 0
      %5248 = vmatprep.subr.bf16.mxu0 0
      %5249 = vmatpush1.bf16.msra.mxu0 0
      %5250 = vmatprep.subr.bf16.mxu0 0
      %5251 = vmatpush1.bf16.msra.mxu0 %v5231
      %5252 = vmatprep.subr.bf16.mxu0 0
      %5253 = vmatpush1.bf16.msra.mxu0 %v5230
      %5254 = vmatprep.subr.bf16.mxu0 0
      %5255 = vmatpush1.bf16.msra.mxu0 %v5229
      %5256 = vmatprep.subr.bf16.mxu0 0
      %5257 = vmatpush1.bf16.msra.mxu0 %v5228
      %5258 = vmatprep.subr.bf16.mxu0 0
      %5259 = vmatpush2.bf16.msra.mxu0 0
      %5260 = vmatprep.subr.bf16.mxu0 0
      %5261 = vmatpush2.bf16.msra.mxu0 0
      %5262 = vmatprep.subr.bf16.mxu0 0
      %5263 = vmatpush2.bf16.msra.mxu0 0
      %5264 = vmatprep.subr.bf16.mxu0 0
      %5265 = vmatpush2.bf16.msra.mxu0 0
      %5266 = vmatprep.subr.bf16.mxu0 0
      %5267 = vmatpush2.bf16.msra.mxu0 0
      %5268 = vmatprep.subr.bf16.mxu0 0
      %5269 = vmatpush2.bf16.msra.mxu0 0
      %5270 = vmatprep.subr.bf16.mxu0 0
      %5271 = vmatpush2.bf16.msra.mxu0 0
      %5272 = vmatprep.subr.bf16.mxu0 0
      %5273 = vmatpush2.bf16.msra.mxu0 0
      %5274 = vmatprep.mubr.bf16.mxu0 0
      %5275 = vmatmul.mubr.bf16.gmra.mxu0 %v5237
      %v5276 = vpop.f32.mrf.mxu0
      %v5277 = vadd.f32 0.0, %v5276
      %v5278 = vpop.f32.mrf.mxu0
      %v5279 = vpop.f32.mrf.mxu0
      %v5280 = vadd.f32 0.0, %v5279
      %v5281 = vpop.f32.mrf.mxu0
      %5282 = vmatprep.mubr.bf16.mxu0 0
      %5283 = vmatmul.mubr.bf16.gmra.mxu0 %v5240
      %v5284 = vpop.f32.mrf.mxu0
      %v5285 = vadd.f32 0.0, %v5284
      %v5286 = vpop.f32.mrf.mxu0
      %v5287 = vpop.f32.mrf.mxu0
      %v5288 = vadd.f32 0.0, %v5287
      %v5289 = vpop.f32.mrf.mxu0
      %5290 = vdwg.mxu0
      %v5299 = vunpack.c.l.b16 %v5018
      %v5300 = vunpack.c.l.b16 %v5019
      %v5301 = vunpack.c.l.b16 %v5020
      %v5302 = vunpack.c.l.b16 %v5021
      %v5303 = vunpack.c.l.b16 %v5022
      %v5304 = vunpack.c.l.b16 %v5023
      %v5305 = vunpack.c.l.b16 %v5024
      %v5306 = vunpack.c.l.b16 %v5025
      %v5307 = vpack.c.b16 %v5300, %v5299
      %v5308 = vpack.c.b16 %v5302, %v5301
      %v5309 = vpack.c.b16 %v5304, %v5303
      %v5310 = vpack.c.b16 %v5306, %v5305
      %v5316 = vsel %vm497, %v5016, 0
      %v5319 = vsel %vm497, %v5017, 0
      %5321 = vmatprep.subr.bf16.mxu0 0
      %5322 = vmatpush1.bf16.msra.mxu0 0
      %5323 = vmatprep.subr.bf16.mxu0 0
      %5324 = vmatpush1.bf16.msra.mxu0 0
      %5325 = vmatprep.subr.bf16.mxu0 0
      %5326 = vmatpush1.bf16.msra.mxu0 0
      %5327 = vmatprep.subr.bf16.mxu0 0
      %5328 = vmatpush1.bf16.msra.mxu0 0
      %5329 = vmatprep.subr.bf16.mxu0 0
      %5330 = vmatpush1.bf16.msra.mxu0 %v5310
      %5331 = vmatprep.subr.bf16.mxu0 0
      %5332 = vmatpush1.bf16.msra.mxu0 %v5309
      %5333 = vmatprep.subr.bf16.mxu0 0
      %5334 = vmatpush1.bf16.msra.mxu0 %v5308
      %5335 = vmatprep.subr.bf16.mxu0 0
      %5336 = vmatpush1.bf16.msra.mxu0 %v5307
      %5337 = vmatprep.subr.bf16.mxu0 0
      %5338 = vmatpush2.bf16.msra.mxu0 0
      %5339 = vmatprep.subr.bf16.mxu0 0
      %5340 = vmatpush2.bf16.msra.mxu0 0
      %5341 = vmatprep.subr.bf16.mxu0 0
      %5342 = vmatpush2.bf16.msra.mxu0 0
      %5343 = vmatprep.subr.bf16.mxu0 0
      %5344 = vmatpush2.bf16.msra.mxu0 0
      %5345 = vmatprep.subr.bf16.mxu0 0
      %5346 = vmatpush2.bf16.msra.mxu0 0
      %5347 = vmatprep.subr.bf16.mxu0 0
      %5348 = vmatpush2.bf16.msra.mxu0 0
      %5349 = vmatprep.subr.bf16.mxu0 0
      %5350 = vmatpush2.bf16.msra.mxu0 0
      %5351 = vmatprep.subr.bf16.mxu0 0
      %5352 = vmatpush2.bf16.msra.mxu0 0
      %5353 = vmatprep.mubr.bf16.mxu0 0
      %5354 = vmatmul.mubr.bf16.gmra.mxu0 %v5316
      %v5355 = vpop.f32.mrf.mxu0
      %v5356 = vadd.f32 %v5277, %v5355
      %v5357 = vpop.f32.mrf.mxu0
      %v5358 = vpop.f32.mrf.mxu0
      %v5359 = vadd.f32 %v5280, %v5358
      %v5360 = vpop.f32.mrf.mxu0
      %5361 = vmatprep.mubr.bf16.mxu0 0
      %5362 = vmatmul.mubr.bf16.gmra.mxu0 %v5319
      %v5363 = vpop.f32.mrf.mxu0
      %v5364 = vadd.f32 %v5285, %v5363
      %v5365 = vpop.f32.mrf.mxu0
      %v5366 = vpop.f32.mrf.mxu0
      %v5367 = vadd.f32 %v5288, %v5366
      %v5368 = vpop.f32.mrf.mxu0
      %5369 = vdwg.mxu0
      %v5370 = vld [vmem:[#allocation2 + $0x4] sm:$0xf]
      %v5371 = vld [vmem:[#allocation2 + $0x34] sm:$0xf]
      %v5372 = vld [vmem:[#allocation2 + $0x64] sm:$0xf]
      %v5373 = vld [vmem:[#allocation2 + $0x94] sm:$0xf]
      %v5374 = vld [vmem:[#allocation2 + $0x14] sm:$0xf]
      %v5375 = vld [vmem:[#allocation2 + $0x44] sm:$0xf]
      %v5376 = vld [vmem:[#allocation2 + $0x74] sm:$0xf]
      %v5377 = vld [vmem:[#allocation2 + $0xa4] sm:$0xf]
      %v5378 = vld [vmem:[#allocation2 + $0x24] sm:$0xf]
      %v5379 = vld [vmem:[#allocation2 + $0x54] sm:$0xf]
      %v5380 = vld [vmem:[#allocation2 + $0x84] sm:$0xf]
      %v5381 = vld [vmem:[#allocation2 + $0xb4] sm:$0xf]
      %v5386 = vunpack.c.l.b16 %v5370
      %v5387 = vunpack.c.l.b16 %v5371
      %v5388 = vunpack.c.l.b16 %v5372
      %v5389 = vunpack.c.l.b16 %v5373
      %v5390 = vpack.c.b16 %v5387, %v5386
      %v5391 = vpack.c.b16 %v5389, %v5388
      %v5396 = vunpack.c.l.b16 %v5374
      %v5397 = vunpack.c.l.b16 %v5375
      %v5398 = vunpack.c.l.b16 %v5376
      %v5399 = vunpack.c.l.b16 %v5377
      %v5400 = vpack.c.b16 %v5397, %v5396
      %v5401 = vpack.c.b16 %v5399, %v5398
      %v5403 = vsel %vm497, %v5390, 0
      %v5406 = vsel %vm497, %v5391, 0
      %v5409 = vsel %vm497, %v5400, 0
      %v5412 = vsel %vm497, %v5401, 0
      %5414 = vmatprep.subr.bf16.mxu0 0
      %5415 = vmatpush1.bf16.xpose.msra.mxu0 0
      %5416 = vmatprep.subr.bf16.mxu0 0
      %5417 = vmatpush1.bf16.xpose.msra.mxu0 0
      %5418 = vmatprep.subr.bf16.mxu0 0
      %5419 = vmatpush1.bf16.xpose.msra.mxu0 0
      %5420 = vmatprep.subr.bf16.mxu0 0
      %5421 = vmatpush1.bf16.xpose.msra.mxu0 0
      %5422 = vmatprep.subr.bf16.mxu0 0
      %5423 = vmatpush1.bf16.xpose.msra.mxu0 0
      %5424 = vmatprep.subr.bf16.mxu0 0
      %5425 = vmatpush1.bf16.xpose.msra.mxu0 0
      %5426 = vmatprep.subr.bf16.mxu0 0
      %5427 = vmatpush1.bf16.xpose.msra.mxu0 %v5412
      %5428 = vmatprep.subr.bf16.mxu0 0
      %5429 = vmatpush1.bf16.xpose.msra.mxu0 %v5409
      %5430 = vmatprep.subr.bf16.mxu0 0
      %5431 = vmatpush2.bf16.xpose.msra.mxu0 0
      %5432 = vmatprep.subr.bf16.mxu0 0
      %5433 = vmatpush2.bf16.xpose.msra.mxu0 0
      %5434 = vmatprep.subr.bf16.mxu0 0
      %5435 = vmatpush2.bf16.xpose.msra.mxu0 0
      %5436 = vmatprep.subr.bf16.mxu0 0
      %5437 = vmatpush2.bf16.xpose.msra.mxu0 0
      %5438 = vmatprep.subr.bf16.mxu0 0
      %5439 = vmatpush2.bf16.xpose.msra.mxu0 0
      %5440 = vmatprep.subr.bf16.mxu0 0
      %5441 = vmatpush2.bf16.xpose.msra.mxu0 0
      %5442 = vmatprep.subr.bf16.mxu0 0
      %5443 = vmatpush2.bf16.xpose.msra.mxu0 0
      %5444 = vmatprep.subr.bf16.mxu0 0
      %5445 = vmatpush2.bf16.xpose.msra.mxu0 0
      %5446 = vmatprep.mubr.bf16.mxu0 0
      %5447 = vmatmul.mubr.bf16.gmra.mxu0 %v5403
      %v5448 = vpop.f32.mrf.mxu0
      %v5449 = vadd.f32 %v315, %v5448
      %v5450 = vpop.f32.mrf.mxu0
      %v5451 = vpop.f32.mrf.mxu0
      %v5452 = vadd.f32 %v315, %v5451
      %v5453 = vpop.f32.mrf.mxu0
      %5454 = vmatprep.mubr.bf16.mxu0 0
      %5455 = vmatmul.mubr.bf16.gmra.mxu0 %v5406
      %v5456 = vpop.f32.mrf.mxu0
      %v5457 = vadd.f32 %v315, %v5456
      %v5458 = vpop.f32.mrf.mxu0
      %v5459 = vpop.f32.mrf.mxu0
      %v5460 = vadd.f32 %v315, %v5459
      %v5461 = vpop.f32.mrf.mxu0
      %5462 = vdwg.mxu0
      %v5463 = vsel %vm1518, %v5449, -inf
      %5464 = vmax.xlane.f32.xlu0 %v5463
      %v5465 = vpop.xlane.xlu0 %5464
      %v5466 = vsel %vm1518, %v5452, -inf
      %5467 = vmax.xlane.f32.xlu0 %v5466
      %v5468 = vpop.xlane.xlu0 %5467
      %v5469 = vsel %vm1518, %v5457, -inf
      %5470 = vmax.xlane.f32.xlu0 %v5469
      %v5471 = vpop.xlane.xlu0 %5470
      %v5472 = vsel %vm1518, %v5460, -inf
      %5473 = vmax.xlane.f32.xlu0 %v5472
      %v5474 = vpop.xlane.xlu0 %5473
      %v5475 = vsub.f32 %v5449, %v5465
      %v5476 = vsub.f32 %v5452, %v5468
      %v5477 = vsub.f32 %v5457, %v5471
      %v5478 = vsub.f32 %v5460, %v5474
      %v5479 = vmul.f32 %v5475, 1.442695
      %v5480 = vpow.pop %v5479
      %v5481 = vmul.f32 %v5476, 1.442695
      %v5482 = vpow.pop %v5481
      %v5483 = vmul.f32 %v5477, 1.442695
      %v5484 = vpow.pop %v5483
      %v5485 = vmul.f32 %v5478, 1.442695
      %v5486 = vpow.pop %v5485
      %v5487 = vsel %vm1518, %v5480, 0.0
      %5488 = vadd.xlane.f32.xlu0 %v5487
      %v5489 = vpop.xlane.xlu0 %5488
      %v5490 = vsel %vm1518, %v5482, 0.0
      %5491 = vadd.xlane.f32.xlu0 %v5490
      %v5492 = vpop.xlane.xlu0 %5491
      %v5493 = vsel %vm1518, %v5484, 0.0
      %5494 = vadd.xlane.f32.xlu0 %v5493
      %v5495 = vpop.xlane.xlu0 %5494
      %v5496 = vsel %vm1518, %v5486, 0.0
      %5497 = vadd.xlane.f32.xlu0 %v5496
      %v5498 = vpop.xlane.xlu0 %5497
      %v5499 = vrcp.pop %v5489
      %v5500 = vrcp.pop %v5492
      %v5501 = vrcp.pop %v5495
      %v5502 = vrcp.pop %v5498
      %v5503 = vmul.f32 %v5480, %v5499
      %v5504 = vmul.f32 %v5482, %v5500
      %v5505 = vmul.f32 %v5484, %v5501
      %v5506 = vmul.f32 %v5486, %v5502
      %v5507 = vpack.c.bf16 %v5504, %v5503
      %v5508 = vpack.c.bf16 %v5506, %v5505
      %v5513 = vunpack.c.l.b16 %v5378
      %v5514 = vunpack.c.l.b16 %v5379
      %v5515 = vunpack.c.l.b16 %v5380
      %v5516 = vunpack.c.l.b16 %v5381
      %v5517 = vpack.c.b16 %v5514, %v5513
      %v5518 = vpack.c.b16 %v5516, %v5515
      %v5522 = vsel %vm1518, %v5507, 0
      %v5525 = vsel %vm1518, %v5508, 0
      %5527 = vmatprep.subr.bf16.mxu0 0
      %5528 = vmatpush1.bf16.msra.mxu0 0
      %5529 = vmatprep.subr.bf16.mxu0 0
      %5530 = vmatpush1.bf16.msra.mxu0 0
      %5531 = vmatprep.subr.bf16.mxu0 0
      %5532 = vmatpush1.bf16.msra.mxu0 0
      %5533 = vmatprep.subr.bf16.mxu0 0
      %5534 = vmatpush1.bf16.msra.mxu0 0
      %5535 = vmatprep.subr.bf16.mxu0 0
      %5536 = vmatpush1.bf16.msra.mxu0 0
      %5537 = vmatprep.subr.bf16.mxu0 0
      %5538 = vmatpush1.bf16.msra.mxu0 0
      %5539 = vmatprep.subr.bf16.mxu0 0
      %5540 = vmatpush1.bf16.msra.mxu0 %v5518
      %5541 = vmatprep.subr.bf16.mxu0 0
      %5542 = vmatpush1.bf16.msra.mxu0 %v5517
      %5543 = vmatprep.subr.bf16.mxu0 0
      %5544 = vmatpush2.bf16.msra.mxu0 0
      %5545 = vmatprep.subr.bf16.mxu0 0
      %5546 = vmatpush2.bf16.msra.mxu0 0
      %5547 = vmatprep.subr.bf16.mxu0 0
      %5548 = vmatpush2.bf16.msra.mxu0 0
      %5549 = vmatprep.subr.bf16.mxu0 0
      %5550 = vmatpush2.bf16.msra.mxu0 0
      %5551 = vmatprep.subr.bf16.mxu0 0
      %5552 = vmatpush2.bf16.msra.mxu0 0
      %5553 = vmatprep.subr.bf16.mxu0 0
      %5554 = vmatpush2.bf16.msra.mxu0 0
      %5555 = vmatprep.subr.bf16.mxu0 0
      %5556 = vmatpush2.bf16.msra.mxu0 0
      %5557 = vmatprep.subr.bf16.mxu0 0
      %5558 = vmatpush2.bf16.msra.mxu0 0
      %5559 = vmatprep.mubr.bf16.mxu0 0
      %5560 = vmatmul.mubr.bf16.gmra.mxu0 %v5522
      %v5561 = vpop.f32.mrf.mxu0
      %v5562 = vadd.f32 0.0, %v5561
      %v5563 = vpop.f32.mrf.mxu0
      %v5564 = vpop.f32.mrf.mxu0
      %v5565 = vadd.f32 0.0, %v5564
      %v5566 = vpop.f32.mrf.mxu0
      %5567 = vmatprep.mubr.bf16.mxu0 0
      %5568 = vmatmul.mubr.bf16.gmra.mxu0 %v5525
      %v5569 = vpop.f32.mrf.mxu0
      %v5570 = vadd.f32 0.0, %v5569
      %v5571 = vpop.f32.mrf.mxu0
      %v5572 = vpop.f32.mrf.mxu0
      %v5573 = vadd.f32 0.0, %v5572
      %v5574 = vpop.f32.mrf.mxu0
      %5575 = vdwg.mxu0
      %v5576 = vpack.c.bf16 %v5565, %v5562
      %v5577 = vpack.c.bf16 %v5573, %v5570
      %v5578 = vld [vmem:[%s6 + $0x140] sm:$0xf]
      %v5579 = vld [vmem:[%s6 + $0x144] sm:$0xf]
      %v5580 = vld [vmem:[%s6 + $0x148] sm:$0xf]
      %v5581 = vld [vmem:[%s6 + $0x14c] sm:$0xf]
      %v5582 = vld [vmem:[%s6 + $0x150] sm:$0xf]
      %v5583 = vld [vmem:[%s6 + $0x154] sm:$0xf]
      %v5584 = vld [vmem:[%s6 + $0x158] sm:$0xf]
      %v5585 = vld [vmem:[%s6 + $0x15c] sm:$0xf]
      %v5594 = vunpack.c.l.b16 %v5578
      %v5595 = vunpack.c.l.b16 %v5579
      %v5596 = vunpack.c.l.b16 %v5580
      %v5597 = vunpack.c.l.b16 %v5581
      %v5598 = vunpack.c.l.b16 %v5582
      %v5599 = vunpack.c.l.b16 %v5583
      %v5600 = vunpack.c.l.b16 %v5584
      %v5601 = vunpack.c.l.b16 %v5585
      %v5602 = vpack.c.b16 %v5595, %v5594
      %v5603 = vpack.c.b16 %v5597, %v5596
      %v5604 = vpack.c.b16 %v5599, %v5598
      %v5605 = vpack.c.b16 %v5601, %v5600
      %v5611 = vsel %vm497, %v5576, 0
      %v5614 = vsel %vm497, %v5577, 0
      %5616 = vmatprep.subr.bf16.mxu0 0
      %5617 = vmatpush1.bf16.msra.mxu0 0
      %5618 = vmatprep.subr.bf16.mxu0 0
      %5619 = vmatpush1.bf16.msra.mxu0 0
      %5620 = vmatprep.subr.bf16.mxu0 0
      %5621 = vmatpush1.bf16.msra.mxu0 0
      %5622 = vmatprep.subr.bf16.mxu0 0
      %5623 = vmatpush1.bf16.msra.mxu0 0
      %5624 = vmatprep.subr.bf16.mxu0 0
      %5625 = vmatpush1.bf16.msra.mxu0 %v5605
      %5626 = vmatprep.subr.bf16.mxu0 0
      %5627 = vmatpush1.bf16.msra.mxu0 %v5604
      %5628 = vmatprep.subr.bf16.mxu0 0
      %5629 = vmatpush1.bf16.msra.mxu0 %v5603
      %5630 = vmatprep.subr.bf16.mxu0 0
      %5631 = vmatpush1.bf16.msra.mxu0 %v5602
      %5632 = vmatprep.subr.bf16.mxu0 0
      %5633 = vmatpush2.bf16.msra.mxu0 0
      %5634 = vmatprep.subr.bf16.mxu0 0
      %5635 = vmatpush2.bf16.msra.mxu0 0
      %5636 = vmatprep.subr.bf16.mxu0 0
      %5637 = vmatpush2.bf16.msra.mxu0 0
      %5638 = vmatprep.subr.bf16.mxu0 0
      %5639 = vmatpush2.bf16.msra.mxu0 0
      %5640 = vmatprep.subr.bf16.mxu0 0
      %5641 = vmatpush2.bf16.msra.mxu0 0
      %5642 = vmatprep.subr.bf16.mxu0 0
      %5643 = vmatpush2.bf16.msra.mxu0 0
      %5644 = vmatprep.subr.bf16.mxu0 0
      %5645 = vmatpush2.bf16.msra.mxu0 0
      %5646 = vmatprep.subr.bf16.mxu0 0
      %5647 = vmatpush2.bf16.msra.mxu0 0
      %5648 = vmatprep.mubr.bf16.mxu0 0
      %5649 = vmatmul.mubr.bf16.gmra.mxu0 %v5611
      %v5650 = vpop.f32.mrf.mxu0
      %v5651 = vadd.f32 0.0, %v5650
      %v5652 = vpop.f32.mrf.mxu0
      %v5653 = vpop.f32.mrf.mxu0
      %v5654 = vadd.f32 0.0, %v5653
      %v5655 = vpop.f32.mrf.mxu0
      %5656 = vmatprep.mubr.bf16.mxu0 0
      %5657 = vmatmul.mubr.bf16.gmra.mxu0 %v5614
      %v5658 = vpop.f32.mrf.mxu0
      %v5659 = vadd.f32 0.0, %v5658
      %v5660 = vpop.f32.mrf.mxu0
      %v5661 = vpop.f32.mrf.mxu0
      %v5662 = vadd.f32 0.0, %v5661
      %v5663 = vpop.f32.mrf.mxu0
      %5664 = vdwg.mxu0
      %v5665 = vadd.f32 %v5356, %v5651
      %v5666 = vadd.f32 %v5359, %v5654
      %v5667 = vadd.f32 %v5364, %v5659
      %v5668 = vadd.f32 %v5367, %v5662
      %5669 = vrot.lane.b32.xlu0 %v5390, 64
      %v5670 = vpop.permute.xlu0 %5669
      %5671 = vrot.lane.b32.xlu0 %v5391, 64
      %v5672 = vpop.permute.xlu0 %5671
      %5673 = vrot.lane.b32.xlu0 %v5400, 64
      %v5674 = vpop.permute.xlu0 %5673
      %5675 = vrot.lane.b32.xlu0 %v5401, 64
      %v5676 = vpop.permute.xlu0 %5675
      %v5678 = vsel %vm497, %v5670, 0
      %v5681 = vsel %vm497, %v5672, 0
      %v5684 = vsel %vm497, %v5674, 0
      %v5687 = vsel %vm497, %v5676, 0
      %5689 = vmatprep.subr.bf16.mxu0 0
      %5690 = vmatpush1.bf16.xpose.msra.mxu0 0
      %5691 = vmatprep.subr.bf16.mxu0 0
      %5692 = vmatpush1.bf16.xpose.msra.mxu0 0
      %5693 = vmatprep.subr.bf16.mxu0 0
      %5694 = vmatpush1.bf16.xpose.msra.mxu0 0
      %5695 = vmatprep.subr.bf16.mxu0 0
      %5696 = vmatpush1.bf16.xpose.msra.mxu0 0
      %5697 = vmatprep.subr.bf16.mxu0 0
      %5698 = vmatpush1.bf16.xpose.msra.mxu0 0
      %5699 = vmatprep.subr.bf16.mxu0 0
      %5700 = vmatpush1.bf16.xpose.msra.mxu0 0
      %5701 = vmatprep.subr.bf16.mxu0 0
      %5702 = vmatpush1.bf16.xpose.msra.mxu0 %v5687
      %5703 = vmatprep.subr.bf16.mxu0 0
      %5704 = vmatpush1.bf16.xpose.msra.mxu0 %v5684
      %5705 = vmatprep.subr.bf16.mxu0 0
      %5706 = vmatpush2.bf16.xpose.msra.mxu0 0
      %5707 = vmatprep.subr.bf16.mxu0 0
      %5708 = vmatpush2.bf16.xpose.msra.mxu0 0
      %5709 = vmatprep.subr.bf16.mxu0 0
      %5710 = vmatpush2.bf16.xpose.msra.mxu0 0
      %5711 = vmatprep.subr.bf16.mxu0 0
      %5712 = vmatpush2.bf16.xpose.msra.mxu0 0
      %5713 = vmatprep.subr.bf16.mxu0 0
      %5714 = vmatpush2.bf16.xpose.msra.mxu0 0
      %5715 = vmatprep.subr.bf16.mxu0 0
      %5716 = vmatpush2.bf16.xpose.msra.mxu0 0
      %5717 = vmatprep.subr.bf16.mxu0 0
      %5718 = vmatpush2.bf16.xpose.msra.mxu0 0
      %5719 = vmatprep.subr.bf16.mxu0 0
      %5720 = vmatpush2.bf16.xpose.msra.mxu0 0
      %5721 = vmatprep.mubr.bf16.mxu0 0
      %5722 = vmatmul.mubr.bf16.gmra.mxu0 %v5678
      %v5723 = vpop.f32.mrf.mxu0
      %v5724 = vadd.f32 %v315, %v5723
      %v5725 = vpop.f32.mrf.mxu0
      %v5726 = vpop.f32.mrf.mxu0
      %v5727 = vadd.f32 %v315, %v5726
      %v5728 = vpop.f32.mrf.mxu0
      %5729 = vmatprep.mubr.bf16.mxu0 0
      %5730 = vmatmul.mubr.bf16.gmra.mxu0 %v5681
      %v5731 = vpop.f32.mrf.mxu0
      %v5732 = vadd.f32 %v315, %v5731
      %v5733 = vpop.f32.mrf.mxu0
      %v5734 = vpop.f32.mrf.mxu0
      %v5735 = vadd.f32 %v315, %v5734
      %v5736 = vpop.f32.mrf.mxu0
      %5737 = vdwg.mxu0
      %v5738 = vsel %vm1518, %v5724, -inf
      %5739 = vmax.xlane.f32.xlu0 %v5738
      %v5740 = vpop.xlane.xlu0 %5739
      %v5741 = vsel %vm1518, %v5727, -inf
      %5742 = vmax.xlane.f32.xlu0 %v5741
      %v5743 = vpop.xlane.xlu0 %5742
      %v5744 = vsel %vm1518, %v5732, -inf
      %5745 = vmax.xlane.f32.xlu0 %v5744
      %v5746 = vpop.xlane.xlu0 %5745
      %v5747 = vsel %vm1518, %v5735, -inf
      %5748 = vmax.xlane.f32.xlu0 %v5747
      %v5749 = vpop.xlane.xlu0 %5748
      %v5750 = vsub.f32 %v5724, %v5740
      %v5751 = vsub.f32 %v5727, %v5743
      %v5752 = vsub.f32 %v5732, %v5746
      %v5753 = vsub.f32 %v5735, %v5749
      %v5754 = vmul.f32 %v5750, 1.442695
      %v5755 = vpow.pop %v5754
      %v5756 = vmul.f32 %v5751, 1.442695
      %v5757 = vpow.pop %v5756
      %v5758 = vmul.f32 %v5752, 1.442695
      %v5759 = vpow.pop %v5758
      %v5760 = vmul.f32 %v5753, 1.442695
      %v5761 = vpow.pop %v5760
      %v5762 = vsel %vm1518, %v5755, 0.0
      %5763 = vadd.xlane.f32.xlu0 %v5762
      %v5764 = vpop.xlane.xlu0 %5763
      %v5765 = vsel %vm1518, %v5757, 0.0
      %5766 = vadd.xlane.f32.xlu0 %v5765
      %v5767 = vpop.xlane.xlu0 %5766
      %v5768 = vsel %vm1518, %v5759, 0.0
      %5769 = vadd.xlane.f32.xlu0 %v5768
      %v5770 = vpop.xlane.xlu0 %5769
      %v5771 = vsel %vm1518, %v5761, 0.0
      %5772 = vadd.xlane.f32.xlu0 %v5771
      %v5773 = vpop.xlane.xlu0 %5772
      %v5774 = vrcp.pop %v5764
      %v5775 = vrcp.pop %v5767
      %v5776 = vrcp.pop %v5770
      %v5777 = vrcp.pop %v5773
      %v5778 = vmul.f32 %v5755, %v5774
      %v5779 = vmul.f32 %v5757, %v5775
      %v5780 = vmul.f32 %v5759, %v5776
      %v5781 = vmul.f32 %v5761, %v5777
      %v5782 = vpack.c.bf16 %v5779, %v5778
      %v5783 = vpack.c.bf16 %v5781, %v5780
      %5784 = vrot.lane.b32.xlu0 %v5517, 64
      %v5785 = vpop.permute.xlu0 %5784
      %5786 = vrot.lane.b32.xlu0 %v5518, 64
      %v5787 = vpop.permute.xlu0 %5786
      %v5791 = vsel %vm1518, %v5782, 0
      %v5794 = vsel %vm1518, %v5783, 0
      %5796 = vmatprep.subr.bf16.mxu0 0
      %5797 = vmatpush1.bf16.msra.mxu0 0
      %5798 = vmatprep.subr.bf16.mxu0 0
      %5799 = vmatpush1.bf16.msra.mxu0 0
      %5800 = vmatprep.subr.bf16.mxu0 0
      %5801 = vmatpush1.bf16.msra.mxu0 0
      %5802 = vmatprep.subr.bf16.mxu0 0
      %5803 = vmatpush1.bf16.msra.mxu0 0
      %5804 = vmatprep.subr.bf16.mxu0 0
      %5805 = vmatpush1.bf16.msra.mxu0 0
      %5806 = vmatprep.subr.bf16.mxu0 0
      %5807 = vmatpush1.bf16.msra.mxu0 0
      %5808 = vmatprep.subr.bf16.mxu0 0
      %5809 = vmatpush1.bf16.msra.mxu0 %v5787
      %5810 = vmatprep.subr.bf16.mxu0 0
      %5811 = vmatpush1.bf16.msra.mxu0 %v5785
      %5812 = vmatprep.subr.bf16.mxu0 0
      %5813 = vmatpush2.bf16.msra.mxu0 0
      %5814 = vmatprep.subr.bf16.mxu0 0
      %5815 = vmatpush2.bf16.msra.mxu0 0
      %5816 = vmatprep.subr.bf16.mxu0 0
      %5817 = vmatpush2.bf16.msra.mxu0 0
      %5818 = vmatprep.subr.bf16.mxu0 0
      %5819 = vmatpush2.bf16.msra.mxu0 0
      %5820 = vmatprep.subr.bf16.mxu0 0
      %5821 = vmatpush2.bf16.msra.mxu0 0
      %5822 = vmatprep.subr.bf16.mxu0 0
      %5823 = vmatpush2.bf16.msra.mxu0 0
      %5824 = vmatprep.subr.bf16.mxu0 0
      %5825 = vmatpush2.bf16.msra.mxu0 0
      %5826 = vmatprep.subr.bf16.mxu0 0
      %5827 = vmatpush2.bf16.msra.mxu0 0
      %5828 = vmatprep.mubr.bf16.mxu0 0
      %5829 = vmatmul.mubr.bf16.gmra.mxu0 %v5791
      %v5830 = vpop.f32.mrf.mxu0
      %v5831 = vadd.f32 0.0, %v5830
      %v5832 = vpop.f32.mrf.mxu0
      %v5833 = vpop.f32.mrf.mxu0
      %v5834 = vadd.f32 0.0, %v5833
      %v5835 = vpop.f32.mrf.mxu0
      %5836 = vmatprep.mubr.bf16.mxu0 0
      %5837 = vmatmul.mubr.bf16.gmra.mxu0 %v5794
      %v5838 = vpop.f32.mrf.mxu0
      %v5839 = vadd.f32 0.0, %v5838
      %v5840 = vpop.f32.mrf.mxu0
      %v5841 = vpop.f32.mrf.mxu0
      %v5842 = vadd.f32 0.0, %v5841
      %v5843 = vpop.f32.mrf.mxu0
      %5844 = vdwg.mxu0
      %v5845 = vpack.c.bf16 %v5834, %v5831
      %v5846 = vpack.c.bf16 %v5842, %v5839
      %v5847 = vld [vmem:[%s6 + $0x160] sm:$0xf]
      %v5848 = vld [vmem:[%s6 + $0x164] sm:$0xf]
      %v5849 = vld [vmem:[%s6 + $0x168] sm:$0xf]
      %v5850 = vld [vmem:[%s6 + $0x16c] sm:$0xf]
      %v5851 = vld [vmem:[%s6 + $0x170] sm:$0xf]
      %v5852 = vld [vmem:[%s6 + $0x174] sm:$0xf]
      %v5853 = vld [vmem:[%s6 + $0x178] sm:$0xf]
      %v5854 = vld [vmem:[%s6 + $0x17c] sm:$0xf]
      %v5863 = vunpack.c.l.b16 %v5847
      %v5864 = vunpack.c.l.b16 %v5848
      %v5865 = vunpack.c.l.b16 %v5849
      %v5866 = vunpack.c.l.b16 %v5850
      %v5867 = vunpack.c.l.b16 %v5851
      %v5868 = vunpack.c.l.b16 %v5852
      %v5869 = vunpack.c.l.b16 %v5853
      %v5870 = vunpack.c.l.b16 %v5854
      %v5871 = vpack.c.b16 %v5864, %v5863
      %v5872 = vpack.c.b16 %v5866, %v5865
      %v5873 = vpack.c.b16 %v5868, %v5867
      %v5874 = vpack.c.b16 %v5870, %v5869
      %v5880 = vsel %vm497, %v5845, 0
      %v5883 = vsel %vm497, %v5846, 0
      %5885 = vmatprep.subr.bf16.mxu0 0
      %5886 = vmatpush1.bf16.msra.mxu0 0
      %5887 = vmatprep.subr.bf16.mxu0 0
      %5888 = vmatpush1.bf16.msra.mxu0 0
      %5889 = vmatprep.subr.bf16.mxu0 0
      %5890 = vmatpush1.bf16.msra.mxu0 0
      %5891 = vmatprep.subr.bf16.mxu0 0
      %5892 = vmatpush1.bf16.msra.mxu0 0
      %5893 = vmatprep.subr.bf16.mxu0 0
      %5894 = vmatpush1.bf16.msra.mxu0 %v5874
      %5895 = vmatprep.subr.bf16.mxu0 0
      %5896 = vmatpush1.bf16.msra.mxu0 %v5873
      %5897 = vmatprep.subr.bf16.mxu0 0
      %5898 = vmatpush1.bf16.msra.mxu0 %v5872
      %5899 = vmatprep.subr.bf16.mxu0 0
      %5900 = vmatpush1.bf16.msra.mxu0 %v5871
      %5901 = vmatprep.subr.bf16.mxu0 0
      %5902 = vmatpush2.bf16.msra.mxu0 0
      %5903 = vmatprep.subr.bf16.mxu0 0
      %5904 = vmatpush2.bf16.msra.mxu0 0
      %5905 = vmatprep.subr.bf16.mxu0 0
      %5906 = vmatpush2.bf16.msra.mxu0 0
      %5907 = vmatprep.subr.bf16.mxu0 0
      %5908 = vmatpush2.bf16.msra.mxu0 0
      %5909 = vmatprep.subr.bf16.mxu0 0
      %5910 = vmatpush2.bf16.msra.mxu0 0
      %5911 = vmatprep.subr.bf16.mxu0 0
      %5912 = vmatpush2.bf16.msra.mxu0 0
      %5913 = vmatprep.subr.bf16.mxu0 0
      %5914 = vmatpush2.bf16.msra.mxu0 0
      %5915 = vmatprep.subr.bf16.mxu0 0
      %5916 = vmatpush2.bf16.msra.mxu0 0
      %5917 = vmatprep.mubr.bf16.mxu0 0
      %5918 = vmatmul.mubr.bf16.gmra.mxu0 %v5880
      %v5919 = vpop.f32.mrf.mxu0
      %v5920 = vadd.f32 0.0, %v5919
      %v5921 = vpop.f32.mrf.mxu0
      %v5922 = vpop.f32.mrf.mxu0
      %v5923 = vadd.f32 0.0, %v5922
      %v5924 = vpop.f32.mrf.mxu0
      %5925 = vmatprep.mubr.bf16.mxu0 0
      %5926 = vmatmul.mubr.bf16.gmra.mxu0 %v5883
      %v5927 = vpop.f32.mrf.mxu0
      %v5928 = vadd.f32 0.0, %v5927
      %v5929 = vpop.f32.mrf.mxu0
      %v5930 = vpop.f32.mrf.mxu0
      %v5931 = vadd.f32 0.0, %v5930
      %v5932 = vpop.f32.mrf.mxu0
      %5933 = vdwg.mxu0
      %v5934 = vadd.f32 %v5665, %v5920
      %v5935 = vadd.f32 %v5666, %v5923
      %v5936 = vadd.f32 %v5667, %v5928
      %v5937 = vadd.f32 %v5668, %v5931
      %v5938 = vld [vmem:[#allocation2 + $0x8] sm:$0xf]
      %v5939 = vld [vmem:[#allocation2 + $0x38] sm:$0xf]
      %v5940 = vld [vmem:[#allocation2 + $0x68] sm:$0xf]
      %v5941 = vld [vmem:[#allocation2 + $0x98] sm:$0xf]
      %v5942 = vld [vmem:[#allocation2 + $0x18] sm:$0xf]
      %v5943 = vld [vmem:[#allocation2 + $0x48] sm:$0xf]
      %v5944 = vld [vmem:[#allocation2 + $0x78] sm:$0xf]
      %v5945 = vld [vmem:[#allocation2 + $0xa8] sm:$0xf]
      %v5946 = vld [vmem:[#allocation2 + $0x28] sm:$0xf]
      %v5947 = vld [vmem:[#allocation2 + $0x58] sm:$0xf]
      %v5948 = vld [vmem:[#allocation2 + $0x88] sm:$0xf]
      %v5949 = vld [vmem:[#allocation2 + $0xb8] sm:$0xf]
      %v5954 = vunpack.c.l.b16 %v5938
      %v5955 = vunpack.c.l.b16 %v5939
      %v5956 = vunpack.c.l.b16 %v5940
      %v5957 = vunpack.c.l.b16 %v5941
      %v5958 = vpack.c.b16 %v5955, %v5954
      %v5959 = vpack.c.b16 %v5957, %v5956
      %v5964 = vunpack.c.l.b16 %v5942
      %v5965 = vunpack.c.l.b16 %v5943
      %v5966 = vunpack.c.l.b16 %v5944
      %v5967 = vunpack.c.l.b16 %v5945
      %v5968 = vpack.c.b16 %v5965, %v5964
      %v5969 = vpack.c.b16 %v5967, %v5966
      %v5971 = vsel %vm497, %v5958, 0
      %v5974 = vsel %vm497, %v5959, 0
      %v5977 = vsel %vm497, %v5968, 0
      %v5980 = vsel %vm497, %v5969, 0
      %5982 = vmatprep.subr.bf16.mxu0 0
      %5983 = vmatpush1.bf16.xpose.msra.mxu0 0
      %5984 = vmatprep.subr.bf16.mxu0 0
      %5985 = vmatpush1.bf16.xpose.msra.mxu0 0
      %5986 = vmatprep.subr.bf16.mxu0 0
      %5987 = vmatpush1.bf16.xpose.msra.mxu0 0
      %5988 = vmatprep.subr.bf16.mxu0 0
      %5989 = vmatpush1.bf16.xpose.msra.mxu0 0
      %5990 = vmatprep.subr.bf16.mxu0 0
      %5991 = vmatpush1.bf16.xpose.msra.mxu0 0
      %5992 = vmatprep.subr.bf16.mxu0 0
      %5993 = vmatpush1.bf16.xpose.msra.mxu0 0
      %5994 = vmatprep.subr.bf16.mxu0 0
      %5995 = vmatpush1.bf16.xpose.msra.mxu0 %v5980
      %5996 = vmatprep.subr.bf16.mxu0 0
      %5997 = vmatpush1.bf16.xpose.msra.mxu0 %v5977
      %5998 = vmatprep.subr.bf16.mxu0 0
      %5999 = vmatpush2.bf16.xpose.msra.mxu0 0
      %6000 = vmatprep.subr.bf16.mxu0 0
      %6001 = vmatpush2.bf16.xpose.msra.mxu0 0
      %6002 = vmatprep.subr.bf16.mxu0 0
      %6003 = vmatpush2.bf16.xpose.msra.mxu0 0
      %6004 = vmatprep.subr.bf16.mxu0 0
      %6005 = vmatpush2.bf16.xpose.msra.mxu0 0
      %6006 = vmatprep.subr.bf16.mxu0 0
      %6007 = vmatpush2.bf16.xpose.msra.mxu0 0
      %6008 = vmatprep.subr.bf16.mxu0 0
      %6009 = vmatpush2.bf16.xpose.msra.mxu0 0
      %6010 = vmatprep.subr.bf16.mxu0 0
      %6011 = vmatpush2.bf16.xpose.msra.mxu0 0
      %6012 = vmatprep.subr.bf16.mxu0 0
      %6013 = vmatpush2.bf16.xpose.msra.mxu0 0
      %6014 = vmatprep.mubr.bf16.mxu0 0
      %6015 = vmatmul.mubr.bf16.gmra.mxu0 %v5971
      %v6016 = vpop.f32.mrf.mxu0
      %v6017 = vadd.f32 %v315, %v6016
      %v6018 = vpop.f32.mrf.mxu0
      %v6019 = vpop.f32.mrf.mxu0
      %v6020 = vadd.f32 %v315, %v6019
      %v6021 = vpop.f32.mrf.mxu0
      %6022 = vmatprep.mubr.bf16.mxu0 0
      %6023 = vmatmul.mubr.bf16.gmra.mxu0 %v5974
      %v6024 = vpop.f32.mrf.mxu0
      %v6025 = vadd.f32 %v315, %v6024
      %v6026 = vpop.f32.mrf.mxu0
      %v6027 = vpop.f32.mrf.mxu0
      %v6028 = vadd.f32 %v315, %v6027
      %v6029 = vpop.f32.mrf.mxu0
      %6030 = vdwg.mxu0
      %v6031 = vsel %vm1518, %v6017, -inf
      %6032 = vmax.xlane.f32.xlu0 %v6031
      %v6033 = vpop.xlane.xlu0 %6032
      %v6034 = vsel %vm1518, %v6020, -inf
      %6035 = vmax.xlane.f32.xlu0 %v6034
      %v6036 = vpop.xlane.xlu0 %6035
      %v6037 = vsel %vm1518, %v6025, -inf
      %6038 = vmax.xlane.f32.xlu0 %v6037
      %v6039 = vpop.xlane.xlu0 %6038
      %v6040 = vsel %vm1518, %v6028, -inf
      %6041 = vmax.xlane.f32.xlu0 %v6040
      %v6042 = vpop.xlane.xlu0 %6041
      %v6043 = vsub.f32 %v6017, %v6033
      %v6044 = vsub.f32 %v6020, %v6036
      %v6045 = vsub.f32 %v6025, %v6039
      %v6046 = vsub.f32 %v6028, %v6042
      %v6047 = vmul.f32 %v6043, 1.442695
      %v6048 = vpow.pop %v6047
      %v6049 = vmul.f32 %v6044, 1.442695
      %v6050 = vpow.pop %v6049
      %v6051 = vmul.f32 %v6045, 1.442695
      %v6052 = vpow.pop %v6051
      %v6053 = vmul.f32 %v6046, 1.442695
      %v6054 = vpow.pop %v6053
      %v6055 = vsel %vm1518, %v6048, 0.0
      %6056 = vadd.xlane.f32.xlu0 %v6055
      %v6057 = vpop.xlane.xlu0 %6056
      %v6058 = vsel %vm1518, %v6050, 0.0
      %6059 = vadd.xlane.f32.xlu0 %v6058
      %v6060 = vpop.xlane.xlu0 %6059
      %v6061 = vsel %vm1518, %v6052, 0.0
      %6062 = vadd.xlane.f32.xlu0 %v6061
      %v6063 = vpop.xlane.xlu0 %6062
      %v6064 = vsel %vm1518, %v6054, 0.0
      %6065 = vadd.xlane.f32.xlu0 %v6064
      %v6066 = vpop.xlane.xlu0 %6065
      %v6067 = vrcp.pop %v6057
      %v6068 = vrcp.pop %v6060
      %v6069 = vrcp.pop %v6063
      %v6070 = vrcp.pop %v6066
      %v6071 = vmul.f32 %v6048, %v6067
      %v6072 = vmul.f32 %v6050, %v6068
      %v6073 = vmul.f32 %v6052, %v6069
      %v6074 = vmul.f32 %v6054, %v6070
      %v6075 = vpack.c.bf16 %v6072, %v6071
      %v6076 = vpack.c.bf16 %v6074, %v6073
      %v6081 = vunpack.c.l.b16 %v5946
      %v6082 = vunpack.c.l.b16 %v5947
      %v6083 = vunpack.c.l.b16 %v5948
      %v6084 = vunpack.c.l.b16 %v5949
      %v6085 = vpack.c.b16 %v6082, %v6081
      %v6086 = vpack.c.b16 %v6084, %v6083
      %v6090 = vsel %vm1518, %v6075, 0
      %v6093 = vsel %vm1518, %v6076, 0
      %6095 = vmatprep.subr.bf16.mxu0 0
      %6096 = vmatpush1.bf16.msra.mxu0 0
      %6097 = vmatprep.subr.bf16.mxu0 0
      %6098 = vmatpush1.bf16.msra.mxu0 0
      %6099 = vmatprep.subr.bf16.mxu0 0
      %6100 = vmatpush1.bf16.msra.mxu0 0
      %6101 = vmatprep.subr.bf16.mxu0 0
      %6102 = vmatpush1.bf16.msra.mxu0 0
      %6103 = vmatprep.subr.bf16.mxu0 0
      %6104 = vmatpush1.bf16.msra.mxu0 0
      %6105 = vmatprep.subr.bf16.mxu0 0
      %6106 = vmatpush1.bf16.msra.mxu0 0
      %6107 = vmatprep.subr.bf16.mxu0 0
      %6108 = vmatpush1.bf16.msra.mxu0 %v6086
      %6109 = vmatprep.subr.bf16.mxu0 0
      %6110 = vmatpush1.bf16.msra.mxu0 %v6085
      %6111 = vmatprep.subr.bf16.mxu0 0
      %6112 = vmatpush2.bf16.msra.mxu0 0
      %6113 = vmatprep.subr.bf16.mxu0 0
      %6114 = vmatpush2.bf16.msra.mxu0 0
      %6115 = vmatprep.subr.bf16.mxu0 0
      %6116 = vmatpush2.bf16.msra.mxu0 0
      %6117 = vmatprep.subr.bf16.mxu0 0
      %6118 = vmatpush2.bf16.msra.mxu0 0
      %6119 = vmatprep.subr.bf16.mxu0 0
      %6120 = vmatpush2.bf16.msra.mxu0 0
      %6121 = vmatprep.subr.bf16.mxu0 0
      %6122 = vmatpush2.bf16.msra.mxu0 0
      %6123 = vmatprep.subr.bf16.mxu0 0
      %6124 = vmatpush2.bf16.msra.mxu0 0
      %6125 = vmatprep.subr.bf16.mxu0 0
      %6126 = vmatpush2.bf16.msra.mxu0 0
      %6127 = vmatprep.mubr.bf16.mxu0 0
      %6128 = vmatmul.mubr.bf16.gmra.mxu0 %v6090
      %v6129 = vpop.f32.mrf.mxu0
      %v6130 = vadd.f32 0.0, %v6129
      %v6131 = vpop.f32.mrf.mxu0
      %v6132 = vpop.f32.mrf.mxu0
      %v6133 = vadd.f32 0.0, %v6132
      %v6134 = vpop.f32.mrf.mxu0
      %6135 = vmatprep.mubr.bf16.mxu0 0
      %6136 = vmatmul.mubr.bf16.gmra.mxu0 %v6093
      %v6137 = vpop.f32.mrf.mxu0
      %v6138 = vadd.f32 0.0, %v6137
      %v6139 = vpop.f32.mrf.mxu0
      %v6140 = vpop.f32.mrf.mxu0
      %v6141 = vadd.f32 0.0, %v6140
      %v6142 = vpop.f32.mrf.mxu0
      %6143 = vdwg.mxu0
      %v6144 = vpack.c.bf16 %v6133, %v6130
      %v6145 = vpack.c.bf16 %v6141, %v6138
      %v6146 = vld [vmem:[%s6 + $0x180] sm:$0xf]
      %v6147 = vld [vmem:[%s6 + $0x184] sm:$0xf]
      %v6148 = vld [vmem:[%s6 + $0x188] sm:$0xf]
      %v6149 = vld [vmem:[%s6 + $0x18c] sm:$0xf]
      %v6150 = vld [vmem:[%s6 + $0x190] sm:$0xf]
      %v6151 = vld [vmem:[%s6 + $0x194] sm:$0xf]
      %v6152 = vld [vmem:[%s6 + $0x198] sm:$0xf]
      %v6153 = vld [vmem:[%s6 + $0x19c] sm:$0xf]
      %v6162 = vunpack.c.l.b16 %v6146
      %v6163 = vunpack.c.l.b16 %v6147
      %v6164 = vunpack.c.l.b16 %v6148
      %v6165 = vunpack.c.l.b16 %v6149
      %v6166 = vunpack.c.l.b16 %v6150
      %v6167 = vunpack.c.l.b16 %v6151
      %v6168 = vunpack.c.l.b16 %v6152
      %v6169 = vunpack.c.l.b16 %v6153
      %v6170 = vpack.c.b16 %v6163, %v6162
      %v6171 = vpack.c.b16 %v6165, %v6164
      %v6172 = vpack.c.b16 %v6167, %v6166
      %v6173 = vpack.c.b16 %v6169, %v6168
      %v6179 = vsel %vm497, %v6144, 0
      %v6182 = vsel %vm497, %v6145, 0
      %6184 = vmatprep.subr.bf16.mxu0 0
      %6185 = vmatpush1.bf16.msra.mxu0 0
      %6186 = vmatprep.subr.bf16.mxu0 0
      %6187 = vmatpush1.bf16.msra.mxu0 0
      %6188 = vmatprep.subr.bf16.mxu0 0
      %6189 = vmatpush1.bf16.msra.mxu0 0
      %6190 = vmatprep.subr.bf16.mxu0 0
      %6191 = vmatpush1.bf16.msra.mxu0 0
      %6192 = vmatprep.subr.bf16.mxu0 0
      %6193 = vmatpush1.bf16.msra.mxu0 %v6173
      %6194 = vmatprep.subr.bf16.mxu0 0
      %6195 = vmatpush1.bf16.msra.mxu0 %v6172
      %6196 = vmatprep.subr.bf16.mxu0 0
      %6197 = vmatpush1.bf16.msra.mxu0 %v6171
      %6198 = vmatprep.subr.bf16.mxu0 0
      %6199 = vmatpush1.bf16.msra.mxu0 %v6170
      %6200 = vmatprep.subr.bf16.mxu0 0
      %6201 = vmatpush2.bf16.msra.mxu0 0
      %6202 = vmatprep.subr.bf16.mxu0 0
      %6203 = vmatpush2.bf16.msra.mxu0 0
      %6204 = vmatprep.subr.bf16.mxu0 0
      %6205 = vmatpush2.bf16.msra.mxu0 0
      %6206 = vmatprep.subr.bf16.mxu0 0
      %6207 = vmatpush2.bf16.msra.mxu0 0
      %6208 = vmatprep.subr.bf16.mxu0 0
      %6209 = vmatpush2.bf16.msra.mxu0 0
      %6210 = vmatprep.subr.bf16.mxu0 0
      %6211 = vmatpush2.bf16.msra.mxu0 0
      %6212 = vmatprep.subr.bf16.mxu0 0
      %6213 = vmatpush2.bf16.msra.mxu0 0
      %6214 = vmatprep.subr.bf16.mxu0 0
      %6215 = vmatpush2.bf16.msra.mxu0 0
      %6216 = vmatprep.mubr.bf16.mxu0 0
      %6217 = vmatmul.mubr.bf16.gmra.mxu0 %v6179
      %v6218 = vpop.f32.mrf.mxu0
      %v6219 = vadd.f32 0.0, %v6218
      %v6220 = vpop.f32.mrf.mxu0
      %v6221 = vpop.f32.mrf.mxu0
      %v6222 = vadd.f32 0.0, %v6221
      %v6223 = vpop.f32.mrf.mxu0
      %6224 = vmatprep.mubr.bf16.mxu0 0
      %6225 = vmatmul.mubr.bf16.gmra.mxu0 %v6182
      %v6226 = vpop.f32.mrf.mxu0
      %v6227 = vadd.f32 0.0, %v6226
      %v6228 = vpop.f32.mrf.mxu0
      %v6229 = vpop.f32.mrf.mxu0
      %v6230 = vadd.f32 0.0, %v6229
      %v6231 = vpop.f32.mrf.mxu0
      %6232 = vdwg.mxu0
      %v6233 = vadd.f32 %v5934, %v6219
      %v6234 = vadd.f32 %v5935, %v6222
      %v6235 = vadd.f32 %v5936, %v6227
      %v6236 = vadd.f32 %v5937, %v6230
      %6237 = vrot.lane.b32.xlu0 %v5958, 64
      %v6238 = vpop.permute.xlu0 %6237
      %6239 = vrot.lane.b32.xlu0 %v5959, 64
      %v6240 = vpop.permute.xlu0 %6239
      %6241 = vrot.lane.b32.xlu0 %v5968, 64
      %v6242 = vpop.permute.xlu0 %6241
      %6243 = vrot.lane.b32.xlu0 %v5969, 64
      %v6244 = vpop.permute.xlu0 %6243
      %v6246 = vsel %vm497, %v6238, 0
      %v6249 = vsel %vm497, %v6240, 0
      %v6252 = vsel %vm497, %v6242, 0
      %v6255 = vsel %vm497, %v6244, 0
      %6257 = vmatprep.subr.bf16.mxu0 0
      %6258 = vmatpush1.bf16.xpose.msra.mxu0 0
      %6259 = vmatprep.subr.bf16.mxu0 0
      %6260 = vmatpush1.bf16.xpose.msra.mxu0 0
      %6261 = vmatprep.subr.bf16.mxu0 0
      %6262 = vmatpush1.bf16.xpose.msra.mxu0 0
      %6263 = vmatprep.subr.bf16.mxu0 0
      %6264 = vmatpush1.bf16.xpose.msra.mxu0 0
      %6265 = vmatprep.subr.bf16.mxu0 0
      %6266 = vmatpush1.bf16.xpose.msra.mxu0 0
      %6267 = vmatprep.subr.bf16.mxu0 0
      %6268 = vmatpush1.bf16.xpose.msra.mxu0 0
      %6269 = vmatprep.subr.bf16.mxu0 0
      %6270 = vmatpush1.bf16.xpose.msra.mxu0 %v6255
      %6271 = vmatprep.subr.bf16.mxu0 0
      %6272 = vmatpush1.bf16.xpose.msra.mxu0 %v6252
      %6273 = vmatprep.subr.bf16.mxu0 0
      %6274 = vmatpush2.bf16.xpose.msra.mxu0 0
      %6275 = vmatprep.subr.bf16.mxu0 0
      %6276 = vmatpush2.bf16.xpose.msra.mxu0 0
      %6277 = vmatprep.subr.bf16.mxu0 0
      %6278 = vmatpush2.bf16.xpose.msra.mxu0 0
      %6279 = vmatprep.subr.bf16.mxu0 0
      %6280 = vmatpush2.bf16.xpose.msra.mxu0 0
      %6281 = vmatprep.subr.bf16.mxu0 0
      %6282 = vmatpush2.bf16.xpose.msra.mxu0 0
      %6283 = vmatprep.subr.bf16.mxu0 0
      %6284 = vmatpush2.bf16.xpose.msra.mxu0 0
      %6285 = vmatprep.subr.bf16.mxu0 0
      %6286 = vmatpush2.bf16.xpose.msra.mxu0 0
      %6287 = vmatprep.subr.bf16.mxu0 0
      %6288 = vmatpush2.bf16.xpose.msra.mxu0 0
      %6289 = vmatprep.mubr.bf16.mxu0 0
      %6290 = vmatmul.mubr.bf16.gmra.mxu0 %v6246
      %v6291 = vpop.f32.mrf.mxu0
      %v6292 = vadd.f32 %v315, %v6291
      %v6293 = vpop.f32.mrf.mxu0
      %v6294 = vpop.f32.mrf.mxu0
      %v6295 = vadd.f32 %v315, %v6294
      %v6296 = vpop.f32.mrf.mxu0
      %6297 = vmatprep.mubr.bf16.mxu0 0
      %6298 = vmatmul.mubr.bf16.gmra.mxu0 %v6249
      %v6299 = vpop.f32.mrf.mxu0
      %v6300 = vadd.f32 %v315, %v6299
      %v6301 = vpop.f32.mrf.mxu0
      %v6302 = vpop.f32.mrf.mxu0
      %v6303 = vadd.f32 %v315, %v6302
      %v6304 = vpop.f32.mrf.mxu0
      %6305 = vdwg.mxu0
      %v6306 = vsel %vm1518, %v6292, -inf
      %6307 = vmax.xlane.f32.xlu0 %v6306
      %v6308 = vpop.xlane.xlu0 %6307
      %v6309 = vsel %vm1518, %v6295, -inf
      %6310 = vmax.xlane.f32.xlu0 %v6309
      %v6311 = vpop.xlane.xlu0 %6310
      %v6312 = vsel %vm1518, %v6300, -inf
      %6313 = vmax.xlane.f32.xlu0 %v6312
      %v6314 = vpop.xlane.xlu0 %6313
      %v6315 = vsel %vm1518, %v6303, -inf
      %6316 = vmax.xlane.f32.xlu0 %v6315
      %v6317 = vpop.xlane.xlu0 %6316
      %v6318 = vsub.f32 %v6292, %v6308
      %v6319 = vsub.f32 %v6295, %v6311
      %v6320 = vsub.f32 %v6300, %v6314
      %v6321 = vsub.f32 %v6303, %v6317
      %v6322 = vmul.f32 %v6318, 1.442695
      %v6323 = vpow.pop %v6322
      %v6324 = vmul.f32 %v6319, 1.442695
      %v6325 = vpow.pop %v6324
      %v6326 = vmul.f32 %v6320, 1.442695
      %v6327 = vpow.pop %v6326
      %v6328 = vmul.f32 %v6321, 1.442695
      %v6329 = vpow.pop %v6328
      %v6330 = vsel %vm1518, %v6323, 0.0
      %6331 = vadd.xlane.f32.xlu0 %v6330
      %v6332 = vpop.xlane.xlu0 %6331
      %v6333 = vsel %vm1518, %v6325, 0.0
      %6334 = vadd.xlane.f32.xlu0 %v6333
      %v6335 = vpop.xlane.xlu0 %6334
      %v6336 = vsel %vm1518, %v6327, 0.0
      %6337 = vadd.xlane.f32.xlu0 %v6336
      %v6338 = vpop.xlane.xlu0 %6337
      %v6339 = vsel %vm1518, %v6329, 0.0
      %6340 = vadd.xlane.f32.xlu0 %v6339
      %v6341 = vpop.xlane.xlu0 %6340
      %v6342 = vrcp.pop %v6332
      %v6343 = vrcp.pop %v6335
      %v6344 = vrcp.pop %v6338
      %v6345 = vrcp.pop %v6341
      %v6346 = vmul.f32 %v6323, %v6342
      %v6347 = vmul.f32 %v6325, %v6343
      %v6348 = vmul.f32 %v6327, %v6344
      %v6349 = vmul.f32 %v6329, %v6345
      %v6350 = vpack.c.bf16 %v6347, %v6346
      %v6351 = vpack.c.bf16 %v6349, %v6348
      %6352 = vrot.lane.b32.xlu0 %v6085, 64
      %v6353 = vpop.permute.xlu0 %6352
      %6354 = vrot.lane.b32.xlu0 %v6086, 64
      %v6355 = vpop.permute.xlu0 %6354
      %v6359 = vsel %vm1518, %v6350, 0
      %v6362 = vsel %vm1518, %v6351, 0
      %6364 = vmatprep.subr.bf16.mxu0 0
      %6365 = vmatpush1.bf16.msra.mxu0 0
      %6366 = vmatprep.subr.bf16.mxu0 0
      %6367 = vmatpush1.bf16.msra.mxu0 0
      %6368 = vmatprep.subr.bf16.mxu0 0
      %6369 = vmatpush1.bf16.msra.mxu0 0
      %6370 = vmatprep.subr.bf16.mxu0 0
      %6371 = vmatpush1.bf16.msra.mxu0 0
      %6372 = vmatprep.subr.bf16.mxu0 0
      %6373 = vmatpush1.bf16.msra.mxu0 0
      %6374 = vmatprep.subr.bf16.mxu0 0
      %6375 = vmatpush1.bf16.msra.mxu0 0
      %6376 = vmatprep.subr.bf16.mxu0 0
      %6377 = vmatpush1.bf16.msra.mxu0 %v6355
      %6378 = vmatprep.subr.bf16.mxu0 0
      %6379 = vmatpush1.bf16.msra.mxu0 %v6353
      %6380 = vmatprep.subr.bf16.mxu0 0
      %6381 = vmatpush2.bf16.msra.mxu0 0
      %6382 = vmatprep.subr.bf16.mxu0 0
      %6383 = vmatpush2.bf16.msra.mxu0 0
      %6384 = vmatprep.subr.bf16.mxu0 0
      %6385 = vmatpush2.bf16.msra.mxu0 0
      %6386 = vmatprep.subr.bf16.mxu0 0
      %6387 = vmatpush2.bf16.msra.mxu0 0
      %6388 = vmatprep.subr.bf16.mxu0 0
      %6389 = vmatpush2.bf16.msra.mxu0 0
      %6390 = vmatprep.subr.bf16.mxu0 0
      %6391 = vmatpush2.bf16.msra.mxu0 0
      %6392 = vmatprep.subr.bf16.mxu0 0
      %6393 = vmatpush2.bf16.msra.mxu0 0
      %6394 = vmatprep.subr.bf16.mxu0 0
      %6395 = vmatpush2.bf16.msra.mxu0 0
      %6396 = vmatprep.mubr.bf16.mxu0 0
      %6397 = vmatmul.mubr.bf16.gmra.mxu0 %v6359
      %v6398 = vpop.f32.mrf.mxu0
      %v6399 = vadd.f32 0.0, %v6398
      %v6400 = vpop.f32.mrf.mxu0
      %v6401 = vpop.f32.mrf.mxu0
      %v6402 = vadd.f32 0.0, %v6401
      %v6403 = vpop.f32.mrf.mxu0
      %6404 = vmatprep.mubr.bf16.mxu0 0
      %6405 = vmatmul.mubr.bf16.gmra.mxu0 %v6362
      %v6406 = vpop.f32.mrf.mxu0
      %v6407 = vadd.f32 0.0, %v6406
      %v6408 = vpop.f32.mrf.mxu0
      %v6409 = vpop.f32.mrf.mxu0
      %v6410 = vadd.f32 0.0, %v6409
      %v6411 = vpop.f32.mrf.mxu0
      %6412 = vdwg.mxu0
      %v6413 = vpack.c.bf16 %v6402, %v6399
      %v6414 = vpack.c.bf16 %v6410, %v6407
      %v6415 = vld [vmem:[%s6 + $0x1a0] sm:$0xf]
      %v6416 = vld [vmem:[%s6 + $0x1a4] sm:$0xf]
      %v6417 = vld [vmem:[%s6 + $0x1a8] sm:$0xf]
      %v6418 = vld [vmem:[%s6 + $0x1ac] sm:$0xf]
      %v6419 = vld [vmem:[%s6 + $0x1b0] sm:$0xf]
      %v6420 = vld [vmem:[%s6 + $0x1b4] sm:$0xf]
      %v6421 = vld [vmem:[%s6 + $0x1b8] sm:$0xf]
      %v6422 = vld [vmem:[%s6 + $0x1bc] sm:$0xf]
      %v6431 = vunpack.c.l.b16 %v6415
      %v6432 = vunpack.c.l.b16 %v6416
      %v6433 = vunpack.c.l.b16 %v6417
      %v6434 = vunpack.c.l.b16 %v6418
      %v6435 = vunpack.c.l.b16 %v6419
      %v6436 = vunpack.c.l.b16 %v6420
      %v6437 = vunpack.c.l.b16 %v6421
      %v6438 = vunpack.c.l.b16 %v6422
      %v6439 = vpack.c.b16 %v6432, %v6431
      %v6440 = vpack.c.b16 %v6434, %v6433
      %v6441 = vpack.c.b16 %v6436, %v6435
      %v6442 = vpack.c.b16 %v6438, %v6437
      %v6448 = vsel %vm497, %v6413, 0
      %v6451 = vsel %vm497, %v6414, 0
      %6453 = vmatprep.subr.bf16.mxu0 0
      %6454 = vmatpush1.bf16.msra.mxu0 0
      %6455 = vmatprep.subr.bf16.mxu0 0
      %6456 = vmatpush1.bf16.msra.mxu0 0
      %6457 = vmatprep.subr.bf16.mxu0 0
      %6458 = vmatpush1.bf16.msra.mxu0 0
      %6459 = vmatprep.subr.bf16.mxu0 0
      %6460 = vmatpush1.bf16.msra.mxu0 0
      %6461 = vmatprep.subr.bf16.mxu0 0
      %6462 = vmatpush1.bf16.msra.mxu0 %v6442
      %6463 = vmatprep.subr.bf16.mxu0 0
      %6464 = vmatpush1.bf16.msra.mxu0 %v6441
      %6465 = vmatprep.subr.bf16.mxu0 0
      %6466 = vmatpush1.bf16.msra.mxu0 %v6440
      %6467 = vmatprep.subr.bf16.mxu0 0
      %6468 = vmatpush1.bf16.msra.mxu0 %v6439
      %6469 = vmatprep.subr.bf16.mxu0 0
      %6470 = vmatpush2.bf16.msra.mxu0 0
      %6471 = vmatprep.subr.bf16.mxu0 0
      %6472 = vmatpush2.bf16.msra.mxu0 0
      %6473 = vmatprep.subr.bf16.mxu0 0
      %6474 = vmatpush2.bf16.msra.mxu0 0
      %6475 = vmatprep.subr.bf16.mxu0 0
      %6476 = vmatpush2.bf16.msra.mxu0 0
      %6477 = vmatprep.subr.bf16.mxu0 0
      %6478 = vmatpush2.bf16.msra.mxu0 0
      %6479 = vmatprep.subr.bf16.mxu0 0
      %6480 = vmatpush2.bf16.msra.mxu0 0
      %6481 = vmatprep.subr.bf16.mxu0 0
      %6482 = vmatpush2.bf16.msra.mxu0 0
      %6483 = vmatprep.subr.bf16.mxu0 0
      %6484 = vmatpush2.bf16.msra.mxu0 0
      %6485 = vmatprep.mubr.bf16.mxu0 0
      %6486 = vmatmul.mubr.bf16.gmra.mxu0 %v6448
      %v6487 = vpop.f32.mrf.mxu0
      %v6488 = vadd.f32 0.0, %v6487
      %v6489 = vpop.f32.mrf.mxu0
      %v6490 = vpop.f32.mrf.mxu0
      %v6491 = vadd.f32 0.0, %v6490
      %v6492 = vpop.f32.mrf.mxu0
      %6493 = vmatprep.mubr.bf16.mxu0 0
      %6494 = vmatmul.mubr.bf16.gmra.mxu0 %v6451
      %v6495 = vpop.f32.mrf.mxu0
      %v6496 = vadd.f32 0.0, %v6495
      %v6497 = vpop.f32.mrf.mxu0
      %v6498 = vpop.f32.mrf.mxu0
      %v6499 = vadd.f32 0.0, %v6498
      %v6500 = vpop.f32.mrf.mxu0
      %6501 = vdwg.mxu0
      %v6502 = vadd.f32 %v6233, %v6488
      %v6503 = vadd.f32 %v6234, %v6491
      %v6504 = vadd.f32 %v6235, %v6496
      %v6505 = vadd.f32 %v6236, %v6499
      %v6506 = vld [vmem:[#allocation2 + $0xc] sm:$0xf]
      %v6507 = vld [vmem:[#allocation2 + $0x3c] sm:$0xf]
      %v6508 = vld [vmem:[#allocation2 + $0x6c] sm:$0xf]
      %v6509 = vld [vmem:[#allocation2 + $0x9c] sm:$0xf]
      %v6510 = vld [vmem:[#allocation2 + $0x1c] sm:$0xf]
      %v6511 = vld [vmem:[#allocation2 + $0x4c] sm:$0xf]
      %v6512 = vld [vmem:[#allocation2 + $0x7c] sm:$0xf]
      %v6513 = vld [vmem:[#allocation2 + $0xac] sm:$0xf]
      %v6514 = vld [vmem:[#allocation2 + $0x2c] sm:$0xf]
      %v6515 = vld [vmem:[#allocation2 + $0x5c] sm:$0xf]
      %v6516 = vld [vmem:[#allocation2 + $0x8c] sm:$0xf]
      %v6517 = vld [vmem:[#allocation2 + $0xbc] sm:$0xf]
      %v6522 = vunpack.c.l.b16 %v6506
      %v6523 = vunpack.c.l.b16 %v6507
      %v6524 = vunpack.c.l.b16 %v6508
      %v6525 = vunpack.c.l.b16 %v6509
      %v6526 = vpack.c.b16 %v6523, %v6522
      %v6527 = vpack.c.b16 %v6525, %v6524
      %v6532 = vunpack.c.l.b16 %v6510
      %v6533 = vunpack.c.l.b16 %v6511
      %v6534 = vunpack.c.l.b16 %v6512
      %v6535 = vunpack.c.l.b16 %v6513
      %v6536 = vpack.c.b16 %v6533, %v6532
      %v6537 = vpack.c.b16 %v6535, %v6534
      %v6539 = vsel %vm497, %v6526, 0
      %v6542 = vsel %vm497, %v6527, 0
      %v6545 = vsel %vm497, %v6536, 0
      %v6548 = vsel %vm497, %v6537, 0
      %6550 = vmatprep.subr.bf16.mxu0 0
      %6551 = vmatpush1.bf16.xpose.msra.mxu0 0
      %6552 = vmatprep.subr.bf16.mxu0 0
      %6553 = vmatpush1.bf16.xpose.msra.mxu0 0
      %6554 = vmatprep.subr.bf16.mxu0 0
      %6555 = vmatpush1.bf16.xpose.msra.mxu0 0
      %6556 = vmatprep.subr.bf16.mxu0 0
      %6557 = vmatpush1.bf16.xpose.msra.mxu0 0
      %6558 = vmatprep.subr.bf16.mxu0 0
      %6559 = vmatpush1.bf16.xpose.msra.mxu0 0
      %6560 = vmatprep.subr.bf16.mxu0 0
      %6561 = vmatpush1.bf16.xpose.msra.mxu0 0
      %6562 = vmatprep.subr.bf16.mxu0 0
      %6563 = vmatpush1.bf16.xpose.msra.mxu0 %v6548
      %6564 = vmatprep.subr.bf16.mxu0 0
      %6565 = vmatpush1.bf16.xpose.msra.mxu0 %v6545
      %6566 = vmatprep.subr.bf16.mxu0 0
      %6567 = vmatpush2.bf16.xpose.msra.mxu0 0
      %6568 = vmatprep.subr.bf16.mxu0 0
      %6569 = vmatpush2.bf16.xpose.msra.mxu0 0
      %6570 = vmatprep.subr.bf16.mxu0 0
      %6571 = vmatpush2.bf16.xpose.msra.mxu0 0
      %6572 = vmatprep.subr.bf16.mxu0 0
      %6573 = vmatpush2.bf16.xpose.msra.mxu0 0
      %6574 = vmatprep.subr.bf16.mxu0 0
      %6575 = vmatpush2.bf16.xpose.msra.mxu0 0
      %6576 = vmatprep.subr.bf16.mxu0 0
      %6577 = vmatpush2.bf16.xpose.msra.mxu0 0
      %6578 = vmatprep.subr.bf16.mxu0 0
      %6579 = vmatpush2.bf16.xpose.msra.mxu0 0
      %6580 = vmatprep.subr.bf16.mxu0 0
      %6581 = vmatpush2.bf16.xpose.msra.mxu0 0
      %6582 = vmatprep.mubr.bf16.mxu0 0
      %6583 = vmatmul.mubr.bf16.gmra.mxu0 %v6539
      %v6584 = vpop.f32.mrf.mxu0
      %v6585 = vadd.f32 %v315, %v6584
      %v6586 = vpop.f32.mrf.mxu0
      %v6587 = vpop.f32.mrf.mxu0
      %v6588 = vadd.f32 %v315, %v6587
      %v6589 = vpop.f32.mrf.mxu0
      %6590 = vmatprep.mubr.bf16.mxu0 0
      %6591 = vmatmul.mubr.bf16.gmra.mxu0 %v6542
      %v6592 = vpop.f32.mrf.mxu0
      %v6593 = vadd.f32 %v315, %v6592
      %v6594 = vpop.f32.mrf.mxu0
      %v6595 = vpop.f32.mrf.mxu0
      %v6596 = vadd.f32 %v315, %v6595
      %v6597 = vpop.f32.mrf.mxu0
      %6598 = vdwg.mxu0
      %v6599 = vsel %vm1518, %v6585, -inf
      %6600 = vmax.xlane.f32.xlu0 %v6599
      %v6601 = vpop.xlane.xlu0 %6600
      %v6602 = vsel %vm1518, %v6588, -inf
      %6603 = vmax.xlane.f32.xlu0 %v6602
      %v6604 = vpop.xlane.xlu0 %6603
      %v6605 = vsel %vm1518, %v6593, -inf
      %6606 = vmax.xlane.f32.xlu0 %v6605
      %v6607 = vpop.xlane.xlu0 %6606
      %v6608 = vsel %vm1518, %v6596, -inf
      %6609 = vmax.xlane.f32.xlu0 %v6608
      %v6610 = vpop.xlane.xlu0 %6609
      %v6611 = vsub.f32 %v6585, %v6601
      %v6612 = vsub.f32 %v6588, %v6604
      %v6613 = vsub.f32 %v6593, %v6607
      %v6614 = vsub.f32 %v6596, %v6610
      %v6615 = vmul.f32 %v6611, 1.442695
      %v6616 = vpow.pop %v6615
      %v6617 = vmul.f32 %v6612, 1.442695
      %v6618 = vpow.pop %v6617
      %v6619 = vmul.f32 %v6613, 1.442695
      %v6620 = vpow.pop %v6619
      %v6621 = vmul.f32 %v6614, 1.442695
      %v6622 = vpow.pop %v6621
      %v6623 = vsel %vm1518, %v6616, 0.0
      %6624 = vadd.xlane.f32.xlu0 %v6623
      %v6625 = vpop.xlane.xlu0 %6624
      %v6626 = vsel %vm1518, %v6618, 0.0
      %6627 = vadd.xlane.f32.xlu0 %v6626
      %v6628 = vpop.xlane.xlu0 %6627
      %v6629 = vsel %vm1518, %v6620, 0.0
      %6630 = vadd.xlane.f32.xlu0 %v6629
      %v6631 = vpop.xlane.xlu0 %6630
      %v6632 = vsel %vm1518, %v6622, 0.0
      %6633 = vadd.xlane.f32.xlu0 %v6632
      %v6634 = vpop.xlane.xlu0 %6633
      %v6635 = vrcp.pop %v6625
      %v6636 = vrcp.pop %v6628
      %v6637 = vrcp.pop %v6631
      %v6638 = vrcp.pop %v6634
      %v6639 = vmul.f32 %v6616, %v6635
      %v6640 = vmul.f32 %v6618, %v6636
      %v6641 = vmul.f32 %v6620, %v6637
      %v6642 = vmul.f32 %v6622, %v6638
      %v6643 = vpack.c.bf16 %v6640, %v6639
      %v6644 = vpack.c.bf16 %v6642, %v6641
      %v6649 = vunpack.c.l.b16 %v6514
      %v6650 = vunpack.c.l.b16 %v6515
      %v6651 = vunpack.c.l.b16 %v6516
      %v6652 = vunpack.c.l.b16 %v6517
      %v6653 = vpack.c.b16 %v6650, %v6649
      %v6654 = vpack.c.b16 %v6652, %v6651
      %v6658 = vsel %vm1518, %v6643, 0
      %v6661 = vsel %vm1518, %v6644, 0
      %6663 = vmatprep.subr.bf16.mxu0 0
      %6664 = vmatpush1.bf16.msra.mxu0 0
      %6665 = vmatprep.subr.bf16.mxu0 0
      %6666 = vmatpush1.bf16.msra.mxu0 0
      %6667 = vmatprep.subr.bf16.mxu0 0
      %6668 = vmatpush1.bf16.msra.mxu0 0
      %6669 = vmatprep.subr.bf16.mxu0 0
      %6670 = vmatpush1.bf16.msra.mxu0 0
      %6671 = vmatprep.subr.bf16.mxu0 0
      %6672 = vmatpush1.bf16.msra.mxu0 0
      %6673 = vmatprep.subr.bf16.mxu0 0
      %6674 = vmatpush1.bf16.msra.mxu0 0
      %6675 = vmatprep.subr.bf16.mxu0 0
      %6676 = vmatpush1.bf16.msra.mxu0 %v6654
      %6677 = vmatprep.subr.bf16.mxu0 0
      %6678 = vmatpush1.bf16.msra.mxu0 %v6653
      %6679 = vmatprep.subr.bf16.mxu0 0
      %6680 = vmatpush2.bf16.msra.mxu0 0
      %6681 = vmatprep.subr.bf16.mxu0 0
      %6682 = vmatpush2.bf16.msra.mxu0 0
      %6683 = vmatprep.subr.bf16.mxu0 0
      %6684 = vmatpush2.bf16.msra.mxu0 0
      %6685 = vmatprep.subr.bf16.mxu0 0
      %6686 = vmatpush2.bf16.msra.mxu0 0
      %6687 = vmatprep.subr.bf16.mxu0 0
      %6688 = vmatpush2.bf16.msra.mxu0 0
      %6689 = vmatprep.subr.bf16.mxu0 0
      %6690 = vmatpush2.bf16.msra.mxu0 0
      %6691 = vmatprep.subr.bf16.mxu0 0
      %6692 = vmatpush2.bf16.msra.mxu0 0
      %6693 = vmatprep.subr.bf16.mxu0 0
      %6694 = vmatpush2.bf16.msra.mxu0 0
      %6695 = vmatprep.mubr.bf16.mxu0 0
      %6696 = vmatmul.mubr.bf16.gmra.mxu0 %v6658
      %v6697 = vpop.f32.mrf.mxu0
      %v6698 = vadd.f32 0.0, %v6697
      %v6699 = vpop.f32.mrf.mxu0
      %v6700 = vpop.f32.mrf.mxu0
      %v6701 = vadd.f32 0.0, %v6700
      %v6702 = vpop.f32.mrf.mxu0
      %6703 = vmatprep.mubr.bf16.mxu0 0
      %6704 = vmatmul.mubr.bf16.gmra.mxu0 %v6661
      %v6705 = vpop.f32.mrf.mxu0
      %v6706 = vadd.f32 0.0, %v6705
      %v6707 = vpop.f32.mrf.mxu0
      %v6708 = vpop.f32.mrf.mxu0
      %v6709 = vadd.f32 0.0, %v6708
      %v6710 = vpop.f32.mrf.mxu0
      %6711 = vdwg.mxu0
      %v6712 = vpack.c.bf16 %v6701, %v6698
      %v6713 = vpack.c.bf16 %v6709, %v6706
      %v6714 = vld [vmem:[%s6 + $0x1c0] sm:$0xf]
      %v6715 = vld [vmem:[%s6 + $0x1c4] sm:$0xf]
      %v6716 = vld [vmem:[%s6 + $0x1c8] sm:$0xf]
      %v6717 = vld [vmem:[%s6 + $0x1cc] sm:$0xf]
      %v6718 = vld [vmem:[%s6 + $0x1d0] sm:$0xf]
      %v6719 = vld [vmem:[%s6 + $0x1d4] sm:$0xf]
      %v6720 = vld [vmem:[%s6 + $0x1d8] sm:$0xf]
      %v6721 = vld [vmem:[%s6 + $0x1dc] sm:$0xf]
      %v6730 = vunpack.c.l.b16 %v6714
      %v6731 = vunpack.c.l.b16 %v6715
      %v6732 = vunpack.c.l.b16 %v6716
      %v6733 = vunpack.c.l.b16 %v6717
      %v6734 = vunpack.c.l.b16 %v6718
      %v6735 = vunpack.c.l.b16 %v6719
      %v6736 = vunpack.c.l.b16 %v6720
      %v6737 = vunpack.c.l.b16 %v6721
      %v6738 = vpack.c.b16 %v6731, %v6730
      %v6739 = vpack.c.b16 %v6733, %v6732
      %v6740 = vpack.c.b16 %v6735, %v6734
      %v6741 = vpack.c.b16 %v6737, %v6736
      %v6747 = vsel %vm497, %v6712, 0
      %v6750 = vsel %vm497, %v6713, 0
      %6752 = vmatprep.subr.bf16.mxu0 0
      %6753 = vmatpush1.bf16.msra.mxu0 0
      %6754 = vmatprep.subr.bf16.mxu0 0
      %6755 = vmatpush1.bf16.msra.mxu0 0
      %6756 = vmatprep.subr.bf16.mxu0 0
      %6757 = vmatpush1.bf16.msra.mxu0 0
      %6758 = vmatprep.subr.bf16.mxu0 0
      %6759 = vmatpush1.bf16.msra.mxu0 0
      %6760 = vmatprep.subr.bf16.mxu0 0
      %6761 = vmatpush1.bf16.msra.mxu0 %v6741
      %6762 = vmatprep.subr.bf16.mxu0 0
      %6763 = vmatpush1.bf16.msra.mxu0 %v6740
      %6764 = vmatprep.subr.bf16.mxu0 0
      %6765 = vmatpush1.bf16.msra.mxu0 %v6739
      %6766 = vmatprep.subr.bf16.mxu0 0
      %6767 = vmatpush1.bf16.msra.mxu0 %v6738
      %6768 = vmatprep.subr.bf16.mxu0 0
      %6769 = vmatpush2.bf16.msra.mxu0 0
      %6770 = vmatprep.subr.bf16.mxu0 0
      %6771 = vmatpush2.bf16.msra.mxu0 0
      %6772 = vmatprep.subr.bf16.mxu0 0
      %6773 = vmatpush2.bf16.msra.mxu0 0
      %6774 = vmatprep.subr.bf16.mxu0 0
      %6775 = vmatpush2.bf16.msra.mxu0 0
      %6776 = vmatprep.subr.bf16.mxu0 0
      %6777 = vmatpush2.bf16.msra.mxu0 0
      %6778 = vmatprep.subr.bf16.mxu0 0
      %6779 = vmatpush2.bf16.msra.mxu0 0
      %6780 = vmatprep.subr.bf16.mxu0 0
      %6781 = vmatpush2.bf16.msra.mxu0 0
      %6782 = vmatprep.subr.bf16.mxu0 0
      %6783 = vmatpush2.bf16.msra.mxu0 0
      %6784 = vmatprep.mubr.bf16.mxu0 0
      %6785 = vmatmul.mubr.bf16.gmra.mxu0 %v6747
      %v6786 = vpop.f32.mrf.mxu0
      %v6787 = vadd.f32 0.0, %v6786
      %v6788 = vpop.f32.mrf.mxu0
      %v6789 = vpop.f32.mrf.mxu0
      %v6790 = vadd.f32 0.0, %v6789
      %v6791 = vpop.f32.mrf.mxu0
      %6792 = vmatprep.mubr.bf16.mxu0 0
      %6793 = vmatmul.mubr.bf16.gmra.mxu0 %v6750
      %v6794 = vpop.f32.mrf.mxu0
      %v6795 = vadd.f32 0.0, %v6794
      %v6796 = vpop.f32.mrf.mxu0
      %v6797 = vpop.f32.mrf.mxu0
      %v6798 = vadd.f32 0.0, %v6797
      %v6799 = vpop.f32.mrf.mxu0
      %6800 = vdwg.mxu0
      %v6801 = vadd.f32 %v6502, %v6787
      %v6802 = vadd.f32 %v6503, %v6790
      %v6803 = vadd.f32 %v6504, %v6795
      %v6804 = vadd.f32 %v6505, %v6798
      %6805 = vrot.lane.b32.xlu0 %v6526, 64
      %v6806 = vpop.permute.xlu0 %6805
      %6807 = vrot.lane.b32.xlu0 %v6527, 64
      %v6808 = vpop.permute.xlu0 %6807
      %6809 = vrot.lane.b32.xlu0 %v6536, 64
      %v6810 = vpop.permute.xlu0 %6809
      %6811 = vrot.lane.b32.xlu0 %v6537, 64
      %v6812 = vpop.permute.xlu0 %6811
      %v6814 = vsel %vm497, %v6806, 0
      %v6817 = vsel %vm497, %v6808, 0
      %v6820 = vsel %vm497, %v6810, 0
      %v6823 = vsel %vm497, %v6812, 0
      %6825 = vmatprep.subr.bf16.mxu0 0
      %6826 = vmatpush1.bf16.xpose.msra.mxu0 0
      %6827 = vmatprep.subr.bf16.mxu0 0
      %6828 = vmatpush1.bf16.xpose.msra.mxu0 0
      %6829 = vmatprep.subr.bf16.mxu0 0
      %6830 = vmatpush1.bf16.xpose.msra.mxu0 0
      %6831 = vmatprep.subr.bf16.mxu0 0
      %6832 = vmatpush1.bf16.xpose.msra.mxu0 0
      %6833 = vmatprep.subr.bf16.mxu0 0
      %6834 = vmatpush1.bf16.xpose.msra.mxu0 0
      %6835 = vmatprep.subr.bf16.mxu0 0
      %6836 = vmatpush1.bf16.xpose.msra.mxu0 0
      %6837 = vmatprep.subr.bf16.mxu0 0
      %6838 = vmatpush1.bf16.xpose.msra.mxu0 %v6823
      %6839 = vmatprep.subr.bf16.mxu0 0
      %6840 = vmatpush1.bf16.xpose.msra.mxu0 %v6820
      %6841 = vmatprep.subr.bf16.mxu0 0
      %6842 = vmatpush2.bf16.xpose.msra.mxu0 0
      %6843 = vmatprep.subr.bf16.mxu0 0
      %6844 = vmatpush2.bf16.xpose.msra.mxu0 0
      %6845 = vmatprep.subr.bf16.mxu0 0
      %6846 = vmatpush2.bf16.xpose.msra.mxu0 0
      %6847 = vmatprep.subr.bf16.mxu0 0
      %6848 = vmatpush2.bf16.xpose.msra.mxu0 0
      %6849 = vmatprep.subr.bf16.mxu0 0
      %6850 = vmatpush2.bf16.xpose.msra.mxu0 0
      %6851 = vmatprep.subr.bf16.mxu0 0
      %6852 = vmatpush2.bf16.xpose.msra.mxu0 0
      %6853 = vmatprep.subr.bf16.mxu0 0
      %6854 = vmatpush2.bf16.xpose.msra.mxu0 0
      %6855 = vmatprep.subr.bf16.mxu0 0
      %6856 = vmatpush2.bf16.xpose.msra.mxu0 0
      %6857 = vmatprep.mubr.bf16.mxu0 0
      %6858 = vmatmul.mubr.bf16.gmra.mxu0 %v6814
      %v6859 = vpop.f32.mrf.mxu0
      %v6860 = vadd.f32 %v315, %v6859
      %v6861 = vpop.f32.mrf.mxu0
      %v6862 = vpop.f32.mrf.mxu0
      %v6863 = vadd.f32 %v315, %v6862
      %v6864 = vpop.f32.mrf.mxu0
      %6865 = vmatprep.mubr.bf16.mxu0 0
      %6866 = vmatmul.mubr.bf16.gmra.mxu0 %v6817
      %v6867 = vpop.f32.mrf.mxu0
      %v6868 = vadd.f32 %v315, %v6867
      %v6869 = vpop.f32.mrf.mxu0
      %v6870 = vpop.f32.mrf.mxu0
      %v6871 = vadd.f32 %v315, %v6870
      %v6872 = vpop.f32.mrf.mxu0
      %6873 = vdwg.mxu0
      %v6874 = vsel %vm1518, %v6860, -inf
      %6875 = vmax.xlane.f32.xlu0 %v6874
      %v6876 = vpop.xlane.xlu0 %6875
      %v6877 = vsel %vm1518, %v6863, -inf
      %6878 = vmax.xlane.f32.xlu0 %v6877
      %v6879 = vpop.xlane.xlu0 %6878
      %v6880 = vsel %vm1518, %v6868, -inf
      %6881 = vmax.xlane.f32.xlu0 %v6880
      %v6882 = vpop.xlane.xlu0 %6881
      %v6883 = vsel %vm1518, %v6871, -inf
      %6884 = vmax.xlane.f32.xlu0 %v6883
      %v6885 = vpop.xlane.xlu0 %6884
      %v6886 = vsub.f32 %v6860, %v6876
      %v6887 = vsub.f32 %v6863, %v6879
      %v6888 = vsub.f32 %v6868, %v6882
      %v6889 = vsub.f32 %v6871, %v6885
      %v6890 = vmul.f32 %v6886, 1.442695
      %v6891 = vpow.pop %v6890
      %v6892 = vmul.f32 %v6887, 1.442695
      %v6893 = vpow.pop %v6892
      %v6894 = vmul.f32 %v6888, 1.442695
      %v6895 = vpow.pop %v6894
      %v6896 = vmul.f32 %v6889, 1.442695
      %v6897 = vpow.pop %v6896
      %v6898 = vsel %vm1518, %v6891, 0.0
      %6899 = vadd.xlane.f32.xlu0 %v6898
      %v6900 = vpop.xlane.xlu0 %6899
      %v6901 = vsel %vm1518, %v6893, 0.0
      %6902 = vadd.xlane.f32.xlu0 %v6901
      %v6903 = vpop.xlane.xlu0 %6902
      %v6904 = vsel %vm1518, %v6895, 0.0
      %6905 = vadd.xlane.f32.xlu0 %v6904
      %v6906 = vpop.xlane.xlu0 %6905
      %v6907 = vsel %vm1518, %v6897, 0.0
      %6908 = vadd.xlane.f32.xlu0 %v6907
      %v6909 = vpop.xlane.xlu0 %6908
      %v6910 = vrcp.pop %v6900
      %v6911 = vrcp.pop %v6903
      %v6912 = vrcp.pop %v6906
      %v6913 = vrcp.pop %v6909
      %v6914 = vmul.f32 %v6891, %v6910
      %v6915 = vmul.f32 %v6893, %v6911
      %v6916 = vmul.f32 %v6895, %v6912
      %v6917 = vmul.f32 %v6897, %v6913
      %v6918 = vpack.c.bf16 %v6915, %v6914
      %v6919 = vpack.c.bf16 %v6917, %v6916
      %6920 = vrot.lane.b32.xlu0 %v6653, 64
      %v6921 = vpop.permute.xlu0 %6920
      %6922 = vrot.lane.b32.xlu0 %v6654, 64
      %v6923 = vpop.permute.xlu0 %6922
      %v6927 = vsel %vm1518, %v6918, 0
      %v6930 = vsel %vm1518, %v6919, 0
      %6932 = vmatprep.subr.bf16.mxu0 0
      %6933 = vmatpush1.bf16.msra.mxu0 0
      %6934 = vmatprep.subr.bf16.mxu0 0
      %6935 = vmatpush1.bf16.msra.mxu0 0
      %6936 = vmatprep.subr.bf16.mxu0 0
      %6937 = vmatpush1.bf16.msra.mxu0 0
      %6938 = vmatprep.subr.bf16.mxu0 0
      %6939 = vmatpush1.bf16.msra.mxu0 0
      %6940 = vmatprep.subr.bf16.mxu0 0
      %6941 = vmatpush1.bf16.msra.mxu0 0
      %6942 = vmatprep.subr.bf16.mxu0 0
      %6943 = vmatpush1.bf16.msra.mxu0 0
      %6944 = vmatprep.subr.bf16.mxu0 0
      %6945 = vmatpush1.bf16.msra.mxu0 %v6923
      %6946 = vmatprep.subr.bf16.mxu0 0
      %6947 = vmatpush1.bf16.msra.mxu0 %v6921
      %6948 = vmatprep.subr.bf16.mxu0 0
      %6949 = vmatpush2.bf16.msra.mxu0 0
      %6950 = vmatprep.subr.bf16.mxu0 0
      %6951 = vmatpush2.bf16.msra.mxu0 0
      %6952 = vmatprep.subr.bf16.mxu0 0
      %6953 = vmatpush2.bf16.msra.mxu0 0
      %6954 = vmatprep.subr.bf16.mxu0 0
      %6955 = vmatpush2.bf16.msra.mxu0 0
      %6956 = vmatprep.subr.bf16.mxu0 0
      %6957 = vmatpush2.bf16.msra.mxu0 0
      %6958 = vmatprep.subr.bf16.mxu0 0
      %6959 = vmatpush2.bf16.msra.mxu0 0
      %6960 = vmatprep.subr.bf16.mxu0 0
      %6961 = vmatpush2.bf16.msra.mxu0 0
      %6962 = vmatprep.subr.bf16.mxu0 0
      %6963 = vmatpush2.bf16.msra.mxu0 0
      %6964 = vmatprep.mubr.bf16.mxu0 0
      %6965 = vmatmul.mubr.bf16.gmra.mxu0 %v6927
      %v6966 = vpop.f32.mrf.mxu0
      %v6967 = vadd.f32 0.0, %v6966
      %v6968 = vpop.f32.mrf.mxu0
      %v6969 = vpop.f32.mrf.mxu0
      %v6970 = vadd.f32 0.0, %v6969
      %v6971 = vpop.f32.mrf.mxu0
      %6972 = vmatprep.mubr.bf16.mxu0 0
      %6973 = vmatmul.mubr.bf16.gmra.mxu0 %v6930
      %v6974 = vpop.f32.mrf.mxu0
      %v6975 = vadd.f32 0.0, %v6974
      %v6976 = vpop.f32.mrf.mxu0
      %v6977 = vpop.f32.mrf.mxu0
      %v6978 = vadd.f32 0.0, %v6977
      %v6979 = vpop.f32.mrf.mxu0
      %6980 = vdwg.mxu0
      %v6981 = vpack.c.bf16 %v6970, %v6967
      %v6982 = vpack.c.bf16 %v6978, %v6975
      %v6983 = vld [vmem:[%s6 + $0x1e0] sm:$0xf]
      %v6984 = vld [vmem:[%s6 + $0x1e4] sm:$0xf]
      %v6985 = vld [vmem:[%s6 + $0x1e8] sm:$0xf]
      %v6986 = vld [vmem:[%s6 + $0x1ec] sm:$0xf]
      %v6987 = vld [vmem:[%s6 + $0x1f0] sm:$0xf]
      %v6988 = vld [vmem:[%s6 + $0x1f4] sm:$0xf]
      %v6989 = vld [vmem:[%s6 + $0x1f8] sm:$0xf]
      %v6990 = vld [vmem:[%s6 + $0x1fc] sm:$0xf]
      %v6999 = vunpack.c.l.b16 %v6983
      %v7000 = vunpack.c.l.b16 %v6984
      %v7001 = vunpack.c.l.b16 %v6985
      %v7002 = vunpack.c.l.b16 %v6986
      %v7003 = vunpack.c.l.b16 %v6987
      %v7004 = vunpack.c.l.b16 %v6988
      %v7005 = vunpack.c.l.b16 %v6989
      %v7006 = vunpack.c.l.b16 %v6990
      %v7007 = vpack.c.b16 %v7000, %v6999
      %v7008 = vpack.c.b16 %v7002, %v7001
      %v7009 = vpack.c.b16 %v7004, %v7003
      %v7010 = vpack.c.b16 %v7006, %v7005
      %v7016 = vsel %vm497, %v6981, 0
      %v7019 = vsel %vm497, %v6982, 0
      %7021 = vmatprep.subr.bf16.mxu0 0
      %7022 = vmatpush1.bf16.msra.mxu0 0
      %7023 = vmatprep.subr.bf16.mxu0 0
      %7024 = vmatpush1.bf16.msra.mxu0 0
      %7025 = vmatprep.subr.bf16.mxu0 0
      %7026 = vmatpush1.bf16.msra.mxu0 0
      %7027 = vmatprep.subr.bf16.mxu0 0
      %7028 = vmatpush1.bf16.msra.mxu0 0
      %7029 = vmatprep.subr.bf16.mxu0 0
      %7030 = vmatpush1.bf16.msra.mxu0 %v7010
      %7031 = vmatprep.subr.bf16.mxu0 0
      %7032 = vmatpush1.bf16.msra.mxu0 %v7009
      %7033 = vmatprep.subr.bf16.mxu0 0
      %7034 = vmatpush1.bf16.msra.mxu0 %v7008
      %7035 = vmatprep.subr.bf16.mxu0 0
      %7036 = vmatpush1.bf16.msra.mxu0 %v7007
      %7037 = vmatprep.subr.bf16.mxu0 0
      %7038 = vmatpush2.bf16.msra.mxu0 0
      %7039 = vmatprep.subr.bf16.mxu0 0
      %7040 = vmatpush2.bf16.msra.mxu0 0
      %7041 = vmatprep.subr.bf16.mxu0 0
      %7042 = vmatpush2.bf16.msra.mxu0 0
      %7043 = vmatprep.subr.bf16.mxu0 0
      %7044 = vmatpush2.bf16.msra.mxu0 0
      %7045 = vmatprep.subr.bf16.mxu0 0
      %7046 = vmatpush2.bf16.msra.mxu0 0
      %7047 = vmatprep.subr.bf16.mxu0 0
      %7048 = vmatpush2.bf16.msra.mxu0 0
      %7049 = vmatprep.subr.bf16.mxu0 0
      %7050 = vmatpush2.bf16.msra.mxu0 0
      %7051 = vmatprep.subr.bf16.mxu0 0
      %7052 = vmatpush2.bf16.msra.mxu0 0
      %7053 = vmatprep.mubr.bf16.mxu0 0
      %7054 = vmatmul.mubr.bf16.gmra.mxu0 %v7016
      %v7055 = vpop.f32.mrf.mxu0
      %v7056 = vadd.f32 0.0, %v7055
      %v7057 = vpop.f32.mrf.mxu0
      %v7058 = vpop.f32.mrf.mxu0
      %v7059 = vadd.f32 0.0, %v7058
      %v7060 = vpop.f32.mrf.mxu0
      %7061 = vmatprep.mubr.bf16.mxu0 0
      %7062 = vmatmul.mubr.bf16.gmra.mxu0 %v7019
      %v7063 = vpop.f32.mrf.mxu0
      %v7064 = vadd.f32 0.0, %v7063
      %v7065 = vpop.f32.mrf.mxu0
      %v7066 = vpop.f32.mrf.mxu0
      %v7067 = vadd.f32 0.0, %v7066
      %v7068 = vpop.f32.mrf.mxu0
      %7069 = vdwg.mxu0
      %v7070 = vadd.f32 %v6801, %v7056
      %v7071 = vadd.f32 %v6802, %v7059
      %v7072 = vadd.f32 %v6803, %v7064
      %v7073 = vadd.f32 %v6804, %v7067
      %v7074 = vlaneseq
      %v7075 = vshrl.u32 %v7074, 7
      %v7076 = vsub.s32 4, %v7075
      %v7077 = vrot.slane %v311, %v7076
      %v7078 = vadd.f32 %v7070, %v7077
      %v7079 = vadd.f32 %v7071, %v7077
      %v7080 = vadd.f32 %v7072, %v7077
      %v7081 = vadd.f32 %v7073, %v7077
      %v7082 = vsel %vm497, %v7078, 0.0
      %7083 = vadd.xlane.f32.xlu0 %v7082
      %v7084 = vpop.xlane.xlu0 %7083
      %v7085 = vsel %vm497, %v7079, 0.0
      %7086 = vadd.xlane.f32.xlu0 %v7085
      %v7087 = vpop.xlane.xlu0 %7086
      %v7088 = vsel %vm497, %v7080, 0.0
      %7089 = vadd.xlane.f32.xlu0 %v7088
      %v7090 = vpop.xlane.xlu0 %7089
      %v7091 = vsel %vm497, %v7081, 0.0
      %7092 = vadd.xlane.f32.xlu0 %v7091
      %v7093 = vpop.xlane.xlu0 %7092
      %v7094 = vmul.f32 %v7084, %v510
      %v7095 = vmul.f32 %v7087, %v510
      %v7096 = vmul.f32 %v7090, %v510
      %v7097 = vmul.f32 %v7093, %v510
      %v7098 = vsub.f32 %v7078, %v7094
      %v7099 = vsub.f32 %v7079, %v7095
      %v7100 = vsub.f32 %v7080, %v7096
      %v7101 = vsub.f32 %v7081, %v7097
      %v7102 = vmul.f32 %v7098, %v7098
      %v7103 = vmul.f32 %v7099, %v7099
      %v7104 = vmul.f32 %v7100, %v7100
      %v7105 = vmul.f32 %v7101, %v7101
      %v7106 = vsel %vm497, %v7102, 0.0
      %7107 = vadd.xlane.f32.xlu0 %v7106
      %v7108 = vpop.xlane.xlu0 %7107
      %v7109 = vsel %vm497, %v7103, 0.0
      %7110 = vadd.xlane.f32.xlu0 %v7109
      %v7111 = vpop.xlane.xlu0 %7110
      %v7112 = vsel %vm497, %v7104, 0.0
      %7113 = vadd.xlane.f32.xlu0 %v7112
      %v7114 = vpop.xlane.xlu0 %7113
      %v7115 = vsel %vm497, %v7105, 0.0
      %7116 = vadd.xlane.f32.xlu0 %v7115
      %v7117 = vpop.xlane.xlu0 %7116
      %v7118 = vmul.f32 %v7108, %v510
      %v7119 = vmul.f32 %v7111, %v510
      %v7120 = vmul.f32 %v7114, %v510
      %v7121 = vmul.f32 %v7117, %v510
      %v7122 = vadd.f32 %v7118, 1e-05
      %v7123 = vadd.f32 %v7119, 1e-05
      %v7124 = vadd.f32 %v7120, 1e-05
      %v7125 = vadd.f32 %v7121, 1e-05
      %v7126 = vrsqrt.pop %v7122
      %v7127 = vrsqrt.pop %v7123
      %v7128 = vrsqrt.pop %v7124
      %v7129 = vrsqrt.pop %v7125
      %v7130 = vmul.f32 %v7098, %v7126
      %v7131 = vmul.f32 %v7099, %v7127
      %v7132 = vmul.f32 %v7100, %v7128
      %v7133 = vmul.f32 %v7101, %v7129
      %v7134 = vlaneseq
      %v7135 = vshrl.u32 %v7134, 7
      %v7136 = vsub.s32 5, %v7135
      %v7137 = vrot.slane %v311, %v7136
      %v7138 = vmul.f32 %v7130, %v7137
      %v7139 = vmul.f32 %v7131, %v7137
      %v7140 = vmul.f32 %v7132, %v7137
      %v7141 = vmul.f32 %v7133, %v7137
      %v7142 = vlaneseq
      %v7143 = vshrl.u32 %v7142, 7
      %v7144 = vsub.s32 6, %v7143
      %v7145 = vrot.slane %v311, %v7144
      %v7146 = vadd.f32 %v7138, %v7145
      %v7147 = vadd.f32 %v7139, %v7145
      %v7148 = vadd.f32 %v7140, %v7145
      %v7149 = vadd.f32 %v7141, %v7145
      %7150 = vst.msk [vmem:[%s307] sm:$0xff] %vm497, %v7146
      %7151 = vst.msk [vmem:[%s307 + $0x8] sm:$0xff] %vm497, %v7147
      %7152 = vst.msk [vmem:[%s307 + $0x10] sm:$0xff] %vm497, %v7148
      %7153 = vst.msk [vmem:[%s307 + $0x18] sm:$0xff] %vm497, %v7149
      %s7154 = smul.u32 4, %s19
      %p7155 = scmp.lt.s32.totalorder %s7154, 7
      %s7156 = scalar_select %p7155, %s7154, 7
      %s7157 = smul.addr %s7156, 8
      %s7158 = scalar_lea.vmem %s8, %s7157
      // Predicated region
      $region53: #{vit_forward.2} parent=51 // pred_check
        %p7159 = pneg %p210
      $region54: #{vit_forward.2} parent=51 // pred_check_branch
        %7161 = sbr.rel (%p7159) target = $region56
      $region55: #{vit_forward.2} parent=51 // pred_region
        %s7162 = smul.u32 4, %s19
      $region56: #{vit_forward.2} parent=51 // pred_fallthru
        _
    $region52: #{vit_forward.2} parent=5 // pred_fallthru
      _
    %p7163 = scmp.le.s32.totalorder 2, %s14
    // Predicated region
    $region57: #{vit_forward.2} parent=5 // pred_check
      %p7164 = pneg %p7163
    $region58: #{vit_forward.2} parent=5 // pred_check_branch
      %7166 = sbr.rel (%p7164) target = $region60
    $region59: #{vit_forward.2} parent=5 // pred_region
      %s7167 = ssub.s32 %s14, 2
      // Predicated region
      $region61: #{vit_forward.2} parent=59 // pred_check
        %p7168 = pneg %p216
      $region62: #{vit_forward.2} parent=59 // pred_check_branch
        %7170 = sbr.rel (%p7168) target = $region64
      $region63: #{vit_forward.2} parent=59 // pred_region
        %s7171 = smul.u32 4, %s20
        %p7172 = scmp.lt.s32.totalorder %s7171, 7
        %s7173 = scalar_select %p7172, %s7171, 7
        %s7174 = smul.addr %s7173, 8
        %s7175 = scalar_lea.vmem %s8, %s7174
      $region64: #{vit_forward.2} parent=59 // pred_fallthru
        _
    $region60: #{vit_forward.2} parent=5 // pred_fallthru
      _
  $region6: #{vit_forward.2} parent=0 // loop_footer
    %s18 = sadd.s32 1, %s14
  $region7: #{vit_forward.2} parent=0 // loop_footer_branch
    %13 = sbr.rel target = $region3
  $region8: #{vit_forward.2} parent=0 // loop_exit
    _

</llo_original>
